<compile_context>
chip_gen: v7x
topology: tpu7x:2x2x1
jax: 0.10.0
libtpu: 0.0.40
codegen_flags: <defaults>
</compile_context>

<pallas_src>
import functools
import math

import jax
import jax.numpy as jnp
from jax.experimental import pallas as pl
from jax.experimental.pallas import tpu as pltpu


# ----------------------------------------------------------------------------
# Pallas kernels
# ----------------------------------------------------------------------------
def conv_bn_relu_pool_kernel(x_ref, w_ref, scale_ref, shift_ref, o_ref, *,
                             ho_out, taps=5):
    """Fused conv(5x5, pad=2) + BN + ReLU + 2x2 maxpool for one sample.

    x_ref:     (1, 2, Hh, Wp*Cin)  bf16 H-polyphase, zero-padded input
                                   x[0, p, u, j*Cin+ci] = Xpad[2*u+p, j, ci]
    w_ref:     (10, Wp*Cin, Wo*Cout) bf16 Toeplitz conv weights, index kh*2+dx
    scale_ref: (1, Wo*Cout) f32     folded BN scale, tiled over wo
    shift_ref: (1, Wo*Cout) f32     folded BN shift (incl. conv bias), tiled
    o_ref:     (1, Ho, Wo*Cout)     pooled output, lane-dense minor axis
    """
    pooled = None
    for dy in range(2):          # pool row offset
        for dx in range(2):      # pool col offset (baked into the weight)
            acc = None
            for kh in range(taps):
                r = dy + kh                       # padded input row offset
                lhs = x_ref[0, r % 2, (r // 2):(r // 2) + ho_out, :]
                contrib = jnp.dot(lhs, w_ref[kh * 2 + dx],
                                  preferred_element_type=jnp.float32)
                acc = contrib if acc is None else acc + contrib
            y = jnp.maximum(acc * scale_ref[...] + shift_ref[...], 0.0)
            pooled = y if pooled is None else jnp.maximum(pooled, y)
    o_ref[0] = pooled.astype(o_ref.dtype)


def fc_logsoftmax_kernel(x_ref, w_ref, b_ref, o_ref):
    """Fused Linear + log_softmax(dim=1).

    x_ref: (TM, F)   flattened features (ho, wo, c order; weight pre-permuted)
    w_ref: (F, 10)   fc weight (row-permuted, transposed torch layout)
    b_ref: (1, 10)   fc bias
    o_ref: (TM, 10)  log-probabilities
    """
    logits = jnp.dot(x_ref[...], w_ref[...],
                     preferred_element_type=jnp.float32) + b_ref[...]
    m = jnp.max(logits, axis=-1, keepdims=True)
    lse = jnp.log(jnp.sum(jnp.exp(logits - m), axis=-1, keepdims=True)) + m
    o_ref[...] = logits - lse


_COMPILER_PARAMS = pltpu.CompilerParams(
    dimension_semantics=("parallel",),
    vmem_limit_bytes=32 * 1024 * 1024,
)


# ----------------------------------------------------------------------------
# Wrappers
# ----------------------------------------------------------------------------
def conv_block(x_hwc, b_weights, scale_t, shift_t, *, c_in, c_out, out_dtype):
    """x_hwc: (N, H, W*c_in) activation. Returns (N, H//2, (W//2)*c_out)."""
    n, h, wc = x_hwc.shape
    w = wc // c_in
    ho, wo = h // 2, w // 2
    wp = w + 4
    hh = (h + 4) // 2
    # Pad + H-polyphase split: cheap XLA ops on the *unexpanded* activation.
    xp = jnp.pad(x_hwc.astype(jnp.bfloat16),
                 ((0, 0), (2, 2), (2 * c_in, 2 * c_in)))
    xe = xp.reshape(n, hh, 2, wp * c_in).transpose(0, 2, 1, 3)  # (N,2,Hh,Wp*Cin)

    kern = functools.partial(conv_bn_relu_pool_kernel, ho_out=ho)
    return pl.pallas_call(
        kern,
        grid=(n,),
        in_specs=[
            pl.BlockSpec((1, 2, hh, wp * c_in), lambda i: (i, 0, 0, 0)),
            pl.BlockSpec((10, wp * c_in, wo * c_out), lambda i: (0, 0, 0)),
            pl.BlockSpec((1, wo * c_out), lambda i: (0, 0)),
            pl.BlockSpec((1, wo * c_out), lambda i: (0, 0)),
        ],
        out_specs=pl.BlockSpec((1, ho, wo * c_out), lambda i: (i, 0, 0)),
        out_shape=jax.ShapeDtypeStruct((n, ho, wo * c_out), out_dtype),
        compiler_params=_COMPILER_PARAMS,
    )(xe, b_weights, scale_t, shift_t)


def fc_logsoftmax(x_flat, w_fc, b_fc, *, block_rows=8):
    n, f = x_flat.shape
    n_pad = ((n + block_rows - 1) // block_rows) * block_rows
    if n_pad != n:
        x_flat = jnp.pad(x_flat, ((0, n_pad - n), (0, 0)))
    out = pl.pallas_call(
        fc_logsoftmax_kernel,
        grid=(n_pad // block_rows,),
        in_specs=[
            pl.BlockSpec((block_rows, f), lambda i: (i, 0)),
            pl.BlockSpec((f, 10), lambda i: (0, 0)),
            pl.BlockSpec((1, 10), lambda i: (0, 0)),
        ],
        out_specs=pl.BlockSpec((block_rows, 10), lambda i: (i, 0)),
        out_shape=jax.ShapeDtypeStruct((n_pad, 10), jnp.float32),
        compiler_params=_COMPILER_PARAMS,
    )(x_flat, w_fc, b_fc)
    return out[:n]


# ----------------------------------------------------------------------------
# Parameter construction (deterministic, mirroring nn.Module __init__ shapes)
# ----------------------------------------------------------------------------
def _conv_params(key, c_in, c_out, w_spatial, ksize=5, pad=2, eps=1e-5):
    k_w, k_b = jax.random.split(key)
    fan_in = c_in * ksize * ksize
    bound = 1.0 / math.sqrt(fan_in)
    w = jax.random.uniform(k_w, (c_out, c_in, ksize, ksize),
                           minval=-bound, maxval=bound, dtype=jnp.float32)
    b = jax.random.uniform(k_b, (c_out,),
                           minval=-bound, maxval=bound, dtype=jnp.float32)

    wp = w_spatial + 2 * pad
    wo = w_spatial // 2
    w_t = jnp.transpose(w, (2, 3, 1, 0))              # (kh, kw, ci, co)
    j_idx = jnp.arange(wp)
    wo_idx = jnp.arange(wo)
    kw_idx = jnp.arange(ksize)
    dx_idx = jnp.arange(2)
    # sel[dx, j, wo, kw] = 1 iff j == 2*wo + dx + kw  (Toeplitz selector)
    sel = (j_idx[None, :, None, None]
           == 2 * wo_idx[None, None, :, None]
           + kw_idx[None, None, None, :]
           + dx_idx[:, None, None, None]).astype(jnp.float32)
    # B[kh, dx, j, ci, wo, co] = sum_kw sel * w_t
    b_mat = jnp.einsum('djwk,hkio->hdjiwo', sel, w_t)
    b_mat = b_mat.reshape(2 * ksize, wp * c_in, wo * c_out).astype(jnp.bfloat16)

    # BatchNorm2d default eval-mode stats: gamma=1, beta=0, mean=0, var=1.
    gamma = jnp.ones((c_out,), jnp.float32)
    beta = jnp.zeros((c_out,), jnp.float32)
    mean = jnp.zeros((c_out,), jnp.float32)
    var = jnp.ones((c_out,), jnp.float32)
    scale = gamma / jnp.sqrt(var + eps)
    shift = (b - mean) * scale + beta
    scale_t = jnp.tile(scale, wo).reshape(1, wo * c_out)
    shift_t = jnp.tile(shift, wo).reshape(1, wo * c_out)
    return b_mat, scale_t, shift_t


def _fc_params(key, c, h, w, f_out=10):
    f_in = c * h * w
    k_w, k_b = jax.random.split(key)
    bound = 1.0 / math.sqrt(f_in)
    wt = jax.random.uniform(k_w, (f_out, f_in),
                            minval=-bound, maxval=bound, dtype=jnp.float32)
    b = jax.random.uniform(k_b, (f_out,),
                           minval=-bound, maxval=bound, dtype=jnp.float32)
    # torch flattens NCHW -> (c, h, w); our features are (h, w, c): permute
    # the rows of the weight host-side so no transpose is needed at runtime.
    w_mat = wt.reshape(f_out, c, h, w).transpose(2, 3, 1, 0).reshape(f_in, f_out)
    return w_mat, b.reshape(1, f_out)


# ----------------------------------------------------------------------------
# Forward pass
# ----------------------------------------------------------------------------
@jax.jit
def net_fashionmnist_forward(x_nchw, params):
    (b1, s1, sh1), (b2, s2, sh2), (w_fc, b_fc) = params
    n = x_nchw.shape[0]
    x = x_nchw.reshape(n, 28, 28)                              # C_in = 1
    out1 = conv_block(x, b1, s1, sh1, c_in=1, c_out=16,
                      out_dtype=jnp.bfloat16)                  # (N, 14, 224)
    out2 = conv_block(out1, b2, s2, sh2, c_in=16, c_out=32,
                      out_dtype=jnp.float32)                   # (N, 7, 224)
    feat = out2.reshape(n, 7 * 7 * 32)                         # (ho, wo, c)
    return fc_logsoftmax(feat, w_fc, b_fc)                     # (N, 10)


if __name__ == "__main__":
    root = jax.random.PRNGKey(0)
    k_x, k1, k2, k3 = jax.random.split(root, 4)

    # FashionMNIST-shaped input: 28x28 required by the fc layer (7*7*32).
    batch = 2
    x = jax.random.normal(k_x, (batch, 1, 28, 28), dtype=jnp.float32)

    params = (
        _conv_params(k1, c_in=1, c_out=16, w_spatial=28),
        _conv_params(k2, c_in=16, c_out=32, w_spatial=14),
        _fc_params(k3, c=32, h=7, w=7, f_out=10),
    )

    logp = net_fashionmnist_forward(x, params)
    jax.block_until_ready(logp)

    assert logp.shape == (batch, 10)
    # log_softmax rows must exponentiate-and-sum to ~1
    assert jnp.allclose(jnp.exp(logp).sum(axis=1), 1.0, atol=1e-4)
    print("KERNEL_OK")
</pallas_src>

<mosaic_0001>
module attributes {stable_mosaic.version = 11 : i64} {
  func.func @conv_bn_relu_pool_kernel(%arg0: i32, %arg1: memref<1x2x16x32xbf16, #tpu.memory_space<vmem>>, %arg2: memref<10x32x224xbf16, #tpu.memory_space<vmem>>, %arg3: memref<1x224xf32, #tpu.memory_space<vmem>>, %arg4: memref<1x224xf32, #tpu.memory_space<vmem>>, %arg5: memref<1x14x224xbf16, #tpu.memory_space<vmem>>) attributes {dimension_semantics = [#tpu.dimension_semantics<parallel>], iteration_bounds = array<i64: 2>, scalar_prefetch = 0 : i64, scratch_operands = 0 : i64, tpu.core_type = #tpu.core_type<tc>, window_params = [{transform_indices = @transform_0, window_bounds = array<i64: 1, 2, 16, 32>}, {pipeline_mode = #tpu.pipeline_mode<synchronous>, transform_indices = @transform_1, window_bounds = array<i64: 10, 32, 224>}, {pipeline_mode = #tpu.pipeline_mode<synchronous>, transform_indices = @transform_2, window_bounds = array<i64: 1, 224>}, {pipeline_mode = #tpu.pipeline_mode<synchronous>, transform_indices = @transform_3, window_bounds = array<i64: 1, 224>}, {transform_indices = @transform_4, window_bounds = array<i64: 1, 14, 224>}]} {
    %c0 = arith.constant 0 : index
    %c0_0 = arith.constant 0 : index
    %c0_1 = arith.constant 0 : index
    %c0_2 = arith.constant 0 : index
    %0 = vector.load %arg1[%c0, %c0_0, %c0_1, %c0_2] : memref<1x2x16x32xbf16, #tpu.memory_space<vmem>>, vector<1x1x14x32xbf16>
    %1 = vector.shape_cast %0 : vector<1x1x14x32xbf16> to vector<14x32xbf16>
    %c0_3 = arith.constant 0 : index
    %c0_4 = arith.constant 0 : index
    %c0_5 = arith.constant 0 : index
    %2 = vector.load %arg2[%c0_3, %c0_4, %c0_5] : memref<10x32x224xbf16, #tpu.memory_space<vmem>>, vector<1x32x224xbf16>
    %3 = vector.shape_cast %2 : vector<1x32x224xbf16> to vector<32x224xbf16>
    %cst = arith.constant dense<0.000000e+00> : vector<14x224xf32>
    %4 = tpu.matmul %1, %3, %cst {dimension_numbers = #tpu.dot_dimension_numbers<[1], [0], [0], [1], [0, 0, 1, 1], [], []>} : vector<14x32xbf16>, vector<32x224xbf16>, vector<14x224xf32> -> vector<14x224xf32>
    %c0_6 = arith.constant 0 : index
    %c1 = arith.constant 1 : index
    %c0_7 = arith.constant 0 : index
    %c0_8 = arith.constant 0 : index
    %5 = vector.load %arg1[%c0_6, %c1, %c0_7, %c0_8] : memref<1x2x16x32xbf16, #tpu.memory_space<vmem>>, vector<1x1x14x32xbf16>
    %6 = vector.shape_cast %5 : vector<1x1x14x32xbf16> to vector<14x32xbf16>
    %c2 = arith.constant 2 : index
    %c0_9 = arith.constant 0 : index
    %c0_10 = arith.constant 0 : index
    %7 = vector.load %arg2[%c2, %c0_9, %c0_10] : memref<10x32x224xbf16, #tpu.memory_space<vmem>>, vector<1x32x224xbf16>
    %8 = vector.shape_cast %7 : vector<1x32x224xbf16> to vector<32x224xbf16>
    %cst_11 = arith.constant dense<0.000000e+00> : vector<14x224xf32>
    %9 = tpu.matmul %6, %8, %cst_11 {dimension_numbers = #tpu.dot_dimension_numbers<[1], [0], [0], [1], [0, 0, 1, 1], [], []>} : vector<14x32xbf16>, vector<32x224xbf16>, vector<14x224xf32> -> vector<14x224xf32>
    %10 = arith.addf %4, %9 : vector<14x224xf32>
    %c0_12 = arith.constant 0 : index
    %c0_13 = arith.constant 0 : index
    %c1_14 = arith.constant 1 : index
    %c0_15 = arith.constant 0 : index
    %11 = vector.load %arg1[%c0_12, %c0_13, %c1_14, %c0_15] : memref<1x2x16x32xbf16, #tpu.memory_space<vmem>>, vector<1x1x14x32xbf16>
    %12 = vector.shape_cast %11 : vector<1x1x14x32xbf16> to vector<14x32xbf16>
    %c4 = arith.constant 4 : index
    %c0_16 = arith.constant 0 : index
    %c0_17 = arith.constant 0 : index
    %13 = vector.load %arg2[%c4, %c0_16, %c0_17] : memref<10x32x224xbf16, #tpu.memory_space<vmem>>, vector<1x32x224xbf16>
    %14 = vector.shape_cast %13 : vector<1x32x224xbf16> to vector<32x224xbf16>
    %cst_18 = arith.constant dense<0.000000e+00> : vector<14x224xf32>
    %15 = tpu.matmul %12, %14, %cst_18 {dimension_numbers = #tpu.dot_dimension_numbers<[1], [0], [0], [1], [0, 0, 1, 1], [], []>} : vector<14x32xbf16>, vector<32x224xbf16>, vector<14x224xf32> -> vector<14x224xf32>
    %16 = arith.addf %10, %15 : vector<14x224xf32>
    %c0_19 = arith.constant 0 : index
    %c1_20 = arith.constant 1 : index
    %c1_21 = arith.constant 1 : index
    %c0_22 = arith.constant 0 : index
    %17 = vector.load %arg1[%c0_19, %c1_20, %c1_21, %c0_22] : memref<1x2x16x32xbf16, #tpu.memory_space<vmem>>, vector<1x1x14x32xbf16>
    %18 = vector.shape_cast %17 : vector<1x1x14x32xbf16> to vector<14x32xbf16>
    %c6 = arith.constant 6 : index
    %c0_23 = arith.constant 0 : index
    %c0_24 = arith.constant 0 : index
    %19 = vector.load %arg2[%c6, %c0_23, %c0_24] : memref<10x32x224xbf16, #tpu.memory_space<vmem>>, vector<1x32x224xbf16>
    %20 = vector.shape_cast %19 : vector<1x32x224xbf16> to vector<32x224xbf16>
    %cst_25 = arith.constant dense<0.000000e+00> : vector<14x224xf32>
    %21 = tpu.matmul %18, %20, %cst_25 {dimension_numbers = #tpu.dot_dimension_numbers<[1], [0], [0], [1], [0, 0, 1, 1], [], []>} : vector<14x32xbf16>, vector<32x224xbf16>, vector<14x224xf32> -> vector<14x224xf32>
    %22 = arith.addf %16, %21 : vector<14x224xf32>
    %c0_26 = arith.constant 0 : index
    %c0_27 = arith.constant 0 : index
    %c2_28 = arith.constant 2 : index
    %c0_29 = arith.constant 0 : index
    %23 = vector.load %arg1[%c0_26, %c0_27, %c2_28, %c0_29] : memref<1x2x16x32xbf16, #tpu.memory_space<vmem>>, vector<1x1x14x32xbf16>
    %24 = vector.shape_cast %23 : vector<1x1x14x32xbf16> to vector<14x32xbf16>
    %c8 = arith.constant 8 : index
    %c0_30 = arith.constant 0 : index
    %c0_31 = arith.constant 0 : index
    %25 = vector.load %arg2[%c8, %c0_30, %c0_31] : memref<10x32x224xbf16, #tpu.memory_space<vmem>>, vector<1x32x224xbf16>
    %26 = vector.shape_cast %25 : vector<1x32x224xbf16> to vector<32x224xbf16>
    %cst_32 = arith.constant dense<0.000000e+00> : vector<14x224xf32>
    %27 = tpu.matmul %24, %26, %cst_32 {dimension_numbers = #tpu.dot_dimension_numbers<[1], [0], [0], [1], [0, 0, 1, 1], [], []>} : vector<14x32xbf16>, vector<32x224xbf16>, vector<14x224xf32> -> vector<14x224xf32>
    %28 = arith.addf %22, %27 : vector<14x224xf32>
    %c0_33 = arith.constant 0 : index
    %c0_34 = arith.constant 0 : index
    %29 = vector.load %arg3[%c0_33, %c0_34] : memref<1x224xf32, #tpu.memory_space<vmem>>, vector<1x224xf32>
    %30 = vector.broadcast %29 : vector<1x224xf32> to vector<14x224xf32>
    %31 = arith.mulf %28, %30 : vector<14x224xf32>
    %c0_35 = arith.constant 0 : index
    %c0_36 = arith.constant 0 : index
    %32 = vector.load %arg4[%c0_35, %c0_36] : memref<1x224xf32, #tpu.memory_space<vmem>>, vector<1x224xf32>
    %33 = vector.broadcast %32 : vector<1x224xf32> to vector<14x224xf32>
    %34 = arith.addf %31, %33 : vector<14x224xf32>
    %cst_37 = arith.constant 0.000000e+00 : f32
    %35 = vector.broadcast %cst_37 : f32 to vector<14x224xf32>
    %36 = arith.maximumf %34, %35 : vector<14x224xf32>
    %c0_38 = arith.constant 0 : index
    %c0_39 = arith.constant 0 : index
    %c0_40 = arith.constant 0 : index
    %c0_41 = arith.constant 0 : index
    %37 = vector.load %arg1[%c0_38, %c0_39, %c0_40, %c0_41] : memref<1x2x16x32xbf16, #tpu.memory_space<vmem>>, vector<1x1x14x32xbf16>
    %38 = vector.shape_cast %37 : vector<1x1x14x32xbf16> to vector<14x32xbf16>
    %c1_42 = arith.constant 1 : index
    %c0_43 = arith.constant 0 : index
    %c0_44 = arith.constant 0 : index
    %39 = vector.load %arg2[%c1_42, %c0_43, %c0_44] : memref<10x32x224xbf16, #tpu.memory_space<vmem>>, vector<1x32x224xbf16>
    %40 = vector.shape_cast %39 : vector<1x32x224xbf16> to vector<32x224xbf16>
    %cst_45 = arith.constant dense<0.000000e+00> : vector<14x224xf32>
    %41 = tpu.matmul %38, %40, %cst_45 {dimension_numbers = #tpu.dot_dimension_numbers<[1], [0], [0], [1], [0, 0, 1, 1], [], []>} : vector<14x32xbf16>, vector<32x224xbf16>, vector<14x224xf32> -> vector<14x224xf32>
    %c0_46 = arith.constant 0 : index
    %c1_47 = arith.constant 1 : index
    %c0_48 = arith.constant 0 : index
    %c0_49 = arith.constant 0 : index
    %42 = vector.load %arg1[%c0_46, %c1_47, %c0_48, %c0_49] : memref<1x2x16x32xbf16, #tpu.memory_space<vmem>>, vector<1x1x14x32xbf16>
    %43 = vector.shape_cast %42 : vector<1x1x14x32xbf16> to vector<14x32xbf16>
    %c3 = arith.constant 3 : index
    %c0_50 = arith.constant 0 : index
    %c0_51 = arith.constant 0 : index
    %44 = vector.load %arg2[%c3, %c0_50, %c0_51] : memref<10x32x224xbf16, #tpu.memory_space<vmem>>, vector<1x32x224xbf16>
    %45 = vector.shape_cast %44 : vector<1x32x224xbf16> to vector<32x224xbf16>
    %cst_52 = arith.constant dense<0.000000e+00> : vector<14x224xf32>
    %46 = tpu.matmul %43, %45, %cst_52 {dimension_numbers = #tpu.dot_dimension_numbers<[1], [0], [0], [1], [0, 0, 1, 1], [], []>} : vector<14x32xbf16>, vector<32x224xbf16>, vector<14x224xf32> -> vector<14x224xf32>
    %47 = arith.addf %41, %46 : vector<14x224xf32>
    %c0_53 = arith.constant 0 : index
    %c0_54 = arith.constant 0 : index
    %c1_55 = arith.constant 1 : index
    %c0_56 = arith.constant 0 : index
    %48 = vector.load %arg1[%c0_53, %c0_54, %c1_55, %c0_56] : memref<1x2x16x32xbf16, #tpu.memory_space<vmem>>, vector<1x1x14x32xbf16>
    %49 = vector.shape_cast %48 : vector<1x1x14x32xbf16> to vector<14x32xbf16>
    %c5 = arith.constant 5 : index
    %c0_57 = arith.constant 0 : index
    %c0_58 = arith.constant 0 : index
    %50 = vector.load %arg2[%c5, %c0_57, %c0_58] : memref<10x32x224xbf16, #tpu.memory_space<vmem>>, vector<1x32x224xbf16>
    %51 = vector.shape_cast %50 : vector<1x32x224xbf16> to vector<32x224xbf16>
    %cst_59 = arith.constant dense<0.000000e+00> : vector<14x224xf32>
    %52 = tpu.matmul %49, %51, %cst_59 {dimension_numbers = #tpu.dot_dimension_numbers<[1], [0], [0], [1], [0, 0, 1, 1], [], []>} : vector<14x32xbf16>, vector<32x224xbf16>, vector<14x224xf32> -> vector<14x224xf32>
    %53 = arith.addf %47, %52 : vector<14x224xf32>
    %c0_60 = arith.constant 0 : index
    %c1_61 = arith.constant 1 : index
    %c1_62 = arith.constant 1 : index
    %c0_63 = arith.constant 0 : index
    %54 = vector.load %arg1[%c0_60, %c1_61, %c1_62, %c0_63] : memref<1x2x16x32xbf16, #tpu.memory_space<vmem>>, vector<1x1x14x32xbf16>
    %55 = vector.shape_cast %54 : vector<1x1x14x32xbf16> to vector<14x32xbf16>
    %c7 = arith.constant 7 : index
    %c0_64 = arith.constant 0 : index
    %c0_65 = arith.constant 0 : index
    %56 = vector.load %arg2[%c7, %c0_64, %c0_65] : memref<10x32x224xbf16, #tpu.memory_space<vmem>>, vector<1x32x224xbf16>
    %57 = vector.shape_cast %56 : vector<1x32x224xbf16> to vector<32x224xbf16>
    %cst_66 = arith.constant dense<0.000000e+00> : vector<14x224xf32>
    %58 = tpu.matmul %55, %57, %cst_66 {dimension_numbers = #tpu.dot_dimension_numbers<[1], [0], [0], [1], [0, 0, 1, 1], [], []>} : vector<14x32xbf16>, vector<32x224xbf16>, vector<14x224xf32> -> vector<14x224xf32>
    %59 = arith.addf %53, %58 : vector<14x224xf32>
    %c0_67 = arith.constant 0 : index
    %c0_68 = arith.constant 0 : index
    %c2_69 = arith.constant 2 : index
    %c0_70 = arith.constant 0 : index
    %60 = vector.load %arg1[%c0_67, %c0_68, %c2_69, %c0_70] : memref<1x2x16x32xbf16, #tpu.memory_space<vmem>>, vector<1x1x14x32xbf16>
    %61 = vector.shape_cast %60 : vector<1x1x14x32xbf16> to vector<14x32xbf16>
    %c9 = arith.constant 9 : index
    %c0_71 = arith.constant 0 : index
    %c0_72 = arith.constant 0 : index
    %62 = vector.load %arg2[%c9, %c0_71, %c0_72] : memref<10x32x224xbf16, #tpu.memory_space<vmem>>, vector<1x32x224xbf16>
    %63 = vector.shape_cast %62 : vector<1x32x224xbf16> to vector<32x224xbf16>
    %cst_73 = arith.constant dense<0.000000e+00> : vector<14x224xf32>
    %64 = tpu.matmul %61, %63, %cst_73 {dimension_numbers = #tpu.dot_dimension_numbers<[1], [0], [0], [1], [0, 0, 1, 1], [], []>} : vector<14x32xbf16>, vector<32x224xbf16>, vector<14x224xf32> -> vector<14x224xf32>
    %65 = arith.addf %59, %64 : vector<14x224xf32>
    %c0_74 = arith.constant 0 : index
    %c0_75 = arith.constant 0 : index
    %66 = vector.load %arg3[%c0_74, %c0_75] : memref<1x224xf32, #tpu.memory_space<vmem>>, vector<1x224xf32>
    %67 = vector.broadcast %66 : vector<1x224xf32> to vector<14x224xf32>
    %68 = arith.mulf %65, %67 : vector<14x224xf32>
    %c0_76 = arith.constant 0 : index
    %c0_77 = arith.constant 0 : index
    %69 = vector.load %arg4[%c0_76, %c0_77] : memref<1x224xf32, #tpu.memory_space<vmem>>, vector<1x224xf32>
    %70 = vector.broadcast %69 : vector<1x224xf32> to vector<14x224xf32>
    %71 = arith.addf %68, %70 : vector<14x224xf32>
    %cst_78 = arith.constant 0.000000e+00 : f32
    %72 = vector.broadcast %cst_78 : f32 to vector<14x224xf32>
    %73 = arith.maximumf %71, %72 : vector<14x224xf32>
    %74 = arith.maximumf %36, %73 : vector<14x224xf32>
    %c0_79 = arith.constant 0 : index
    %c1_80 = arith.constant 1 : index
    %c0_81 = arith.constant 0 : index
    %c0_82 = arith.constant 0 : index
    %75 = vector.load %arg1[%c0_79, %c1_80, %c0_81, %c0_82] : memref<1x2x16x32xbf16, #tpu.memory_space<vmem>>, vector<1x1x14x32xbf16>
    %76 = vector.shape_cast %75 : vector<1x1x14x32xbf16> to vector<14x32xbf16>
    %c0_83 = arith.constant 0 : index
    %c0_84 = arith.constant 0 : index
    %c0_85 = arith.constant 0 : index
    %77 = vector.load %arg2[%c0_83, %c0_84, %c0_85] : memref<10x32x224xbf16, #tpu.memory_space<vmem>>, vector<1x32x224xbf16>
    %78 = vector.shape_cast %77 : vector<1x32x224xbf16> to vector<32x224xbf16>
    %cst_86 = arith.constant dense<0.000000e+00> : vector<14x224xf32>
    %79 = tpu.matmul %76, %78, %cst_86 {dimension_numbers = #tpu.dot_dimension_numbers<[1], [0], [0], [1], [0, 0, 1, 1], [], []>} : vector<14x32xbf16>, vector<32x224xbf16>, vector<14x224xf32> -> vector<14x224xf32>
    %c0_87 = arith.constant 0 : index
    %c0_88 = arith.constant 0 : index
    %c1_89 = arith.constant 1 : index
    %c0_90 = arith.constant 0 : index
    %80 = vector.load %arg1[%c0_87, %c0_88, %c1_89, %c0_90] : memref<1x2x16x32xbf16, #tpu.memory_space<vmem>>, vector<1x1x14x32xbf16>
    %81 = vector.shape_cast %80 : vector<1x1x14x32xbf16> to vector<14x32xbf16>
    %c2_91 = arith.constant 2 : index
    %c0_92 = arith.constant 0 : index
    %c0_93 = arith.constant 0 : index
    %82 = vector.load %arg2[%c2_91, %c0_92, %c0_93] : memref<10x32x224xbf16, #tpu.memory_space<vmem>>, vector<1x32x224xbf16>
    %83 = vector.shape_cast %82 : vector<1x32x224xbf16> to vector<32x224xbf16>
    %cst_94 = arith.constant dense<0.000000e+00> : vector<14x224xf32>
    %84 = tpu.matmul %81, %83, %cst_94 {dimension_numbers = #tpu.dot_dimension_numbers<[1], [0], [0], [1], [0, 0, 1, 1], [], []>} : vector<14x32xbf16>, vector<32x224xbf16>, vector<14x224xf32> -> vector<14x224xf32>
    %85 = arith.addf %79, %84 : vector<14x224xf32>
    %c0_95 = arith.constant 0 : index
    %c1_96 = arith.constant 1 : index
    %c1_97 = arith.constant 1 : index
    %c0_98 = arith.constant 0 : index
    %86 = vector.load %arg1[%c0_95, %c1_96, %c1_97, %c0_98] : memref<1x2x16x32xbf16, #tpu.memory_space<vmem>>, vector<1x1x14x32xbf16>
    %87 = vector.shape_cast %86 : vector<1x1x14x32xbf16> to vector<14x32xbf16>
    %c4_99 = arith.constant 4 : index
    %c0_100 = arith.constant 0 : index
    %c0_101 = arith.constant 0 : index
    %88 = vector.load %arg2[%c4_99, %c0_100, %c0_101] : memref<10x32x224xbf16, #tpu.memory_space<vmem>>, vector<1x32x224xbf16>
    %89 = vector.shape_cast %88 : vector<1x32x224xbf16> to vector<32x224xbf16>
    %cst_102 = arith.constant dense<0.000000e+00> : vector<14x224xf32>
    %90 = tpu.matmul %87, %89, %cst_102 {dimension_numbers = #tpu.dot_dimension_numbers<[1], [0], [0], [1], [0, 0, 1, 1], [], []>} : vector<14x32xbf16>, vector<32x224xbf16>, vector<14x224xf32> -> vector<14x224xf32>
    %91 = arith.addf %85, %90 : vector<14x224xf32>
    %c0_103 = arith.constant 0 : index
    %c0_104 = arith.constant 0 : index
    %c2_105 = arith.constant 2 : index
    %c0_106 = arith.constant 0 : index
    %92 = vector.load %arg1[%c0_103, %c0_104, %c2_105, %c0_106] : memref<1x2x16x32xbf16, #tpu.memory_space<vmem>>, vector<1x1x14x32xbf16>
    %93 = vector.shape_cast %92 : vector<1x1x14x32xbf16> to vector<14x32xbf16>
    %c6_107 = arith.constant 6 : index
    %c0_108 = arith.constant 0 : index
    %c0_109 = arith.constant 0 : index
    %94 = vector.load %arg2[%c6_107, %c0_108, %c0_109] : memref<10x32x224xbf16, #tpu.memory_space<vmem>>, vector<1x32x224xbf16>
    %95 = vector.shape_cast %94 : vector<1x32x224xbf16> to vector<32x224xbf16>
    %cst_110 = arith.constant dense<0.000000e+00> : vector<14x224xf32>
    %96 = tpu.matmul %93, %95, %cst_110 {dimension_numbers = #tpu.dot_dimension_numbers<[1], [0], [0], [1], [0, 0, 1, 1], [], []>} : vector<14x32xbf16>, vector<32x224xbf16>, vector<14x224xf32> -> vector<14x224xf32>
    %97 = arith.addf %91, %96 : vector<14x224xf32>
    %c0_111 = arith.constant 0 : index
    %c1_112 = arith.constant 1 : index
    %c2_113 = arith.constant 2 : index
    %c0_114 = arith.constant 0 : index
    %98 = vector.load %arg1[%c0_111, %c1_112, %c2_113, %c0_114] : memref<1x2x16x32xbf16, #tpu.memory_space<vmem>>, vector<1x1x14x32xbf16>
    %99 = vector.shape_cast %98 : vector<1x1x14x32xbf16> to vector<14x32xbf16>
    %c8_115 = arith.constant 8 : index
    %c0_116 = arith.constant 0 : index
    %c0_117 = arith.constant 0 : index
    %100 = vector.load %arg2[%c8_115, %c0_116, %c0_117] : memref<10x32x224xbf16, #tpu.memory_space<vmem>>, vector<1x32x224xbf16>
    %101 = vector.shape_cast %100 : vector<1x32x224xbf16> to vector<32x224xbf16>
    %cst_118 = arith.constant dense<0.000000e+00> : vector<14x224xf32>
    %102 = tpu.matmul %99, %101, %cst_118 {dimension_numbers = #tpu.dot_dimension_numbers<[1], [0], [0], [1], [0, 0, 1, 1], [], []>} : vector<14x32xbf16>, vector<32x224xbf16>, vector<14x224xf32> -> vector<14x224xf32>
    %103 = arith.addf %97, %102 : vector<14x224xf32>
    %c0_119 = arith.constant 0 : index
    %c0_120 = arith.constant 0 : index
    %104 = vector.load %arg3[%c0_119, %c0_120] : memref<1x224xf32, #tpu.memory_space<vmem>>, vector<1x224xf32>
    %105 = vector.broadcast %104 : vector<1x224xf32> to vector<14x224xf32>
    %106 = arith.mulf %103, %105 : vector<14x224xf32>
    %c0_121 = arith.constant 0 : index
    %c0_122 = arith.constant 0 : index
    %107 = vector.load %arg4[%c0_121, %c0_122] : memref<1x224xf32, #tpu.memory_space<vmem>>, vector<1x224xf32>
    %108 = vector.broadcast %107 : vector<1x224xf32> to vector<14x224xf32>
    %109 = arith.addf %106, %108 : vector<14x224xf32>
    %cst_123 = arith.constant 0.000000e+00 : f32
    %110 = vector.broadcast %cst_123 : f32 to vector<14x224xf32>
    %111 = arith.maximumf %109, %110 : vector<14x224xf32>
    %112 = arith.maximumf %74, %111 : vector<14x224xf32>
    %c0_124 = arith.constant 0 : index
    %c1_125 = arith.constant 1 : index
    %c0_126 = arith.constant 0 : index
    %c0_127 = arith.constant 0 : index
    %113 = vector.load %arg1[%c0_124, %c1_125, %c0_126, %c0_127] : memref<1x2x16x32xbf16, #tpu.memory_space<vmem>>, vector<1x1x14x32xbf16>
    %114 = vector.shape_cast %113 : vector<1x1x14x32xbf16> to vector<14x32xbf16>
    %c1_128 = arith.constant 1 : index
    %c0_129 = arith.constant 0 : index
    %c0_130 = arith.constant 0 : index
    %115 = vector.load %arg2[%c1_128, %c0_129, %c0_130] : memref<10x32x224xbf16, #tpu.memory_space<vmem>>, vector<1x32x224xbf16>
    %116 = vector.shape_cast %115 : vector<1x32x224xbf16> to vector<32x224xbf16>
    %cst_131 = arith.constant dense<0.000000e+00> : vector<14x224xf32>
    %117 = tpu.matmul %114, %116, %cst_131 {dimension_numbers = #tpu.dot_dimension_numbers<[1], [0], [0], [1], [0, 0, 1, 1], [], []>} : vector<14x32xbf16>, vector<32x224xbf16>, vector<14x224xf32> -> vector<14x224xf32>
    %c0_132 = arith.constant 0 : index
    %c0_133 = arith.constant 0 : index
    %c1_134 = arith.constant 1 : index
    %c0_135 = arith.constant 0 : index
    %118 = vector.load %arg1[%c0_132, %c0_133, %c1_134, %c0_135] : memref<1x2x16x32xbf16, #tpu.memory_space<vmem>>, vector<1x1x14x32xbf16>
    %119 = vector.shape_cast %118 : vector<1x1x14x32xbf16> to vector<14x32xbf16>
    %c3_136 = arith.constant 3 : index
    %c0_137 = arith.constant 0 : index
    %c0_138 = arith.constant 0 : index
    %120 = vector.load %arg2[%c3_136, %c0_137, %c0_138] : memref<10x32x224xbf16, #tpu.memory_space<vmem>>, vector<1x32x224xbf16>
    %121 = vector.shape_cast %120 : vector<1x32x224xbf16> to vector<32x224xbf16>
    %cst_139 = arith.constant dense<0.000000e+00> : vector<14x224xf32>
    %122 = tpu.matmul %119, %121, %cst_139 {dimension_numbers = #tpu.dot_dimension_numbers<[1], [0], [0], [1], [0, 0, 1, 1], [], []>} : vector<14x32xbf16>, vector<32x224xbf16>, vector<14x224xf32> -> vector<14x224xf32>
    %123 = arith.addf %117, %122 : vector<14x224xf32>
    %c0_140 = arith.constant 0 : index
    %c1_141 = arith.constant 1 : index
    %c1_142 = arith.constant 1 : index
    %c0_143 = arith.constant 0 : index
    %124 = vector.load %arg1[%c0_140, %c1_141, %c1_142, %c0_143] : memref<1x2x16x32xbf16, #tpu.memory_space<vmem>>, vector<1x1x14x32xbf16>
    %125 = vector.shape_cast %124 : vector<1x1x14x32xbf16> to vector<14x32xbf16>
    %c5_144 = arith.constant 5 : index
    %c0_145 = arith.constant 0 : index
    %c0_146 = arith.constant 0 : index
    %126 = vector.load %arg2[%c5_144, %c0_145, %c0_146] : memref<10x32x224xbf16, #tpu.memory_space<vmem>>, vector<1x32x224xbf16>
    %127 = vector.shape_cast %126 : vector<1x32x224xbf16> to vector<32x224xbf16>
    %cst_147 = arith.constant dense<0.000000e+00> : vector<14x224xf32>
    %128 = tpu.matmul %125, %127, %cst_147 {dimension_numbers = #tpu.dot_dimension_numbers<[1], [0], [0], [1], [0, 0, 1, 1], [], []>} : vector<14x32xbf16>, vector<32x224xbf16>, vector<14x224xf32> -> vector<14x224xf32>
    %129 = arith.addf %123, %128 : vector<14x224xf32>
    %c0_148 = arith.constant 0 : index
    %c0_149 = arith.constant 0 : index
    %c2_150 = arith.constant 2 : index
    %c0_151 = arith.constant 0 : index
    %130 = vector.load %arg1[%c0_148, %c0_149, %c2_150, %c0_151] : memref<1x2x16x32xbf16, #tpu.memory_space<vmem>>, vector<1x1x14x32xbf16>
    %131 = vector.shape_cast %130 : vector<1x1x14x32xbf16> to vector<14x32xbf16>
    %c7_152 = arith.constant 7 : index
    %c0_153 = arith.constant 0 : index
    %c0_154 = arith.constant 0 : index
    %132 = vector.load %arg2[%c7_152, %c0_153, %c0_154] : memref<10x32x224xbf16, #tpu.memory_space<vmem>>, vector<1x32x224xbf16>
    %133 = vector.shape_cast %132 : vector<1x32x224xbf16> to vector<32x224xbf16>
    %cst_155 = arith.constant dense<0.000000e+00> : vector<14x224xf32>
    %134 = tpu.matmul %131, %133, %cst_155 {dimension_numbers = #tpu.dot_dimension_numbers<[1], [0], [0], [1], [0, 0, 1, 1], [], []>} : vector<14x32xbf16>, vector<32x224xbf16>, vector<14x224xf32> -> vector<14x224xf32>
    %135 = arith.addf %129, %134 : vector<14x224xf32>
    %c0_156 = arith.constant 0 : index
    %c1_157 = arith.constant 1 : index
    %c2_158 = arith.constant 2 : index
    %c0_159 = arith.constant 0 : index
    %136 = vector.load %arg1[%c0_156, %c1_157, %c2_158, %c0_159] : memref<1x2x16x32xbf16, #tpu.memory_space<vmem>>, vector<1x1x14x32xbf16>
    %137 = vector.shape_cast %136 : vector<1x1x14x32xbf16> to vector<14x32xbf16>
    %c9_160 = arith.constant 9 : index
    %c0_161 = arith.constant 0 : index
    %c0_162 = arith.constant 0 : index
    %138 = vector.load %arg2[%c9_160, %c0_161, %c0_162] : memref<10x32x224xbf16, #tpu.memory_space<vmem>>, vector<1x32x224xbf16>
    %139 = vector.shape_cast %138 : vector<1x32x224xbf16> to vector<32x224xbf16>
    %cst_163 = arith.constant dense<0.000000e+00> : vector<14x224xf32>
    %140 = tpu.matmul %137, %139, %cst_163 {dimension_numbers = #tpu.dot_dimension_numbers<[1], [0], [0], [1], [0, 0, 1, 1], [], []>} : vector<14x32xbf16>, vector<32x224xbf16>, vector<14x224xf32> -> vector<14x224xf32>
    %141 = arith.addf %135, %140 : vector<14x224xf32>
    %c0_164 = arith.constant 0 : index
    %c0_165 = arith.constant 0 : index
    %142 = vector.load %arg3[%c0_164, %c0_165] : memref<1x224xf32, #tpu.memory_space<vmem>>, vector<1x224xf32>
    %143 = vector.broadcast %142 : vector<1x224xf32> to vector<14x224xf32>
    %144 = arith.mulf %141, %143 : vector<14x224xf32>
    %c0_166 = arith.constant 0 : index
    %c0_167 = arith.constant 0 : index
    %145 = vector.load %arg4[%c0_166, %c0_167] : memref<1x224xf32, #tpu.memory_space<vmem>>, vector<1x224xf32>
    %146 = vector.broadcast %145 : vector<1x224xf32> to vector<14x224xf32>
    %147 = arith.addf %144, %146 : vector<14x224xf32>
    %cst_168 = arith.constant 0.000000e+00 : f32
    %148 = vector.broadcast %cst_168 : f32 to vector<14x224xf32>
    %149 = arith.maximumf %147, %148 : vector<14x224xf32>
    %150 = arith.maximumf %112, %149 : vector<14x224xf32>
    %151 = arith.truncf %150 : vector<14x224xf32> to vector<14x224xbf16>
    %c0_169 = arith.constant 0 : index
    %c0_170 = arith.constant 0 : index
    %c0_171 = arith.constant 0 : index
    %152 = vector.load %arg5[%c0_169, %c0_170, %c0_171] : memref<1x14x224xbf16, #tpu.memory_space<vmem>>, vector<1x14x224xbf16>
    %153 = vector.shape_cast %152 : vector<1x14x224xbf16> to vector<14x224xbf16>
    %154 = vector.shape_cast %151 : vector<14x224xbf16> to vector<1x14x224xbf16>
    tpu.vector_store %arg5[%c0_169, %c0_170, %c0_171], %154 {strides = array<i32>} : memref<1x14x224xbf16, #tpu.memory_space<vmem>>, vector<1x14x224xbf16>,
    return
  }
  func.func @transform_0(%arg0: i32) -> (i32, i32, i32, i32) {
    %c0_i32 = arith.constant 0 : i32
    %c0_i32_0 = arith.constant 0 : i32
    %c0_i32_1 = arith.constant 0 : i32
    %c0_i32_2 = arith.constant 0 : i32
    return %arg0, %c0_i32, %c0_i32_0, %c0_i32_1 : i32, i32, i32, i32
  }
  func.func @transform_1(%arg0: i32) -> (i32, i32, i32) {
    %c0_i32 = arith.constant 0 : i32
    %c0_i32_0 = arith.constant 0 : i32
    %c0_i32_1 = arith.constant 0 : i32
    %c0_i32_2 = arith.constant 0 : i32
    return %c0_i32, %c0_i32_0, %c0_i32_1 : i32, i32, i32
  }
  func.func @transform_2(%arg0: i32) -> (i32, i32) {
    %c0_i32 = arith.constant 0 : i32
    %c0_i32_0 = arith.constant 0 : i32
    %c0_i32_1 = arith.constant 0 : i32
    return %c0_i32, %c0_i32_0 : i32, i32
  }
  func.func @transform_3(%arg0: i32) -> (i32, i32) {
    %c0_i32 = arith.constant 0 : i32
    %c0_i32_0 = arith.constant 0 : i32
    %c0_i32_1 = arith.constant 0 : i32
    return %c0_i32, %c0_i32_0 : i32, i32
  }
  func.func @transform_4(%arg0: i32) -> (i32, i32, i32) {
    %c0_i32 = arith.constant 0 : i32
    %c0_i32_0 = arith.constant 0 : i32
    %c0_i32_1 = arith.constant 0 : i32
    return %arg0, %c0_i32, %c0_i32_0 : i32, i32, i32
  }
}

module attributes {stable_mosaic.version = 11 : i64} {
  func.func @conv_bn_relu_pool_kernel(%arg0: i32, %arg1: memref<1x2x9x288xbf16, #tpu.memory_space<vmem>>, %arg2: memref<10x288x224xbf16, #tpu.memory_space<vmem>>, %arg3: memref<1x224xf32, #tpu.memory_space<vmem>>, %arg4: memref<1x224xf32, #tpu.memory_space<vmem>>, %arg5: memref<1x7x224xf32, #tpu.memory_space<vmem>>) attributes {dimension_semantics = [#tpu.dimension_semantics<parallel>], iteration_bounds = array<i64: 2>, scalar_prefetch = 0 : i64, scratch_operands = 0 : i64, tpu.core_type = #tpu.core_type<tc>, window_params = [{transform_indices = @transform_0, window_bounds = array<i64: 1, 2, 9, 288>}, {pipeline_mode = #tpu.pipeline_mode<synchronous>, transform_indices = @transform_1, window_bounds = array<i64: 10, 288, 224>}, {pipeline_mode = #tpu.pipeline_mode<synchronous>, transform_indices = @transform_2, window_bounds = array<i64: 1, 224>}, {pipeline_mode = #tpu.pipeline_mode<synchronous>, transform_indices = @transform_3, window_bounds = array<i64: 1, 224>}, {transform_indices = @transform_4, window_bounds = array<i64: 1, 7, 224>}]} {
    %c0 = arith.constant 0 : index
    %c0_0 = arith.constant 0 : index
    %c0_1 = arith.constant 0 : index
    %c0_2 = arith.constant 0 : index
    %0 = vector.load %arg1[%c0, %c0_0, %c0_1, %c0_2] : memref<1x2x9x288xbf16, #tpu.memory_space<vmem>>, vector<1x1x7x288xbf16>
    %1 = vector.shape_cast %0 : vector<1x1x7x288xbf16> to vector<7x288xbf16>
    %c0_3 = arith.constant 0 : index
    %c0_4 = arith.constant 0 : index
    %c0_5 = arith.constant 0 : index
    %2 = vector.load %arg2[%c0_3, %c0_4, %c0_5] : memref<10x288x224xbf16, #tpu.memory_space<vmem>>, vector<1x288x224xbf16>
    %3 = vector.shape_cast %2 : vector<1x288x224xbf16> to vector<288x224xbf16>
    %cst = arith.constant dense<0.000000e+00> : vector<7x224xf32>
    %4 = tpu.matmul %1, %3, %cst {dimension_numbers = #tpu.dot_dimension_numbers<[1], [0], [0], [1], [0, 0, 1, 1], [], []>} : vector<7x288xbf16>, vector<288x224xbf16>, vector<7x224xf32> -> vector<7x224xf32>
    %c0_6 = arith.constant 0 : index
    %c1 = arith.constant 1 : index
    %c0_7 = arith.constant 0 : index
    %c0_8 = arith.constant 0 : index
    %5 = vector.load %arg1[%c0_6, %c1, %c0_7, %c0_8] : memref<1x2x9x288xbf16, #tpu.memory_space<vmem>>, vector<1x1x7x288xbf16>
    %6 = vector.shape_cast %5 : vector<1x1x7x288xbf16> to vector<7x288xbf16>
    %c2 = arith.constant 2 : index
    %c0_9 = arith.constant 0 : index
    %c0_10 = arith.constant 0 : index
    %7 = vector.load %arg2[%c2, %c0_9, %c0_10] : memref<10x288x224xbf16, #tpu.memory_space<vmem>>, vector<1x288x224xbf16>
    %8 = vector.shape_cast %7 : vector<1x288x224xbf16> to vector<288x224xbf16>
    %cst_11 = arith.constant dense<0.000000e+00> : vector<7x224xf32>
    %9 = tpu.matmul %6, %8, %cst_11 {dimension_numbers = #tpu.dot_dimension_numbers<[1], [0], [0], [1], [0, 0, 1, 1], [], []>} : vector<7x288xbf16>, vector<288x224xbf16>, vector<7x224xf32> -> vector<7x224xf32>
    %10 = arith.addf %4, %9 : vector<7x224xf32>
    %c0_12 = arith.constant 0 : index
    %c0_13 = arith.constant 0 : index
    %c1_14 = arith.constant 1 : index
    %c0_15 = arith.constant 0 : index
    %11 = vector.load %arg1[%c0_12, %c0_13, %c1_14, %c0_15] : memref<1x2x9x288xbf16, #tpu.memory_space<vmem>>, vector<1x1x7x288xbf16>
    %12 = vector.shape_cast %11 : vector<1x1x7x288xbf16> to vector<7x288xbf16>
    %c4 = arith.constant 4 : index
    %c0_16 = arith.constant 0 : index
    %c0_17 = arith.constant 0 : index
    %13 = vector.load %arg2[%c4, %c0_16, %c0_17] : memref<10x288x224xbf16, #tpu.memory_space<vmem>>, vector<1x288x224xbf16>
    %14 = vector.shape_cast %13 : vector<1x288x224xbf16> to vector<288x224xbf16>
    %cst_18 = arith.constant dense<0.000000e+00> : vector<7x224xf32>
    %15 = tpu.matmul %12, %14, %cst_18 {dimension_numbers = #tpu.dot_dimension_numbers<[1], [0], [0], [1], [0, 0, 1, 1], [], []>} : vector<7x288xbf16>, vector<288x224xbf16>, vector<7x224xf32> -> vector<7x224xf32>
    %16 = arith.addf %10, %15 : vector<7x224xf32>
    %c0_19 = arith.constant 0 : index
    %c1_20 = arith.constant 1 : index
    %c1_21 = arith.constant 1 : index
    %c0_22 = arith.constant 0 : index
    %17 = vector.load %arg1[%c0_19, %c1_20, %c1_21, %c0_22] : memref<1x2x9x288xbf16, #tpu.memory_space<vmem>>, vector<1x1x7x288xbf16>
    %18 = vector.shape_cast %17 : vector<1x1x7x288xbf16> to vector<7x288xbf16>
    %c6 = arith.constant 6 : index
    %c0_23 = arith.constant 0 : index
    %c0_24 = arith.constant 0 : index
    %19 = vector.load %arg2[%c6, %c0_23, %c0_24] : memref<10x288x224xbf16, #tpu.memory_space<vmem>>, vector<1x288x224xbf16>
    %20 = vector.shape_cast %19 : vector<1x288x224xbf16> to vector<288x224xbf16>
    %cst_25 = arith.constant dense<0.000000e+00> : vector<7x224xf32>
    %21 = tpu.matmul %18, %20, %cst_25 {dimension_numbers = #tpu.dot_dimension_numbers<[1], [0], [0], [1], [0, 0, 1, 1], [], []>} : vector<7x288xbf16>, vector<288x224xbf16>, vector<7x224xf32> -> vector<7x224xf32>
    %22 = arith.addf %16, %21 : vector<7x224xf32>
    %c0_26 = arith.constant 0 : index
    %c0_27 = arith.constant 0 : index
    %c2_28 = arith.constant 2 : index
    %c0_29 = arith.constant 0 : index
    %23 = vector.load %arg1[%c0_26, %c0_27, %c2_28, %c0_29] : memref<1x2x9x288xbf16, #tpu.memory_space<vmem>>, vector<1x1x7x288xbf16>
    %24 = vector.shape_cast %23 : vector<1x1x7x288xbf16> to vector<7x288xbf16>
    %c8 = arith.constant 8 : index
    %c0_30 = arith.constant 0 : index
    %c0_31 = arith.constant 0 : index
    %25 = vector.load %arg2[%c8, %c0_30, %c0_31] : memref<10x288x224xbf16, #tpu.memory_space<vmem>>, vector<1x288x224xbf16>
    %26 = vector.shape_cast %25 : vector<1x288x224xbf16> to vector<288x224xbf16>
    %cst_32 = arith.constant dense<0.000000e+00> : vector<7x224xf32>
    %27 = tpu.matmul %24, %26, %cst_32 {dimension_numbers = #tpu.dot_dimension_numbers<[1], [0], [0], [1], [0, 0, 1, 1], [], []>} : vector<7x288xbf16>, vector<288x224xbf16>, vector<7x224xf32> -> vector<7x224xf32>
    %28 = arith.addf %22, %27 : vector<7x224xf32>
    %c0_33 = arith.constant 0 : index
    %c0_34 = arith.constant 0 : index
    %29 = vector.load %arg3[%c0_33, %c0_34] : memref<1x224xf32, #tpu.memory_space<vmem>>, vector<1x224xf32>
    %30 = vector.broadcast %29 : vector<1x224xf32> to vector<7x224xf32>
    %31 = arith.mulf %28, %30 : vector<7x224xf32>
    %c0_35 = arith.constant 0 : index
    %c0_36 = arith.constant 0 : index
    %32 = vector.load %arg4[%c0_35, %c0_36] : memref<1x224xf32, #tpu.memory_space<vmem>>, vector<1x224xf32>
    %33 = vector.broadcast %32 : vector<1x224xf32> to vector<7x224xf32>
    %34 = arith.addf %31, %33 : vector<7x224xf32>
    %cst_37 = arith.constant 0.000000e+00 : f32
    %35 = vector.broadcast %cst_37 : f32 to vector<7x224xf32>
    %36 = arith.maximumf %34, %35 : vector<7x224xf32>
    %c0_38 = arith.constant 0 : index
    %c0_39 = arith.constant 0 : index
    %c0_40 = arith.constant 0 : index
    %c0_41 = arith.constant 0 : index
    %37 = vector.load %arg1[%c0_38, %c0_39, %c0_40, %c0_41] : memref<1x2x9x288xbf16, #tpu.memory_space<vmem>>, vector<1x1x7x288xbf16>
    %38 = vector.shape_cast %37 : vector<1x1x7x288xbf16> to vector<7x288xbf16>
    %c1_42 = arith.constant 1 : index
    %c0_43 = arith.constant 0 : index
    %c0_44 = arith.constant 0 : index
    %39 = vector.load %arg2[%c1_42, %c0_43, %c0_44] : memref<10x288x224xbf16, #tpu.memory_space<vmem>>, vector<1x288x224xbf16>
    %40 = vector.shape_cast %39 : vector<1x288x224xbf16> to vector<288x224xbf16>
    %cst_45 = arith.constant dense<0.000000e+00> : vector<7x224xf32>
    %41 = tpu.matmul %38, %40, %cst_45 {dimension_numbers = #tpu.dot_dimension_numbers<[1], [0], [0], [1], [0, 0, 1, 1], [], []>} : vector<7x288xbf16>, vector<288x224xbf16>, vector<7x224xf32> -> vector<7x224xf32>
    %c0_46 = arith.constant 0 : index
    %c1_47 = arith.constant 1 : index
    %c0_48 = arith.constant 0 : index
    %c0_49 = arith.constant 0 : index
    %42 = vector.load %arg1[%c0_46, %c1_47, %c0_48, %c0_49] : memref<1x2x9x288xbf16, #tpu.memory_space<vmem>>, vector<1x1x7x288xbf16>
    %43 = vector.shape_cast %42 : vector<1x1x7x288xbf16> to vector<7x288xbf16>
    %c3 = arith.constant 3 : index
    %c0_50 = arith.constant 0 : index
    %c0_51 = arith.constant 0 : index
    %44 = vector.load %arg2[%c3, %c0_50, %c0_51] : memref<10x288x224xbf16, #tpu.memory_space<vmem>>, vector<1x288x224xbf16>
    %45 = vector.shape_cast %44 : vector<1x288x224xbf16> to vector<288x224xbf16>
    %cst_52 = arith.constant dense<0.000000e+00> : vector<7x224xf32>
    %46 = tpu.matmul %43, %45, %cst_52 {dimension_numbers = #tpu.dot_dimension_numbers<[1], [0], [0], [1], [0, 0, 1, 1], [], []>} : vector<7x288xbf16>, vector<288x224xbf16>, vector<7x224xf32> -> vector<7x224xf32>
    %47 = arith.addf %41, %46 : vector<7x224xf32>
    %c0_53 = arith.constant 0 : index
    %c0_54 = arith.constant 0 : index
    %c1_55 = arith.constant 1 : index
    %c0_56 = arith.constant 0 : index
    %48 = vector.load %arg1[%c0_53, %c0_54, %c1_55, %c0_56] : memref<1x2x9x288xbf16, #tpu.memory_space<vmem>>, vector<1x1x7x288xbf16>
    %49 = vector.shape_cast %48 : vector<1x1x7x288xbf16> to vector<7x288xbf16>
    %c5 = arith.constant 5 : index
    %c0_57 = arith.constant 0 : index
    %c0_58 = arith.constant 0 : index
    %50 = vector.load %arg2[%c5, %c0_57, %c0_58] : memref<10x288x224xbf16, #tpu.memory_space<vmem>>, vector<1x288x224xbf16>
    %51 = vector.shape_cast %50 : vector<1x288x224xbf16> to vector<288x224xbf16>
    %cst_59 = arith.constant dense<0.000000e+00> : vector<7x224xf32>
    %52 = tpu.matmul %49, %51, %cst_59 {dimension_numbers = #tpu.dot_dimension_numbers<[1], [0], [0], [1], [0, 0, 1, 1], [], []>} : vector<7x288xbf16>, vector<288x224xbf16>, vector<7x224xf32> -> vector<7x224xf32>
    %53 = arith.addf %47, %52 : vector<7x224xf32>
    %c0_60 = arith.constant 0 : index
    %c1_61 = arith.constant 1 : index
    %c1_62 = arith.constant 1 : index
    %c0_63 = arith.constant 0 : index
    %54 = vector.load %arg1[%c0_60, %c1_61, %c1_62, %c0_63] : memref<1x2x9x288xbf16, #tpu.memory_space<vmem>>, vector<1x1x7x288xbf16>
    %55 = vector.shape_cast %54 : vector<1x1x7x288xbf16> to vector<7x288xbf16>
    %c7 = arith.constant 7 : index
    %c0_64 = arith.constant 0 : index
    %c0_65 = arith.constant 0 : index
    %56 = vector.load %arg2[%c7, %c0_64, %c0_65] : memref<10x288x224xbf16, #tpu.memory_space<vmem>>, vector<1x288x224xbf16>
    %57 = vector.shape_cast %56 : vector<1x288x224xbf16> to vector<288x224xbf16>
    %cst_66 = arith.constant dense<0.000000e+00> : vector<7x224xf32>
    %58 = tpu.matmul %55, %57, %cst_66 {dimension_numbers = #tpu.dot_dimension_numbers<[1], [0], [0], [1], [0, 0, 1, 1], [], []>} : vector<7x288xbf16>, vector<288x224xbf16>, vector<7x224xf32> -> vector<7x224xf32>
    %59 = arith.addf %53, %58 : vector<7x224xf32>
    %c0_67 = arith.constant 0 : index
    %c0_68 = arith.constant 0 : index
    %c2_69 = arith.constant 2 : index
    %c0_70 = arith.constant 0 : index
    %60 = vector.load %arg1[%c0_67, %c0_68, %c2_69, %c0_70] : memref<1x2x9x288xbf16, #tpu.memory_space<vmem>>, vector<1x1x7x288xbf16>
    %61 = vector.shape_cast %60 : vector<1x1x7x288xbf16> to vector<7x288xbf16>
    %c9 = arith.constant 9 : index
    %c0_71 = arith.constant 0 : index
    %c0_72 = arith.constant 0 : index
    %62 = vector.load %arg2[%c9, %c0_71, %c0_72] : memref<10x288x224xbf16, #tpu.memory_space<vmem>>, vector<1x288x224xbf16>
    %63 = vector.shape_cast %62 : vector<1x288x224xbf16> to vector<288x224xbf16>
    %cst_73 = arith.constant dense<0.000000e+00> : vector<7x224xf32>
    %64 = tpu.matmul %61, %63, %cst_73 {dimension_numbers = #tpu.dot_dimension_numbers<[1], [0], [0], [1], [0, 0, 1, 1], [], []>} : vector<7x288xbf16>, vector<288x224xbf16>, vector<7x224xf32> -> vector<7x224xf32>
    %65 = arith.addf %59, %64 : vector<7x224xf32>
    %c0_74 = arith.constant 0 : index
    %c0_75 = arith.constant 0 : index
    %66 = vector.load %arg3[%c0_74, %c0_75] : memref<1x224xf32, #tpu.memory_space<vmem>>, vector<1x224xf32>
    %67 = vector.broadcast %66 : vector<1x224xf32> to vector<7x224xf32>
    %68 = arith.mulf %65, %67 : vector<7x224xf32>
    %c0_76 = arith.constant 0 : index
    %c0_77 = arith.constant 0 : index
    %69 = vector.load %arg4[%c0_76, %c0_77] : memref<1x224xf32, #tpu.memory_space<vmem>>, vector<1x224xf32>
    %70 = vector.broadcast %69 : vector<1x224xf32> to vector<7x224xf32>
    %71 = arith.addf %68, %70 : vector<7x224xf32>
    %cst_78 = arith.constant 0.000000e+00 : f32
    %72 = vector.broadcast %cst_78 : f32 to vector<7x224xf32>
    %73 = arith.maximumf %71, %72 : vector<7x224xf32>
    %74 = arith.maximumf %36, %73 : vector<7x224xf32>
    %c0_79 = arith.constant 0 : index
    %c1_80 = arith.constant 1 : index
    %c0_81 = arith.constant 0 : index
    %c0_82 = arith.constant 0 : index
    %75 = vector.load %arg1[%c0_79, %c1_80, %c0_81, %c0_82] : memref<1x2x9x288xbf16, #tpu.memory_space<vmem>>, vector<1x1x7x288xbf16>
    %76 = vector.shape_cast %75 : vector<1x1x7x288xbf16> to vector<7x288xbf16>
    %c0_83 = arith.constant 0 : index
    %c0_84 = arith.constant 0 : index
    %c0_85 = arith.constant 0 : index
    %77 = vector.load %arg2[%c0_83, %c0_84, %c0_85] : memref<10x288x224xbf16, #tpu.memory_space<vmem>>, vector<1x288x224xbf16>
    %78 = vector.shape_cast %77 : vector<1x288x224xbf16> to vector<288x224xbf16>
    %cst_86 = arith.constant dense<0.000000e+00> : vector<7x224xf32>
    %79 = tpu.matmul %76, %78, %cst_86 {dimension_numbers = #tpu.dot_dimension_numbers<[1], [0], [0], [1], [0, 0, 1, 1], [], []>} : vector<7x288xbf16>, vector<288x224xbf16>, vector<7x224xf32> -> vector<7x224xf32>
    %c0_87 = arith.constant 0 : index
    %c0_88 = arith.constant 0 : index
    %c1_89 = arith.constant 1 : index
    %c0_90 = arith.constant 0 : index
    %80 = vector.load %arg1[%c0_87, %c0_88, %c1_89, %c0_90] : memref<1x2x9x288xbf16, #tpu.memory_space<vmem>>, vector<1x1x7x288xbf16>
    %81 = vector.shape_cast %80 : vector<1x1x7x288xbf16> to vector<7x288xbf16>
    %c2_91 = arith.constant 2 : index
    %c0_92 = arith.constant 0 : index
    %c0_93 = arith.constant 0 : index
    %82 = vector.load %arg2[%c2_91, %c0_92, %c0_93] : memref<10x288x224xbf16, #tpu.memory_space<vmem>>, vector<1x288x224xbf16>
    %83 = vector.shape_cast %82 : vector<1x288x224xbf16> to vector<288x224xbf16>
    %cst_94 = arith.constant dense<0.000000e+00> : vector<7x224xf32>
    %84 = tpu.matmul %81, %83, %cst_94 {dimension_numbers = #tpu.dot_dimension_numbers<[1], [0], [0], [1], [0, 0, 1, 1], [], []>} : vector<7x288xbf16>, vector<288x224xbf16>, vector<7x224xf32> -> vector<7x224xf32>
    %85 = arith.addf %79, %84 : vector<7x224xf32>
    %c0_95 = arith.constant 0 : index
    %c1_96 = arith.constant 1 : index
    %c1_97 = arith.constant 1 : index
    %c0_98 = arith.constant 0 : index
    %86 = vector.load %arg1[%c0_95, %c1_96, %c1_97, %c0_98] : memref<1x2x9x288xbf16, #tpu.memory_space<vmem>>, vector<1x1x7x288xbf16>
    %87 = vector.shape_cast %86 : vector<1x1x7x288xbf16> to vector<7x288xbf16>
    %c4_99 = arith.constant 4 : index
    %c0_100 = arith.constant 0 : index
    %c0_101 = arith.constant 0 : index
    %88 = vector.load %arg2[%c4_99, %c0_100, %c0_101] : memref<10x288x224xbf16, #tpu.memory_space<vmem>>, vector<1x288x224xbf16>
    %89 = vector.shape_cast %88 : vector<1x288x224xbf16> to vector<288x224xbf16>
    %cst_102 = arith.constant dense<0.000000e+00> : vector<7x224xf32>
    %90 = tpu.matmul %87, %89, %cst_102 {dimension_numbers = #tpu.dot_dimension_numbers<[1], [0], [0], [1], [0, 0, 1, 1], [], []>} : vector<7x288xbf16>, vector<288x224xbf16>, vector<7x224xf32> -> vector<7x224xf32>
    %91 = arith.addf %85, %90 : vector<7x224xf32>
    %c0_103 = arith.constant 0 : index
    %c0_104 = arith.constant 0 : index
    %c2_105 = arith.constant 2 : index
    %c0_106 = arith.constant 0 : index
    %92 = vector.load %arg1[%c0_103, %c0_104, %c2_105, %c0_106] : memref<1x2x9x288xbf16, #tpu.memory_space<vmem>>, vector<1x1x7x288xbf16>
    %93 = vector.shape_cast %92 : vector<1x1x7x288xbf16> to vector<7x288xbf16>
    %c6_107 = arith.constant 6 : index
    %c0_108 = arith.constant 0 : index
    %c0_109 = arith.constant 0 : index
    %94 = vector.load %arg2[%c6_107, %c0_108, %c0_109] : memref<10x288x224xbf16, #tpu.memory_space<vmem>>, vector<1x288x224xbf16>
    %95 = vector.shape_cast %94 : vector<1x288x224xbf16> to vector<288x224xbf16>
    %cst_110 = arith.constant dense<0.000000e+00> : vector<7x224xf32>
    %96 = tpu.matmul %93, %95, %cst_110 {dimension_numbers = #tpu.dot_dimension_numbers<[1], [0], [0], [1], [0, 0, 1, 1], [], []>} : vector<7x288xbf16>, vector<288x224xbf16>, vector<7x224xf32> -> vector<7x224xf32>
    %97 = arith.addf %91, %96 : vector<7x224xf32>
    %c0_111 = arith.constant 0 : index
    %c1_112 = arith.constant 1 : index
    %c2_113 = arith.constant 2 : index
    %c0_114 = arith.constant 0 : index
    %98 = vector.load %arg1[%c0_111, %c1_112, %c2_113, %c0_114] : memref<1x2x9x288xbf16, #tpu.memory_space<vmem>>, vector<1x1x7x288xbf16>
    %99 = vector.shape_cast %98 : vector<1x1x7x288xbf16> to vector<7x288xbf16>
    %c8_115 = arith.constant 8 : index
    %c0_116 = arith.constant 0 : index
    %c0_117 = arith.constant 0 : index
    %100 = vector.load %arg2[%c8_115, %c0_116, %c0_117] : memref<10x288x224xbf16, #tpu.memory_space<vmem>>, vector<1x288x224xbf16>
    %101 = vector.shape_cast %100 : vector<1x288x224xbf16> to vector<288x224xbf16>
    %cst_118 = arith.constant dense<0.000000e+00> : vector<7x224xf32>
    %102 = tpu.matmul %99, %101, %cst_118 {dimension_numbers = #tpu.dot_dimension_numbers<[1], [0], [0], [1], [0, 0, 1, 1], [], []>} : vector<7x288xbf16>, vector<288x224xbf16>, vector<7x224xf32> -> vector<7x224xf32>
    %103 = arith.addf %97, %102 : vector<7x224xf32>
    %c0_119 = arith.constant 0 : index
    %c0_120 = arith.constant 0 : index
    %104 = vector.load %arg3[%c0_119, %c0_120] : memref<1x224xf32, #tpu.memory_space<vmem>>, vector<1x224xf32>
    %105 = vector.broadcast %104 : vector<1x224xf32> to vector<7x224xf32>
    %106 = arith.mulf %103, %105 : vector<7x224xf32>
    %c0_121 = arith.constant 0 : index
    %c0_122 = arith.constant 0 : index
    %107 = vector.load %arg4[%c0_121, %c0_122] : memref<1x224xf32, #tpu.memory_space<vmem>>, vector<1x224xf32>
    %108 = vector.broadcast %107 : vector<1x224xf32> to vector<7x224xf32>
    %109 = arith.addf %106, %108 : vector<7x224xf32>
    %cst_123 = arith.constant 0.000000e+00 : f32
    %110 = vector.broadcast %cst_123 : f32 to vector<7x224xf32>
    %111 = arith.maximumf %109, %110 : vector<7x224xf32>
    %112 = arith.maximumf %74, %111 : vector<7x224xf32>
    %c0_124 = arith.constant 0 : index
    %c1_125 = arith.constant 1 : index
    %c0_126 = arith.constant 0 : index
    %c0_127 = arith.constant 0 : index
    %113 = vector.load %arg1[%c0_124, %c1_125, %c0_126, %c0_127] : memref<1x2x9x288xbf16, #tpu.memory_space<vmem>>, vector<1x1x7x288xbf16>
    %114 = vector.shape_cast %113 : vector<1x1x7x288xbf16> to vector<7x288xbf16>
    %c1_128 = arith.constant 1 : index
    %c0_129 = arith.constant 0 : index
    %c0_130 = arith.constant 0 : index
    %115 = vector.load %arg2[%c1_128, %c0_129, %c0_130] : memref<10x288x224xbf16, #tpu.memory_space<vmem>>, vector<1x288x224xbf16>
    %116 = vector.shape_cast %115 : vector<1x288x224xbf16> to vector<288x224xbf16>
    %cst_131 = arith.constant dense<0.000000e+00> : vector<7x224xf32>
    %117 = tpu.matmul %114, %116, %cst_131 {dimension_numbers = #tpu.dot_dimension_numbers<[1], [0], [0], [1], [0, 0, 1, 1], [], []>} : vector<7x288xbf16>, vector<288x224xbf16>, vector<7x224xf32> -> vector<7x224xf32>
    %c0_132 = arith.constant 0 : index
    %c0_133 = arith.constant 0 : index
    %c1_134 = arith.constant 1 : index
    %c0_135 = arith.constant 0 : index
    %118 = vector.load %arg1[%c0_132, %c0_133, %c1_134, %c0_135] : memref<1x2x9x288xbf16, #tpu.memory_space<vmem>>, vector<1x1x7x288xbf16>
    %119 = vector.shape_cast %118 : vector<1x1x7x288xbf16> to vector<7x288xbf16>
    %c3_136 = arith.constant 3 : index
    %c0_137 = arith.constant 0 : index
    %c0_138 = arith.constant 0 : index
    %120 = vector.load %arg2[%c3_136, %c0_137, %c0_138] : memref<10x288x224xbf16, #tpu.memory_space<vmem>>, vector<1x288x224xbf16>
    %121 = vector.shape_cast %120 : vector<1x288x224xbf16> to vector<288x224xbf16>
    %cst_139 = arith.constant dense<0.000000e+00> : vector<7x224xf32>
    %122 = tpu.matmul %119, %121, %cst_139 {dimension_numbers = #tpu.dot_dimension_numbers<[1], [0], [0], [1], [0, 0, 1, 1], [], []>} : vector<7x288xbf16>, vector<288x224xbf16>, vector<7x224xf32> -> vector<7x224xf32>
    %123 = arith.addf %117, %122 : vector<7x224xf32>
    %c0_140 = arith.constant 0 : index
    %c1_141 = arith.constant 1 : index
    %c1_142 = arith.constant 1 : index
    %c0_143 = arith.constant 0 : index
    %124 = vector.load %arg1[%c0_140, %c1_141, %c1_142, %c0_143] : memref<1x2x9x288xbf16, #tpu.memory_space<vmem>>, vector<1x1x7x288xbf16>
    %125 = vector.shape_cast %124 : vector<1x1x7x288xbf16> to vector<7x288xbf16>
    %c5_144 = arith.constant 5 : index
    %c0_145 = arith.constant 0 : index
    %c0_146 = arith.constant 0 : index
    %126 = vector.load %arg2[%c5_144, %c0_145, %c0_146] : memref<10x288x224xbf16, #tpu.memory_space<vmem>>, vector<1x288x224xbf16>
    %127 = vector.shape_cast %126 : vector<1x288x224xbf16> to vector<288x224xbf16>
    %cst_147 = arith.constant dense<0.000000e+00> : vector<7x224xf32>
    %128 = tpu.matmul %125, %127, %cst_147 {dimension_numbers = #tpu.dot_dimension_numbers<[1], [0], [0], [1], [0, 0, 1, 1], [], []>} : vector<7x288xbf16>, vector<288x224xbf16>, vector<7x224xf32> -> vector<7x224xf32>
    %129 = arith.addf %123, %128 : vector<7x224xf32>
    %c0_148 = arith.constant 0 : index
    %c0_149 = arith.constant 0 : index
    %c2_150 = arith.constant 2 : index
    %c0_151 = arith.constant 0 : index
    %130 = vector.load %arg1[%c0_148, %c0_149, %c2_150, %c0_151] : memref<1x2x9x288xbf16, #tpu.memory_space<vmem>>, vector<1x1x7x288xbf16>
    %131 = vector.shape_cast %130 : vector<1x1x7x288xbf16> to vector<7x288xbf16>
    %c7_152 = arith.constant 7 : index
    %c0_153 = arith.constant 0 : index
    %c0_154 = arith.constant 0 : index
    %132 = vector.load %arg2[%c7_152, %c0_153, %c0_154] : memref<10x288x224xbf16, #tpu.memory_space<vmem>>, vector<1x288x224xbf16>
    %133 = vector.shape_cast %132 : vector<1x288x224xbf16> to vector<288x224xbf16>
    %cst_155 = arith.constant dense<0.000000e+00> : vector<7x224xf32>
    %134 = tpu.matmul %131, %133, %cst_155 {dimension_numbers = #tpu.dot_dimension_numbers<[1], [0], [0], [1], [0, 0, 1, 1], [], []>} : vector<7x288xbf16>, vector<288x224xbf16>, vector<7x224xf32> -> vector<7x224xf32>
    %135 = arith.addf %129, %134 : vector<7x224xf32>
    %c0_156 = arith.constant 0 : index
    %c1_157 = arith.constant 1 : index
    %c2_158 = arith.constant 2 : index
    %c0_159 = arith.constant 0 : index
    %136 = vector.load %arg1[%c0_156, %c1_157, %c2_158, %c0_159] : memref<1x2x9x288xbf16, #tpu.memory_space<vmem>>, vector<1x1x7x288xbf16>
    %137 = vector.shape_cast %136 : vector<1x1x7x288xbf16> to vector<7x288xbf16>
    %c9_160 = arith.constant 9 : index
    %c0_161 = arith.constant 0 : index
    %c0_162 = arith.constant 0 : index
    %138 = vector.load %arg2[%c9_160, %c0_161, %c0_162] : memref<10x288x224xbf16, #tpu.memory_space<vmem>>, vector<1x288x224xbf16>
    %139 = vector.shape_cast %138 : vector<1x288x224xbf16> to vector<288x224xbf16>
    %cst_163 = arith.constant dense<0.000000e+00> : vector<7x224xf32>
    %140 = tpu.matmul %137, %139, %cst_163 {dimension_numbers = #tpu.dot_dimension_numbers<[1], [0], [0], [1], [0, 0, 1, 1], [], []>} : vector<7x288xbf16>, vector<288x224xbf16>, vector<7x224xf32> -> vector<7x224xf32>
    %141 = arith.addf %135, %140 : vector<7x224xf32>
    %c0_164 = arith.constant 0 : index
    %c0_165 = arith.constant 0 : index
    %142 = vector.load %arg3[%c0_164, %c0_165] : memref<1x224xf32, #tpu.memory_space<vmem>>, vector<1x224xf32>
    %143 = vector.broadcast %142 : vector<1x224xf32> to vector<7x224xf32>
    %144 = arith.mulf %141, %143 : vector<7x224xf32>
    %c0_166 = arith.constant 0 : index
    %c0_167 = arith.constant 0 : index
    %145 = vector.load %arg4[%c0_166, %c0_167] : memref<1x224xf32, #tpu.memory_space<vmem>>, vector<1x224xf32>
    %146 = vector.broadcast %145 : vector<1x224xf32> to vector<7x224xf32>
    %147 = arith.addf %144, %146 : vector<7x224xf32>
    %cst_168 = arith.constant 0.000000e+00 : f32
    %148 = vector.broadcast %cst_168 : f32 to vector<7x224xf32>
    %149 = arith.maximumf %147, %148 : vector<7x224xf32>
    %150 = arith.maximumf %112, %149 : vector<7x224xf32>
    %c0_169 = arith.constant 0 : index
    %c0_170 = arith.constant 0 : index
    %c0_171 = arith.constant 0 : index
    %151 = vector.load %arg5[%c0_169, %c0_170, %c0_171] : memref<1x7x224xf32, #tpu.memory_space<vmem>>, vector<1x7x224xf32>
    %152 = vector.shape_cast %151 : vector<1x7x224xf32> to vector<7x224xf32>
    %153 = vector.shape_cast %150 : vector<7x224xf32> to vector<1x7x224xf32>
    tpu.vector_store %arg5[%c0_169, %c0_170, %c0_171], %153 {strides = array<i32>} : memref<1x7x224xf32, #tpu.memory_space<vmem>>, vector<1x7x224xf32>,
    return
  }
  func.func @transform_0(%arg0: i32) -> (i32, i32, i32, i32) {
    %c0_i32 = arith.constant 0 : i32
    %c0_i32_0 = arith.constant 0 : i32
    %c0_i32_1 = arith.constant 0 : i32
    %c0_i32_2 = arith.constant 0 : i32
    return %arg0, %c0_i32, %c0_i32_0, %c0_i32_1 : i32, i32, i32, i32
  }
  func.func @transform_1(%arg0: i32) -> (i32, i32, i32) {
    %c0_i32 = arith.constant 0 : i32
    %c0_i32_0 = arith.constant 0 : i32
    %c0_i32_1 = arith.constant 0 : i32
    %c0_i32_2 = arith.constant 0 : i32
    return %c0_i32, %c0_i32_0, %c0_i32_1 : i32, i32, i32
  }
  func.func @transform_2(%arg0: i32) -> (i32, i32) {
    %c0_i32 = arith.constant 0 : i32
    %c0_i32_0 = arith.constant 0 : i32
    %c0_i32_1 = arith.constant 0 : i32
    return %c0_i32, %c0_i32_0 : i32, i32
  }
  func.func @transform_3(%arg0: i32) -> (i32, i32) {
    %c0_i32 = arith.constant 0 : i32
    %c0_i32_0 = arith.constant 0 : i32
    %c0_i32_1 = arith.constant 0 : i32
    return %c0_i32, %c0_i32_0 : i32, i32
  }
  func.func @transform_4(%arg0: i32) -> (i32, i32, i32) {
    %c0_i32 = arith.constant 0 : i32
    %c0_i32_0 = arith.constant 0 : i32
    %c0_i32_1 = arith.constant 0 : i32
    return %arg0, %c0_i32, %c0_i32_0 : i32, i32, i32
  }
}

module attributes {stable_mosaic.version = 11 : i64} {
  func.func @fc_logsoftmax_kernel(%arg0: i32, %arg1: memref<8x1568xf32, #tpu.memory_space<vmem>>, %arg2: memref<1568x10xf32, #tpu.memory_space<vmem>>, %arg3: memref<1x10xf32, #tpu.memory_space<vmem>>, %arg4: memref<8x10xf32, #tpu.memory_space<vmem>>) attributes {dimension_semantics = [#tpu.dimension_semantics<parallel>], iteration_bounds = array<i64: 1>, scalar_prefetch = 0 : i64, scratch_operands = 0 : i64, tpu.core_type = #tpu.core_type<tc>, window_params = [{transform_indices = @transform_0, window_bounds = array<i64: 8, 1568>}, {pipeline_mode = #tpu.pipeline_mode<synchronous>, transform_indices = @transform_1, window_bounds = array<i64: 1568, 10>}, {pipeline_mode = #tpu.pipeline_mode<synchronous>, transform_indices = @transform_2, window_bounds = array<i64: 1, 10>}, {transform_indices = @transform_3, window_bounds = array<i64: 8, 10>}]} {
    %c0 = arith.constant 0 : index
    %c0_0 = arith.constant 0 : index
    %0 = vector.load %arg1[%c0, %c0_0] : memref<8x1568xf32, #tpu.memory_space<vmem>>, vector<8x1568xf32>
    %c0_1 = arith.constant 0 : index
    %c0_2 = arith.constant 0 : index
    %1 = vector.load %arg2[%c0_1, %c0_2] : memref<1568x10xf32, #tpu.memory_space<vmem>>, vector<1568x10xf32>
    %cst = arith.constant dense<0.000000e+00> : vector<8x10xf32>
    %2 = tpu.matmul %0, %1, %cst {dimension_numbers = #tpu.dot_dimension_numbers<[1], [0], [0], [1], [0, 0, 1, 1], [], []>} : vector<8x1568xf32>, vector<1568x10xf32>, vector<8x10xf32> -> vector<8x10xf32>
    %c0_3 = arith.constant 0 : index
    %c0_4 = arith.constant 0 : index
    %3 = vector.load %arg3[%c0_3, %c0_4] : memref<1x10xf32, #tpu.memory_space<vmem>>, vector<1x10xf32>
    %4 = vector.broadcast %3 : vector<1x10xf32> to vector<8x10xf32>
    %5 = arith.addf %2, %4 : vector<8x10xf32>
    %cst_5 = arith.constant dense<0xFF800000> : vector<8xf32>
    %6 = vector.multi_reduction <maximumf>, %5, %cst_5 [1] : vector<8x10xf32> to vector<8xf32>
    %7 = vector.shape_cast %6 : vector<8xf32> to vector<8x1xf32>
    %8 = vector.broadcast %7 : vector<8x1xf32> to vector<8x10xf32>
    %9 = arith.subf %5, %8 : vector<8x10xf32>
    %10 = math.exp %9 : vector<8x10xf32>
    %cst_6 = arith.constant dense<0.000000e+00> : vector<8xf32>
    %11 = vector.multi_reduction <add>, %10, %cst_6 [1] : vector<8x10xf32> to vector<8xf32>
    %12 = vector.shape_cast %11 : vector<8xf32> to vector<8x1xf32>
    %13 = math.log %12 : vector<8x1xf32>
    %14 = arith.addf %13, %7 : vector<8x1xf32>
    %15 = vector.broadcast %14 : vector<8x1xf32> to vector<8x10xf32>
    %16 = arith.subf %5, %15 : vector<8x10xf32>
    %c0_7 = arith.constant 0 : index
    %c0_8 = arith.constant 0 : index
    %17 = vector.load %arg4[%c0_7, %c0_8] : memref<8x10xf32, #tpu.memory_space<vmem>>, vector<8x10xf32>
    tpu.vector_store %arg4[%c0_7, %c0_8], %16 {strides = array<i32>} : memref<8x10xf32, #tpu.memory_space<vmem>>, vector<8x10xf32>,
    return
  }
  func.func @transform_0(%arg0: i32) -> (i32, i32) {
    %c0_i32 = arith.constant 0 : i32
    %c0_i32_0 = arith.constant 0 : i32
    return %arg0, %c0_i32 : i32, i32
  }
  func.func @transform_1(%arg0: i32) -> (i32, i32) {
    %c0_i32 = arith.constant 0 : i32
    %c0_i32_0 = arith.constant 0 : i32
    %c0_i32_1 = arith.constant 0 : i32
    return %c0_i32, %c0_i32_0 : i32, i32
  }
  func.func @transform_2(%arg0: i32) -> (i32, i32) {
    %c0_i32 = arith.constant 0 : i32
    %c0_i32_0 = arith.constant 0 : i32
    %c0_i32_1 = arith.constant 0 : i32
    return %c0_i32, %c0_i32_0 : i32, i32
  }
  func.func @transform_3(%arg0: i32) -> (i32, i32) {
    %c0_i32 = arith.constant 0 : i32
    %c0_i32_0 = arith.constant 0 : i32
    return %arg0, %c0_i32 : i32, i32
  }
}

</mosaic_0001>

<llo_original>
// kernel: net_fashionmnist_forward.5
$region0: #{net_fashionmnist_forward.5}
  #allocation0 [shape = 'u32[]', space=smem, size = 0x4, offset = 0x4, fixed_abs, tag = 'smem constant byte address 0x4 - core index']
  #allocation1 [shape = 'u32[144,128]{1,0:T(1,128)}', space=vmem, size = 0x12000, scoped, tag = 'internal scratch']
  %s0 = inlined_call_operand.vmem [shape: f32[8,1568], index: 0, kind: input, shape index: {}]
  %s1 = inlined_call_operand.vmem [shape: f32[1568,10], index: 1, kind: input, shape index: {}]
  %s2 = inlined_call_operand.vmem [shape: f32[1,10], index: 2, kind: input, shape index: {}]
  %s3 = inlined_call_operand.vmem [shape: f32[8,10], index: 3, kind: output, shape index: {}]
  %s4 = sld [smem:[#allocation0]]
  $region22: #{net_fashionmnist_forward.5} parent=0
    _
  %s6 = ssub.s32 1, %s4
  %s7 = scalar_select 0, %s6, %s4
  // Predicated region
  $region2: #{net_fashionmnist_forward.5} parent=0 // pred_check
    _
  $region3: #{net_fashionmnist_forward.5} parent=0 // pred_check_branch
    %9 = sbr.rel (0) target = $region5
  $region4: #{net_fashionmnist_forward.5} parent=0 // pred_region
    _
  $region5: #{net_fashionmnist_forward.5} parent=0 // pred_fallthru
    _
  // Predicated region
  $region6: #{net_fashionmnist_forward.5} parent=0 // pred_check
    _
  $region7: #{net_fashionmnist_forward.5} parent=0 // pred_check_branch
    %11 = sbr.rel (0) target = $region9
  $region8: #{net_fashionmnist_forward.5} parent=0 // pred_region
    _
  $region9: #{net_fashionmnist_forward.5} parent=0 // pred_fallthru
    _
  // Predicated region
  $region10: #{net_fashionmnist_forward.5} parent=0 // pred_check
    _
  $region11: #{net_fashionmnist_forward.5} parent=0 // pred_check_branch
    %13 = sbr.rel (0) target = $region13
  $region12: #{net_fashionmnist_forward.5} parent=0 // pred_region
    _
  $region13: #{net_fashionmnist_forward.5} parent=0 // pred_fallthru
    _
  %v14 = vld [vmem:[%s0] sm:$0xff]
  %v15 = vld [vmem:[%s0 + $0x8] sm:$0xff]
  %v16 = vld [vmem:[%s0 + $0x10] sm:$0xff]
  %v17 = vld [vmem:[%s0 + $0x18] sm:$0xff]
  %v18 = vld [vmem:[%s0 + $0x20] sm:$0xff]
  %v19 = vld [vmem:[%s0 + $0x28] sm:$0xff]
  %v20 = vld [vmem:[%s0 + $0x30] sm:$0xff]
  %v21 = vld [vmem:[%s0 + $0x38] sm:$0xff]
  %v22 = vld [vmem:[%s0 + $0x40] sm:$0xff]
  %v23 = vld [vmem:[%s0 + $0x48] sm:$0xff]
  %v24 = vld [vmem:[%s0 + $0x50] sm:$0xff]
  %v25 = vld [vmem:[%s0 + $0x58] sm:$0xff]
  %v26 = vld [vmem:[%s0 + $0x60] sm:$0xff]
  %v27 = vld [vmem:[%s1] sm:$0xff]
  %v28 = vld [vmem:[%s1 + $0x8] sm:$0xff]
  %v29 = vld [vmem:[%s1 + $0x10] sm:$0xff]
  %v30 = vld [vmem:[%s1 + $0x18] sm:$0xff]
  %v31 = vld [vmem:[%s1 + $0x20] sm:$0xff]
  %v32 = vld [vmem:[%s1 + $0x28] sm:$0xff]
  %v33 = vld [vmem:[%s1 + $0x30] sm:$0xff]
  %v34 = vld [vmem:[%s1 + $0x38] sm:$0xff]
  %v35 = vld [vmem:[%s1 + $0x40] sm:$0xff]
  %v36 = vld [vmem:[%s1 + $0x48] sm:$0xff]
  %v37 = vld [vmem:[%s1 + $0x50] sm:$0xff]
  %v38 = vld [vmem:[%s1 + $0x58] sm:$0xff]
  %v39 = vld [vmem:[%s1 + $0x60] sm:$0xff]
  %v40 = vld [vmem:[%s1 + $0x68] sm:$0xff]
  %v41 = vld [vmem:[%s1 + $0x70] sm:$0xff]
  %v42 = vld [vmem:[%s1 + $0x78] sm:$0xff]
  %v43 = vld [vmem:[%s1 + $0x80] sm:$0xff]
  %v44 = vld [vmem:[%s1 + $0x88] sm:$0xff]
  %v45 = vld [vmem:[%s1 + $0x90] sm:$0xff]
  %v46 = vld [vmem:[%s1 + $0x98] sm:$0xff]
  %v47 = vld [vmem:[%s1 + $0xa0] sm:$0xff]
  %v48 = vld [vmem:[%s1 + $0xa8] sm:$0xff]
  %v49 = vld [vmem:[%s1 + $0xb0] sm:$0xff]
  %v50 = vld [vmem:[%s1 + $0xb8] sm:$0xff]
  %v51 = vld [vmem:[%s1 + $0xc0] sm:$0xff]
  %v52 = vld [vmem:[%s1 + $0xc8] sm:$0xff]
  %v53 = vld [vmem:[%s1 + $0xd0] sm:$0xff]
  %v54 = vld [vmem:[%s1 + $0xd8] sm:$0xff]
  %v55 = vld [vmem:[%s1 + $0xe0] sm:$0xff]
  %v56 = vld [vmem:[%s1 + $0xe8] sm:$0xff]
  %v57 = vld [vmem:[%s1 + $0xf0] sm:$0xff]
  %v58 = vld [vmem:[%s1 + $0xf8] sm:$0xff]
  %v59 = vld [vmem:[%s1 + $0x100] sm:$0xff]
  %v60 = vld [vmem:[%s1 + $0x108] sm:$0xff]
  %v61 = vld [vmem:[%s1 + $0x110] sm:$0xff]
  %v62 = vld [vmem:[%s1 + $0x118] sm:$0xff]
  %v63 = vld [vmem:[%s1 + $0x120] sm:$0xff]
  %v64 = vld [vmem:[%s1 + $0x128] sm:$0xff]
  %v65 = vld [vmem:[%s1 + $0x130] sm:$0xff]
  %v66 = vld [vmem:[%s1 + $0x138] sm:$0xff]
  %v67 = vld [vmem:[%s1 + $0x140] sm:$0xff]
  %v68 = vld [vmem:[%s1 + $0x148] sm:$0xff]
  %v69 = vld [vmem:[%s1 + $0x150] sm:$0xff]
  %v70 = vld [vmem:[%s1 + $0x158] sm:$0xff]
  %v71 = vld [vmem:[%s1 + $0x160] sm:$0xff]
  %v72 = vld [vmem:[%s1 + $0x168] sm:$0xff]
  %v73 = vld [vmem:[%s1 + $0x170] sm:$0xff]
  %v74 = vld [vmem:[%s1 + $0x178] sm:$0xff]
  %v75 = vld [vmem:[%s1 + $0x180] sm:$0xff]
  %v76 = vld [vmem:[%s1 + $0x188] sm:$0xff]
  %v77 = vld [vmem:[%s1 + $0x190] sm:$0xff]
  %v78 = vld [vmem:[%s1 + $0x198] sm:$0xff]
  %v79 = vld [vmem:[%s1 + $0x1a0] sm:$0xff]
  %v80 = vld [vmem:[%s1 + $0x1a8] sm:$0xff]
  %v81 = vld [vmem:[%s1 + $0x1b0] sm:$0xff]
  %v82 = vld [vmem:[%s1 + $0x1b8] sm:$0xff]
  %v83 = vld [vmem:[%s1 + $0x1c0] sm:$0xff]
  %v84 = vld [vmem:[%s1 + $0x1c8] sm:$0xff]
  %v85 = vld [vmem:[%s1 + $0x1d0] sm:$0xff]
  %v86 = vld [vmem:[%s1 + $0x1d8] sm:$0xff]
  %v87 = vld [vmem:[%s1 + $0x1e0] sm:$0xff]
  %v88 = vld [vmem:[%s1 + $0x1e8] sm:$0xff]
  %v89 = vld [vmem:[%s1 + $0x1f0] sm:$0xff]
  %v90 = vld [vmem:[%s1 + $0x1f8] sm:$0xff]
  %v91 = vld [vmem:[%s1 + $0x200] sm:$0xff]
  %v92 = vld [vmem:[%s1 + $0x208] sm:$0xff]
  %v93 = vld [vmem:[%s1 + $0x210] sm:$0xff]
  %v94 = vld [vmem:[%s1 + $0x218] sm:$0xff]
  %v95 = vld [vmem:[%s1 + $0x220] sm:$0xff]
  %v96 = vld [vmem:[%s1 + $0x228] sm:$0xff]
  %v97 = vld [vmem:[%s1 + $0x230] sm:$0xff]
  %v98 = vld [vmem:[%s1 + $0x238] sm:$0xff]
  %v99 = vld [vmem:[%s1 + $0x240] sm:$0xff]
  %v100 = vld [vmem:[%s1 + $0x248] sm:$0xff]
  %v101 = vld [vmem:[%s1 + $0x250] sm:$0xff]
  %v102 = vld [vmem:[%s1 + $0x258] sm:$0xff]
  %v103 = vld [vmem:[%s1 + $0x260] sm:$0xff]
  %v104 = vld [vmem:[%s1 + $0x268] sm:$0xff]
  %v105 = vld [vmem:[%s1 + $0x270] sm:$0xff]
  %v106 = vld [vmem:[%s1 + $0x278] sm:$0xff]
  %v107 = vld [vmem:[%s1 + $0x280] sm:$0xff]
  %v108 = vld [vmem:[%s1 + $0x288] sm:$0xff]
  %v109 = vld [vmem:[%s1 + $0x290] sm:$0xff]
  %v110 = vld [vmem:[%s1 + $0x298] sm:$0xff]
  %v111 = vld [vmem:[%s1 + $0x2a0] sm:$0xff]
  %v112 = vld [vmem:[%s1 + $0x2a8] sm:$0xff]
  %v113 = vld [vmem:[%s1 + $0x2b0] sm:$0xff]
  %v114 = vld [vmem:[%s1 + $0x2b8] sm:$0xff]
  %v115 = vld [vmem:[%s1 + $0x2c0] sm:$0xff]
  %v116 = vld [vmem:[%s1 + $0x2c8] sm:$0xff]
  %v117 = vld [vmem:[%s1 + $0x2d0] sm:$0xff]
  %v118 = vld [vmem:[%s1 + $0x2d8] sm:$0xff]
  %v119 = vld [vmem:[%s1 + $0x2e0] sm:$0xff]
  %v120 = vld [vmem:[%s1 + $0x2e8] sm:$0xff]
  %v121 = vld [vmem:[%s1 + $0x2f0] sm:$0xff]
  %v122 = vld [vmem:[%s1 + $0x2f8] sm:$0xff]
  %v123 = vld [vmem:[%s1 + $0x300] sm:$0xff]
  %v124 = vld [vmem:[%s1 + $0x308] sm:$0xff]
  %v125 = vld [vmem:[%s1 + $0x310] sm:$0xff]
  %v126 = vld [vmem:[%s1 + $0x318] sm:$0xff]
  %v127 = vld [vmem:[%s1 + $0x320] sm:$0xff]
  %v128 = vld [vmem:[%s1 + $0x328] sm:$0xff]
  %v129 = vld [vmem:[%s1 + $0x330] sm:$0xff]
  %v130 = vld [vmem:[%s1 + $0x338] sm:$0xff]
  %v131 = vld [vmem:[%s1 + $0x340] sm:$0xff]
  %v132 = vld [vmem:[%s1 + $0x348] sm:$0xff]
  %v133 = vld [vmem:[%s1 + $0x350] sm:$0xff]
  %v134 = vld [vmem:[%s1 + $0x358] sm:$0xff]
  %v135 = vld [vmem:[%s1 + $0x360] sm:$0xff]
  %v136 = vld [vmem:[%s1 + $0x368] sm:$0xff]
  %v137 = vld [vmem:[%s1 + $0x370] sm:$0xff]
  %v138 = vld [vmem:[%s1 + $0x378] sm:$0xff]
  %v139 = vld [vmem:[%s1 + $0x380] sm:$0xff]
  %v140 = vld [vmem:[%s1 + $0x388] sm:$0xff]
  %v141 = vld [vmem:[%s1 + $0x390] sm:$0xff]
  %v142 = vld [vmem:[%s1 + $0x398] sm:$0xff]
  %v143 = vld [vmem:[%s1 + $0x3a0] sm:$0xff]
  %v144 = vld [vmem:[%s1 + $0x3a8] sm:$0xff]
  %v145 = vld [vmem:[%s1 + $0x3b0] sm:$0xff]
  %v146 = vld [vmem:[%s1 + $0x3b8] sm:$0xff]
  %v147 = vld [vmem:[%s1 + $0x3c0] sm:$0xff]
  %v148 = vld [vmem:[%s1 + $0x3c8] sm:$0xff]
  %v149 = vld [vmem:[%s1 + $0x3d0] sm:$0xff]
  %v150 = vld [vmem:[%s1 + $0x3d8] sm:$0xff]
  %v151 = vld [vmem:[%s1 + $0x3e0] sm:$0xff]
  %v152 = vld [vmem:[%s1 + $0x3e8] sm:$0xff]
  %v153 = vld [vmem:[%s1 + $0x3f0] sm:$0xff]
  %v154 = vld [vmem:[%s1 + $0x3f8] sm:$0xff]
  %v155 = vld [vmem:[%s1 + $0x400] sm:$0xff]
  %v156 = vld [vmem:[%s1 + $0x408] sm:$0xff]
  %v157 = vld [vmem:[%s1 + $0x410] sm:$0xff]
  %v158 = vld [vmem:[%s1 + $0x418] sm:$0xff]
  %v159 = vld [vmem:[%s1 + $0x420] sm:$0xff]
  %v160 = vld [vmem:[%s1 + $0x428] sm:$0xff]
  %v161 = vld [vmem:[%s1 + $0x430] sm:$0xff]
  %v162 = vld [vmem:[%s1 + $0x438] sm:$0xff]
  %v163 = vld [vmem:[%s1 + $0x440] sm:$0xff]
  %v164 = vld [vmem:[%s1 + $0x448] sm:$0xff]
  %v165 = vld [vmem:[%s1 + $0x450] sm:$0xff]
  %v166 = vld [vmem:[%s1 + $0x458] sm:$0xff]
  %v167 = vld [vmem:[%s1 + $0x460] sm:$0xff]
  %v168 = vld [vmem:[%s1 + $0x468] sm:$0xff]
  %v169 = vld [vmem:[%s1 + $0x470] sm:$0xff]
  %v170 = vld [vmem:[%s1 + $0x478] sm:$0xff]
  %v171 = vld [vmem:[%s1 + $0x480] sm:$0xff]
  %v172 = vld [vmem:[%s1 + $0x488] sm:$0xff]
  %v173 = vld [vmem:[%s1 + $0x490] sm:$0xff]
  %v174 = vld [vmem:[%s1 + $0x498] sm:$0xff]
  %v175 = vld [vmem:[%s1 + $0x4a0] sm:$0xff]
  %v176 = vld [vmem:[%s1 + $0x4a8] sm:$0xff]
  %v177 = vld [vmem:[%s1 + $0x4b0] sm:$0xff]
  %v178 = vld [vmem:[%s1 + $0x4b8] sm:$0xff]
  %v179 = vld [vmem:[%s1 + $0x4c0] sm:$0xff]
  %v180 = vld [vmem:[%s1 + $0x4c8] sm:$0xff]
  %v181 = vld [vmem:[%s1 + $0x4d0] sm:$0xff]
  %v182 = vld [vmem:[%s1 + $0x4d8] sm:$0xff]
  %v183 = vld [vmem:[%s1 + $0x4e0] sm:$0xff]
  %v184 = vld [vmem:[%s1 + $0x4e8] sm:$0xff]
  %v185 = vld [vmem:[%s1 + $0x4f0] sm:$0xff]
  %v186 = vld [vmem:[%s1 + $0x4f8] sm:$0xff]
  %v187 = vld [vmem:[%s1 + $0x500] sm:$0xff]
  %v188 = vld [vmem:[%s1 + $0x508] sm:$0xff]
  %v189 = vld [vmem:[%s1 + $0x510] sm:$0xff]
  %v190 = vld [vmem:[%s1 + $0x518] sm:$0xff]
  %v191 = vld [vmem:[%s1 + $0x520] sm:$0xff]
  %v192 = vld [vmem:[%s1 + $0x528] sm:$0xff]
  %v193 = vld [vmem:[%s1 + $0x530] sm:$0xff]
  %v194 = vld [vmem:[%s1 + $0x538] sm:$0xff]
  %v195 = vld [vmem:[%s1 + $0x540] sm:$0xff]
  %v196 = vld [vmem:[%s1 + $0x548] sm:$0xff]
  %v197 = vld [vmem:[%s1 + $0x550] sm:$0xff]
  %v198 = vld [vmem:[%s1 + $0x558] sm:$0xff]
  %v199 = vld [vmem:[%s1 + $0x560] sm:$0xff]
  %v200 = vld [vmem:[%s1 + $0x568] sm:$0xff]
  %v201 = vld [vmem:[%s1 + $0x570] sm:$0xff]
  %v202 = vld [vmem:[%s1 + $0x578] sm:$0xff]
  %v203 = vld [vmem:[%s1 + $0x580] sm:$0xff]
  %v204 = vld [vmem:[%s1 + $0x588] sm:$0xff]
  %v205 = vld [vmem:[%s1 + $0x590] sm:$0xff]
  %v206 = vld [vmem:[%s1 + $0x598] sm:$0xff]
  %v207 = vld [vmem:[%s1 + $0x5a0] sm:$0xff]
  %v208 = vld [vmem:[%s1 + $0x5a8] sm:$0xff]
  %v209 = vld [vmem:[%s1 + $0x5b0] sm:$0xff]
  %v210 = vld [vmem:[%s1 + $0x5b8] sm:$0xff]
  %v211 = vld [vmem:[%s1 + $0x5c0] sm:$0xff]
  %v212 = vld [vmem:[%s1 + $0x5c8] sm:$0xff]
  %v213 = vld [vmem:[%s1 + $0x5d0] sm:$0xff]
  %v214 = vld [vmem:[%s1 + $0x5d8] sm:$0xff]
  %v215 = vld [vmem:[%s1 + $0x5e0] sm:$0xff]
  %v216 = vld [vmem:[%s1 + $0x5e8] sm:$0xff]
  %v217 = vld [vmem:[%s1 + $0x5f0] sm:$0xff]
  %v218 = vld [vmem:[%s1 + $0x5f8] sm:$0xff]
  %v219 = vld [vmem:[%s1 + $0x600] sm:$0xff]
  %v220 = vld [vmem:[%s1 + $0x608] sm:$0xff]
  %v221 = vld [vmem:[%s1 + $0x610] sm:$0xff]
  %v222 = vld [vmem:[%s1 + $0x618] sm:$0xff]
  %v223 = vld [vmem:[%s2] sm:$0x1]
  %v225 = vlaneseq
  %v226 = vshrl.u32 %v225, 7
  %v227 = vsub.s32 0, %v226
  %v228 = vrot.slane %v223, %v227
  %vm230 = vcmask 261120
  %v232 = vsel %vm230, %v26, 0
  %234 = vmatprep.subr.mxu0 0.0
  %235 = vmatpush1.msra.mxu0 %v27
  %236 = vmatprep.subr.mxu0 0.0
  %237 = vmatpush1.msra.mxu0 %v28
  %238 = vmatprep.subr.mxu0 0.0
  %239 = vmatpush1.msra.mxu0 %v29
  %240 = vmatprep.subr.mxu0 0.0
  %241 = vmatpush1.msra.mxu0 %v30
  %242 = vmatprep.subr.mxu0 0.0
  %243 = vmatpush1.msra.mxu0 %v31
  %244 = vmatprep.subr.mxu0 0.0
  %245 = vmatpush1.msra.mxu0 %v32
  %246 = vmatprep.subr.mxu0 0.0
  %247 = vmatpush1.msra.mxu0 %v33
  %248 = vmatprep.subr.mxu0 0.0
  %249 = vmatpush1.msra.mxu0 %v34
  %250 = vmatprep.subr.mxu0 0.0
  %251 = vmatpush1.msra.mxu0 %v35
  %252 = vmatprep.subr.mxu0 0.0
  %253 = vmatpush1.msra.mxu0 %v36
  %254 = vmatprep.subr.mxu0 0.0
  %255 = vmatpush1.msra.mxu0 %v37
  %256 = vmatprep.subr.mxu0 0.0
  %257 = vmatpush1.msra.mxu0 %v38
  %258 = vmatprep.subr.mxu0 0.0
  %259 = vmatpush1.msra.mxu0 %v39
  %260 = vmatprep.subr.mxu0 0.0
  %261 = vmatpush1.msra.mxu0 %v40
  %262 = vmatprep.subr.mxu0 0.0
  %263 = vmatpush1.msra.mxu0 %v41
  %264 = vmatprep.subr.mxu0 0.0
  %265 = vmatpush1.msra.mxu0 %v42
  %266 = vmatprep.subr.mxu0 0.0
  %267 = vmatpush1.msra.mxu0 %v43
  %268 = vmatprep.subr.mxu0 0.0
  %269 = vmatpush1.msra.mxu0 %v44
  %270 = vmatprep.subr.mxu0 0.0
  %271 = vmatpush1.msra.mxu0 %v45
  %272 = vmatprep.subr.mxu0 0.0
  %273 = vmatpush1.msra.mxu0 %v46
  %274 = vmatprep.subr.mxu0 0.0
  %275 = vmatpush1.msra.mxu0 %v47
  %276 = vmatprep.subr.mxu0 0.0
  %277 = vmatpush1.msra.mxu0 %v48
  %278 = vmatprep.subr.mxu0 0.0
  %279 = vmatpush1.msra.mxu0 %v49
  %280 = vmatprep.subr.mxu0 0.0
  %281 = vmatpush1.msra.mxu0 %v50
  %282 = vmatprep.subr.mxu0 0.0
  %283 = vmatpush1.msra.mxu0 %v51
  %284 = vmatprep.subr.mxu0 0.0
  %285 = vmatpush1.msra.mxu0 %v52
  %286 = vmatprep.subr.mxu0 0.0
  %287 = vmatpush1.msra.mxu0 %v53
  %288 = vmatprep.subr.mxu0 0.0
  %289 = vmatpush1.msra.mxu0 %v54
  %290 = vmatprep.subr.mxu0 0.0
  %291 = vmatpush1.msra.mxu0 %v55
  %292 = vmatprep.subr.mxu0 0.0
  %293 = vmatpush1.msra.mxu0 %v56
  %294 = vmatprep.subr.mxu0 0.0
  %295 = vmatpush1.msra.mxu0 %v57
  %296 = vmatprep.subr.mxu0 0.0
  %297 = vmatpush1.msra.mxu0 %v58
  %298 = vmatprep.mubr.f32.mxu0 %v15
  %299 = vmatmul.mubr.f32.gmra.mrb[0].mxu0 %v14
  %v300 = vpop.f32.mrb[0].mxu0
  %v301 = vadd.f32 %v228, %v300
  %v302 = vpop.f32.mrb[0].mxu0
  %303 = vdwg.mxu0
  %304 = vmatprep.subr.mxu0 0.0
  %305 = vmatpush1.msra.mxu0 %v59
  %306 = vmatprep.subr.mxu0 0.0
  %307 = vmatpush1.msra.mxu0 %v60
  %308 = vmatprep.subr.mxu0 0.0
  %309 = vmatpush1.msra.mxu0 %v61
  %310 = vmatprep.subr.mxu0 0.0
  %311 = vmatpush1.msra.mxu0 %v62
  %312 = vmatprep.subr.mxu0 0.0
  %313 = vmatpush1.msra.mxu0 %v63
  %314 = vmatprep.subr.mxu0 0.0
  %315 = vmatpush1.msra.mxu0 %v64
  %316 = vmatprep.subr.mxu0 0.0
  %317 = vmatpush1.msra.mxu0 %v65
  %318 = vmatprep.subr.mxu0 0.0
  %319 = vmatpush1.msra.mxu0 %v66
  %320 = vmatprep.subr.mxu0 0.0
  %321 = vmatpush1.msra.mxu0 %v67
  %322 = vmatprep.subr.mxu0 0.0
  %323 = vmatpush1.msra.mxu0 %v68
  %324 = vmatprep.subr.mxu0 0.0
  %325 = vmatpush1.msra.mxu0 %v69
  %326 = vmatprep.subr.mxu0 0.0
  %327 = vmatpush1.msra.mxu0 %v70
  %328 = vmatprep.subr.mxu0 0.0
  %329 = vmatpush1.msra.mxu0 %v71
  %330 = vmatprep.subr.mxu0 0.0
  %331 = vmatpush1.msra.mxu0 %v72
  %332 = vmatprep.subr.mxu0 0.0
  %333 = vmatpush1.msra.mxu0 %v73
  %334 = vmatprep.subr.mxu0 0.0
  %335 = vmatpush1.msra.mxu0 %v74
  %336 = vmatprep.subr.mxu0 0.0
  %337 = vmatpush1.msra.mxu0 %v75
  %338 = vmatprep.subr.mxu0 0.0
  %339 = vmatpush1.msra.mxu0 %v76
  %340 = vmatprep.subr.mxu0 0.0
  %341 = vmatpush1.msra.mxu0 %v77
  %342 = vmatprep.subr.mxu0 0.0
  %343 = vmatpush1.msra.mxu0 %v78
  %344 = vmatprep.subr.mxu0 0.0
  %345 = vmatpush1.msra.mxu0 %v79
  %346 = vmatprep.subr.mxu0 0.0
  %347 = vmatpush1.msra.mxu0 %v80
  %348 = vmatprep.subr.mxu0 0.0
  %349 = vmatpush1.msra.mxu0 %v81
  %350 = vmatprep.subr.mxu0 0.0
  %351 = vmatpush1.msra.mxu0 %v82
  %352 = vmatprep.subr.mxu0 0.0
  %353 = vmatpush1.msra.mxu0 %v83
  %354 = vmatprep.subr.mxu0 0.0
  %355 = vmatpush1.msra.mxu0 %v84
  %356 = vmatprep.subr.mxu0 0.0
  %357 = vmatpush1.msra.mxu0 %v85
  %358 = vmatprep.subr.mxu0 0.0
  %359 = vmatpush1.msra.mxu0 %v86
  %360 = vmatprep.subr.mxu0 0.0
  %361 = vmatpush1.msra.mxu0 %v87
  %362 = vmatprep.subr.mxu0 0.0
  %363 = vmatpush1.msra.mxu0 %v88
  %364 = vmatprep.subr.mxu0 0.0
  %365 = vmatpush1.msra.mxu0 %v89
  %366 = vmatprep.subr.mxu0 0.0
  %367 = vmatpush1.msra.mxu0 %v90
  %368 = vmatprep.mubr.f32.mxu0 %v17
  %369 = vmatmul.mubr.f32.gmra.mrb[0].mxu0 %v16
  %v370 = vpop.f32.mrb[0].mxu0
  %v371 = vadd.f32 %v301, %v370
  %v372 = vpop.f32.mrb[0].mxu0
  %373 = vdwg.mxu0
  %374 = vmatprep.subr.mxu0 0.0
  %375 = vmatpush1.msra.mxu0 %v91
  %376 = vmatprep.subr.mxu0 0.0
  %377 = vmatpush1.msra.mxu0 %v92
  %378 = vmatprep.subr.mxu0 0.0
  %379 = vmatpush1.msra.mxu0 %v93
  %380 = vmatprep.subr.mxu0 0.0
  %381 = vmatpush1.msra.mxu0 %v94
  %382 = vmatprep.subr.mxu0 0.0
  %383 = vmatpush1.msra.mxu0 %v95
  %384 = vmatprep.subr.mxu0 0.0
  %385 = vmatpush1.msra.mxu0 %v96
  %386 = vmatprep.subr.mxu0 0.0
  %387 = vmatpush1.msra.mxu0 %v97
  %388 = vmatprep.subr.mxu0 0.0
  %389 = vmatpush1.msra.mxu0 %v98
  %390 = vmatprep.subr.mxu0 0.0
  %391 = vmatpush1.msra.mxu0 %v99
  %392 = vmatprep.subr.mxu0 0.0
  %393 = vmatpush1.msra.mxu0 %v100
  %394 = vmatprep.subr.mxu0 0.0
  %395 = vmatpush1.msra.mxu0 %v101
  %396 = vmatprep.subr.mxu0 0.0
  %397 = vmatpush1.msra.mxu0 %v102
  %398 = vmatprep.subr.mxu0 0.0
  %399 = vmatpush1.msra.mxu0 %v103
  %400 = vmatprep.subr.mxu0 0.0
  %401 = vmatpush1.msra.mxu0 %v104
  %402 = vmatprep.subr.mxu0 0.0
  %403 = vmatpush1.msra.mxu0 %v105
  %404 = vmatprep.subr.mxu0 0.0
  %405 = vmatpush1.msra.mxu0 %v106
  %406 = vmatprep.subr.mxu0 0.0
  %407 = vmatpush1.msra.mxu0 %v107
  %408 = vmatprep.subr.mxu0 0.0
  %409 = vmatpush1.msra.mxu0 %v108
  %410 = vmatprep.subr.mxu0 0.0
  %411 = vmatpush1.msra.mxu0 %v109
  %412 = vmatprep.subr.mxu0 0.0
  %413 = vmatpush1.msra.mxu0 %v110
  %414 = vmatprep.subr.mxu0 0.0
  %415 = vmatpush1.msra.mxu0 %v111
  %416 = vmatprep.subr.mxu0 0.0
  %417 = vmatpush1.msra.mxu0 %v112
  %418 = vmatprep.subr.mxu0 0.0
  %419 = vmatpush1.msra.mxu0 %v113
  %420 = vmatprep.subr.mxu0 0.0
  %421 = vmatpush1.msra.mxu0 %v114
  %422 = vmatprep.subr.mxu0 0.0
  %423 = vmatpush1.msra.mxu0 %v115
  %424 = vmatprep.subr.mxu0 0.0
  %425 = vmatpush1.msra.mxu0 %v116
  %426 = vmatprep.subr.mxu0 0.0
  %427 = vmatpush1.msra.mxu0 %v117
  %428 = vmatprep.subr.mxu0 0.0
  %429 = vmatpush1.msra.mxu0 %v118
  %430 = vmatprep.subr.mxu0 0.0
  %431 = vmatpush1.msra.mxu0 %v119
  %432 = vmatprep.subr.mxu0 0.0
  %433 = vmatpush1.msra.mxu0 %v120
  %434 = vmatprep.subr.mxu0 0.0
  %435 = vmatpush1.msra.mxu0 %v121
  %436 = vmatprep.subr.mxu0 0.0
  %437 = vmatpush1.msra.mxu0 %v122
  %438 = vmatprep.mubr.f32.mxu0 %v19
  %439 = vmatmul.mubr.f32.gmra.mrb[0].mxu0 %v18
  %v440 = vpop.f32.mrb[0].mxu0
  %v441 = vadd.f32 %v371, %v440
  %v442 = vpop.f32.mrb[0].mxu0
  %443 = vdwg.mxu0
  %444 = vmatprep.subr.mxu0 0.0
  %445 = vmatpush1.msra.mxu0 %v123
  %446 = vmatprep.subr.mxu0 0.0
  %447 = vmatpush1.msra.mxu0 %v124
  %448 = vmatprep.subr.mxu0 0.0
  %449 = vmatpush1.msra.mxu0 %v125
  %450 = vmatprep.subr.mxu0 0.0
  %451 = vmatpush1.msra.mxu0 %v126
  %452 = vmatprep.subr.mxu0 0.0
  %453 = vmatpush1.msra.mxu0 %v127
  %454 = vmatprep.subr.mxu0 0.0
  %455 = vmatpush1.msra.mxu0 %v128
  %456 = vmatprep.subr.mxu0 0.0
  %457 = vmatpush1.msra.mxu0 %v129
  %458 = vmatprep.subr.mxu0 0.0
  %459 = vmatpush1.msra.mxu0 %v130
  %460 = vmatprep.subr.mxu0 0.0
  %461 = vmatpush1.msra.mxu0 %v131
  %462 = vmatprep.subr.mxu0 0.0
  %463 = vmatpush1.msra.mxu0 %v132
  %464 = vmatprep.subr.mxu0 0.0
  %465 = vmatpush1.msra.mxu0 %v133
  %466 = vmatprep.subr.mxu0 0.0
  %467 = vmatpush1.msra.mxu0 %v134
  %468 = vmatprep.subr.mxu0 0.0
  %469 = vmatpush1.msra.mxu0 %v135
  %470 = vmatprep.subr.mxu0 0.0
  %471 = vmatpush1.msra.mxu0 %v136
  %472 = vmatprep.subr.mxu0 0.0
  %473 = vmatpush1.msra.mxu0 %v137
  %474 = vmatprep.subr.mxu0 0.0
  %475 = vmatpush1.msra.mxu0 %v138
  %476 = vmatprep.subr.mxu0 0.0
  %477 = vmatpush1.msra.mxu0 %v139
  %478 = vmatprep.subr.mxu0 0.0
  %479 = vmatpush1.msra.mxu0 %v140
  %480 = vmatprep.subr.mxu0 0.0
  %481 = vmatpush1.msra.mxu0 %v141
  %482 = vmatprep.subr.mxu0 0.0
  %483 = vmatpush1.msra.mxu0 %v142
  %484 = vmatprep.subr.mxu0 0.0
  %485 = vmatpush1.msra.mxu0 %v143
  %486 = vmatprep.subr.mxu0 0.0
  %487 = vmatpush1.msra.mxu0 %v144
  %488 = vmatprep.subr.mxu0 0.0
  %489 = vmatpush1.msra.mxu0 %v145
  %490 = vmatprep.subr.mxu0 0.0
  %491 = vmatpush1.msra.mxu0 %v146
  %492 = vmatprep.subr.mxu0 0.0
  %493 = vmatpush1.msra.mxu0 %v147
  %494 = vmatprep.subr.mxu0 0.0
  %495 = vmatpush1.msra.mxu0 %v148
  %496 = vmatprep.subr.mxu0 0.0
  %497 = vmatpush1.msra.mxu0 %v149
  %498 = vmatprep.subr.mxu0 0.0
  %499 = vmatpush1.msra.mxu0 %v150
  %500 = vmatprep.subr.mxu0 0.0
  %501 = vmatpush1.msra.mxu0 %v151
  %502 = vmatprep.subr.mxu0 0.0
  %503 = vmatpush1.msra.mxu0 %v152
  %504 = vmatprep.subr.mxu0 0.0
  %505 = vmatpush1.msra.mxu0 %v153
  %506 = vmatprep.subr.mxu0 0.0
  %507 = vmatpush1.msra.mxu0 %v154
  %508 = vmatprep.mubr.f32.mxu0 %v21
  %509 = vmatmul.mubr.f32.gmra.mrb[0].mxu0 %v20
  %v510 = vpop.f32.mrb[0].mxu0
  %v511 = vadd.f32 %v441, %v510
  %v512 = vpop.f32.mrb[0].mxu0
  %513 = vdwg.mxu0
  %514 = vmatprep.subr.mxu0 0.0
  %515 = vmatpush1.msra.mxu0 %v155
  %516 = vmatprep.subr.mxu0 0.0
  %517 = vmatpush1.msra.mxu0 %v156
  %518 = vmatprep.subr.mxu0 0.0
  %519 = vmatpush1.msra.mxu0 %v157
  %520 = vmatprep.subr.mxu0 0.0
  %521 = vmatpush1.msra.mxu0 %v158
  %522 = vmatprep.subr.mxu0 0.0
  %523 = vmatpush1.msra.mxu0 %v159
  %524 = vmatprep.subr.mxu0 0.0
  %525 = vmatpush1.msra.mxu0 %v160
  %526 = vmatprep.subr.mxu0 0.0
  %527 = vmatpush1.msra.mxu0 %v161
  %528 = vmatprep.subr.mxu0 0.0
  %529 = vmatpush1.msra.mxu0 %v162
  %530 = vmatprep.subr.mxu0 0.0
  %531 = vmatpush1.msra.mxu0 %v163
  %532 = vmatprep.subr.mxu0 0.0
  %533 = vmatpush1.msra.mxu0 %v164
  %534 = vmatprep.subr.mxu0 0.0
  %535 = vmatpush1.msra.mxu0 %v165
  %536 = vmatprep.subr.mxu0 0.0
  %537 = vmatpush1.msra.mxu0 %v166
  %538 = vmatprep.subr.mxu0 0.0
  %539 = vmatpush1.msra.mxu0 %v167
  %540 = vmatprep.subr.mxu0 0.0
  %541 = vmatpush1.msra.mxu0 %v168
  %542 = vmatprep.subr.mxu0 0.0
  %543 = vmatpush1.msra.mxu0 %v169
  %544 = vmatprep.subr.mxu0 0.0
  %545 = vmatpush1.msra.mxu0 %v170
  %546 = vmatprep.subr.mxu0 0.0
  %547 = vmatpush1.msra.mxu0 %v171
  %548 = vmatprep.subr.mxu0 0.0
  %549 = vmatpush1.msra.mxu0 %v172
  %550 = vmatprep.subr.mxu0 0.0
  %551 = vmatpush1.msra.mxu0 %v173
  %552 = vmatprep.subr.mxu0 0.0
  %553 = vmatpush1.msra.mxu0 %v174
  %554 = vmatprep.subr.mxu0 0.0
  %555 = vmatpush1.msra.mxu0 %v175
  %556 = vmatprep.subr.mxu0 0.0
  %557 = vmatpush1.msra.mxu0 %v176
  %558 = vmatprep.subr.mxu0 0.0
  %559 = vmatpush1.msra.mxu0 %v177
  %560 = vmatprep.subr.mxu0 0.0
  %561 = vmatpush1.msra.mxu0 %v178
  %562 = vmatprep.subr.mxu0 0.0
  %563 = vmatpush1.msra.mxu0 %v179
  %564 = vmatprep.subr.mxu0 0.0
  %565 = vmatpush1.msra.mxu0 %v180
  %566 = vmatprep.subr.mxu0 0.0
  %567 = vmatpush1.msra.mxu0 %v181
  %568 = vmatprep.subr.mxu0 0.0
  %569 = vmatpush1.msra.mxu0 %v182
  %570 = vmatprep.subr.mxu0 0.0
  %571 = vmatpush1.msra.mxu0 %v183
  %572 = vmatprep.subr.mxu0 0.0
  %573 = vmatpush1.msra.mxu0 %v184
  %574 = vmatprep.subr.mxu0 0.0
  %575 = vmatpush1.msra.mxu0 %v185
  %576 = vmatprep.subr.mxu0 0.0
  %577 = vmatpush1.msra.mxu0 %v186
  %578 = vmatprep.mubr.f32.mxu0 %v23
  %579 = vmatmul.mubr.f32.gmra.mrb[0].mxu0 %v22
  %v580 = vpop.f32.mrb[0].mxu0
  %v581 = vadd.f32 %v511, %v580
  %v582 = vpop.f32.mrb[0].mxu0
  %583 = vdwg.mxu0
  %584 = vmatprep.subr.mxu0 0.0
  %585 = vmatpush1.msra.mxu0 %v187
  %586 = vmatprep.subr.mxu0 0.0
  %587 = vmatpush1.msra.mxu0 %v188
  %588 = vmatprep.subr.mxu0 0.0
  %589 = vmatpush1.msra.mxu0 %v189
  %590 = vmatprep.subr.mxu0 0.0
  %591 = vmatpush1.msra.mxu0 %v190
  %592 = vmatprep.subr.mxu0 0.0
  %593 = vmatpush1.msra.mxu0 %v191
  %594 = vmatprep.subr.mxu0 0.0
  %595 = vmatpush1.msra.mxu0 %v192
  %596 = vmatprep.subr.mxu0 0.0
  %597 = vmatpush1.msra.mxu0 %v193
  %598 = vmatprep.subr.mxu0 0.0
  %599 = vmatpush1.msra.mxu0 %v194
  %600 = vmatprep.subr.mxu0 0.0
  %601 = vmatpush1.msra.mxu0 %v195
  %602 = vmatprep.subr.mxu0 0.0
  %603 = vmatpush1.msra.mxu0 %v196
  %604 = vmatprep.subr.mxu0 0.0
  %605 = vmatpush1.msra.mxu0 %v197
  %606 = vmatprep.subr.mxu0 0.0
  %607 = vmatpush1.msra.mxu0 %v198
  %608 = vmatprep.subr.mxu0 0.0
  %609 = vmatpush1.msra.mxu0 %v199
  %610 = vmatprep.subr.mxu0 0.0
  %611 = vmatpush1.msra.mxu0 %v200
  %612 = vmatprep.subr.mxu0 0.0
  %613 = vmatpush1.msra.mxu0 %v201
  %614 = vmatprep.subr.mxu0 0.0
  %615 = vmatpush1.msra.mxu0 %v202
  %616 = vmatprep.subr.mxu0 0.0
  %617 = vmatpush1.msra.mxu0 %v203
  %618 = vmatprep.subr.mxu0 0.0
  %619 = vmatpush1.msra.mxu0 %v204
  %620 = vmatprep.subr.mxu0 0.0
  %621 = vmatpush1.msra.mxu0 %v205
  %622 = vmatprep.subr.mxu0 0.0
  %623 = vmatpush1.msra.mxu0 %v206
  %624 = vmatprep.subr.mxu0 0.0
  %625 = vmatpush1.msra.mxu0 %v207
  %626 = vmatprep.subr.mxu0 0.0
  %627 = vmatpush1.msra.mxu0 %v208
  %628 = vmatprep.subr.mxu0 0.0
  %629 = vmatpush1.msra.mxu0 %v209
  %630 = vmatprep.subr.mxu0 0.0
  %631 = vmatpush1.msra.mxu0 %v210
  %632 = vmatprep.subr.mxu0 0.0
  %633 = vmatpush1.msra.mxu0 %v211
  %634 = vmatprep.subr.mxu0 0.0
  %635 = vmatpush1.msra.mxu0 %v212
  %636 = vmatprep.subr.mxu0 0.0
  %637 = vmatpush1.msra.mxu0 %v213
  %638 = vmatprep.subr.mxu0 0.0
  %639 = vmatpush1.msra.mxu0 %v214
  %640 = vmatprep.subr.mxu0 0.0
  %641 = vmatpush1.msra.mxu0 %v215
  %642 = vmatprep.subr.mxu0 0.0
  %643 = vmatpush1.msra.mxu0 %v216
  %644 = vmatprep.subr.mxu0 0.0
  %645 = vmatpush1.msra.mxu0 %v217
  %646 = vmatprep.subr.mxu0 0.0
  %647 = vmatpush1.msra.mxu0 %v218
  %648 = vmatprep.mubr.f32.mxu0 %v25
  %649 = vmatmul.mubr.f32.gmra.mrb[0].mxu0 %v24
  %v650 = vpop.f32.mrb[0].mxu0
  %v651 = vadd.f32 %v581, %v650
  %v652 = vpop.f32.mrb[0].mxu0
  %653 = vdwg.mxu0
  %654 = vmatprep.subr.mxu0 0.0
  %655 = vmatpush1.msra.mxu0 %v219
  %656 = vmatprep.subr.mxu0 0.0
  %657 = vmatpush1.msra.mxu0 %v220
  %658 = vmatprep.subr.mxu0 0.0
  %659 = vmatpush1.msra.mxu0 %v221
  %660 = vmatprep.subr.mxu0 0.0
  %661 = vmatpush1.msra.mxu0 %v222
  %662 = vmatprep.subr.mxu0 0.0
  %663 = vmatpush1.msra.mxu0 0.0
  %664 = vmatprep.subr.mxu0 0.0
  %665 = vmatpush1.msra.mxu0 0.0
  %666 = vmatprep.subr.mxu0 0.0
  %667 = vmatpush1.msra.mxu0 0.0
  %668 = vmatprep.subr.mxu0 0.0
  %669 = vmatpush1.msra.mxu0 0.0
  %670 = vmatprep.subr.mxu0 0.0
  %671 = vmatpush1.msra.mxu0 0.0
  %672 = vmatprep.subr.mxu0 0.0
  %673 = vmatpush1.msra.mxu0 0.0
  %674 = vmatprep.subr.mxu0 0.0
  %675 = vmatpush1.msra.mxu0 0.0
  %676 = vmatprep.subr.mxu0 0.0
  %677 = vmatpush1.msra.mxu0 0.0
  %678 = vmatprep.subr.mxu0 0.0
  %679 = vmatpush1.msra.mxu0 0.0
  %680 = vmatprep.subr.mxu0 0.0
  %681 = vmatpush1.msra.mxu0 0.0
  %682 = vmatprep.subr.mxu0 0.0
  %683 = vmatpush1.msra.mxu0 0.0
  %684 = vmatprep.subr.mxu0 0.0
  %685 = vmatpush1.msra.mxu0 0.0
  %686 = vmatprep.subr.mxu0 0.0
  %687 = vmatpush1.msra.mxu0 0.0
  %688 = vmatprep.subr.mxu0 0.0
  %689 = vmatpush1.msra.mxu0 0.0
  %690 = vmatprep.subr.mxu0 0.0
  %691 = vmatpush1.msra.mxu0 0.0
  %692 = vmatprep.subr.mxu0 0.0
  %693 = vmatpush1.msra.mxu0 0.0
  %694 = vmatprep.subr.mxu0 0.0
  %695 = vmatpush1.msra.mxu0 0.0
  %696 = vmatprep.subr.mxu0 0.0
  %697 = vmatpush1.msra.mxu0 0.0
  %698 = vmatprep.subr.mxu0 0.0
  %699 = vmatpush1.msra.mxu0 0.0
  %700 = vmatprep.subr.mxu0 0.0
  %701 = vmatpush1.msra.mxu0 0.0
  %702 = vmatprep.subr.mxu0 0.0
  %703 = vmatpush1.msra.mxu0 0.0
  %704 = vmatprep.subr.mxu0 0.0
  %705 = vmatpush1.msra.mxu0 0.0
  %706 = vmatprep.subr.mxu0 0.0
  %707 = vmatpush1.msra.mxu0 0.0
  %708 = vmatprep.subr.mxu0 0.0
  %709 = vmatpush1.msra.mxu0 0.0
  %710 = vmatprep.subr.mxu0 0.0
  %711 = vmatpush1.msra.mxu0 0.0
  %712 = vmatprep.subr.mxu0 0.0
  %713 = vmatpush1.msra.mxu0 0.0
  %714 = vmatprep.subr.mxu0 0.0
  %715 = vmatpush1.msra.mxu0 0.0
  %716 = vmatprep.subr.mxu0 0.0
  %717 = vmatpush1.msra.mxu0 0.0
  %718 = vmatprep.mubr.f32.mxu0 0.0
  %719 = vmatmul.mubr.f32.gmra.mrb[0].mxu0 %v232
  %v720 = vpop.f32.mrb[0].mxu0
  %v721 = vadd.f32 %v651, %v720
  %v722 = vpop.f32.mrb[0].mxu0
  %723 = vdwg.mxu0
  %vm724 = vcmask 80896
  %v725 = vsel %vm724, %v721, -inf
  %726 = vmax.xlane.f32.xlu0 %v725
  %v727 = vpop.xlane.xlu0 %726
  %v728 = vsub.f32 %v721, %v727
  %v729 = vmul.f32 %v728, 1.442695
  %v730 = vpow.pop %v729
  %v731 = vsel %vm724, %v730, 0.0
  %732 = vadd.xlane.f32.xlu0 %v731
  %v733 = vpop.xlane.xlu0 %732
  %v734 = vlog2.pop %v733
  %v735 = vmul.f32 %v734, 0.6931472
  %v736 = vadd.f32 %v735, %v727
  %v737 = vsub.f32 %v721, %v736
  %738 = vst.msk [vmem:[%s3] sm:$0xff] %vm724, %v737
  // Predicated region
  $region14: #{net_fashionmnist_forward.5} parent=0 // pred_check
    _
  $region15: #{net_fashionmnist_forward.5} parent=0 // pred_check_branch
    %740 = sbr.rel (0) target = $region17
  $region16: #{net_fashionmnist_forward.5} parent=0 // pred_region
    _
  $region17: #{net_fashionmnist_forward.5} parent=0 // pred_fallthru
    _
  // Predicated region
  $region18: #{net_fashionmnist_forward.5} parent=0 // pred_check
    _
  $region19: #{net_fashionmnist_forward.5} parent=0 // pred_check_branch
    %742 = sbr.rel (0) target = $region21
  $region20: #{net_fashionmnist_forward.5} parent=0 // pred_region
    _
  $region21: #{net_fashionmnist_forward.5} parent=0 // pred_fallthru
    _

// kernel: net_fashionmnist_forward.3
$region0: #{net_fashionmnist_forward.3}
  #allocation0 [shape = 'u32[]', space=smem, size = 0x4, offset = 0x4, fixed_abs, tag = 'smem constant byte address 0x4 - core index']
  #allocation1 [shape = 'u32[144,128]{1,0:T(1,128)}', space=vmem, size = 0x12000, scoped, tag = 'internal scratch']
  %s0 = inlined_call_operand.vmem [shape: bf16[2,2,16,32], index: 0, kind: input, shape index: {}]
  %s1 = inlined_call_operand.hbm [shape: bf16[10,32,224], index: 1, kind: input, shape index: {}]
  %s2 = inlined_call_operand.hbm [shape: f32[1,224], index: 2, kind: input, shape index: {}]
  %s3 = inlined_call_operand.hbm [shape: f32[1,224], index: 3, kind: input, shape index: {}]
  %s4 = inlined_call_operand.vmem [shape: bf16[2,14,224], index: 4, kind: output, shape index: {}]
  %s5 = sld [smem:[#allocation0]]
  $region61: #{net_fashionmnist_forward.3} parent=0
    _
  %s7 = ssub.s32 1, %s5
  %s8 = scalar_select 0, %s7, %s5
  $region1: #{net_fashionmnist_forward.3} parent=0
    #allocation2 [shape = 'u8[163840]{0}', space=vmem, size = 0x28000, scoped, tag = 'input window, operand 1, single buffered']
    #allocation3 [shape = 's32[2]{0}', space=sflag, size = 0x8, scoped, tag = 'scoped memory for net_fashionmnist_forward.3']
    #allocation4 [shape = 'u8[1024]{0}', space=vmem, size = 0x400, scoped, tag = 'input window, operand 2, single buffered']
    #allocation5 [shape = 's32[1]{0}', space=sflag, size = 0x4, scoped, tag = 'scoped memory for net_fashionmnist_forward.3']
    #allocation6 [shape = 'u8[1024]{0}', space=vmem, size = 0x400, scoped, tag = 'input window, operand 3, single buffered']
    %9 = vsyncpa [#allocation3], 0
    %10 = vsyncpa [#allocation5], 0
    loop: start=0, step=1, limit=4
    $region2: #{net_fashionmnist_forward.3} parent=1 // loop_pre_header
      _
    $region3: #{net_fashionmnist_forward.3} parent=1 // loop_header
      %s12 = sphi 0, %s16
      %p13 = scmp.ge.s32.totalorder %s12, 4
      %s22 = sphi 0, %s24
      %s25 = sphi 0, %s22
      %s26 = sphi 0, %s25
      %s42 = sphi 0, %s26
      %s46 = sphi 0, %s46
      %s48 = sphi 0, %s46
      %s49 = sphi 0, %s48
      %s63 = sphi 0, %s49
      %s67 = sphi 0, %s67
      %s69 = sphi 0, %s67
      %s70 = sphi 0, %s69
      %s84 = sphi 0, %s70
      %s88 = sphi 0, %s88
      %s90 = sphi 0, %s88
      %s91 = sphi 0, %s90
      %s105 = sphi 0, %s91
      %s111 = sphi 0, %s113
      %s114 = sphi 0, %s111
      %s115 = sphi 0, %s114
      %s131 = sphi 0, %s115
    $region4: #{net_fashionmnist_forward.3} parent=1 // loop_header_branch
      %15 = sbr.rel (%p13) target = $region8
    $region5: #{net_fashionmnist_forward.3} parent=1 // loop_body
      %s17 = ssub.s32 %s12, 1
      %s18 = ssub.s32 %s12, 2
      %s19 = sadd.s32 %s12, 1
      %s20 = ssub.s32 %s12, %s19
      %p21 = scmp.eq.s32.totalorder %s20, 0
      %s23 = sadd.s32 %s22, 1
      %s24 = scalar_select %p21, %s22, %s23
      %p27 = pneg %p21
      %p28 = scmp.eq.s32.totalorder %s12, 1
      %p29 = por %p27, %p28
      %p30 = scmp.ne.s32.totalorder %s22, %s25
      %p31 = scmp.eq.s32.totalorder %s12, 0
      %p32 = por %p30, %p31
      %p33 = scmp.ne.s32.totalorder %s22, %s25
      %p34 = scmp.eq.s32.totalorder %s17, 1
      %p35 = por %p33, %p34
      %p36 = scmp.ne.s32.totalorder %s25, %s26
      %p37 = scmp.eq.s32.totalorder %s17, 0
      %p38 = por %p36, %p37
      %p39 = scmp.ne.s32.totalorder %s25, %s26
      %p40 = scmp.eq.s32.totalorder %s18, 1
      %p41 = por %p39, %p40
      %p43 = scmp.ne.s32.totalorder %s26, %s42
      %p44 = scmp.eq.s32.totalorder %s18, 0
      %p45 = por %p43, %p44
      %s47 = sadd.s32 %s46, 1
      %p50 = scmp.eq.s32.totalorder %s12, 1
      %p51 = scmp.ne.s32.totalorder %s46, %s48
      %p52 = scmp.eq.s32.totalorder %s12, 0
      %p53 = por %p51, %p52
      %p54 = scmp.ne.s32.totalorder %s46, %s48
      %p55 = scmp.eq.s32.totalorder %s17, 1
      %p56 = por %p54, %p55
      %p57 = scmp.ne.s32.totalorder %s48, %s49
      %p58 = scmp.eq.s32.totalorder %s17, 0
      %p59 = por %p57, %p58
      %p60 = scmp.ne.s32.totalorder %s48, %s49
      %p61 = scmp.eq.s32.totalorder %s18, 1
      %p62 = por %p60, %p61
      %p64 = scmp.ne.s32.totalorder %s49, %s63
      %p65 = scmp.eq.s32.totalorder %s18, 0
      %p66 = por %p64, %p65
      %s68 = sadd.s32 %s67, 1
      %p71 = scmp.eq.s32.totalorder %s12, 1
      %p72 = scmp.ne.s32.totalorder %s67, %s69
      %p73 = scmp.eq.s32.totalorder %s12, 0
      %p74 = por %p72, %p73
      %p75 = scmp.ne.s32.totalorder %s67, %s69
      %p76 = scmp.eq.s32.totalorder %s17, 1
      %p77 = por %p75, %p76
      %p78 = scmp.ne.s32.totalorder %s69, %s70
      %p79 = scmp.eq.s32.totalorder %s17, 0
      %p80 = por %p78, %p79
      %p81 = scmp.ne.s32.totalorder %s69, %s70
      %p82 = scmp.eq.s32.totalorder %s18, 1
      %p83 = por %p81, %p82
      %p85 = scmp.ne.s32.totalorder %s70, %s84
      %p86 = scmp.eq.s32.totalorder %s18, 0
      %p87 = por %p85, %p86
      %s89 = sadd.s32 %s88, 1
      %p92 = scmp.eq.s32.totalorder %s12, 1
      %p93 = scmp.ne.s32.totalorder %s88, %s90
      %p94 = scmp.eq.s32.totalorder %s12, 0
      %p95 = por %p93, %p94
      %p96 = scmp.ne.s32.totalorder %s88, %s90
      %p97 = scmp.eq.s32.totalorder %s17, 1
      %p98 = por %p96, %p97
      %p99 = scmp.ne.s32.totalorder %s90, %s91
      %p100 = scmp.eq.s32.totalorder %s17, 0
      %p101 = por %p99, %p100
      %p102 = scmp.ne.s32.totalorder %s90, %s91
      %p103 = scmp.eq.s32.totalorder %s18, 1
      %p104 = por %p102, %p103
      %p106 = scmp.ne.s32.totalorder %s91, %s105
      %p107 = scmp.eq.s32.totalorder %s18, 0
      %p108 = por %p106, %p107
      %s109 = ssub.s32 %s12, %s19
      %p110 = scmp.eq.s32.totalorder %s109, 0
      %s112 = sadd.s32 %s111, 1
      %s113 = scalar_select %p110, %s111, %s112
      %p116 = pneg %p110
      %p117 = scmp.eq.s32.totalorder %s12, 1
      %p118 = por %p116, %p117
      %p119 = scmp.ne.s32.totalorder %s111, %s114
      %p120 = scmp.eq.s32.totalorder %s12, 0
      %p121 = por %p119, %p120
      %p122 = scmp.ne.s32.totalorder %s111, %s114
      %p123 = scmp.eq.s32.totalorder %s17, 1
      %p124 = por %p122, %p123
      %p125 = scmp.ne.s32.totalorder %s114, %s115
      %p126 = scmp.eq.s32.totalorder %s17, 0
      %p127 = por %p125, %p126
      %p128 = scmp.ne.s32.totalorder %s114, %s115
      %p129 = scmp.eq.s32.totalorder %s18, 1
      %p130 = por %p128, %p129
      %p132 = scmp.ne.s32.totalorder %s115, %s131
      %p133 = scmp.eq.s32.totalorder %s18, 0
      %p134 = por %p132, %p133
      %p135 = scmp.le.s32.totalorder 1, %s12
      %p136 = scmp.lt.s32.totalorder %s12, 3
      %p137 = pnand %p135, %p136
      %p138 = pneg %p137
      // Predicated region
      $region9: #{net_fashionmnist_forward.3} parent=5 // pred_check
        _
      $region10: #{net_fashionmnist_forward.3} parent=5 // pred_check_branch
        %140 = sbr.rel (%p137) target = $region12
      $region11: #{net_fashionmnist_forward.3} parent=5 // pred_region
        %s141 = ssub.s32 %s12, 1
        // Predicated region
        $region13: #{net_fashionmnist_forward.3} parent=11 // pred_check
          %p142 = pneg %p59
        $region14: #{net_fashionmnist_forward.3} parent=11 // pred_check_branch
          %144 = sbr.rel (%p142) target = $region16
        $region15: #{net_fashionmnist_forward.3} parent=11 // pred_region
          %s146 = ssub.s32 5120, 5120
          %147 = vsyncadd [#allocation3], %s146
          %s148 = sshll.u32 [#allocation2], 4
          %s149 = int_to_ptr.vmem [resolvable:$true] %s148
          %154 = dma.hbm_to_vmem [thread:$0]  %s1, 5120, %s149, [#allocation3], 128, 128, 8
        $region16: #{net_fashionmnist_forward.3} parent=11 // pred_fallthru
          _
        // Predicated region
        $region17: #{net_fashionmnist_forward.3} parent=11 // pred_check
          %p155 = pneg %p80
        $region18: #{net_fashionmnist_forward.3} parent=11 // pred_check_branch
          %157 = sbr.rel (%p155) target = $region20
        $region19: #{net_fashionmnist_forward.3} parent=11 // pred_region
          %s159 = ssub.s32 32, 32
          %160 = vsyncadd [#allocation5], %s159
          %s162 = sshll.u32 [#allocation4], 4
          %s163 = int_to_ptr.vmem [resolvable:$true] %s162
          %165 = dma.hbm_to_vmem [thread:$0]  %s2, 32, %s163, [#allocation5]
        $region20: #{net_fashionmnist_forward.3} parent=11 // pred_fallthru
          _
        // Predicated region
        $region21: #{net_fashionmnist_forward.3} parent=11 // pred_check
          %p166 = pneg %p101
        $region22: #{net_fashionmnist_forward.3} parent=11 // pred_check_branch
          %168 = sbr.rel (%p166) target = $region24
        $region23: #{net_fashionmnist_forward.3} parent=11 // pred_region
          %s170 = ssub.s32 32, 32
          %171 = vsyncadd [#allocation5], %s170
          %s173 = sshll.u32 [#allocation6], 4
          %s174 = int_to_ptr.vmem [resolvable:$true] %s173
          %176 = dma.hbm_to_vmem [thread:$0]  %s3, 32, %s174, [#allocation5]
        $region24: #{net_fashionmnist_forward.3} parent=11 // pred_fallthru
          _
      $region12: #{net_fashionmnist_forward.3} parent=5 // pred_fallthru
        _
      %p177 = scmp.lt.s32.totalorder %s12, 2
      // Predicated region
      $region25: #{net_fashionmnist_forward.3} parent=5 // pred_check
        %p178 = pneg %p177
      $region26: #{net_fashionmnist_forward.3} parent=5 // pred_check_branch
        %180 = sbr.rel (%p178) target = $region28
      $region27: #{net_fashionmnist_forward.3} parent=5 // pred_region
        // Predicated region
        $region29: #{net_fashionmnist_forward.3} parent=27 // pred_check
          %p181 = pneg %p32
        $region30: #{net_fashionmnist_forward.3} parent=27 // pred_check_branch
          %183 = sbr.rel (%p181) target = $region32
        $region31: #{net_fashionmnist_forward.3} parent=27 // pred_region
          %p184 = scmp.lt.s32.totalorder %s12, 1
          %s185 = scalar_select %p184, %s12, 1
          %s186 = smul.addr %s185, 4
          %s187 = smul.addr %s186, 4
          %s188 = scalar_lea.vmem %s0, %s187
        $region32: #{net_fashionmnist_forward.3} parent=27 // pred_fallthru
          _
      $region28: #{net_fashionmnist_forward.3} parent=5 // pred_fallthru
        _
      %p189 = scmp.le.s32.totalorder 1, %s12
      %p190 = scmp.lt.s32.totalorder %s12, 3
      %p191 = pnand %p189, %p190
      %p192 = pneg %p191
      // Predicated region
      $region33: #{net_fashionmnist_forward.3} parent=5 // pred_check
        _
      $region34: #{net_fashionmnist_forward.3} parent=5 // pred_check_branch
        %194 = sbr.rel (%p191) target = $region36
      $region35: #{net_fashionmnist_forward.3} parent=5 // pred_region
        %s195 = ssub.s32 %s12, 1
        // Predicated region
        $region37: #{net_fashionmnist_forward.3} parent=35 // pred_check
          %p196 = pneg %p59
        $region38: #{net_fashionmnist_forward.3} parent=35 // pred_check_branch
          %198 = sbr.rel (%p196) target = $region40
        $region39: #{net_fashionmnist_forward.3} parent=35 // pred_region
          %199 = dma.done [#allocation3], 5120
        $region40: #{net_fashionmnist_forward.3} parent=35 // pred_fallthru
          _
        // Predicated region
        $region41: #{net_fashionmnist_forward.3} parent=35 // pred_check
          %p200 = pneg %p80
        $region42: #{net_fashionmnist_forward.3} parent=35 // pred_check_branch
          %202 = sbr.rel (%p200) target = $region44
        $region43: #{net_fashionmnist_forward.3} parent=35 // pred_region
          %203 = dma.done [#allocation5], 32
        $region44: #{net_fashionmnist_forward.3} parent=35 // pred_fallthru
          _
        // Predicated region
        $region45: #{net_fashionmnist_forward.3} parent=35 // pred_check
          %p204 = pneg %p101
        $region46: #{net_fashionmnist_forward.3} parent=35 // pred_check_branch
          %206 = sbr.rel (%p204) target = $region48
        $region47: #{net_fashionmnist_forward.3} parent=35 // pred_region
          %207 = dma.done [#allocation5], 32
        $region48: #{net_fashionmnist_forward.3} parent=35 // pred_fallthru
          _
        %p208 = scmp.lt.s32.totalorder %s17, 1
        %s209 = scalar_select %p208, %s17, 1
        %s210 = smul.addr %s209, 4
        %s211 = smul.addr %s210, 4
        %s212 = scalar_lea.vmem %s0, %s211
        %p213 = pneg %p38
        %p214 = pneg %p35
        %p215 = pneg %p59
        %p216 = pneg %p56
        %p217 = pneg %p80
        %p218 = pneg %p77
        %p219 = pneg %p101
        %p220 = pneg %p98
        %p221 = pneg %p127
        %p222 = pneg %p124
        %p223 = scmp.lt.s32.totalorder %s17, 1
        %s224 = scalar_select %p223, %s17, 1
        %s225 = smul.addr %s224, 4
        %s226 = smul.addr %s225, 4
        %s227 = scalar_lea.vmem %s4, %s226
        %p228 = scmp.lt.s32.totalorder %s17, 1
        %s229 = scalar_select %p228, %s17, 1
        %s230 = smul.addr %s229, 4
        %s231 = smul.addr %s230, 4
        %s232 = scalar_lea.vmem %s0, %s231
        %p233 = scmp.lt.s32.totalorder %s17, 1
        %s234 = scalar_select %p233, %s17, 1
        %s235 = smul.addr %s234, 4
        %s236 = smul.addr %s235, 4
        %s237 = scalar_lea.vmem %s4, %s236
        %v239 = vld [vmem:[%s232] sm:$0xf]
        %v240 = vld [vmem:[%s232 + $0x4] sm:$0x7]
        %v241 = vld [vmem:[#allocation2] sm:$0xff]
        %v242 = vld [vmem:[#allocation2 + $0x8] sm:$0xff]
        %v243 = vld [vmem:[#allocation2 + $0x10] sm:$0xff]
        %v244 = vld [vmem:[#allocation2 + $0x18] sm:$0xff]
        %s245 = scalar_lea.vmem %s232, 8
        %v246 = vld [vmem:[%s245] sm:$0xf]
        %v247 = vld [vmem:[%s245 + $0x4] sm:$0x7]
        %s248 = scalar_lea.vmem [#allocation2], 64
        %v249 = vld [vmem:[%s248] sm:$0xff]
        %v250 = vld [vmem:[%s248 + $0x8] sm:$0xff]
        %v251 = vld [vmem:[%s248 + $0x10] sm:$0xff]
        %v252 = vld [vmem:[%s248 + $0x18] sm:$0xff]
        %v255 = vunpack.c.l.b16 %v246
        %v256 = vunpack.c.l.b16 %v247
        %v257 = vpack.c.b16 %v256, %v255
        %v262 = vunpack.c.l.b16 %v249
        %v263 = vunpack.c.h.b16 %v249
        %v264 = vunpack.c.l.b16 %v250
        %v265 = vunpack.c.h.b16 %v250
        %v266 = vunpack.c.l.b16 %v251
        %v267 = vunpack.c.h.b16 %v251
        %v268 = vunpack.c.l.b16 %v252
        %v269 = vunpack.c.h.b16 %v252
        %v270 = vpack.c.b16 %v264, %v262
        %v271 = vpack.c.b16 %v265, %v263
        %v272 = vpack.c.b16 %v268, %v266
        %v273 = vpack.c.b16 %v269, %v267
        %vm278 = vcmask 261120
        %v280 = vsel %vm278, %v257, 0
        %282 = vmatprep.subr.bf16.mxu0 %v271
        %283 = vmatpush1.bf16.msra.mxu0 %v270
        %284 = vmatprep.subr.bf16.mxu0 %v273
        %285 = vmatpush1.bf16.msra.mxu0 %v272
        %286 = vmatprep.subr.bf16.mxu0 0
        %287 = vmatpush1.bf16.msra.mxu0 0
        %288 = vmatprep.subr.bf16.mxu0 0
        %289 = vmatpush1.bf16.msra.mxu0 0
        %290 = vmatprep.subr.bf16.mxu0 0
        %291 = vmatpush1.bf16.msra.mxu0 0
        %292 = vmatprep.subr.bf16.mxu0 0
        %293 = vmatpush1.bf16.msra.mxu0 0
        %294 = vmatprep.subr.bf16.mxu0 0
        %295 = vmatpush1.bf16.msra.mxu0 0
        %296 = vmatprep.subr.bf16.mxu0 0
        %297 = vmatpush1.bf16.msra.mxu0 0
        %298 = vmatprep.subr.bf16.mxu0 0
        %299 = vmatpush1.bf16.msra.mxu0 0
        %300 = vmatprep.subr.bf16.mxu0 0
        %301 = vmatpush1.bf16.msra.mxu0 0
        %302 = vmatprep.subr.bf16.mxu0 0
        %303 = vmatpush1.bf16.msra.mxu0 0
        %304 = vmatprep.subr.bf16.mxu0 0
        %305 = vmatpush1.bf16.msra.mxu0 0
        %306 = vmatprep.subr.bf16.mxu0 0
        %307 = vmatpush1.bf16.msra.mxu0 0
        %308 = vmatprep.subr.bf16.mxu0 0
        %309 = vmatpush1.bf16.msra.mxu0 0
        %310 = vmatprep.subr.bf16.mxu0 0
        %311 = vmatpush1.bf16.msra.mxu0 0
        %312 = vmatprep.subr.bf16.mxu0 0
        %313 = vmatpush1.bf16.msra.mxu0 0
        %314 = vmatprep.mubr.bf16.mxu0 0
        %315 = vmatmul.mubr.bf16.gmra.mrb[0].mxu0 %v280
        %v316 = vpop.f32.mrb[0].mxu0
        %v317 = vadd.f32 0.0, %v316
        %v318 = vpop.f32.mrb[0].mxu0
        %v319 = vadd.f32 0.0, %v318
        %v320 = vpop.f32.mrb[0].mxu0
        %v321 = vadd.f32 0.0, %v320
        %v322 = vpop.f32.mrb[0].mxu0
        %v323 = vadd.f32 0.0, %v322
        %324 = vdwg.mxu0
        %v327 = vunpack.c.l.b16 %v239
        %v328 = vunpack.c.l.b16 %v240
        %v329 = vpack.c.b16 %v328, %v327
        %v334 = vunpack.c.l.b16 %v241
        %v335 = vunpack.c.h.b16 %v241
        %v336 = vunpack.c.l.b16 %v242
        %v337 = vunpack.c.h.b16 %v242
        %v338 = vunpack.c.l.b16 %v243
        %v339 = vunpack.c.h.b16 %v243
        %v340 = vunpack.c.l.b16 %v244
        %v341 = vunpack.c.h.b16 %v244
        %v342 = vpack.c.b16 %v336, %v334
        %v343 = vpack.c.b16 %v337, %v335
        %v344 = vpack.c.b16 %v340, %v338
        %v345 = vpack.c.b16 %v341, %v339
        %v351 = vsel %vm278, %v329, 0
        %353 = vmatprep.subr.bf16.mxu0 %v343
        %354 = vmatpush1.bf16.msra.mxu0 %v342
        %355 = vmatprep.subr.bf16.mxu0 %v345
        %356 = vmatpush1.bf16.msra.mxu0 %v344
        %357 = vmatprep.subr.bf16.mxu0 0
        %358 = vmatpush1.bf16.msra.mxu0 0
        %359 = vmatprep.subr.bf16.mxu0 0
        %360 = vmatpush1.bf16.msra.mxu0 0
        %361 = vmatprep.subr.bf16.mxu0 0
        %362 = vmatpush1.bf16.msra.mxu0 0
        %363 = vmatprep.subr.bf16.mxu0 0
        %364 = vmatpush1.bf16.msra.mxu0 0
        %365 = vmatprep.subr.bf16.mxu0 0
        %366 = vmatpush1.bf16.msra.mxu0 0
        %367 = vmatprep.subr.bf16.mxu0 0
        %368 = vmatpush1.bf16.msra.mxu0 0
        %369 = vmatprep.subr.bf16.mxu0 0
        %370 = vmatpush1.bf16.msra.mxu0 0
        %371 = vmatprep.subr.bf16.mxu0 0
        %372 = vmatpush1.bf16.msra.mxu0 0
        %373 = vmatprep.subr.bf16.mxu0 0
        %374 = vmatpush1.bf16.msra.mxu0 0
        %375 = vmatprep.subr.bf16.mxu0 0
        %376 = vmatpush1.bf16.msra.mxu0 0
        %377 = vmatprep.subr.bf16.mxu0 0
        %378 = vmatpush1.bf16.msra.mxu0 0
        %379 = vmatprep.subr.bf16.mxu0 0
        %380 = vmatpush1.bf16.msra.mxu0 0
        %381 = vmatprep.subr.bf16.mxu0 0
        %382 = vmatpush1.bf16.msra.mxu0 0
        %383 = vmatprep.subr.bf16.mxu0 0
        %384 = vmatpush1.bf16.msra.mxu0 0
        %385 = vmatprep.mubr.bf16.mxu0 0
        %386 = vmatmul.mubr.bf16.gmra.mrb[0].mxu0 %v351
        %v387 = vpop.f32.mrb[0].mxu0
        %v388 = vadd.f32 %v317, %v387
        %v389 = vpop.f32.mrb[0].mxu0
        %v390 = vadd.f32 %v319, %v389
        %v391 = vpop.f32.mrb[0].mxu0
        %v392 = vadd.f32 %v321, %v391
        %v393 = vpop.f32.mrb[0].mxu0
        %v394 = vadd.f32 %v323, %v393
        %395 = vdwg.mxu0
        %v396 = vld [vmem:[%s232 + $0x4] sm:$0xf]
        %s397 = scalar_lea.vmem [#allocation2], 128
        %v398 = vld [vmem:[%s397] sm:$0xff]
        %v399 = vld [vmem:[%s397 + $0x8] sm:$0xff]
        %v400 = vld [vmem:[%s397 + $0x10] sm:$0xff]
        %v401 = vld [vmem:[%s397 + $0x18] sm:$0xff]
        %v403 = vunpack.c.l.b16 %v396
        %v404 = vpack.c.b16 %v403, %v327
        %v406 = vshrl.u32 %v404, 16
        %v408 = vshll.u32 %v404, 16
        %v410 = vrot.slane %v408, 1
        %v411 = vor.u32 %v406, %v410
        %v416 = vunpack.c.l.b16 %v398
        %v417 = vunpack.c.h.b16 %v398
        %v418 = vunpack.c.l.b16 %v399
        %v419 = vunpack.c.h.b16 %v399
        %v420 = vunpack.c.l.b16 %v400
        %v421 = vunpack.c.h.b16 %v400
        %v422 = vunpack.c.l.b16 %v401
        %v423 = vunpack.c.h.b16 %v401
        %v424 = vpack.c.b16 %v418, %v416
        %v425 = vpack.c.b16 %v419, %v417
        %v426 = vpack.c.b16 %v422, %v420
        %v427 = vpack.c.b16 %v423, %v421
        %v433 = vsel %vm278, %v411, 0
        %435 = vmatprep.subr.bf16.mxu0 %v425
        %436 = vmatpush1.bf16.msra.mxu0 %v424
        %437 = vmatprep.subr.bf16.mxu0 %v427
        %438 = vmatpush1.bf16.msra.mxu0 %v426
        %439 = vmatprep.subr.bf16.mxu0 0
        %440 = vmatpush1.bf16.msra.mxu0 0
        %441 = vmatprep.subr.bf16.mxu0 0
        %442 = vmatpush1.bf16.msra.mxu0 0
        %443 = vmatprep.subr.bf16.mxu0 0
        %444 = vmatpush1.bf16.msra.mxu0 0
        %445 = vmatprep.subr.bf16.mxu0 0
        %446 = vmatpush1.bf16.msra.mxu0 0
        %447 = vmatprep.subr.bf16.mxu0 0
        %448 = vmatpush1.bf16.msra.mxu0 0
        %449 = vmatprep.subr.bf16.mxu0 0
        %450 = vmatpush1.bf16.msra.mxu0 0
        %451 = vmatprep.subr.bf16.mxu0 0
        %452 = vmatpush1.bf16.msra.mxu0 0
        %453 = vmatprep.subr.bf16.mxu0 0
        %454 = vmatpush1.bf16.msra.mxu0 0
        %455 = vmatprep.subr.bf16.mxu0 0
        %456 = vmatpush1.bf16.msra.mxu0 0
        %457 = vmatprep.subr.bf16.mxu0 0
        %458 = vmatpush1.bf16.msra.mxu0 0
        %459 = vmatprep.subr.bf16.mxu0 0
        %460 = vmatpush1.bf16.msra.mxu0 0
        %461 = vmatprep.subr.bf16.mxu0 0
        %462 = vmatpush1.bf16.msra.mxu0 0
        %463 = vmatprep.subr.bf16.mxu0 0
        %464 = vmatpush1.bf16.msra.mxu0 0
        %465 = vmatprep.subr.bf16.mxu0 0
        %466 = vmatpush1.bf16.msra.mxu0 0
        %467 = vmatprep.mubr.bf16.mxu0 0
        %468 = vmatmul.mubr.bf16.gmra.mrb[0].mxu0 %v433
        %v469 = vpop.f32.mrb[0].mxu0
        %v470 = vadd.f32 0.0, %v469
        %v471 = vpop.f32.mrb[0].mxu0
        %v472 = vadd.f32 0.0, %v471
        %v473 = vpop.f32.mrb[0].mxu0
        %v474 = vadd.f32 0.0, %v473
        %v475 = vpop.f32.mrb[0].mxu0
        %v476 = vadd.f32 0.0, %v475
        %477 = vdwg.mxu0
        %v478 = vadd.f32 %v388, %v470
        %v479 = vadd.f32 %v390, %v472
        %v480 = vadd.f32 %v392, %v474
        %v481 = vadd.f32 %v394, %v476
        %v482 = vld [vmem:[%s245 + $0x4] sm:$0xf]
        %s483 = scalar_lea.vmem [#allocation2], 192
        %v484 = vld [vmem:[%s483] sm:$0xff]
        %v485 = vld [vmem:[%s483 + $0x8] sm:$0xff]
        %v486 = vld [vmem:[%s483 + $0x10] sm:$0xff]
        %v487 = vld [vmem:[%s483 + $0x18] sm:$0xff]
        %v489 = vunpack.c.l.b16 %v482
        %v490 = vpack.c.b16 %v489, %v255
        %v492 = vshrl.u32 %v490, 16
        %v494 = vshll.u32 %v490, 16
        %v496 = vrot.slane %v494, 1
        %v497 = vor.u32 %v492, %v496
        %v502 = vunpack.c.l.b16 %v484
        %v503 = vunpack.c.h.b16 %v484
        %v504 = vunpack.c.l.b16 %v485
        %v505 = vunpack.c.h.b16 %v485
        %v506 = vunpack.c.l.b16 %v486
        %v507 = vunpack.c.h.b16 %v486
        %v508 = vunpack.c.l.b16 %v487
        %v509 = vunpack.c.h.b16 %v487
        %v510 = vpack.c.b16 %v504, %v502
        %v511 = vpack.c.b16 %v505, %v503
        %v512 = vpack.c.b16 %v508, %v506
        %v513 = vpack.c.b16 %v509, %v507
        %v519 = vsel %vm278, %v497, 0
        %521 = vmatprep.subr.bf16.mxu0 %v511
        %522 = vmatpush1.bf16.msra.mxu0 %v510
        %523 = vmatprep.subr.bf16.mxu0 %v513
        %524 = vmatpush1.bf16.msra.mxu0 %v512
        %525 = vmatprep.subr.bf16.mxu0 0
        %526 = vmatpush1.bf16.msra.mxu0 0
        %527 = vmatprep.subr.bf16.mxu0 0
        %528 = vmatpush1.bf16.msra.mxu0 0
        %529 = vmatprep.subr.bf16.mxu0 0
        %530 = vmatpush1.bf16.msra.mxu0 0
        %531 = vmatprep.subr.bf16.mxu0 0
        %532 = vmatpush1.bf16.msra.mxu0 0
        %533 = vmatprep.subr.bf16.mxu0 0
        %534 = vmatpush1.bf16.msra.mxu0 0
        %535 = vmatprep.subr.bf16.mxu0 0
        %536 = vmatpush1.bf16.msra.mxu0 0
        %537 = vmatprep.subr.bf16.mxu0 0
        %538 = vmatpush1.bf16.msra.mxu0 0
        %539 = vmatprep.subr.bf16.mxu0 0
        %540 = vmatpush1.bf16.msra.mxu0 0
        %541 = vmatprep.subr.bf16.mxu0 0
        %542 = vmatpush1.bf16.msra.mxu0 0
        %543 = vmatprep.subr.bf16.mxu0 0
        %544 = vmatpush1.bf16.msra.mxu0 0
        %545 = vmatprep.subr.bf16.mxu0 0
        %546 = vmatpush1.bf16.msra.mxu0 0
        %547 = vmatprep.subr.bf16.mxu0 0
        %548 = vmatpush1.bf16.msra.mxu0 0
        %549 = vmatprep.subr.bf16.mxu0 0
        %550 = vmatpush1.bf16.msra.mxu0 0
        %551 = vmatprep.subr.bf16.mxu0 0
        %552 = vmatpush1.bf16.msra.mxu0 0
        %553 = vmatprep.mubr.bf16.mxu0 0
        %554 = vmatmul.mubr.bf16.gmra.mrb[0].mxu0 %v519
        %v555 = vpop.f32.mrb[0].mxu0
        %v556 = vadd.f32 0.0, %v555
        %v557 = vpop.f32.mrb[0].mxu0
        %v558 = vadd.f32 0.0, %v557
        %v559 = vpop.f32.mrb[0].mxu0
        %v560 = vadd.f32 0.0, %v559
        %v561 = vpop.f32.mrb[0].mxu0
        %v562 = vadd.f32 0.0, %v561
        %563 = vdwg.mxu0
        %v564 = vadd.f32 %v478, %v556
        %v565 = vadd.f32 %v479, %v558
        %v566 = vadd.f32 %v480, %v560
        %v567 = vadd.f32 %v481, %v562
        %v568 = vld [vmem:[%s232] sm:$0xe]
        %s569 = scalar_lea.vmem [#allocation2], 256
        %v570 = vld [vmem:[%s569] sm:$0xff]
        %v571 = vld [vmem:[%s569 + $0x8] sm:$0xff]
        %v572 = vld [vmem:[%s569 + $0x10] sm:$0xff]
        %v573 = vld [vmem:[%s569 + $0x18] sm:$0xff]
        %v575 = vunpack.c.l.b16 %v568
        %v576 = vpack.c.b16 %v403, %v575
        %v577 = vrot.slane %v576, 1
        %v582 = vunpack.c.l.b16 %v570
        %v583 = vunpack.c.h.b16 %v570
        %v584 = vunpack.c.l.b16 %v571
        %v585 = vunpack.c.h.b16 %v571
        %v586 = vunpack.c.l.b16 %v572
        %v587 = vunpack.c.h.b16 %v572
        %v588 = vunpack.c.l.b16 %v573
        %v589 = vunpack.c.h.b16 %v573
        %v590 = vpack.c.b16 %v584, %v582
        %v591 = vpack.c.b16 %v585, %v583
        %v592 = vpack.c.b16 %v588, %v586
        %v593 = vpack.c.b16 %v589, %v587
        %v599 = vsel %vm278, %v577, 0
        %601 = vmatprep.subr.bf16.mxu0 %v591
        %602 = vmatpush1.bf16.msra.mxu0 %v590
        %603 = vmatprep.subr.bf16.mxu0 %v593
        %604 = vmatpush1.bf16.msra.mxu0 %v592
        %605 = vmatprep.subr.bf16.mxu0 0
        %606 = vmatpush1.bf16.msra.mxu0 0
        %607 = vmatprep.subr.bf16.mxu0 0
        %608 = vmatpush1.bf16.msra.mxu0 0
        %609 = vmatprep.subr.bf16.mxu0 0
        %610 = vmatpush1.bf16.msra.mxu0 0
        %611 = vmatprep.subr.bf16.mxu0 0
        %612 = vmatpush1.bf16.msra.mxu0 0
        %613 = vmatprep.subr.bf16.mxu0 0
        %614 = vmatpush1.bf16.msra.mxu0 0
        %615 = vmatprep.subr.bf16.mxu0 0
        %616 = vmatpush1.bf16.msra.mxu0 0
        %617 = vmatprep.subr.bf16.mxu0 0
        %618 = vmatpush1.bf16.msra.mxu0 0
        %619 = vmatprep.subr.bf16.mxu0 0
        %620 = vmatpush1.bf16.msra.mxu0 0
        %621 = vmatprep.subr.bf16.mxu0 0
        %622 = vmatpush1.bf16.msra.mxu0 0
        %623 = vmatprep.subr.bf16.mxu0 0
        %624 = vmatpush1.bf16.msra.mxu0 0
        %625 = vmatprep.subr.bf16.mxu0 0
        %626 = vmatpush1.bf16.msra.mxu0 0
        %627 = vmatprep.subr.bf16.mxu0 0
        %628 = vmatpush1.bf16.msra.mxu0 0
        %629 = vmatprep.subr.bf16.mxu0 0
        %630 = vmatpush1.bf16.msra.mxu0 0
        %631 = vmatprep.subr.bf16.mxu0 0
        %632 = vmatpush1.bf16.msra.mxu0 0
        %633 = vmatprep.mubr.bf16.mxu0 0
        %634 = vmatmul.mubr.bf16.gmra.mrb[0].mxu0 %v599
        %v635 = vpop.f32.mrb[0].mxu0
        %v636 = vadd.f32 0.0, %v635
        %v637 = vpop.f32.mrb[0].mxu0
        %v638 = vadd.f32 0.0, %v637
        %v639 = vpop.f32.mrb[0].mxu0
        %v640 = vadd.f32 0.0, %v639
        %v641 = vpop.f32.mrb[0].mxu0
        %v642 = vadd.f32 0.0, %v641
        %643 = vdwg.mxu0
        %v644 = vadd.f32 %v564, %v636
        %v645 = vadd.f32 %v565, %v638
        %v646 = vadd.f32 %v566, %v640
        %v647 = vadd.f32 %v567, %v642
        %v648 = vld [vmem:[#allocation4] sm:$0x3]
        %v650 = vlaneseq
        %v651 = vshrl.u32 %v650, 7
        %v652 = vsub.s32 0, %v651
        %v653 = vrot.slane %v648, %v652
        %v654 = vlaneseq
        %v655 = vshrl.u32 %v654, 7
        %v656 = vsub.s32 1, %v655
        %v657 = vrot.slane %v648, %v656
        %v660 = vmul.f32 %v644, %v653
        %v661 = vmul.f32 %v645, %v657
        %v662 = vmul.f32 %v646, %v653
        %v663 = vmul.f32 %v647, %v657
        %v664 = vld [vmem:[#allocation6] sm:$0x3]
        %v666 = vlaneseq
        %v667 = vshrl.u32 %v666, 7
        %v668 = vsub.s32 0, %v667
        %v669 = vrot.slane %v664, %v668
        %v670 = vlaneseq
        %v671 = vshrl.u32 %v670, 7
        %v672 = vsub.s32 1, %v671
        %v673 = vrot.slane %v664, %v672
        %v676 = vadd.f32 %v660, %v669
        %v677 = vadd.f32 %v661, %v673
        %v678 = vadd.f32 %v662, %v669
        %v679 = vadd.f32 %v663, %v673
        %v680 = vmax.f32 %v676, 0.0
        %v681 = vmax.f32 %v677, 0.0
        %v682 = vmax.f32 %v678, 0.0
        %v683 = vmax.f32 %v679, 0.0
        %s684 = scalar_lea.vmem [#allocation2], 32
        %v685 = vld [vmem:[%s684] sm:$0xff]
        %v686 = vld [vmem:[%s684 + $0x8] sm:$0xff]
        %v687 = vld [vmem:[%s684 + $0x10] sm:$0xff]
        %v688 = vld [vmem:[%s684 + $0x18] sm:$0xff]
        %s689 = scalar_lea.vmem [#allocation2], 96
        %v690 = vld [vmem:[%s689] sm:$0xff]
        %v691 = vld [vmem:[%s689 + $0x8] sm:$0xff]
        %v692 = vld [vmem:[%s689 + $0x10] sm:$0xff]
        %v693 = vld [vmem:[%s689 + $0x18] sm:$0xff]
        %v698 = vunpack.c.l.b16 %v690
        %v699 = vunpack.c.h.b16 %v690
        %v700 = vunpack.c.l.b16 %v691
        %v701 = vunpack.c.h.b16 %v691
        %v702 = vunpack.c.l.b16 %v692
        %v703 = vunpack.c.h.b16 %v692
        %v704 = vunpack.c.l.b16 %v693
        %v705 = vunpack.c.h.b16 %v693
        %v706 = vpack.c.b16 %v700, %v698
        %v707 = vpack.c.b16 %v701, %v699
        %v708 = vpack.c.b16 %v704, %v702
        %v709 = vpack.c.b16 %v705, %v703
        %714 = vmatprep.subr.bf16.mxu0 %v707
        %715 = vmatpush1.bf16.msra.mxu0 %v706
        %716 = vmatprep.subr.bf16.mxu0 %v709
        %717 = vmatpush1.bf16.msra.mxu0 %v708
        %718 = vmatprep.subr.bf16.mxu0 0
        %719 = vmatpush1.bf16.msra.mxu0 0
        %720 = vmatprep.subr.bf16.mxu0 0
        %721 = vmatpush1.bf16.msra.mxu0 0
        %722 = vmatprep.subr.bf16.mxu0 0
        %723 = vmatpush1.bf16.msra.mxu0 0
        %724 = vmatprep.subr.bf16.mxu0 0
        %725 = vmatpush1.bf16.msra.mxu0 0
        %726 = vmatprep.subr.bf16.mxu0 0
        %727 = vmatpush1.bf16.msra.mxu0 0
        %728 = vmatprep.subr.bf16.mxu0 0
        %729 = vmatpush1.bf16.msra.mxu0 0
        %730 = vmatprep.subr.bf16.mxu0 0
        %731 = vmatpush1.bf16.msra.mxu0 0
        %732 = vmatprep.subr.bf16.mxu0 0
        %733 = vmatpush1.bf16.msra.mxu0 0
        %734 = vmatprep.subr.bf16.mxu0 0
        %735 = vmatpush1.bf16.msra.mxu0 0
        %736 = vmatprep.subr.bf16.mxu0 0
        %737 = vmatpush1.bf16.msra.mxu0 0
        %738 = vmatprep.subr.bf16.mxu0 0
        %739 = vmatpush1.bf16.msra.mxu0 0
        %740 = vmatprep.subr.bf16.mxu0 0
        %741 = vmatpush1.bf16.msra.mxu0 0
        %742 = vmatprep.subr.bf16.mxu0 0
        %743 = vmatpush1.bf16.msra.mxu0 0
        %744 = vmatprep.subr.bf16.mxu0 0
        %745 = vmatpush1.bf16.msra.mxu0 0
        %746 = vmatprep.mubr.bf16.mxu0 0
        %747 = vmatmul.mubr.bf16.gmra.mrb[0].mxu0 %v280
        %v748 = vpop.f32.mrb[0].mxu0
        %v749 = vadd.f32 0.0, %v748
        %v750 = vpop.f32.mrb[0].mxu0
        %v751 = vadd.f32 0.0, %v750
        %v752 = vpop.f32.mrb[0].mxu0
        %v753 = vadd.f32 0.0, %v752
        %v754 = vpop.f32.mrb[0].mxu0
        %v755 = vadd.f32 0.0, %v754
        %756 = vdwg.mxu0
        %v761 = vunpack.c.l.b16 %v685
        %v762 = vunpack.c.h.b16 %v685
        %v763 = vunpack.c.l.b16 %v686
        %v764 = vunpack.c.h.b16 %v686
        %v765 = vunpack.c.l.b16 %v687
        %v766 = vunpack.c.h.b16 %v687
        %v767 = vunpack.c.l.b16 %v688
        %v768 = vunpack.c.h.b16 %v688
        %v769 = vpack.c.b16 %v763, %v761
        %v770 = vpack.c.b16 %v764, %v762
        %v771 = vpack.c.b16 %v767, %v765
        %v772 = vpack.c.b16 %v768, %v766
        %777 = vmatprep.subr.bf16.mxu0 %v770
        %778 = vmatpush1.bf16.msra.mxu0 %v769
        %779 = vmatprep.subr.bf16.mxu0 %v772
        %780 = vmatpush1.bf16.msra.mxu0 %v771
        %781 = vmatprep.subr.bf16.mxu0 0
        %782 = vmatpush1.bf16.msra.mxu0 0
        %783 = vmatprep.subr.bf16.mxu0 0
        %784 = vmatpush1.bf16.msra.mxu0 0
        %785 = vmatprep.subr.bf16.mxu0 0
        %786 = vmatpush1.bf16.msra.mxu0 0
        %787 = vmatprep.subr.bf16.mxu0 0
        %788 = vmatpush1.bf16.msra.mxu0 0
        %789 = vmatprep.subr.bf16.mxu0 0
        %790 = vmatpush1.bf16.msra.mxu0 0
        %791 = vmatprep.subr.bf16.mxu0 0
        %792 = vmatpush1.bf16.msra.mxu0 0
        %793 = vmatprep.subr.bf16.mxu0 0
        %794 = vmatpush1.bf16.msra.mxu0 0
        %795 = vmatprep.subr.bf16.mxu0 0
        %796 = vmatpush1.bf16.msra.mxu0 0
        %797 = vmatprep.subr.bf16.mxu0 0
        %798 = vmatpush1.bf16.msra.mxu0 0
        %799 = vmatprep.subr.bf16.mxu0 0
        %800 = vmatpush1.bf16.msra.mxu0 0
        %801 = vmatprep.subr.bf16.mxu0 0
        %802 = vmatpush1.bf16.msra.mxu0 0
        %803 = vmatprep.subr.bf16.mxu0 0
        %804 = vmatpush1.bf16.msra.mxu0 0
        %805 = vmatprep.subr.bf16.mxu0 0
        %806 = vmatpush1.bf16.msra.mxu0 0
        %807 = vmatprep.subr.bf16.mxu0 0
        %808 = vmatpush1.bf16.msra.mxu0 0
        %809 = vmatprep.mubr.bf16.mxu0 0
        %810 = vmatmul.mubr.bf16.gmra.mrb[0].mxu0 %v351
        %v811 = vpop.f32.mrb[0].mxu0
        %v812 = vadd.f32 %v749, %v811
        %v813 = vpop.f32.mrb[0].mxu0
        %v814 = vadd.f32 %v751, %v813
        %v815 = vpop.f32.mrb[0].mxu0
        %v816 = vadd.f32 %v753, %v815
        %v817 = vpop.f32.mrb[0].mxu0
        %v818 = vadd.f32 %v755, %v817
        %819 = vdwg.mxu0
        %s820 = scalar_lea.vmem [#allocation2], 160
        %v821 = vld [vmem:[%s820] sm:$0xff]
        %v822 = vld [vmem:[%s820 + $0x8] sm:$0xff]
        %v823 = vld [vmem:[%s820 + $0x10] sm:$0xff]
        %v824 = vld [vmem:[%s820 + $0x18] sm:$0xff]
        %v829 = vunpack.c.l.b16 %v821
        %v830 = vunpack.c.h.b16 %v821
        %v831 = vunpack.c.l.b16 %v822
        %v832 = vunpack.c.h.b16 %v822
        %v833 = vunpack.c.l.b16 %v823
        %v834 = vunpack.c.h.b16 %v823
        %v835 = vunpack.c.l.b16 %v824
        %v836 = vunpack.c.h.b16 %v824
        %v837 = vpack.c.b16 %v831, %v829
        %v838 = vpack.c.b16 %v832, %v830
        %v839 = vpack.c.b16 %v835, %v833
        %v840 = vpack.c.b16 %v836, %v834
        %845 = vmatprep.subr.bf16.mxu0 %v838
        %846 = vmatpush1.bf16.msra.mxu0 %v837
        %847 = vmatprep.subr.bf16.mxu0 %v840
        %848 = vmatpush1.bf16.msra.mxu0 %v839
        %849 = vmatprep.subr.bf16.mxu0 0
        %850 = vmatpush1.bf16.msra.mxu0 0
        %851 = vmatprep.subr.bf16.mxu0 0
        %852 = vmatpush1.bf16.msra.mxu0 0
        %853 = vmatprep.subr.bf16.mxu0 0
        %854 = vmatpush1.bf16.msra.mxu0 0
        %855 = vmatprep.subr.bf16.mxu0 0
        %856 = vmatpush1.bf16.msra.mxu0 0
        %857 = vmatprep.subr.bf16.mxu0 0
        %858 = vmatpush1.bf16.msra.mxu0 0
        %859 = vmatprep.subr.bf16.mxu0 0
        %860 = vmatpush1.bf16.msra.mxu0 0
        %861 = vmatprep.subr.bf16.mxu0 0
        %862 = vmatpush1.bf16.msra.mxu0 0
        %863 = vmatprep.subr.bf16.mxu0 0
        %864 = vmatpush1.bf16.msra.mxu0 0
        %865 = vmatprep.subr.bf16.mxu0 0
        %866 = vmatpush1.bf16.msra.mxu0 0
        %867 = vmatprep.subr.bf16.mxu0 0
        %868 = vmatpush1.bf16.msra.mxu0 0
        %869 = vmatprep.subr.bf16.mxu0 0
        %870 = vmatpush1.bf16.msra.mxu0 0
        %871 = vmatprep.subr.bf16.mxu0 0
        %872 = vmatpush1.bf16.msra.mxu0 0
        %873 = vmatprep.subr.bf16.mxu0 0
        %874 = vmatpush1.bf16.msra.mxu0 0
        %875 = vmatprep.subr.bf16.mxu0 0
        %876 = vmatpush1.bf16.msra.mxu0 0
        %877 = vmatprep.mubr.bf16.mxu0 0
        %878 = vmatmul.mubr.bf16.gmra.mrb[0].mxu0 %v433
        %v879 = vpop.f32.mrb[0].mxu0
        %v880 = vadd.f32 0.0, %v879
        %v881 = vpop.f32.mrb[0].mxu0
        %v882 = vadd.f32 0.0, %v881
        %v883 = vpop.f32.mrb[0].mxu0
        %v884 = vadd.f32 0.0, %v883
        %v885 = vpop.f32.mrb[0].mxu0
        %v886 = vadd.f32 0.0, %v885
        %887 = vdwg.mxu0
        %v888 = vadd.f32 %v812, %v880
        %v889 = vadd.f32 %v814, %v882
        %v890 = vadd.f32 %v816, %v884
        %v891 = vadd.f32 %v818, %v886
        %s892 = scalar_lea.vmem [#allocation2], 224
        %v893 = vld [vmem:[%s892] sm:$0xff]
        %v894 = vld [vmem:[%s892 + $0x8] sm:$0xff]
        %v895 = vld [vmem:[%s892 + $0x10] sm:$0xff]
        %v896 = vld [vmem:[%s892 + $0x18] sm:$0xff]
        %v901 = vunpack.c.l.b16 %v893
        %v902 = vunpack.c.h.b16 %v893
        %v903 = vunpack.c.l.b16 %v894
        %v904 = vunpack.c.h.b16 %v894
        %v905 = vunpack.c.l.b16 %v895
        %v906 = vunpack.c.h.b16 %v895
        %v907 = vunpack.c.l.b16 %v896
        %v908 = vunpack.c.h.b16 %v896
        %v909 = vpack.c.b16 %v903, %v901
        %v910 = vpack.c.b16 %v904, %v902
        %v911 = vpack.c.b16 %v907, %v905
        %v912 = vpack.c.b16 %v908, %v906
        %917 = vmatprep.subr.bf16.mxu0 %v910
        %918 = vmatpush1.bf16.msra.mxu0 %v909
        %919 = vmatprep.subr.bf16.mxu0 %v912
        %920 = vmatpush1.bf16.msra.mxu0 %v911
        %921 = vmatprep.subr.bf16.mxu0 0
        %922 = vmatpush1.bf16.msra.mxu0 0
        %923 = vmatprep.subr.bf16.mxu0 0
        %924 = vmatpush1.bf16.msra.mxu0 0
        %925 = vmatprep.subr.bf16.mxu0 0
        %926 = vmatpush1.bf16.msra.mxu0 0
        %927 = vmatprep.subr.bf16.mxu0 0
        %928 = vmatpush1.bf16.msra.mxu0 0
        %929 = vmatprep.subr.bf16.mxu0 0
        %930 = vmatpush1.bf16.msra.mxu0 0
        %931 = vmatprep.subr.bf16.mxu0 0
        %932 = vmatpush1.bf16.msra.mxu0 0
        %933 = vmatprep.subr.bf16.mxu0 0
        %934 = vmatpush1.bf16.msra.mxu0 0
        %935 = vmatprep.subr.bf16.mxu0 0
        %936 = vmatpush1.bf16.msra.mxu0 0
        %937 = vmatprep.subr.bf16.mxu0 0
        %938 = vmatpush1.bf16.msra.mxu0 0
        %939 = vmatprep.subr.bf16.mxu0 0
        %940 = vmatpush1.bf16.msra.mxu0 0
        %941 = vmatprep.subr.bf16.mxu0 0
        %942 = vmatpush1.bf16.msra.mxu0 0
        %943 = vmatprep.subr.bf16.mxu0 0
        %944 = vmatpush1.bf16.msra.mxu0 0
        %945 = vmatprep.subr.bf16.mxu0 0
        %946 = vmatpush1.bf16.msra.mxu0 0
        %947 = vmatprep.subr.bf16.mxu0 0
        %948 = vmatpush1.bf16.msra.mxu0 0
        %949 = vmatprep.mubr.bf16.mxu0 0
        %950 = vmatmul.mubr.bf16.gmra.mrb[0].mxu0 %v519
        %v951 = vpop.f32.mrb[0].mxu0
        %v952 = vadd.f32 0.0, %v951
        %v953 = vpop.f32.mrb[0].mxu0
        %v954 = vadd.f32 0.0, %v953
        %v955 = vpop.f32.mrb[0].mxu0
        %v956 = vadd.f32 0.0, %v955
        %v957 = vpop.f32.mrb[0].mxu0
        %v958 = vadd.f32 0.0, %v957
        %959 = vdwg.mxu0
        %v960 = vadd.f32 %v888, %v952
        %v961 = vadd.f32 %v889, %v954
        %v962 = vadd.f32 %v890, %v956
        %v963 = vadd.f32 %v891, %v958
        %s964 = scalar_lea.vmem [#allocation2], 288
        %v965 = vld [vmem:[%s964] sm:$0xff]
        %v966 = vld [vmem:[%s964 + $0x8] sm:$0xff]
        %v967 = vld [vmem:[%s964 + $0x10] sm:$0xff]
        %v968 = vld [vmem:[%s964 + $0x18] sm:$0xff]
        %v973 = vunpack.c.l.b16 %v965
        %v974 = vunpack.c.h.b16 %v965
        %v975 = vunpack.c.l.b16 %v966
        %v976 = vunpack.c.h.b16 %v966
        %v977 = vunpack.c.l.b16 %v967
        %v978 = vunpack.c.h.b16 %v967
        %v979 = vunpack.c.l.b16 %v968
        %v980 = vunpack.c.h.b16 %v968
        %v981 = vpack.c.b16 %v975, %v973
        %v982 = vpack.c.b16 %v976, %v974
        %v983 = vpack.c.b16 %v979, %v977
        %v984 = vpack.c.b16 %v980, %v978
        %989 = vmatprep.subr.bf16.mxu0 %v982
        %990 = vmatpush1.bf16.msra.mxu0 %v981
        %991 = vmatprep.subr.bf16.mxu0 %v984
        %992 = vmatpush1.bf16.msra.mxu0 %v983
        %993 = vmatprep.subr.bf16.mxu0 0
        %994 = vmatpush1.bf16.msra.mxu0 0
        %995 = vmatprep.subr.bf16.mxu0 0
        %996 = vmatpush1.bf16.msra.mxu0 0
        %997 = vmatprep.subr.bf16.mxu0 0
        %998 = vmatpush1.bf16.msra.mxu0 0
        %999 = vmatprep.subr.bf16.mxu0 0
        %1000 = vmatpush1.bf16.msra.mxu0 0
        %1001 = vmatprep.subr.bf16.mxu0 0
        %1002 = vmatpush1.bf16.msra.mxu0 0
        %1003 = vmatprep.subr.bf16.mxu0 0
        %1004 = vmatpush1.bf16.msra.mxu0 0
        %1005 = vmatprep.subr.bf16.mxu0 0
        %1006 = vmatpush1.bf16.msra.mxu0 0
        %1007 = vmatprep.subr.bf16.mxu0 0
        %1008 = vmatpush1.bf16.msra.mxu0 0
        %1009 = vmatprep.subr.bf16.mxu0 0
        %1010 = vmatpush1.bf16.msra.mxu0 0
        %1011 = vmatprep.subr.bf16.mxu0 0
        %1012 = vmatpush1.bf16.msra.mxu0 0
        %1013 = vmatprep.subr.bf16.mxu0 0
        %1014 = vmatpush1.bf16.msra.mxu0 0
        %1015 = vmatprep.subr.bf16.mxu0 0
        %1016 = vmatpush1.bf16.msra.mxu0 0
        %1017 = vmatprep.subr.bf16.mxu0 0
        %1018 = vmatpush1.bf16.msra.mxu0 0
        %1019 = vmatprep.subr.bf16.mxu0 0
        %1020 = vmatpush1.bf16.msra.mxu0 0
        %1021 = vmatprep.mubr.bf16.mxu0 0
        %1022 = vmatmul.mubr.bf16.gmra.mrb[0].mxu0 %v599
        %v1023 = vpop.f32.mrb[0].mxu0
        %v1024 = vadd.f32 0.0, %v1023
        %v1025 = vpop.f32.mrb[0].mxu0
        %v1026 = vadd.f32 0.0, %v1025
        %v1027 = vpop.f32.mrb[0].mxu0
        %v1028 = vadd.f32 0.0, %v1027
        %v1029 = vpop.f32.mrb[0].mxu0
        %v1030 = vadd.f32 0.0, %v1029
        %1031 = vdwg.mxu0
        %v1032 = vadd.f32 %v960, %v1024
        %v1033 = vadd.f32 %v961, %v1026
        %v1034 = vadd.f32 %v962, %v1028
        %v1035 = vadd.f32 %v963, %v1030
        %v1036 = vmul.f32 %v1032, %v653
        %v1037 = vmul.f32 %v1033, %v657
        %v1038 = vmul.f32 %v1034, %v653
        %v1039 = vmul.f32 %v1035, %v657
        %v1040 = vadd.f32 %v1036, %v669
        %v1041 = vadd.f32 %v1037, %v673
        %v1042 = vadd.f32 %v1038, %v669
        %v1043 = vadd.f32 %v1039, %v673
        %v1044 = vmax.f32 %v1040, 0.0
        %v1045 = vmax.f32 %v1041, 0.0
        %v1046 = vmax.f32 %v1042, 0.0
        %v1047 = vmax.f32 %v1043, 0.0
        %v1048 = vmax.f32 %v680, %v1044
        %v1049 = vmax.f32 %v681, %v1045
        %v1050 = vmax.f32 %v682, %v1046
        %v1051 = vmax.f32 %v683, %v1047
        %1052 = vmatprep.subr.bf16.mxu0 %v271
        %1053 = vmatpush1.bf16.msra.mxu0 %v270
        %1054 = vmatprep.subr.bf16.mxu0 %v273
        %1055 = vmatpush1.bf16.msra.mxu0 %v272
        %1056 = vmatprep.subr.bf16.mxu0 0
        %1057 = vmatpush1.bf16.msra.mxu0 0
        %1058 = vmatprep.subr.bf16.mxu0 0
        %1059 = vmatpush1.bf16.msra.mxu0 0
        %1060 = vmatprep.subr.bf16.mxu0 0
        %1061 = vmatpush1.bf16.msra.mxu0 0
        %1062 = vmatprep.subr.bf16.mxu0 0
        %1063 = vmatpush1.bf16.msra.mxu0 0
        %1064 = vmatprep.subr.bf16.mxu0 0
        %1065 = vmatpush1.bf16.msra.mxu0 0
        %1066 = vmatprep.subr.bf16.mxu0 0
        %1067 = vmatpush1.bf16.msra.mxu0 0
        %1068 = vmatprep.subr.bf16.mxu0 0
        %1069 = vmatpush1.bf16.msra.mxu0 0
        %1070 = vmatprep.subr.bf16.mxu0 0
        %1071 = vmatpush1.bf16.msra.mxu0 0
        %1072 = vmatprep.subr.bf16.mxu0 0
        %1073 = vmatpush1.bf16.msra.mxu0 0
        %1074 = vmatprep.subr.bf16.mxu0 0
        %1075 = vmatpush1.bf16.msra.mxu0 0
        %1076 = vmatprep.subr.bf16.mxu0 0
        %1077 = vmatpush1.bf16.msra.mxu0 0
        %1078 = vmatprep.subr.bf16.mxu0 0
        %1079 = vmatpush1.bf16.msra.mxu0 0
        %1080 = vmatprep.subr.bf16.mxu0 0
        %1081 = vmatpush1.bf16.msra.mxu0 0
        %1082 = vmatprep.subr.bf16.mxu0 0
        %1083 = vmatpush1.bf16.msra.mxu0 0
        %1084 = vmatprep.mubr.bf16.mxu0 0
        %1085 = vmatmul.mubr.bf16.gmra.mrb[0].mxu0 %v433
        %v1086 = vpop.f32.mrb[0].mxu0
        %v1087 = vadd.f32 0.0, %v1086
        %v1088 = vpop.f32.mrb[0].mxu0
        %v1089 = vadd.f32 0.0, %v1088
        %v1090 = vpop.f32.mrb[0].mxu0
        %v1091 = vadd.f32 0.0, %v1090
        %v1092 = vpop.f32.mrb[0].mxu0
        %v1093 = vadd.f32 0.0, %v1092
        %1094 = vdwg.mxu0
        %1095 = vmatprep.subr.bf16.mxu0 %v343
        %1096 = vmatpush1.bf16.msra.mxu0 %v342
        %1097 = vmatprep.subr.bf16.mxu0 %v345
        %1098 = vmatpush1.bf16.msra.mxu0 %v344
        %1099 = vmatprep.subr.bf16.mxu0 0
        %1100 = vmatpush1.bf16.msra.mxu0 0
        %1101 = vmatprep.subr.bf16.mxu0 0
        %1102 = vmatpush1.bf16.msra.mxu0 0
        %1103 = vmatprep.subr.bf16.mxu0 0
        %1104 = vmatpush1.bf16.msra.mxu0 0
        %1105 = vmatprep.subr.bf16.mxu0 0
        %1106 = vmatpush1.bf16.msra.mxu0 0
        %1107 = vmatprep.subr.bf16.mxu0 0
        %1108 = vmatpush1.bf16.msra.mxu0 0
        %1109 = vmatprep.subr.bf16.mxu0 0
        %1110 = vmatpush1.bf16.msra.mxu0 0
        %1111 = vmatprep.subr.bf16.mxu0 0
        %1112 = vmatpush1.bf16.msra.mxu0 0
        %1113 = vmatprep.subr.bf16.mxu0 0
        %1114 = vmatpush1.bf16.msra.mxu0 0
        %1115 = vmatprep.subr.bf16.mxu0 0
        %1116 = vmatpush1.bf16.msra.mxu0 0
        %1117 = vmatprep.subr.bf16.mxu0 0
        %1118 = vmatpush1.bf16.msra.mxu0 0
        %1119 = vmatprep.subr.bf16.mxu0 0
        %1120 = vmatpush1.bf16.msra.mxu0 0
        %1121 = vmatprep.subr.bf16.mxu0 0
        %1122 = vmatpush1.bf16.msra.mxu0 0
        %1123 = vmatprep.subr.bf16.mxu0 0
        %1124 = vmatpush1.bf16.msra.mxu0 0
        %1125 = vmatprep.subr.bf16.mxu0 0
        %1126 = vmatpush1.bf16.msra.mxu0 0
        %1127 = vmatprep.mubr.bf16.mxu0 0
        %1128 = vmatmul.mubr.bf16.gmra.mrb[0].mxu0 %v280
        %v1129 = vpop.f32.mrb[0].mxu0
        %v1130 = vadd.f32 %v1087, %v1129
        %v1131 = vpop.f32.mrb[0].mxu0
        %v1132 = vadd.f32 %v1089, %v1131
        %v1133 = vpop.f32.mrb[0].mxu0
        %v1134 = vadd.f32 %v1091, %v1133
        %v1135 = vpop.f32.mrb[0].mxu0
        %v1136 = vadd.f32 %v1093, %v1135
        %1137 = vdwg.mxu0
        %1138 = vmatprep.subr.bf16.mxu0 %v425
        %1139 = vmatpush1.bf16.msra.mxu0 %v424
        %1140 = vmatprep.subr.bf16.mxu0 %v427
        %1141 = vmatpush1.bf16.msra.mxu0 %v426
        %1142 = vmatprep.subr.bf16.mxu0 0
        %1143 = vmatpush1.bf16.msra.mxu0 0
        %1144 = vmatprep.subr.bf16.mxu0 0
        %1145 = vmatpush1.bf16.msra.mxu0 0
        %1146 = vmatprep.subr.bf16.mxu0 0
        %1147 = vmatpush1.bf16.msra.mxu0 0
        %1148 = vmatprep.subr.bf16.mxu0 0
        %1149 = vmatpush1.bf16.msra.mxu0 0
        %1150 = vmatprep.subr.bf16.mxu0 0
        %1151 = vmatpush1.bf16.msra.mxu0 0
        %1152 = vmatprep.subr.bf16.mxu0 0
        %1153 = vmatpush1.bf16.msra.mxu0 0
        %1154 = vmatprep.subr.bf16.mxu0 0
        %1155 = vmatpush1.bf16.msra.mxu0 0
        %1156 = vmatprep.subr.bf16.mxu0 0
        %1157 = vmatpush1.bf16.msra.mxu0 0
        %1158 = vmatprep.subr.bf16.mxu0 0
        %1159 = vmatpush1.bf16.msra.mxu0 0
        %1160 = vmatprep.subr.bf16.mxu0 0
        %1161 = vmatpush1.bf16.msra.mxu0 0
        %1162 = vmatprep.subr.bf16.mxu0 0
        %1163 = vmatpush1.bf16.msra.mxu0 0
        %1164 = vmatprep.subr.bf16.mxu0 0
        %1165 = vmatpush1.bf16.msra.mxu0 0
        %1166 = vmatprep.subr.bf16.mxu0 0
        %1167 = vmatpush1.bf16.msra.mxu0 0
        %1168 = vmatprep.subr.bf16.mxu0 0
        %1169 = vmatpush1.bf16.msra.mxu0 0
        %1170 = vmatprep.mubr.bf16.mxu0 0
        %1171 = vmatmul.mubr.bf16.gmra.mrb[0].mxu0 %v519
        %v1172 = vpop.f32.mrb[0].mxu0
        %v1173 = vadd.f32 0.0, %v1172
        %v1174 = vpop.f32.mrb[0].mxu0
        %v1175 = vadd.f32 0.0, %v1174
        %v1176 = vpop.f32.mrb[0].mxu0
        %v1177 = vadd.f32 0.0, %v1176
        %v1178 = vpop.f32.mrb[0].mxu0
        %v1179 = vadd.f32 0.0, %v1178
        %1180 = vdwg.mxu0
        %v1181 = vadd.f32 %v1130, %v1173
        %v1182 = vadd.f32 %v1132, %v1175
        %v1183 = vadd.f32 %v1134, %v1177
        %v1184 = vadd.f32 %v1136, %v1179
        %1185 = vmatprep.subr.bf16.mxu0 %v511
        %1186 = vmatpush1.bf16.msra.mxu0 %v510
        %1187 = vmatprep.subr.bf16.mxu0 %v513
        %1188 = vmatpush1.bf16.msra.mxu0 %v512
        %1189 = vmatprep.subr.bf16.mxu0 0
        %1190 = vmatpush1.bf16.msra.mxu0 0
        %1191 = vmatprep.subr.bf16.mxu0 0
        %1192 = vmatpush1.bf16.msra.mxu0 0
        %1193 = vmatprep.subr.bf16.mxu0 0
        %1194 = vmatpush1.bf16.msra.mxu0 0
        %1195 = vmatprep.subr.bf16.mxu0 0
        %1196 = vmatpush1.bf16.msra.mxu0 0
        %1197 = vmatprep.subr.bf16.mxu0 0
        %1198 = vmatpush1.bf16.msra.mxu0 0
        %1199 = vmatprep.subr.bf16.mxu0 0
        %1200 = vmatpush1.bf16.msra.mxu0 0
        %1201 = vmatprep.subr.bf16.mxu0 0
        %1202 = vmatpush1.bf16.msra.mxu0 0
        %1203 = vmatprep.subr.bf16.mxu0 0
        %1204 = vmatpush1.bf16.msra.mxu0 0
        %1205 = vmatprep.subr.bf16.mxu0 0
        %1206 = vmatpush1.bf16.msra.mxu0 0
        %1207 = vmatprep.subr.bf16.mxu0 0
        %1208 = vmatpush1.bf16.msra.mxu0 0
        %1209 = vmatprep.subr.bf16.mxu0 0
        %1210 = vmatpush1.bf16.msra.mxu0 0
        %1211 = vmatprep.subr.bf16.mxu0 0
        %1212 = vmatpush1.bf16.msra.mxu0 0
        %1213 = vmatprep.subr.bf16.mxu0 0
        %1214 = vmatpush1.bf16.msra.mxu0 0
        %1215 = vmatprep.subr.bf16.mxu0 0
        %1216 = vmatpush1.bf16.msra.mxu0 0
        %1217 = vmatprep.mubr.bf16.mxu0 0
        %1218 = vmatmul.mubr.bf16.gmra.mrb[0].mxu0 %v599
        %v1219 = vpop.f32.mrb[0].mxu0
        %v1220 = vadd.f32 0.0, %v1219
        %v1221 = vpop.f32.mrb[0].mxu0
        %v1222 = vadd.f32 0.0, %v1221
        %v1223 = vpop.f32.mrb[0].mxu0
        %v1224 = vadd.f32 0.0, %v1223
        %v1225 = vpop.f32.mrb[0].mxu0
        %v1226 = vadd.f32 0.0, %v1225
        %1227 = vdwg.mxu0
        %v1228 = vadd.f32 %v1181, %v1220
        %v1229 = vadd.f32 %v1182, %v1222
        %v1230 = vadd.f32 %v1183, %v1224
        %v1231 = vadd.f32 %v1184, %v1226
        %v1232 = vld [vmem:[%s245] sm:$0xe]
        %v1234 = vunpack.c.l.b16 %v1232
        %v1235 = vpack.c.b16 %v489, %v1234
        %v1236 = vrot.slane %v1235, 1
        %v1238 = vsel %vm278, %v1236, 0
        %1240 = vmatprep.subr.bf16.mxu0 %v591
        %1241 = vmatpush1.bf16.msra.mxu0 %v590
        %1242 = vmatprep.subr.bf16.mxu0 %v593
        %1243 = vmatpush1.bf16.msra.mxu0 %v592
        %1244 = vmatprep.subr.bf16.mxu0 0
        %1245 = vmatpush1.bf16.msra.mxu0 0
        %1246 = vmatprep.subr.bf16.mxu0 0
        %1247 = vmatpush1.bf16.msra.mxu0 0
        %1248 = vmatprep.subr.bf16.mxu0 0
        %1249 = vmatpush1.bf16.msra.mxu0 0
        %1250 = vmatprep.subr.bf16.mxu0 0
        %1251 = vmatpush1.bf16.msra.mxu0 0
        %1252 = vmatprep.subr.bf16.mxu0 0
        %1253 = vmatpush1.bf16.msra.mxu0 0
        %1254 = vmatprep.subr.bf16.mxu0 0
        %1255 = vmatpush1.bf16.msra.mxu0 0
        %1256 = vmatprep.subr.bf16.mxu0 0
        %1257 = vmatpush1.bf16.msra.mxu0 0
        %1258 = vmatprep.subr.bf16.mxu0 0
        %1259 = vmatpush1.bf16.msra.mxu0 0
        %1260 = vmatprep.subr.bf16.mxu0 0
        %1261 = vmatpush1.bf16.msra.mxu0 0
        %1262 = vmatprep.subr.bf16.mxu0 0
        %1263 = vmatpush1.bf16.msra.mxu0 0
        %1264 = vmatprep.subr.bf16.mxu0 0
        %1265 = vmatpush1.bf16.msra.mxu0 0
        %1266 = vmatprep.subr.bf16.mxu0 0
        %1267 = vmatpush1.bf16.msra.mxu0 0
        %1268 = vmatprep.subr.bf16.mxu0 0
        %1269 = vmatpush1.bf16.msra.mxu0 0
        %1270 = vmatprep.subr.bf16.mxu0 0
        %1271 = vmatpush1.bf16.msra.mxu0 0
        %1272 = vmatprep.mubr.bf16.mxu0 0
        %1273 = vmatmul.mubr.bf16.gmra.mrb[0].mxu0 %v1238
        %v1274 = vpop.f32.mrb[0].mxu0
        %v1275 = vadd.f32 0.0, %v1274
        %v1276 = vpop.f32.mrb[0].mxu0
        %v1277 = vadd.f32 0.0, %v1276
        %v1278 = vpop.f32.mrb[0].mxu0
        %v1279 = vadd.f32 0.0, %v1278
        %v1280 = vpop.f32.mrb[0].mxu0
        %v1281 = vadd.f32 0.0, %v1280
        %1282 = vdwg.mxu0
        %v1283 = vadd.f32 %v1228, %v1275
        %v1284 = vadd.f32 %v1229, %v1277
        %v1285 = vadd.f32 %v1230, %v1279
        %v1286 = vadd.f32 %v1231, %v1281
        %v1287 = vmul.f32 %v1283, %v653
        %v1288 = vmul.f32 %v1284, %v657
        %v1289 = vmul.f32 %v1285, %v653
        %v1290 = vmul.f32 %v1286, %v657
        %v1291 = vadd.f32 %v1287, %v669
        %v1292 = vadd.f32 %v1288, %v673
        %v1293 = vadd.f32 %v1289, %v669
        %v1294 = vadd.f32 %v1290, %v673
        %v1295 = vmax.f32 %v1291, 0.0
        %v1296 = vmax.f32 %v1292, 0.0
        %v1297 = vmax.f32 %v1293, 0.0
        %v1298 = vmax.f32 %v1294, 0.0
        %v1299 = vmax.f32 %v1048, %v1295
        %v1300 = vmax.f32 %v1049, %v1296
        %v1301 = vmax.f32 %v1050, %v1297
        %v1302 = vmax.f32 %v1051, %v1298
        %1303 = vmatprep.subr.bf16.mxu0 %v707
        %1304 = vmatpush1.bf16.msra.mxu0 %v706
        %1305 = vmatprep.subr.bf16.mxu0 %v709
        %1306 = vmatpush1.bf16.msra.mxu0 %v708
        %1307 = vmatprep.subr.bf16.mxu0 0
        %1308 = vmatpush1.bf16.msra.mxu0 0
        %1309 = vmatprep.subr.bf16.mxu0 0
        %1310 = vmatpush1.bf16.msra.mxu0 0
        %1311 = vmatprep.subr.bf16.mxu0 0
        %1312 = vmatpush1.bf16.msra.mxu0 0
        %1313 = vmatprep.subr.bf16.mxu0 0
        %1314 = vmatpush1.bf16.msra.mxu0 0
        %1315 = vmatprep.subr.bf16.mxu0 0
        %1316 = vmatpush1.bf16.msra.mxu0 0
        %1317 = vmatprep.subr.bf16.mxu0 0
        %1318 = vmatpush1.bf16.msra.mxu0 0
        %1319 = vmatprep.subr.bf16.mxu0 0
        %1320 = vmatpush1.bf16.msra.mxu0 0
        %1321 = vmatprep.subr.bf16.mxu0 0
        %1322 = vmatpush1.bf16.msra.mxu0 0
        %1323 = vmatprep.subr.bf16.mxu0 0
        %1324 = vmatpush1.bf16.msra.mxu0 0
        %1325 = vmatprep.subr.bf16.mxu0 0
        %1326 = vmatpush1.bf16.msra.mxu0 0
        %1327 = vmatprep.subr.bf16.mxu0 0
        %1328 = vmatpush1.bf16.msra.mxu0 0
        %1329 = vmatprep.subr.bf16.mxu0 0
        %1330 = vmatpush1.bf16.msra.mxu0 0
        %1331 = vmatprep.subr.bf16.mxu0 0
        %1332 = vmatpush1.bf16.msra.mxu0 0
        %1333 = vmatprep.subr.bf16.mxu0 0
        %1334 = vmatpush1.bf16.msra.mxu0 0
        %1335 = vmatprep.mubr.bf16.mxu0 0
        %1336 = vmatmul.mubr.bf16.gmra.mrb[0].mxu0 %v433
        %v1337 = vpop.f32.mrb[0].mxu0
        %v1338 = vadd.f32 0.0, %v1337
        %v1339 = vpop.f32.mrb[0].mxu0
        %v1340 = vadd.f32 0.0, %v1339
        %v1341 = vpop.f32.mrb[0].mxu0
        %v1342 = vadd.f32 0.0, %v1341
        %v1343 = vpop.f32.mrb[0].mxu0
        %v1344 = vadd.f32 0.0, %v1343
        %1345 = vdwg.mxu0
        %1346 = vmatprep.subr.bf16.mxu0 %v770
        %1347 = vmatpush1.bf16.msra.mxu0 %v769
        %1348 = vmatprep.subr.bf16.mxu0 %v772
        %1349 = vmatpush1.bf16.msra.mxu0 %v771
        %1350 = vmatprep.subr.bf16.mxu0 0
        %1351 = vmatpush1.bf16.msra.mxu0 0
        %1352 = vmatprep.subr.bf16.mxu0 0
        %1353 = vmatpush1.bf16.msra.mxu0 0
        %1354 = vmatprep.subr.bf16.mxu0 0
        %1355 = vmatpush1.bf16.msra.mxu0 0
        %1356 = vmatprep.subr.bf16.mxu0 0
        %1357 = vmatpush1.bf16.msra.mxu0 0
        %1358 = vmatprep.subr.bf16.mxu0 0
        %1359 = vmatpush1.bf16.msra.mxu0 0
        %1360 = vmatprep.subr.bf16.mxu0 0
        %1361 = vmatpush1.bf16.msra.mxu0 0
        %1362 = vmatprep.subr.bf16.mxu0 0
        %1363 = vmatpush1.bf16.msra.mxu0 0
        %1364 = vmatprep.subr.bf16.mxu0 0
        %1365 = vmatpush1.bf16.msra.mxu0 0
        %1366 = vmatprep.subr.bf16.mxu0 0
        %1367 = vmatpush1.bf16.msra.mxu0 0
        %1368 = vmatprep.subr.bf16.mxu0 0
        %1369 = vmatpush1.bf16.msra.mxu0 0
        %1370 = vmatprep.subr.bf16.mxu0 0
        %1371 = vmatpush1.bf16.msra.mxu0 0
        %1372 = vmatprep.subr.bf16.mxu0 0
        %1373 = vmatpush1.bf16.msra.mxu0 0
        %1374 = vmatprep.subr.bf16.mxu0 0
        %1375 = vmatpush1.bf16.msra.mxu0 0
        %1376 = vmatprep.subr.bf16.mxu0 0
        %1377 = vmatpush1.bf16.msra.mxu0 0
        %1378 = vmatprep.mubr.bf16.mxu0 0
        %1379 = vmatmul.mubr.bf16.gmra.mrb[0].mxu0 %v280
        %v1380 = vpop.f32.mrb[0].mxu0
        %v1381 = vadd.f32 %v1338, %v1380
        %v1382 = vpop.f32.mrb[0].mxu0
        %v1383 = vadd.f32 %v1340, %v1382
        %v1384 = vpop.f32.mrb[0].mxu0
        %v1385 = vadd.f32 %v1342, %v1384
        %v1386 = vpop.f32.mrb[0].mxu0
        %v1387 = vadd.f32 %v1344, %v1386
        %1388 = vdwg.mxu0
        %1389 = vmatprep.subr.bf16.mxu0 %v838
        %1390 = vmatpush1.bf16.msra.mxu0 %v837
        %1391 = vmatprep.subr.bf16.mxu0 %v840
        %1392 = vmatpush1.bf16.msra.mxu0 %v839
        %1393 = vmatprep.subr.bf16.mxu0 0
        %1394 = vmatpush1.bf16.msra.mxu0 0
        %1395 = vmatprep.subr.bf16.mxu0 0
        %1396 = vmatpush1.bf16.msra.mxu0 0
        %1397 = vmatprep.subr.bf16.mxu0 0
        %1398 = vmatpush1.bf16.msra.mxu0 0
        %1399 = vmatprep.subr.bf16.mxu0 0
        %1400 = vmatpush1.bf16.msra.mxu0 0
        %1401 = vmatprep.subr.bf16.mxu0 0
        %1402 = vmatpush1.bf16.msra.mxu0 0
        %1403 = vmatprep.subr.bf16.mxu0 0
        %1404 = vmatpush1.bf16.msra.mxu0 0
        %1405 = vmatprep.subr.bf16.mxu0 0
        %1406 = vmatpush1.bf16.msra.mxu0 0
        %1407 = vmatprep.subr.bf16.mxu0 0
        %1408 = vmatpush1.bf16.msra.mxu0 0
        %1409 = vmatprep.subr.bf16.mxu0 0
        %1410 = vmatpush1.bf16.msra.mxu0 0
        %1411 = vmatprep.subr.bf16.mxu0 0
        %1412 = vmatpush1.bf16.msra.mxu0 0
        %1413 = vmatprep.subr.bf16.mxu0 0
        %1414 = vmatpush1.bf16.msra.mxu0 0
        %1415 = vmatprep.subr.bf16.mxu0 0
        %1416 = vmatpush1.bf16.msra.mxu0 0
        %1417 = vmatprep.subr.bf16.mxu0 0
        %1418 = vmatpush1.bf16.msra.mxu0 0
        %1419 = vmatprep.subr.bf16.mxu0 0
        %1420 = vmatpush1.bf16.msra.mxu0 0
        %1421 = vmatprep.mubr.bf16.mxu0 0
        %1422 = vmatmul.mubr.bf16.gmra.mrb[0].mxu0 %v519
        %v1423 = vpop.f32.mrb[0].mxu0
        %v1424 = vadd.f32 0.0, %v1423
        %v1425 = vpop.f32.mrb[0].mxu0
        %v1426 = vadd.f32 0.0, %v1425
        %v1427 = vpop.f32.mrb[0].mxu0
        %v1428 = vadd.f32 0.0, %v1427
        %v1429 = vpop.f32.mrb[0].mxu0
        %v1430 = vadd.f32 0.0, %v1429
        %1431 = vdwg.mxu0
        %v1432 = vadd.f32 %v1381, %v1424
        %v1433 = vadd.f32 %v1383, %v1426
        %v1434 = vadd.f32 %v1385, %v1428
        %v1435 = vadd.f32 %v1387, %v1430
        %1436 = vmatprep.subr.bf16.mxu0 %v910
        %1437 = vmatpush1.bf16.msra.mxu0 %v909
        %1438 = vmatprep.subr.bf16.mxu0 %v912
        %1439 = vmatpush1.bf16.msra.mxu0 %v911
        %1440 = vmatprep.subr.bf16.mxu0 0
        %1441 = vmatpush1.bf16.msra.mxu0 0
        %1442 = vmatprep.subr.bf16.mxu0 0
        %1443 = vmatpush1.bf16.msra.mxu0 0
        %1444 = vmatprep.subr.bf16.mxu0 0
        %1445 = vmatpush1.bf16.msra.mxu0 0
        %1446 = vmatprep.subr.bf16.mxu0 0
        %1447 = vmatpush1.bf16.msra.mxu0 0
        %1448 = vmatprep.subr.bf16.mxu0 0
        %1449 = vmatpush1.bf16.msra.mxu0 0
        %1450 = vmatprep.subr.bf16.mxu0 0
        %1451 = vmatpush1.bf16.msra.mxu0 0
        %1452 = vmatprep.subr.bf16.mxu0 0
        %1453 = vmatpush1.bf16.msra.mxu0 0
        %1454 = vmatprep.subr.bf16.mxu0 0
        %1455 = vmatpush1.bf16.msra.mxu0 0
        %1456 = vmatprep.subr.bf16.mxu0 0
        %1457 = vmatpush1.bf16.msra.mxu0 0
        %1458 = vmatprep.subr.bf16.mxu0 0
        %1459 = vmatpush1.bf16.msra.mxu0 0
        %1460 = vmatprep.subr.bf16.mxu0 0
        %1461 = vmatpush1.bf16.msra.mxu0 0
        %1462 = vmatprep.subr.bf16.mxu0 0
        %1463 = vmatpush1.bf16.msra.mxu0 0
        %1464 = vmatprep.subr.bf16.mxu0 0
        %1465 = vmatpush1.bf16.msra.mxu0 0
        %1466 = vmatprep.subr.bf16.mxu0 0
        %1467 = vmatpush1.bf16.msra.mxu0 0
        %1468 = vmatprep.mubr.bf16.mxu0 0
        %1469 = vmatmul.mubr.bf16.gmra.mrb[0].mxu0 %v599
        %v1470 = vpop.f32.mrb[0].mxu0
        %v1471 = vadd.f32 0.0, %v1470
        %v1472 = vpop.f32.mrb[0].mxu0
        %v1473 = vadd.f32 0.0, %v1472
        %v1474 = vpop.f32.mrb[0].mxu0
        %v1475 = vadd.f32 0.0, %v1474
        %v1476 = vpop.f32.mrb[0].mxu0
        %v1477 = vadd.f32 0.0, %v1476
        %1478 = vdwg.mxu0
        %v1479 = vadd.f32 %v1432, %v1471
        %v1480 = vadd.f32 %v1433, %v1473
        %v1481 = vadd.f32 %v1434, %v1475
        %v1482 = vadd.f32 %v1435, %v1477
        %1483 = vmatprep.subr.bf16.mxu0 %v982
        %1484 = vmatpush1.bf16.msra.mxu0 %v981
        %1485 = vmatprep.subr.bf16.mxu0 %v984
        %1486 = vmatpush1.bf16.msra.mxu0 %v983
        %1487 = vmatprep.subr.bf16.mxu0 0
        %1488 = vmatpush1.bf16.msra.mxu0 0
        %1489 = vmatprep.subr.bf16.mxu0 0
        %1490 = vmatpush1.bf16.msra.mxu0 0
        %1491 = vmatprep.subr.bf16.mxu0 0
        %1492 = vmatpush1.bf16.msra.mxu0 0
        %1493 = vmatprep.subr.bf16.mxu0 0
        %1494 = vmatpush1.bf16.msra.mxu0 0
        %1495 = vmatprep.subr.bf16.mxu0 0
        %1496 = vmatpush1.bf16.msra.mxu0 0
        %1497 = vmatprep.subr.bf16.mxu0 0
        %1498 = vmatpush1.bf16.msra.mxu0 0
        %1499 = vmatprep.subr.bf16.mxu0 0
        %1500 = vmatpush1.bf16.msra.mxu0 0
        %1501 = vmatprep.subr.bf16.mxu0 0
        %1502 = vmatpush1.bf16.msra.mxu0 0
        %1503 = vmatprep.subr.bf16.mxu0 0
        %1504 = vmatpush1.bf16.msra.mxu0 0
        %1505 = vmatprep.subr.bf16.mxu0 0
        %1506 = vmatpush1.bf16.msra.mxu0 0
        %1507 = vmatprep.subr.bf16.mxu0 0
        %1508 = vmatpush1.bf16.msra.mxu0 0
        %1509 = vmatprep.subr.bf16.mxu0 0
        %1510 = vmatpush1.bf16.msra.mxu0 0
        %1511 = vmatprep.subr.bf16.mxu0 0
        %1512 = vmatpush1.bf16.msra.mxu0 0
        %1513 = vmatprep.subr.bf16.mxu0 0
        %1514 = vmatpush1.bf16.msra.mxu0 0
        %1515 = vmatprep.mubr.bf16.mxu0 0
        %1516 = vmatmul.mubr.bf16.gmra.mrb[0].mxu0 %v1238
        %v1517 = vpop.f32.mrb[0].mxu0
        %v1518 = vadd.f32 0.0, %v1517
        %v1519 = vpop.f32.mrb[0].mxu0
        %v1520 = vadd.f32 0.0, %v1519
        %v1521 = vpop.f32.mrb[0].mxu0
        %v1522 = vadd.f32 0.0, %v1521
        %v1523 = vpop.f32.mrb[0].mxu0
        %v1524 = vadd.f32 0.0, %v1523
        %1525 = vdwg.mxu0
        %v1526 = vadd.f32 %v1479, %v1518
        %v1527 = vadd.f32 %v1480, %v1520
        %v1528 = vadd.f32 %v1481, %v1522
        %v1529 = vadd.f32 %v1482, %v1524
        %v1530 = vmul.f32 %v1526, %v653
        %v1531 = vmul.f32 %v1527, %v657
        %v1532 = vmul.f32 %v1528, %v653
        %v1533 = vmul.f32 %v1529, %v657
        %v1534 = vadd.f32 %v1530, %v669
        %v1535 = vadd.f32 %v1531, %v673
        %v1536 = vadd.f32 %v1532, %v669
        %v1537 = vadd.f32 %v1533, %v673
        %v1538 = vmax.f32 %v1534, 0.0
        %v1539 = vmax.f32 %v1535, 0.0
        %v1540 = vmax.f32 %v1536, 0.0
        %v1541 = vmax.f32 %v1537, 0.0
        %v1542 = vmax.f32 %v1299, %v1538
        %v1543 = vmax.f32 %v1300, %v1539
        %v1544 = vmax.f32 %v1301, %v1540
        %v1545 = vmax.f32 %v1302, %v1541
        %v1546 = vpack.c.bf16 %v1544, %v1542
        %v1547 = vpack.c.bf16 %v1545, %v1543
        %v1550 = vunpack.c.l.b16 %v1546
        %v1551 = vunpack.c.l.b16 %v1547
        %v1552 = vunpack.c.h.b16 %v1546
        %v1553 = vunpack.c.h.b16 %v1547
        %v1554 = vpack.c.b16 %v1551, %v1550
        %v1555 = vpack.c.b16 %v1553, %v1552
        %vm1558 = vcmask 1043456
        %vm1559 = vcmask 785412
        %vm1560 = vmor %vm1559, %vm1558
        %1561 = vst.msk [vmem:[%s237] sm:$0xff] %vm1560, %v1554
        %vm1562 = vcmask 1042432
        %vm1563 = vcmask 784388
        %vm1564 = vmor %vm1563, %vm1562
        %1565 = vst.msk [vmem:[%s237 + $0x8] sm:$0x77] %vm1564, %v1555
        %p1566 = scmp.lt.s32.totalorder %s17, 1
        %s1567 = scalar_select %p1566, %s17, 1
        %s1568 = smul.addr %s1567, 4
        %s1569 = smul.addr %s1568, 4
        %s1570 = scalar_lea.vmem %s4, %s1569
        // Predicated region
        $region49: #{net_fashionmnist_forward.3} parent=35 // pred_check
          %p1571 = pneg %p124
        $region50: #{net_fashionmnist_forward.3} parent=35 // pred_check_branch
          %1573 = sbr.rel (%p1571) target = $region52
        $region51: #{net_fashionmnist_forward.3} parent=35 // pred_region
          _
        $region52: #{net_fashionmnist_forward.3} parent=35 // pred_fallthru
          _
      $region36: #{net_fashionmnist_forward.3} parent=5 // pred_fallthru
        _
      %p1574 = scmp.le.s32.totalorder 2, %s12
      // Predicated region
      $region53: #{net_fashionmnist_forward.3} parent=5 // pred_check
        %p1575 = pneg %p1574
      $region54: #{net_fashionmnist_forward.3} parent=5 // pred_check_branch
        %1577 = sbr.rel (%p1575) target = $region56
      $region55: #{net_fashionmnist_forward.3} parent=5 // pred_region
        %s1578 = ssub.s32 %s12, 2
        // Predicated region
        $region57: #{net_fashionmnist_forward.3} parent=55 // pred_check
          %p1579 = pneg %p130
        $region58: #{net_fashionmnist_forward.3} parent=55 // pred_check_branch
          %1581 = sbr.rel (%p1579) target = $region60
        $region59: #{net_fashionmnist_forward.3} parent=55 // pred_region
          %p1582 = scmp.lt.s32.totalorder %s18, 1
          %s1583 = scalar_select %p1582, %s18, 1
          %s1584 = smul.addr %s1583, 4
          %s1585 = smul.addr %s1584, 4
          %s1586 = scalar_lea.vmem %s4, %s1585
        $region60: #{net_fashionmnist_forward.3} parent=55 // pred_fallthru
          _
      $region56: #{net_fashionmnist_forward.3} parent=5 // pred_fallthru
        _
    $region6: #{net_fashionmnist_forward.3} parent=1 // loop_footer
      %s16 = sadd.s32 1, %s12
    $region7: #{net_fashionmnist_forward.3} parent=1 // loop_footer_branch
      %11 = sbr.rel target = $region3
    $region8: #{net_fashionmnist_forward.3} parent=1 // loop_exit
      _
    %1587 = vsyncpa [#allocation3], 1
    %s1588 = scalar_lea.sflag [#allocation3], 1
    %1589 = vsyncpa %s1588, 1
    %1590 = vsyncpa [#allocation5], 1

// kernel: net_fashionmnist_forward.4
$region0: #{net_fashionmnist_forward.4}
  #allocation0 [shape = 'u32[]', space=smem, size = 0x4, offset = 0x4, fixed_abs, tag = 'smem constant byte address 0x4 - core index']
  #allocation1 [shape = 'u32[144,128]{1,0:T(1,128)}', space=vmem, size = 0x12000, scoped, tag = 'internal scratch']
  %s0 = inlined_call_operand.vmem [shape: bf16[2,2,9,288], index: 0, kind: input, shape index: {}]
  %s1 = inlined_call_operand.hbm [shape: bf16[10,288,224], index: 1, kind: input, shape index: {}]
  %s2 = inlined_call_operand.hbm [shape: f32[1,224], index: 2, kind: input, shape index: {}]
  %s3 = inlined_call_operand.hbm [shape: f32[1,224], index: 3, kind: input, shape index: {}]
  %s4 = inlined_call_operand.vmem [shape: f32[2,7,224], index: 4, kind: output, shape index: {}]
  %s5 = sld [smem:[#allocation0]]
  $region61: #{net_fashionmnist_forward.4} parent=0
    _
  %s7 = ssub.s32 1, %s5
  %s8 = scalar_select 0, %s7, %s5
  $region1: #{net_fashionmnist_forward.4} parent=0
    #allocation2 [shape = 'u8[1474560]{0}', space=vmem, size = 0x168000, scoped, tag = 'input window, operand 1, single buffered']
    #allocation3 [shape = 's32[2]{0}', space=sflag, size = 0x8, scoped, tag = 'scoped memory for net_fashionmnist_forward.4']
    #allocation4 [shape = 'u8[1024]{0}', space=vmem, size = 0x400, scoped, tag = 'input window, operand 2, single buffered']
    #allocation5 [shape = 's32[1]{0}', space=sflag, size = 0x4, scoped, tag = 'scoped memory for net_fashionmnist_forward.4']
    #allocation6 [shape = 'u8[1024]{0}', space=vmem, size = 0x400, scoped, tag = 'input window, operand 3, single buffered']
    %9 = vsyncpa [#allocation3], 0
    %10 = vsyncpa [#allocation5], 0
    loop: start=0, step=1, limit=4
    $region2: #{net_fashionmnist_forward.4} parent=1 // loop_pre_header
      _
    $region3: #{net_fashionmnist_forward.4} parent=1 // loop_header
      %s12 = sphi 0, %s16
      %p13 = scmp.ge.s32.totalorder %s12, 4
      %s22 = sphi 0, %s24
      %s25 = sphi 0, %s22
      %s26 = sphi 0, %s25
      %s42 = sphi 0, %s26
      %s46 = sphi 0, %s46
      %s48 = sphi 0, %s46
      %s49 = sphi 0, %s48
      %s63 = sphi 0, %s49
      %s67 = sphi 0, %s67
      %s69 = sphi 0, %s67
      %s70 = sphi 0, %s69
      %s84 = sphi 0, %s70
      %s88 = sphi 0, %s88
      %s90 = sphi 0, %s88
      %s91 = sphi 0, %s90
      %s105 = sphi 0, %s91
      %s111 = sphi 0, %s113
      %s114 = sphi 0, %s111
      %s115 = sphi 0, %s114
      %s131 = sphi 0, %s115
    $region4: #{net_fashionmnist_forward.4} parent=1 // loop_header_branch
      %15 = sbr.rel (%p13) target = $region8
    $region5: #{net_fashionmnist_forward.4} parent=1 // loop_body
      %s17 = ssub.s32 %s12, 1
      %s18 = ssub.s32 %s12, 2
      %s19 = sadd.s32 %s12, 1
      %s20 = ssub.s32 %s12, %s19
      %p21 = scmp.eq.s32.totalorder %s20, 0
      %s23 = sadd.s32 %s22, 1
      %s24 = scalar_select %p21, %s22, %s23
      %p27 = pneg %p21
      %p28 = scmp.eq.s32.totalorder %s12, 1
      %p29 = por %p27, %p28
      %p30 = scmp.ne.s32.totalorder %s22, %s25
      %p31 = scmp.eq.s32.totalorder %s12, 0
      %p32 = por %p30, %p31
      %p33 = scmp.ne.s32.totalorder %s22, %s25
      %p34 = scmp.eq.s32.totalorder %s17, 1
      %p35 = por %p33, %p34
      %p36 = scmp.ne.s32.totalorder %s25, %s26
      %p37 = scmp.eq.s32.totalorder %s17, 0
      %p38 = por %p36, %p37
      %p39 = scmp.ne.s32.totalorder %s25, %s26
      %p40 = scmp.eq.s32.totalorder %s18, 1
      %p41 = por %p39, %p40
      %p43 = scmp.ne.s32.totalorder %s26, %s42
      %p44 = scmp.eq.s32.totalorder %s18, 0
      %p45 = por %p43, %p44
      %s47 = sadd.s32 %s46, 1
      %p50 = scmp.eq.s32.totalorder %s12, 1
      %p51 = scmp.ne.s32.totalorder %s46, %s48
      %p52 = scmp.eq.s32.totalorder %s12, 0
      %p53 = por %p51, %p52
      %p54 = scmp.ne.s32.totalorder %s46, %s48
      %p55 = scmp.eq.s32.totalorder %s17, 1
      %p56 = por %p54, %p55
      %p57 = scmp.ne.s32.totalorder %s48, %s49
      %p58 = scmp.eq.s32.totalorder %s17, 0
      %p59 = por %p57, %p58
      %p60 = scmp.ne.s32.totalorder %s48, %s49
      %p61 = scmp.eq.s32.totalorder %s18, 1
      %p62 = por %p60, %p61
      %p64 = scmp.ne.s32.totalorder %s49, %s63
      %p65 = scmp.eq.s32.totalorder %s18, 0
      %p66 = por %p64, %p65
      %s68 = sadd.s32 %s67, 1
      %p71 = scmp.eq.s32.totalorder %s12, 1
      %p72 = scmp.ne.s32.totalorder %s67, %s69
      %p73 = scmp.eq.s32.totalorder %s12, 0
      %p74 = por %p72, %p73
      %p75 = scmp.ne.s32.totalorder %s67, %s69
      %p76 = scmp.eq.s32.totalorder %s17, 1
      %p77 = por %p75, %p76
      %p78 = scmp.ne.s32.totalorder %s69, %s70
      %p79 = scmp.eq.s32.totalorder %s17, 0
      %p80 = por %p78, %p79
      %p81 = scmp.ne.s32.totalorder %s69, %s70
      %p82 = scmp.eq.s32.totalorder %s18, 1
      %p83 = por %p81, %p82
      %p85 = scmp.ne.s32.totalorder %s70, %s84
      %p86 = scmp.eq.s32.totalorder %s18, 0
      %p87 = por %p85, %p86
      %s89 = sadd.s32 %s88, 1
      %p92 = scmp.eq.s32.totalorder %s12, 1
      %p93 = scmp.ne.s32.totalorder %s88, %s90
      %p94 = scmp.eq.s32.totalorder %s12, 0
      %p95 = por %p93, %p94
      %p96 = scmp.ne.s32.totalorder %s88, %s90
      %p97 = scmp.eq.s32.totalorder %s17, 1
      %p98 = por %p96, %p97
      %p99 = scmp.ne.s32.totalorder %s90, %s91
      %p100 = scmp.eq.s32.totalorder %s17, 0
      %p101 = por %p99, %p100
      %p102 = scmp.ne.s32.totalorder %s90, %s91
      %p103 = scmp.eq.s32.totalorder %s18, 1
      %p104 = por %p102, %p103
      %p106 = scmp.ne.s32.totalorder %s91, %s105
      %p107 = scmp.eq.s32.totalorder %s18, 0
      %p108 = por %p106, %p107
      %s109 = ssub.s32 %s12, %s19
      %p110 = scmp.eq.s32.totalorder %s109, 0
      %s112 = sadd.s32 %s111, 1
      %s113 = scalar_select %p110, %s111, %s112
      %p116 = pneg %p110
      %p117 = scmp.eq.s32.totalorder %s12, 1
      %p118 = por %p116, %p117
      %p119 = scmp.ne.s32.totalorder %s111, %s114
      %p120 = scmp.eq.s32.totalorder %s12, 0
      %p121 = por %p119, %p120
      %p122 = scmp.ne.s32.totalorder %s111, %s114
      %p123 = scmp.eq.s32.totalorder %s17, 1
      %p124 = por %p122, %p123
      %p125 = scmp.ne.s32.totalorder %s114, %s115
      %p126 = scmp.eq.s32.totalorder %s17, 0
      %p127 = por %p125, %p126
      %p128 = scmp.ne.s32.totalorder %s114, %s115
      %p129 = scmp.eq.s32.totalorder %s18, 1
      %p130 = por %p128, %p129
      %p132 = scmp.ne.s32.totalorder %s115, %s131
      %p133 = scmp.eq.s32.totalorder %s18, 0
      %p134 = por %p132, %p133
      %p135 = scmp.le.s32.totalorder 1, %s12
      %p136 = scmp.lt.s32.totalorder %s12, 3
      %p137 = pnand %p135, %p136
      %p138 = pneg %p137
      // Predicated region
      $region9: #{net_fashionmnist_forward.4} parent=5 // pred_check
        _
      $region10: #{net_fashionmnist_forward.4} parent=5 // pred_check_branch
        %140 = sbr.rel (%p137) target = $region12
      $region11: #{net_fashionmnist_forward.4} parent=5 // pred_region
        %s141 = ssub.s32 %s12, 1
        // Predicated region
        $region13: #{net_fashionmnist_forward.4} parent=11 // pred_check
          %p142 = pneg %p59
        $region14: #{net_fashionmnist_forward.4} parent=11 // pred_check_branch
          %144 = sbr.rel (%p142) target = $region16
        $region15: #{net_fashionmnist_forward.4} parent=11 // pred_region
          %s146 = ssub.s32 46080, 46080
          %147 = vsyncadd [#allocation3], %s146
          %s148 = sshll.u32 [#allocation2], 4
          %s149 = int_to_ptr.vmem [resolvable:$true] %s148
          %154 = dma.hbm_to_vmem [thread:$0]  %s1, 46080, %s149, [#allocation3], 128, 128, 8
        $region16: #{net_fashionmnist_forward.4} parent=11 // pred_fallthru
          _
        // Predicated region
        $region17: #{net_fashionmnist_forward.4} parent=11 // pred_check
          %p155 = pneg %p80
        $region18: #{net_fashionmnist_forward.4} parent=11 // pred_check_branch
          %157 = sbr.rel (%p155) target = $region20
        $region19: #{net_fashionmnist_forward.4} parent=11 // pred_region
          %s159 = ssub.s32 32, 32
          %160 = vsyncadd [#allocation5], %s159
          %s162 = sshll.u32 [#allocation4], 4
          %s163 = int_to_ptr.vmem [resolvable:$true] %s162
          %165 = dma.hbm_to_vmem [thread:$0]  %s2, 32, %s163, [#allocation5]
        $region20: #{net_fashionmnist_forward.4} parent=11 // pred_fallthru
          _
        // Predicated region
        $region21: #{net_fashionmnist_forward.4} parent=11 // pred_check
          %p166 = pneg %p101
        $region22: #{net_fashionmnist_forward.4} parent=11 // pred_check_branch
          %168 = sbr.rel (%p166) target = $region24
        $region23: #{net_fashionmnist_forward.4} parent=11 // pred_region
          %s170 = ssub.s32 32, 32
          %171 = vsyncadd [#allocation5], %s170
          %s173 = sshll.u32 [#allocation6], 4
          %s174 = int_to_ptr.vmem [resolvable:$true] %s173
          %176 = dma.hbm_to_vmem [thread:$0]  %s3, 32, %s174, [#allocation5]
        $region24: #{net_fashionmnist_forward.4} parent=11 // pred_fallthru
          _
      $region12: #{net_fashionmnist_forward.4} parent=5 // pred_fallthru
        _
      %p177 = scmp.lt.s32.totalorder %s12, 2
      // Predicated region
      $region25: #{net_fashionmnist_forward.4} parent=5 // pred_check
        %p178 = pneg %p177
      $region26: #{net_fashionmnist_forward.4} parent=5 // pred_check_branch
        %180 = sbr.rel (%p178) target = $region28
      $region27: #{net_fashionmnist_forward.4} parent=5 // pred_region
        // Predicated region
        $region29: #{net_fashionmnist_forward.4} parent=27 // pred_check
          %p181 = pneg %p32
        $region30: #{net_fashionmnist_forward.4} parent=27 // pred_check_branch
          %183 = sbr.rel (%p181) target = $region32
        $region31: #{net_fashionmnist_forward.4} parent=27 // pred_region
          %p184 = scmp.lt.s32.totalorder %s12, 1
          %s185 = scalar_select %p184, %s12, 1
          %s186 = smul.addr %s185, 12
          %s187 = smul.addr %s186, 4
          %s188 = scalar_lea.vmem %s0, %s187
        $region32: #{net_fashionmnist_forward.4} parent=27 // pred_fallthru
          _
      $region28: #{net_fashionmnist_forward.4} parent=5 // pred_fallthru
        _
      %p189 = scmp.le.s32.totalorder 1, %s12
      %p190 = scmp.lt.s32.totalorder %s12, 3
      %p191 = pnand %p189, %p190
      %p192 = pneg %p191
      // Predicated region
      $region33: #{net_fashionmnist_forward.4} parent=5 // pred_check
        _
      $region34: #{net_fashionmnist_forward.4} parent=5 // pred_check_branch
        %194 = sbr.rel (%p191) target = $region36
      $region35: #{net_fashionmnist_forward.4} parent=5 // pred_region
        %s195 = ssub.s32 %s12, 1
        // Predicated region
        $region37: #{net_fashionmnist_forward.4} parent=35 // pred_check
          %p196 = pneg %p59
        $region38: #{net_fashionmnist_forward.4} parent=35 // pred_check_branch
          %198 = sbr.rel (%p196) target = $region40
        $region39: #{net_fashionmnist_forward.4} parent=35 // pred_region
          %199 = dma.done [#allocation3], 46080
        $region40: #{net_fashionmnist_forward.4} parent=35 // pred_fallthru
          _
        // Predicated region
        $region41: #{net_fashionmnist_forward.4} parent=35 // pred_check
          %p200 = pneg %p80
        $region42: #{net_fashionmnist_forward.4} parent=35 // pred_check_branch
          %202 = sbr.rel (%p200) target = $region44
        $region43: #{net_fashionmnist_forward.4} parent=35 // pred_region
          %203 = dma.done [#allocation5], 32
        $region44: #{net_fashionmnist_forward.4} parent=35 // pred_fallthru
          _
        // Predicated region
        $region45: #{net_fashionmnist_forward.4} parent=35 // pred_check
          %p204 = pneg %p101
        $region46: #{net_fashionmnist_forward.4} parent=35 // pred_check_branch
          %206 = sbr.rel (%p204) target = $region48
        $region47: #{net_fashionmnist_forward.4} parent=35 // pred_region
          %207 = dma.done [#allocation5], 32
        $region48: #{net_fashionmnist_forward.4} parent=35 // pred_fallthru
          _
        %p208 = scmp.lt.s32.totalorder %s17, 1
        %s209 = scalar_select %p208, %s17, 1
        %s210 = smul.addr %s209, 12
        %s211 = smul.addr %s210, 4
        %s212 = scalar_lea.vmem %s0, %s211
        %p213 = pneg %p38
        %p214 = pneg %p35
        %p215 = pneg %p59
        %p216 = pneg %p56
        %p217 = pneg %p80
        %p218 = pneg %p77
        %p219 = pneg %p101
        %p220 = pneg %p98
        %p221 = pneg %p127
        %p222 = pneg %p124
        %p223 = scmp.lt.s32.totalorder %s17, 1
        %s224 = scalar_select %p223, %s17, 1
        %s225 = smul.addr %s224, 2
        %s226 = smul.addr %s225, 8
        %s227 = scalar_lea.vmem %s4, %s226
        %p228 = scmp.lt.s32.totalorder %s17, 1
        %s229 = scalar_select %p228, %s17, 1
        %s230 = smul.addr %s229, 12
        %s231 = smul.addr %s230, 4
        %s232 = scalar_lea.vmem %s0, %s231
        %p233 = scmp.lt.s32.totalorder %s17, 1
        %s234 = scalar_select %p233, %s17, 1
        %s235 = smul.addr %s234, 2
        %s236 = smul.addr %s235, 8
        %s237 = scalar_lea.vmem %s4, %s236
        %v239 = vld [vmem:[%s232] sm:$0xff]
        %v240 = vld [vmem:[%s232 + $0x8] sm:$0xf]
        %v241 = vld [vmem:[#allocation2] sm:$0xff]
        %v242 = vld [vmem:[#allocation2 + $0x8] sm:$0xff]
        %v243 = vld [vmem:[#allocation2 + $0x10] sm:$0xff]
        %v244 = vld [vmem:[#allocation2 + $0x18] sm:$0xff]
        %v245 = vld [vmem:[#allocation2 + $0x20] sm:$0xff]
        %v246 = vld [vmem:[#allocation2 + $0x28] sm:$0xff]
        %v247 = vld [vmem:[#allocation2 + $0x30] sm:$0xff]
        %v248 = vld [vmem:[#allocation2 + $0x38] sm:$0xff]
        %v249 = vld [vmem:[#allocation2 + $0x40] sm:$0xff]
        %v250 = vld [vmem:[#allocation2 + $0x48] sm:$0xff]
        %v251 = vld [vmem:[#allocation2 + $0x50] sm:$0xff]
        %v252 = vld [vmem:[#allocation2 + $0x58] sm:$0xff]
        %v253 = vld [vmem:[#allocation2 + $0x60] sm:$0xff]
        %v254 = vld [vmem:[#allocation2 + $0x68] sm:$0xff]
        %v255 = vld [vmem:[#allocation2 + $0x70] sm:$0xff]
        %v256 = vld [vmem:[#allocation2 + $0x78] sm:$0xff]
        %v257 = vld [vmem:[#allocation2 + $0x80] sm:$0xff]
        %v258 = vld [vmem:[#allocation2 + $0x88] sm:$0xff]
        %v259 = vld [vmem:[#allocation2 + $0x90] sm:$0xff]
        %v260 = vld [vmem:[#allocation2 + $0x98] sm:$0xff]
        %v261 = vld [vmem:[#allocation2 + $0xa0] sm:$0xff]
        %v262 = vld [vmem:[#allocation2 + $0xa8] sm:$0xff]
        %v263 = vld [vmem:[#allocation2 + $0xb0] sm:$0xff]
        %v264 = vld [vmem:[#allocation2 + $0xb8] sm:$0xff]
        %v265 = vld [vmem:[#allocation2 + $0xc0] sm:$0xff]
        %v266 = vld [vmem:[#allocation2 + $0xc8] sm:$0xff]
        %v267 = vld [vmem:[#allocation2 + $0xd0] sm:$0xff]
        %v268 = vld [vmem:[#allocation2 + $0xd8] sm:$0xff]
        %v269 = vld [vmem:[#allocation2 + $0xe0] sm:$0xff]
        %v270 = vld [vmem:[#allocation2 + $0xe8] sm:$0xff]
        %v271 = vld [vmem:[#allocation2 + $0xf0] sm:$0xff]
        %v272 = vld [vmem:[#allocation2 + $0xf8] sm:$0xff]
        %v273 = vld [vmem:[#allocation2 + $0x100] sm:$0xff]
        %v274 = vld [vmem:[#allocation2 + $0x108] sm:$0xff]
        %v275 = vld [vmem:[#allocation2 + $0x110] sm:$0xff]
        %v276 = vld [vmem:[#allocation2 + $0x118] sm:$0xff]
        %s277 = scalar_lea.vmem %s232, 24
        %v278 = vld [vmem:[%s277] sm:$0xff]
        %v279 = vld [vmem:[%s277 + $0x8] sm:$0xf]
        %s280 = scalar_lea.vmem [#allocation2], 576
        %v281 = vld [vmem:[%s280] sm:$0xff]
        %v282 = vld [vmem:[%s280 + $0x8] sm:$0xff]
        %v283 = vld [vmem:[%s280 + $0x10] sm:$0xff]
        %v284 = vld [vmem:[%s280 + $0x18] sm:$0xff]
        %v285 = vld [vmem:[%s280 + $0x20] sm:$0xff]
        %v286 = vld [vmem:[%s280 + $0x28] sm:$0xff]
        %v287 = vld [vmem:[%s280 + $0x30] sm:$0xff]
        %v288 = vld [vmem:[%s280 + $0x38] sm:$0xff]
        %v289 = vld [vmem:[%s280 + $0x40] sm:$0xff]
        %v290 = vld [vmem:[%s280 + $0x48] sm:$0xff]
        %v291 = vld [vmem:[%s280 + $0x50] sm:$0xff]
        %v292 = vld [vmem:[%s280 + $0x58] sm:$0xff]
        %v293 = vld [vmem:[%s280 + $0x60] sm:$0xff]
        %v294 = vld [vmem:[%s280 + $0x68] sm:$0xff]
        %v295 = vld [vmem:[%s280 + $0x70] sm:$0xff]
        %v296 = vld [vmem:[%s280 + $0x78] sm:$0xff]
        %v297 = vld [vmem:[%s280 + $0x80] sm:$0xff]
        %v298 = vld [vmem:[%s280 + $0x88] sm:$0xff]
        %v299 = vld [vmem:[%s280 + $0x90] sm:$0xff]
        %v300 = vld [vmem:[%s280 + $0x98] sm:$0xff]
        %v301 = vld [vmem:[%s280 + $0xa0] sm:$0xff]
        %v302 = vld [vmem:[%s280 + $0xa8] sm:$0xff]
        %v303 = vld [vmem:[%s280 + $0xb0] sm:$0xff]
        %v304 = vld [vmem:[%s280 + $0xb8] sm:$0xff]
        %v305 = vld [vmem:[%s280 + $0xc0] sm:$0xff]
        %v306 = vld [vmem:[%s280 + $0xc8] sm:$0xff]
        %v307 = vld [vmem:[%s280 + $0xd0] sm:$0xff]
        %v308 = vld [vmem:[%s280 + $0xd8] sm:$0xff]
        %v309 = vld [vmem:[%s280 + $0xe0] sm:$0xff]
        %v310 = vld [vmem:[%s280 + $0xe8] sm:$0xff]
        %v311 = vld [vmem:[%s280 + $0xf0] sm:$0xff]
        %v312 = vld [vmem:[%s280 + $0xf8] sm:$0xff]
        %v313 = vld [vmem:[%s280 + $0x100] sm:$0xff]
        %v314 = vld [vmem:[%s280 + $0x108] sm:$0xff]
        %v315 = vld [vmem:[%s280 + $0x110] sm:$0xff]
        %v316 = vld [vmem:[%s280 + $0x118] sm:$0xff]
        %v319 = vunpack.c.l.b16 %v278
        %v320 = vunpack.c.h.b16 %v278
        %v321 = vunpack.c.l.b16 %v279
        %v322 = vpack.c.b16 %v319, %v319
        %v323 = vpack.c.b16 %v320, %v320
        %v324 = vpack.c.b16 %v321, %v321
        %v363 = vunpack.c.l.b16 %v281
        %v364 = vunpack.c.h.b16 %v281
        %v365 = vunpack.c.l.b16 %v282
        %v366 = vunpack.c.h.b16 %v282
        %v367 = vunpack.c.l.b16 %v283
        %v368 = vunpack.c.h.b16 %v283
        %v369 = vunpack.c.l.b16 %v284
        %v370 = vunpack.c.h.b16 %v284
        %v371 = vunpack.c.l.b16 %v285
        %v372 = vunpack.c.h.b16 %v285
        %v373 = vunpack.c.l.b16 %v286
        %v374 = vunpack.c.h.b16 %v286
        %v375 = vunpack.c.l.b16 %v287
        %v376 = vunpack.c.h.b16 %v287
        %v377 = vunpack.c.l.b16 %v288
        %v378 = vunpack.c.h.b16 %v288
        %v379 = vunpack.c.l.b16 %v289
        %v380 = vunpack.c.h.b16 %v289
        %v381 = vunpack.c.l.b16 %v290
        %v382 = vunpack.c.h.b16 %v290
        %v383 = vunpack.c.l.b16 %v291
        %v384 = vunpack.c.h.b16 %v291
        %v385 = vunpack.c.l.b16 %v292
        %v386 = vunpack.c.h.b16 %v292
        %v387 = vunpack.c.l.b16 %v293
        %v388 = vunpack.c.h.b16 %v293
        %v389 = vunpack.c.l.b16 %v294
        %v390 = vunpack.c.h.b16 %v294
        %v391 = vunpack.c.l.b16 %v295
        %v392 = vunpack.c.h.b16 %v295
        %v393 = vunpack.c.l.b16 %v296
        %v394 = vunpack.c.h.b16 %v296
        %v395 = vunpack.c.l.b16 %v297
        %v396 = vunpack.c.h.b16 %v297
        %v397 = vunpack.c.l.b16 %v298
        %v398 = vunpack.c.h.b16 %v298
        %v399 = vunpack.c.l.b16 %v299
        %v400 = vunpack.c.h.b16 %v299
        %v401 = vunpack.c.l.b16 %v300
        %v402 = vunpack.c.h.b16 %v300
        %v403 = vunpack.c.l.b16 %v301
        %v404 = vunpack.c.h.b16 %v301
        %v405 = vunpack.c.l.b16 %v302
        %v406 = vunpack.c.h.b16 %v302
        %v407 = vunpack.c.l.b16 %v303
        %v408 = vunpack.c.h.b16 %v303
        %v409 = vunpack.c.l.b16 %v304
        %v410 = vunpack.c.h.b16 %v304
        %v411 = vunpack.c.l.b16 %v305
        %v412 = vunpack.c.h.b16 %v305
        %v413 = vunpack.c.l.b16 %v306
        %v414 = vunpack.c.h.b16 %v306
        %v415 = vunpack.c.l.b16 %v307
        %v416 = vunpack.c.h.b16 %v307
        %v417 = vunpack.c.l.b16 %v308
        %v418 = vunpack.c.h.b16 %v308
        %v419 = vunpack.c.l.b16 %v309
        %v420 = vunpack.c.h.b16 %v309
        %v421 = vunpack.c.l.b16 %v310
        %v422 = vunpack.c.h.b16 %v310
        %v423 = vunpack.c.l.b16 %v311
        %v424 = vunpack.c.h.b16 %v311
        %v425 = vunpack.c.l.b16 %v312
        %v426 = vunpack.c.h.b16 %v312
        %v427 = vunpack.c.l.b16 %v313
        %v428 = vunpack.c.h.b16 %v313
        %v429 = vunpack.c.l.b16 %v314
        %v430 = vunpack.c.h.b16 %v314
        %v431 = vunpack.c.l.b16 %v315
        %v432 = vunpack.c.h.b16 %v315
        %v433 = vunpack.c.l.b16 %v316
        %v434 = vunpack.c.h.b16 %v316
        %v435 = vpack.c.b16 %v365, %v363
        %v436 = vpack.c.b16 %v366, %v364
        %v437 = vpack.c.b16 %v369, %v367
        %v438 = vpack.c.b16 %v370, %v368
        %v439 = vpack.c.b16 %v373, %v371
        %v440 = vpack.c.b16 %v374, %v372
        %v441 = vpack.c.b16 %v377, %v375
        %v442 = vpack.c.b16 %v378, %v376
        %v443 = vpack.c.b16 %v381, %v379
        %v444 = vpack.c.b16 %v382, %v380
        %v445 = vpack.c.b16 %v385, %v383
        %v446 = vpack.c.b16 %v386, %v384
        %v447 = vpack.c.b16 %v389, %v387
        %v448 = vpack.c.b16 %v390, %v388
        %v449 = vpack.c.b16 %v393, %v391
        %v450 = vpack.c.b16 %v394, %v392
        %v451 = vpack.c.b16 %v397, %v395
        %v452 = vpack.c.b16 %v398, %v396
        %v453 = vpack.c.b16 %v401, %v399
        %v454 = vpack.c.b16 %v402, %v400
        %v455 = vpack.c.b16 %v405, %v403
        %v456 = vpack.c.b16 %v406, %v404
        %v457 = vpack.c.b16 %v409, %v407
        %v458 = vpack.c.b16 %v410, %v408
        %v459 = vpack.c.b16 %v413, %v411
        %v460 = vpack.c.b16 %v414, %v412
        %v461 = vpack.c.b16 %v417, %v415
        %v462 = vpack.c.b16 %v418, %v416
        %v463 = vpack.c.b16 %v421, %v419
        %v464 = vpack.c.b16 %v422, %v420
        %v465 = vpack.c.b16 %v425, %v423
        %v466 = vpack.c.b16 %v426, %v424
        %v467 = vpack.c.b16 %v429, %v427
        %v468 = vpack.c.b16 %v430, %v428
        %v469 = vpack.c.b16 %v433, %v431
        %v470 = vpack.c.b16 %v434, %v432
        %vm507 = vcmask 261120
        %v509 = vsel %vm507, %v324, 0
        %511 = vmatprep.subr.bf16.mxu0 %v436
        %512 = vmatpush1.bf16.msra.mxu0 %v435
        %513 = vmatprep.subr.bf16.mxu0 %v438
        %514 = vmatpush1.bf16.msra.mxu0 %v437
        %515 = vmatprep.subr.bf16.mxu0 %v440
        %516 = vmatpush1.bf16.msra.mxu0 %v439
        %517 = vmatprep.subr.bf16.mxu0 %v442
        %518 = vmatpush1.bf16.msra.mxu0 %v441
        %519 = vmatprep.subr.bf16.mxu0 %v444
        %520 = vmatpush1.bf16.msra.mxu0 %v443
        %521 = vmatprep.subr.bf16.mxu0 %v446
        %522 = vmatpush1.bf16.msra.mxu0 %v445
        %523 = vmatprep.subr.bf16.mxu0 %v448
        %524 = vmatpush1.bf16.msra.mxu0 %v447
        %525 = vmatprep.subr.bf16.mxu0 %v450
        %526 = vmatpush1.bf16.msra.mxu0 %v449
        %527 = vmatprep.subr.bf16.mxu0 %v452
        %528 = vmatpush1.bf16.msra.mxu0 %v451
        %529 = vmatprep.subr.bf16.mxu0 %v454
        %530 = vmatpush1.bf16.msra.mxu0 %v453
        %531 = vmatprep.subr.bf16.mxu0 %v456
        %532 = vmatpush1.bf16.msra.mxu0 %v455
        %533 = vmatprep.subr.bf16.mxu0 %v458
        %534 = vmatpush1.bf16.msra.mxu0 %v457
        %535 = vmatprep.subr.bf16.mxu0 %v460
        %536 = vmatpush1.bf16.msra.mxu0 %v459
        %537 = vmatprep.subr.bf16.mxu0 %v462
        %538 = vmatpush1.bf16.msra.mxu0 %v461
        %539 = vmatprep.subr.bf16.mxu0 %v464
        %540 = vmatpush1.bf16.msra.mxu0 %v463
        %541 = vmatprep.subr.bf16.mxu0 %v466
        %542 = vmatpush1.bf16.msra.mxu0 %v465
        %543 = vmatprep.mubr.bf16.mxu0 %v323
        %544 = vmatmul.mubr.bf16.gmra.mrb[0].mxu0 %v322
        %v545 = vpop.f32.mrb[0].mxu0
        %v546 = vadd.f32 0.0, %v545
        %v547 = vpop.f32.mrb[0].mxu0
        %v548 = vadd.f32 0.0, %v547
        %v549 = vpop.f32.mrb[0].mxu0
        %v550 = vpop.f32.mrb[0].mxu0
        %551 = vdwg.mxu0
        %552 = vmatprep.subr.bf16.mxu0 %v468
        %553 = vmatpush1.bf16.msra.mxu0 %v467
        %554 = vmatprep.subr.bf16.mxu0 %v470
        %555 = vmatpush1.bf16.msra.mxu0 %v469
        %556 = vmatprep.subr.bf16.mxu0 0
        %557 = vmatpush1.bf16.msra.mxu0 0
        %558 = vmatprep.subr.bf16.mxu0 0
        %559 = vmatpush1.bf16.msra.mxu0 0
        %560 = vmatprep.subr.bf16.mxu0 0
        %561 = vmatpush1.bf16.msra.mxu0 0
        %562 = vmatprep.subr.bf16.mxu0 0
        %563 = vmatpush1.bf16.msra.mxu0 0
        %564 = vmatprep.subr.bf16.mxu0 0
        %565 = vmatpush1.bf16.msra.mxu0 0
        %566 = vmatprep.subr.bf16.mxu0 0
        %567 = vmatpush1.bf16.msra.mxu0 0
        %568 = vmatprep.subr.bf16.mxu0 0
        %569 = vmatpush1.bf16.msra.mxu0 0
        %570 = vmatprep.subr.bf16.mxu0 0
        %571 = vmatpush1.bf16.msra.mxu0 0
        %572 = vmatprep.subr.bf16.mxu0 0
        %573 = vmatpush1.bf16.msra.mxu0 0
        %574 = vmatprep.subr.bf16.mxu0 0
        %575 = vmatpush1.bf16.msra.mxu0 0
        %576 = vmatprep.subr.bf16.mxu0 0
        %577 = vmatpush1.bf16.msra.mxu0 0
        %578 = vmatprep.subr.bf16.mxu0 0
        %579 = vmatpush1.bf16.msra.mxu0 0
        %580 = vmatprep.subr.bf16.mxu0 0
        %581 = vmatpush1.bf16.msra.mxu0 0
        %582 = vmatprep.subr.bf16.mxu0 0
        %583 = vmatpush1.bf16.msra.mxu0 0
        %584 = vmatprep.mubr.bf16.mxu0 0
        %585 = vmatmul.mubr.bf16.gmra.mrb[0].mxu0 %v509
        %v586 = vpop.f32.mrb[0].mxu0
        %v587 = vadd.f32 %v546, %v586
        %v588 = vpop.f32.mrb[0].mxu0
        %v589 = vadd.f32 %v548, %v588
        %v590 = vpop.f32.mrb[0].mxu0
        %v591 = vpop.f32.mrb[0].mxu0
        %592 = vdwg.mxu0
        %v595 = vunpack.c.l.b16 %v239
        %v596 = vunpack.c.h.b16 %v239
        %v597 = vunpack.c.l.b16 %v240
        %v598 = vpack.c.b16 %v595, %v595
        %v599 = vpack.c.b16 %v596, %v596
        %v600 = vpack.c.b16 %v597, %v597
        %v639 = vunpack.c.l.b16 %v241
        %v640 = vunpack.c.h.b16 %v241
        %v641 = vunpack.c.l.b16 %v242
        %v642 = vunpack.c.h.b16 %v242
        %v643 = vunpack.c.l.b16 %v243
        %v644 = vunpack.c.h.b16 %v243
        %v645 = vunpack.c.l.b16 %v244
        %v646 = vunpack.c.h.b16 %v244
        %v647 = vunpack.c.l.b16 %v245
        %v648 = vunpack.c.h.b16 %v245
        %v649 = vunpack.c.l.b16 %v246
        %v650 = vunpack.c.h.b16 %v246
        %v651 = vunpack.c.l.b16 %v247
        %v652 = vunpack.c.h.b16 %v247
        %v653 = vunpack.c.l.b16 %v248
        %v654 = vunpack.c.h.b16 %v248
        %v655 = vunpack.c.l.b16 %v249
        %v656 = vunpack.c.h.b16 %v249
        %v657 = vunpack.c.l.b16 %v250
        %v658 = vunpack.c.h.b16 %v250
        %v659 = vunpack.c.l.b16 %v251
        %v660 = vunpack.c.h.b16 %v251
        %v661 = vunpack.c.l.b16 %v252
        %v662 = vunpack.c.h.b16 %v252
        %v663 = vunpack.c.l.b16 %v253
        %v664 = vunpack.c.h.b16 %v253
        %v665 = vunpack.c.l.b16 %v254
        %v666 = vunpack.c.h.b16 %v254
        %v667 = vunpack.c.l.b16 %v255
        %v668 = vunpack.c.h.b16 %v255
        %v669 = vunpack.c.l.b16 %v256
        %v670 = vunpack.c.h.b16 %v256
        %v671 = vunpack.c.l.b16 %v257
        %v672 = vunpack.c.h.b16 %v257
        %v673 = vunpack.c.l.b16 %v258
        %v674 = vunpack.c.h.b16 %v258
        %v675 = vunpack.c.l.b16 %v259
        %v676 = vunpack.c.h.b16 %v259
        %v677 = vunpack.c.l.b16 %v260
        %v678 = vunpack.c.h.b16 %v260
        %v679 = vunpack.c.l.b16 %v261
        %v680 = vunpack.c.h.b16 %v261
        %v681 = vunpack.c.l.b16 %v262
        %v682 = vunpack.c.h.b16 %v262
        %v683 = vunpack.c.l.b16 %v263
        %v684 = vunpack.c.h.b16 %v263
        %v685 = vunpack.c.l.b16 %v264
        %v686 = vunpack.c.h.b16 %v264
        %v687 = vunpack.c.l.b16 %v265
        %v688 = vunpack.c.h.b16 %v265
        %v689 = vunpack.c.l.b16 %v266
        %v690 = vunpack.c.h.b16 %v266
        %v691 = vunpack.c.l.b16 %v267
        %v692 = vunpack.c.h.b16 %v267
        %v693 = vunpack.c.l.b16 %v268
        %v694 = vunpack.c.h.b16 %v268
        %v695 = vunpack.c.l.b16 %v269
        %v696 = vunpack.c.h.b16 %v269
        %v697 = vunpack.c.l.b16 %v270
        %v698 = vunpack.c.h.b16 %v270
        %v699 = vunpack.c.l.b16 %v271
        %v700 = vunpack.c.h.b16 %v271
        %v701 = vunpack.c.l.b16 %v272
        %v702 = vunpack.c.h.b16 %v272
        %v703 = vunpack.c.l.b16 %v273
        %v704 = vunpack.c.h.b16 %v273
        %v705 = vunpack.c.l.b16 %v274
        %v706 = vunpack.c.h.b16 %v274
        %v707 = vunpack.c.l.b16 %v275
        %v708 = vunpack.c.h.b16 %v275
        %v709 = vunpack.c.l.b16 %v276
        %v710 = vunpack.c.h.b16 %v276
        %v711 = vpack.c.b16 %v641, %v639
        %v712 = vpack.c.b16 %v642, %v640
        %v713 = vpack.c.b16 %v645, %v643
        %v714 = vpack.c.b16 %v646, %v644
        %v715 = vpack.c.b16 %v649, %v647
        %v716 = vpack.c.b16 %v650, %v648
        %v717 = vpack.c.b16 %v653, %v651
        %v718 = vpack.c.b16 %v654, %v652
        %v719 = vpack.c.b16 %v657, %v655
        %v720 = vpack.c.b16 %v658, %v656
        %v721 = vpack.c.b16 %v661, %v659
        %v722 = vpack.c.b16 %v662, %v660
        %v723 = vpack.c.b16 %v665, %v663
        %v724 = vpack.c.b16 %v666, %v664
        %v725 = vpack.c.b16 %v669, %v667
        %v726 = vpack.c.b16 %v670, %v668
        %v727 = vpack.c.b16 %v673, %v671
        %v728 = vpack.c.b16 %v674, %v672
        %v729 = vpack.c.b16 %v677, %v675
        %v730 = vpack.c.b16 %v678, %v676
        %v731 = vpack.c.b16 %v681, %v679
        %v732 = vpack.c.b16 %v682, %v680
        %v733 = vpack.c.b16 %v685, %v683
        %v734 = vpack.c.b16 %v686, %v684
        %v735 = vpack.c.b16 %v689, %v687
        %v736 = vpack.c.b16 %v690, %v688
        %v737 = vpack.c.b16 %v693, %v691
        %v738 = vpack.c.b16 %v694, %v692
        %v739 = vpack.c.b16 %v697, %v695
        %v740 = vpack.c.b16 %v698, %v696
        %v741 = vpack.c.b16 %v701, %v699
        %v742 = vpack.c.b16 %v702, %v700
        %v743 = vpack.c.b16 %v705, %v703
        %v744 = vpack.c.b16 %v706, %v704
        %v745 = vpack.c.b16 %v709, %v707
        %v746 = vpack.c.b16 %v710, %v708
        %v784 = vsel %vm507, %v600, 0
        %786 = vmatprep.subr.bf16.mxu0 %v712
        %787 = vmatpush1.bf16.msra.mxu0 %v711
        %788 = vmatprep.subr.bf16.mxu0 %v714
        %789 = vmatpush1.bf16.msra.mxu0 %v713
        %790 = vmatprep.subr.bf16.mxu0 %v716
        %791 = vmatpush1.bf16.msra.mxu0 %v715
        %792 = vmatprep.subr.bf16.mxu0 %v718
        %793 = vmatpush1.bf16.msra.mxu0 %v717
        %794 = vmatprep.subr.bf16.mxu0 %v720
        %795 = vmatpush1.bf16.msra.mxu0 %v719
        %796 = vmatprep.subr.bf16.mxu0 %v722
        %797 = vmatpush1.bf16.msra.mxu0 %v721
        %798 = vmatprep.subr.bf16.mxu0 %v724
        %799 = vmatpush1.bf16.msra.mxu0 %v723
        %800 = vmatprep.subr.bf16.mxu0 %v726
        %801 = vmatpush1.bf16.msra.mxu0 %v725
        %802 = vmatprep.subr.bf16.mxu0 %v728
        %803 = vmatpush1.bf16.msra.mxu0 %v727
        %804 = vmatprep.subr.bf16.mxu0 %v730
        %805 = vmatpush1.bf16.msra.mxu0 %v729
        %806 = vmatprep.subr.bf16.mxu0 %v732
        %807 = vmatpush1.bf16.msra.mxu0 %v731
        %808 = vmatprep.subr.bf16.mxu0 %v734
        %809 = vmatpush1.bf16.msra.mxu0 %v733
        %810 = vmatprep.subr.bf16.mxu0 %v736
        %811 = vmatpush1.bf16.msra.mxu0 %v735
        %812 = vmatprep.subr.bf16.mxu0 %v738
        %813 = vmatpush1.bf16.msra.mxu0 %v737
        %814 = vmatprep.subr.bf16.mxu0 %v740
        %815 = vmatpush1.bf16.msra.mxu0 %v739
        %816 = vmatprep.subr.bf16.mxu0 %v742
        %817 = vmatpush1.bf16.msra.mxu0 %v741
        %818 = vmatprep.mubr.bf16.mxu0 %v599
        %819 = vmatmul.mubr.bf16.gmra.mrb[0].mxu0 %v598
        %v820 = vpop.f32.mrb[0].mxu0
        %v821 = vadd.f32 %v587, %v820
        %v822 = vpop.f32.mrb[0].mxu0
        %v823 = vadd.f32 %v589, %v822
        %v824 = vpop.f32.mrb[0].mxu0
        %v825 = vpop.f32.mrb[0].mxu0
        %826 = vdwg.mxu0
        %827 = vmatprep.subr.bf16.mxu0 %v744
        %828 = vmatpush1.bf16.msra.mxu0 %v743
        %829 = vmatprep.subr.bf16.mxu0 %v746
        %830 = vmatpush1.bf16.msra.mxu0 %v745
        %831 = vmatprep.subr.bf16.mxu0 0
        %832 = vmatpush1.bf16.msra.mxu0 0
        %833 = vmatprep.subr.bf16.mxu0 0
        %834 = vmatpush1.bf16.msra.mxu0 0
        %835 = vmatprep.subr.bf16.mxu0 0
        %836 = vmatpush1.bf16.msra.mxu0 0
        %837 = vmatprep.subr.bf16.mxu0 0
        %838 = vmatpush1.bf16.msra.mxu0 0
        %839 = vmatprep.subr.bf16.mxu0 0
        %840 = vmatpush1.bf16.msra.mxu0 0
        %841 = vmatprep.subr.bf16.mxu0 0
        %842 = vmatpush1.bf16.msra.mxu0 0
        %843 = vmatprep.subr.bf16.mxu0 0
        %844 = vmatpush1.bf16.msra.mxu0 0
        %845 = vmatprep.subr.bf16.mxu0 0
        %846 = vmatpush1.bf16.msra.mxu0 0
        %847 = vmatprep.subr.bf16.mxu0 0
        %848 = vmatpush1.bf16.msra.mxu0 0
        %849 = vmatprep.subr.bf16.mxu0 0
        %850 = vmatpush1.bf16.msra.mxu0 0
        %851 = vmatprep.subr.bf16.mxu0 0
        %852 = vmatpush1.bf16.msra.mxu0 0
        %853 = vmatprep.subr.bf16.mxu0 0
        %854 = vmatpush1.bf16.msra.mxu0 0
        %855 = vmatprep.subr.bf16.mxu0 0
        %856 = vmatpush1.bf16.msra.mxu0 0
        %857 = vmatprep.subr.bf16.mxu0 0
        %858 = vmatpush1.bf16.msra.mxu0 0
        %859 = vmatprep.mubr.bf16.mxu0 0
        %860 = vmatmul.mubr.bf16.gmra.mrb[0].mxu0 %v784
        %v861 = vpop.f32.mrb[0].mxu0
        %v862 = vadd.f32 %v821, %v861
        %v863 = vpop.f32.mrb[0].mxu0
        %v864 = vadd.f32 %v823, %v863
        %v865 = vpop.f32.mrb[0].mxu0
        %v866 = vpop.f32.mrb[0].mxu0
        %867 = vdwg.mxu0
        %s868 = scalar_lea.vmem [#allocation2], 1152
        %v869 = vld [vmem:[%s868] sm:$0xff]
        %v870 = vld [vmem:[%s868 + $0x8] sm:$0xff]
        %v871 = vld [vmem:[%s868 + $0x10] sm:$0xff]
        %v872 = vld [vmem:[%s868 + $0x18] sm:$0xff]
        %v873 = vld [vmem:[%s868 + $0x20] sm:$0xff]
        %v874 = vld [vmem:[%s868 + $0x28] sm:$0xff]
        %v875 = vld [vmem:[%s868 + $0x30] sm:$0xff]
        %v876 = vld [vmem:[%s868 + $0x38] sm:$0xff]
        %v877 = vld [vmem:[%s868 + $0x40] sm:$0xff]
        %v878 = vld [vmem:[%s868 + $0x48] sm:$0xff]
        %v879 = vld [vmem:[%s868 + $0x50] sm:$0xff]
        %v880 = vld [vmem:[%s868 + $0x58] sm:$0xff]
        %v881 = vld [vmem:[%s868 + $0x60] sm:$0xff]
        %v882 = vld [vmem:[%s868 + $0x68] sm:$0xff]
        %v883 = vld [vmem:[%s868 + $0x70] sm:$0xff]
        %v884 = vld [vmem:[%s868 + $0x78] sm:$0xff]
        %v885 = vld [vmem:[%s868 + $0x80] sm:$0xff]
        %v886 = vld [vmem:[%s868 + $0x88] sm:$0xff]
        %v887 = vld [vmem:[%s868 + $0x90] sm:$0xff]
        %v888 = vld [vmem:[%s868 + $0x98] sm:$0xff]
        %v889 = vld [vmem:[%s868 + $0xa0] sm:$0xff]
        %v890 = vld [vmem:[%s868 + $0xa8] sm:$0xff]
        %v891 = vld [vmem:[%s868 + $0xb0] sm:$0xff]
        %v892 = vld [vmem:[%s868 + $0xb8] sm:$0xff]
        %v893 = vld [vmem:[%s868 + $0xc0] sm:$0xff]
        %v894 = vld [vmem:[%s868 + $0xc8] sm:$0xff]
        %v895 = vld [vmem:[%s868 + $0xd0] sm:$0xff]
        %v896 = vld [vmem:[%s868 + $0xd8] sm:$0xff]
        %v897 = vld [vmem:[%s868 + $0xe0] sm:$0xff]
        %v898 = vld [vmem:[%s868 + $0xe8] sm:$0xff]
        %v899 = vld [vmem:[%s868 + $0xf0] sm:$0xff]
        %v900 = vld [vmem:[%s868 + $0xf8] sm:$0xff]
        %v901 = vld [vmem:[%s868 + $0x100] sm:$0xff]
        %v902 = vld [vmem:[%s868 + $0x108] sm:$0xff]
        %v903 = vld [vmem:[%s868 + $0x110] sm:$0xff]
        %v904 = vld [vmem:[%s868 + $0x118] sm:$0xff]
        %v906 = vshrl.u32 %v598, 16
        %v908 = vshll.u32 %v598, 16
        %v910 = vrot.slane %v908, 1
        %v911 = vor.u32 %v906, %v910
        %v913 = vshrl.u32 %v599, 16
        %v915 = vshll.u32 %v599, 16
        %v917 = vrot.slane %v915, 1
        %v918 = vor.u32 %v913, %v917
        %v919 = vshrl.u32 %v600, 16
        %v921 = vshll.u32 %v600, 16
        %v923 = vrot.slane %v921, 1
        %v924 = vor.u32 %v919, %v923
        %v963 = vunpack.c.l.b16 %v869
        %v964 = vunpack.c.h.b16 %v869
        %v965 = vunpack.c.l.b16 %v870
        %v966 = vunpack.c.h.b16 %v870
        %v967 = vunpack.c.l.b16 %v871
        %v968 = vunpack.c.h.b16 %v871
        %v969 = vunpack.c.l.b16 %v872
        %v970 = vunpack.c.h.b16 %v872
        %v971 = vunpack.c.l.b16 %v873
        %v972 = vunpack.c.h.b16 %v873
        %v973 = vunpack.c.l.b16 %v874
        %v974 = vunpack.c.h.b16 %v874
        %v975 = vunpack.c.l.b16 %v875
        %v976 = vunpack.c.h.b16 %v875
        %v977 = vunpack.c.l.b16 %v876
        %v978 = vunpack.c.h.b16 %v876
        %v979 = vunpack.c.l.b16 %v877
        %v980 = vunpack.c.h.b16 %v877
        %v981 = vunpack.c.l.b16 %v878
        %v982 = vunpack.c.h.b16 %v878
        %v983 = vunpack.c.l.b16 %v879
        %v984 = vunpack.c.h.b16 %v879
        %v985 = vunpack.c.l.b16 %v880
        %v986 = vunpack.c.h.b16 %v880
        %v987 = vunpack.c.l.b16 %v881
        %v988 = vunpack.c.h.b16 %v881
        %v989 = vunpack.c.l.b16 %v882
        %v990 = vunpack.c.h.b16 %v882
        %v991 = vunpack.c.l.b16 %v883
        %v992 = vunpack.c.h.b16 %v883
        %v993 = vunpack.c.l.b16 %v884
        %v994 = vunpack.c.h.b16 %v884
        %v995 = vunpack.c.l.b16 %v885
        %v996 = vunpack.c.h.b16 %v885
        %v997 = vunpack.c.l.b16 %v886
        %v998 = vunpack.c.h.b16 %v886
        %v999 = vunpack.c.l.b16 %v887
        %v1000 = vunpack.c.h.b16 %v887
        %v1001 = vunpack.c.l.b16 %v888
        %v1002 = vunpack.c.h.b16 %v888
        %v1003 = vunpack.c.l.b16 %v889
        %v1004 = vunpack.c.h.b16 %v889
        %v1005 = vunpack.c.l.b16 %v890
        %v1006 = vunpack.c.h.b16 %v890
        %v1007 = vunpack.c.l.b16 %v891
        %v1008 = vunpack.c.h.b16 %v891
        %v1009 = vunpack.c.l.b16 %v892
        %v1010 = vunpack.c.h.b16 %v892
        %v1011 = vunpack.c.l.b16 %v893
        %v1012 = vunpack.c.h.b16 %v893
        %v1013 = vunpack.c.l.b16 %v894
        %v1014 = vunpack.c.h.b16 %v894
        %v1015 = vunpack.c.l.b16 %v895
        %v1016 = vunpack.c.h.b16 %v895
        %v1017 = vunpack.c.l.b16 %v896
        %v1018 = vunpack.c.h.b16 %v896
        %v1019 = vunpack.c.l.b16 %v897
        %v1020 = vunpack.c.h.b16 %v897
        %v1021 = vunpack.c.l.b16 %v898
        %v1022 = vunpack.c.h.b16 %v898
        %v1023 = vunpack.c.l.b16 %v899
        %v1024 = vunpack.c.h.b16 %v899
        %v1025 = vunpack.c.l.b16 %v900
        %v1026 = vunpack.c.h.b16 %v900
        %v1027 = vunpack.c.l.b16 %v901
        %v1028 = vunpack.c.h.b16 %v901
        %v1029 = vunpack.c.l.b16 %v902
        %v1030 = vunpack.c.h.b16 %v902
        %v1031 = vunpack.c.l.b16 %v903
        %v1032 = vunpack.c.h.b16 %v903
        %v1033 = vunpack.c.l.b16 %v904
        %v1034 = vunpack.c.h.b16 %v904
        %v1035 = vpack.c.b16 %v965, %v963
        %v1036 = vpack.c.b16 %v966, %v964
        %v1037 = vpack.c.b16 %v969, %v967
        %v1038 = vpack.c.b16 %v970, %v968
        %v1039 = vpack.c.b16 %v973, %v971
        %v1040 = vpack.c.b16 %v974, %v972
        %v1041 = vpack.c.b16 %v977, %v975
        %v1042 = vpack.c.b16 %v978, %v976
        %v1043 = vpack.c.b16 %v981, %v979
        %v1044 = vpack.c.b16 %v982, %v980
        %v1045 = vpack.c.b16 %v985, %v983
        %v1046 = vpack.c.b16 %v986, %v984
        %v1047 = vpack.c.b16 %v989, %v987
        %v1048 = vpack.c.b16 %v990, %v988
        %v1049 = vpack.c.b16 %v993, %v991
        %v1050 = vpack.c.b16 %v994, %v992
        %v1051 = vpack.c.b16 %v997, %v995
        %v1052 = vpack.c.b16 %v998, %v996
        %v1053 = vpack.c.b16 %v1001, %v999
        %v1054 = vpack.c.b16 %v1002, %v1000
        %v1055 = vpack.c.b16 %v1005, %v1003
        %v1056 = vpack.c.b16 %v1006, %v1004
        %v1057 = vpack.c.b16 %v1009, %v1007
        %v1058 = vpack.c.b16 %v1010, %v1008
        %v1059 = vpack.c.b16 %v1013, %v1011
        %v1060 = vpack.c.b16 %v1014, %v1012
        %v1061 = vpack.c.b16 %v1017, %v1015
        %v1062 = vpack.c.b16 %v1018, %v1016
        %v1063 = vpack.c.b16 %v1021, %v1019
        %v1064 = vpack.c.b16 %v1022, %v1020
        %v1065 = vpack.c.b16 %v1025, %v1023
        %v1066 = vpack.c.b16 %v1026, %v1024
        %v1067 = vpack.c.b16 %v1029, %v1027
        %v1068 = vpack.c.b16 %v1030, %v1028
        %v1069 = vpack.c.b16 %v1033, %v1031
        %v1070 = vpack.c.b16 %v1034, %v1032
        %v1108 = vsel %vm507, %v924, 0
        %1110 = vmatprep.subr.bf16.mxu0 %v1036
        %1111 = vmatpush1.bf16.msra.mxu0 %v1035
        %1112 = vmatprep.subr.bf16.mxu0 %v1038
        %1113 = vmatpush1.bf16.msra.mxu0 %v1037
        %1114 = vmatprep.subr.bf16.mxu0 %v1040
        %1115 = vmatpush1.bf16.msra.mxu0 %v1039
        %1116 = vmatprep.subr.bf16.mxu0 %v1042
        %1117 = vmatpush1.bf16.msra.mxu0 %v1041
        %1118 = vmatprep.subr.bf16.mxu0 %v1044
        %1119 = vmatpush1.bf16.msra.mxu0 %v1043
        %1120 = vmatprep.subr.bf16.mxu0 %v1046
        %1121 = vmatpush1.bf16.msra.mxu0 %v1045
        %1122 = vmatprep.subr.bf16.mxu0 %v1048
        %1123 = vmatpush1.bf16.msra.mxu0 %v1047
        %1124 = vmatprep.subr.bf16.mxu0 %v1050
        %1125 = vmatpush1.bf16.msra.mxu0 %v1049
        %1126 = vmatprep.subr.bf16.mxu0 %v1052
        %1127 = vmatpush1.bf16.msra.mxu0 %v1051
        %1128 = vmatprep.subr.bf16.mxu0 %v1054
        %1129 = vmatpush1.bf16.msra.mxu0 %v1053
        %1130 = vmatprep.subr.bf16.mxu0 %v1056
        %1131 = vmatpush1.bf16.msra.mxu0 %v1055
        %1132 = vmatprep.subr.bf16.mxu0 %v1058
        %1133 = vmatpush1.bf16.msra.mxu0 %v1057
        %1134 = vmatprep.subr.bf16.mxu0 %v1060
        %1135 = vmatpush1.bf16.msra.mxu0 %v1059
        %1136 = vmatprep.subr.bf16.mxu0 %v1062
        %1137 = vmatpush1.bf16.msra.mxu0 %v1061
        %1138 = vmatprep.subr.bf16.mxu0 %v1064
        %1139 = vmatpush1.bf16.msra.mxu0 %v1063
        %1140 = vmatprep.subr.bf16.mxu0 %v1066
        %1141 = vmatpush1.bf16.msra.mxu0 %v1065
        %1142 = vmatprep.mubr.bf16.mxu0 %v918
        %1143 = vmatmul.mubr.bf16.gmra.mrb[0].mxu0 %v911
        %v1144 = vpop.f32.mrb[0].mxu0
        %v1145 = vadd.f32 0.0, %v1144
        %v1146 = vpop.f32.mrb[0].mxu0
        %v1147 = vadd.f32 0.0, %v1146
        %v1148 = vpop.f32.mrb[0].mxu0
        %v1149 = vpop.f32.mrb[0].mxu0
        %1150 = vdwg.mxu0
        %1151 = vmatprep.subr.bf16.mxu0 %v1068
        %1152 = vmatpush1.bf16.msra.mxu0 %v1067
        %1153 = vmatprep.subr.bf16.mxu0 %v1070
        %1154 = vmatpush1.bf16.msra.mxu0 %v1069
        %1155 = vmatprep.subr.bf16.mxu0 0
        %1156 = vmatpush1.bf16.msra.mxu0 0
        %1157 = vmatprep.subr.bf16.mxu0 0
        %1158 = vmatpush1.bf16.msra.mxu0 0
        %1159 = vmatprep.subr.bf16.mxu0 0
        %1160 = vmatpush1.bf16.msra.mxu0 0
        %1161 = vmatprep.subr.bf16.mxu0 0
        %1162 = vmatpush1.bf16.msra.mxu0 0
        %1163 = vmatprep.subr.bf16.mxu0 0
        %1164 = vmatpush1.bf16.msra.mxu0 0
        %1165 = vmatprep.subr.bf16.mxu0 0
        %1166 = vmatpush1.bf16.msra.mxu0 0
        %1167 = vmatprep.subr.bf16.mxu0 0
        %1168 = vmatpush1.bf16.msra.mxu0 0
        %1169 = vmatprep.subr.bf16.mxu0 0
        %1170 = vmatpush1.bf16.msra.mxu0 0
        %1171 = vmatprep.subr.bf16.mxu0 0
        %1172 = vmatpush1.bf16.msra.mxu0 0
        %1173 = vmatprep.subr.bf16.mxu0 0
        %1174 = vmatpush1.bf16.msra.mxu0 0
        %1175 = vmatprep.subr.bf16.mxu0 0
        %1176 = vmatpush1.bf16.msra.mxu0 0
        %1177 = vmatprep.subr.bf16.mxu0 0
        %1178 = vmatpush1.bf16.msra.mxu0 0
        %1179 = vmatprep.subr.bf16.mxu0 0
        %1180 = vmatpush1.bf16.msra.mxu0 0
        %1181 = vmatprep.subr.bf16.mxu0 0
        %1182 = vmatpush1.bf16.msra.mxu0 0
        %1183 = vmatprep.mubr.bf16.mxu0 0
        %1184 = vmatmul.mubr.bf16.gmra.mrb[0].mxu0 %v1108
        %v1185 = vpop.f32.mrb[0].mxu0
        %v1186 = vadd.f32 %v1145, %v1185
        %v1187 = vpop.f32.mrb[0].mxu0
        %v1188 = vadd.f32 %v1147, %v1187
        %v1189 = vpop.f32.mrb[0].mxu0
        %v1190 = vpop.f32.mrb[0].mxu0
        %1191 = vdwg.mxu0
        %v1192 = vadd.f32 %v862, %v1186
        %v1193 = vadd.f32 %v864, %v1188
        %s1194 = scalar_lea.vmem [#allocation2], 1728
        %v1195 = vld [vmem:[%s1194] sm:$0xff]
        %v1196 = vld [vmem:[%s1194 + $0x8] sm:$0xff]
        %v1197 = vld [vmem:[%s1194 + $0x10] sm:$0xff]
        %v1198 = vld [vmem:[%s1194 + $0x18] sm:$0xff]
        %v1199 = vld [vmem:[%s1194 + $0x20] sm:$0xff]
        %v1200 = vld [vmem:[%s1194 + $0x28] sm:$0xff]
        %v1201 = vld [vmem:[%s1194 + $0x30] sm:$0xff]
        %v1202 = vld [vmem:[%s1194 + $0x38] sm:$0xff]
        %v1203 = vld [vmem:[%s1194 + $0x40] sm:$0xff]
        %v1204 = vld [vmem:[%s1194 + $0x48] sm:$0xff]
        %v1205 = vld [vmem:[%s1194 + $0x50] sm:$0xff]
        %v1206 = vld [vmem:[%s1194 + $0x58] sm:$0xff]
        %v1207 = vld [vmem:[%s1194 + $0x60] sm:$0xff]
        %v1208 = vld [vmem:[%s1194 + $0x68] sm:$0xff]
        %v1209 = vld [vmem:[%s1194 + $0x70] sm:$0xff]
        %v1210 = vld [vmem:[%s1194 + $0x78] sm:$0xff]
        %v1211 = vld [vmem:[%s1194 + $0x80] sm:$0xff]
        %v1212 = vld [vmem:[%s1194 + $0x88] sm:$0xff]
        %v1213 = vld [vmem:[%s1194 + $0x90] sm:$0xff]
        %v1214 = vld [vmem:[%s1194 + $0x98] sm:$0xff]
        %v1215 = vld [vmem:[%s1194 + $0xa0] sm:$0xff]
        %v1216 = vld [vmem:[%s1194 + $0xa8] sm:$0xff]
        %v1217 = vld [vmem:[%s1194 + $0xb0] sm:$0xff]
        %v1218 = vld [vmem:[%s1194 + $0xb8] sm:$0xff]
        %v1219 = vld [vmem:[%s1194 + $0xc0] sm:$0xff]
        %v1220 = vld [vmem:[%s1194 + $0xc8] sm:$0xff]
        %v1221 = vld [vmem:[%s1194 + $0xd0] sm:$0xff]
        %v1222 = vld [vmem:[%s1194 + $0xd8] sm:$0xff]
        %v1223 = vld [vmem:[%s1194 + $0xe0] sm:$0xff]
        %v1224 = vld [vmem:[%s1194 + $0xe8] sm:$0xff]
        %v1225 = vld [vmem:[%s1194 + $0xf0] sm:$0xff]
        %v1226 = vld [vmem:[%s1194 + $0xf8] sm:$0xff]
        %v1227 = vld [vmem:[%s1194 + $0x100] sm:$0xff]
        %v1228 = vld [vmem:[%s1194 + $0x108] sm:$0xff]
        %v1229 = vld [vmem:[%s1194 + $0x110] sm:$0xff]
        %v1230 = vld [vmem:[%s1194 + $0x118] sm:$0xff]
        %v1232 = vshrl.u32 %v322, 16
        %v1234 = vshll.u32 %v322, 16
        %v1236 = vrot.slane %v1234, 1
        %v1237 = vor.u32 %v1232, %v1236
        %v1239 = vshrl.u32 %v323, 16
        %v1241 = vshll.u32 %v323, 16
        %v1243 = vrot.slane %v1241, 1
        %v1244 = vor.u32 %v1239, %v1243
        %v1245 = vshrl.u32 %v324, 16
        %v1247 = vshll.u32 %v324, 16
        %v1249 = vrot.slane %v1247, 1
        %v1250 = vor.u32 %v1245, %v1249
        %v1289 = vunpack.c.l.b16 %v1195
        %v1290 = vunpack.c.h.b16 %v1195
        %v1291 = vunpack.c.l.b16 %v1196
        %v1292 = vunpack.c.h.b16 %v1196
        %v1293 = vunpack.c.l.b16 %v1197
        %v1294 = vunpack.c.h.b16 %v1197
        %v1295 = vunpack.c.l.b16 %v1198
        %v1296 = vunpack.c.h.b16 %v1198
        %v1297 = vunpack.c.l.b16 %v1199
        %v1298 = vunpack.c.h.b16 %v1199
        %v1299 = vunpack.c.l.b16 %v1200
        %v1300 = vunpack.c.h.b16 %v1200
        %v1301 = vunpack.c.l.b16 %v1201
        %v1302 = vunpack.c.h.b16 %v1201
        %v1303 = vunpack.c.l.b16 %v1202
        %v1304 = vunpack.c.h.b16 %v1202
        %v1305 = vunpack.c.l.b16 %v1203
        %v1306 = vunpack.c.h.b16 %v1203
        %v1307 = vunpack.c.l.b16 %v1204
        %v1308 = vunpack.c.h.b16 %v1204
        %v1309 = vunpack.c.l.b16 %v1205
        %v1310 = vunpack.c.h.b16 %v1205
        %v1311 = vunpack.c.l.b16 %v1206
        %v1312 = vunpack.c.h.b16 %v1206
        %v1313 = vunpack.c.l.b16 %v1207
        %v1314 = vunpack.c.h.b16 %v1207
        %v1315 = vunpack.c.l.b16 %v1208
        %v1316 = vunpack.c.h.b16 %v1208
        %v1317 = vunpack.c.l.b16 %v1209
        %v1318 = vunpack.c.h.b16 %v1209
        %v1319 = vunpack.c.l.b16 %v1210
        %v1320 = vunpack.c.h.b16 %v1210
        %v1321 = vunpack.c.l.b16 %v1211
        %v1322 = vunpack.c.h.b16 %v1211
        %v1323 = vunpack.c.l.b16 %v1212
        %v1324 = vunpack.c.h.b16 %v1212
        %v1325 = vunpack.c.l.b16 %v1213
        %v1326 = vunpack.c.h.b16 %v1213
        %v1327 = vunpack.c.l.b16 %v1214
        %v1328 = vunpack.c.h.b16 %v1214
        %v1329 = vunpack.c.l.b16 %v1215
        %v1330 = vunpack.c.h.b16 %v1215
        %v1331 = vunpack.c.l.b16 %v1216
        %v1332 = vunpack.c.h.b16 %v1216
        %v1333 = vunpack.c.l.b16 %v1217
        %v1334 = vunpack.c.h.b16 %v1217
        %v1335 = vunpack.c.l.b16 %v1218
        %v1336 = vunpack.c.h.b16 %v1218
        %v1337 = vunpack.c.l.b16 %v1219
        %v1338 = vunpack.c.h.b16 %v1219
        %v1339 = vunpack.c.l.b16 %v1220
        %v1340 = vunpack.c.h.b16 %v1220
        %v1341 = vunpack.c.l.b16 %v1221
        %v1342 = vunpack.c.h.b16 %v1221
        %v1343 = vunpack.c.l.b16 %v1222
        %v1344 = vunpack.c.h.b16 %v1222
        %v1345 = vunpack.c.l.b16 %v1223
        %v1346 = vunpack.c.h.b16 %v1223
        %v1347 = vunpack.c.l.b16 %v1224
        %v1348 = vunpack.c.h.b16 %v1224
        %v1349 = vunpack.c.l.b16 %v1225
        %v1350 = vunpack.c.h.b16 %v1225
        %v1351 = vunpack.c.l.b16 %v1226
        %v1352 = vunpack.c.h.b16 %v1226
        %v1353 = vunpack.c.l.b16 %v1227
        %v1354 = vunpack.c.h.b16 %v1227
        %v1355 = vunpack.c.l.b16 %v1228
        %v1356 = vunpack.c.h.b16 %v1228
        %v1357 = vunpack.c.l.b16 %v1229
        %v1358 = vunpack.c.h.b16 %v1229
        %v1359 = vunpack.c.l.b16 %v1230
        %v1360 = vunpack.c.h.b16 %v1230
        %v1361 = vpack.c.b16 %v1291, %v1289
        %v1362 = vpack.c.b16 %v1292, %v1290
        %v1363 = vpack.c.b16 %v1295, %v1293
        %v1364 = vpack.c.b16 %v1296, %v1294
        %v1365 = vpack.c.b16 %v1299, %v1297
        %v1366 = vpack.c.b16 %v1300, %v1298
        %v1367 = vpack.c.b16 %v1303, %v1301
        %v1368 = vpack.c.b16 %v1304, %v1302
        %v1369 = vpack.c.b16 %v1307, %v1305
        %v1370 = vpack.c.b16 %v1308, %v1306
        %v1371 = vpack.c.b16 %v1311, %v1309
        %v1372 = vpack.c.b16 %v1312, %v1310
        %v1373 = vpack.c.b16 %v1315, %v1313
        %v1374 = vpack.c.b16 %v1316, %v1314
        %v1375 = vpack.c.b16 %v1319, %v1317
        %v1376 = vpack.c.b16 %v1320, %v1318
        %v1377 = vpack.c.b16 %v1323, %v1321
        %v1378 = vpack.c.b16 %v1324, %v1322
        %v1379 = vpack.c.b16 %v1327, %v1325
        %v1380 = vpack.c.b16 %v1328, %v1326
        %v1381 = vpack.c.b16 %v1331, %v1329
        %v1382 = vpack.c.b16 %v1332, %v1330
        %v1383 = vpack.c.b16 %v1335, %v1333
        %v1384 = vpack.c.b16 %v1336, %v1334
        %v1385 = vpack.c.b16 %v1339, %v1337
        %v1386 = vpack.c.b16 %v1340, %v1338
        %v1387 = vpack.c.b16 %v1343, %v1341
        %v1388 = vpack.c.b16 %v1344, %v1342
        %v1389 = vpack.c.b16 %v1347, %v1345
        %v1390 = vpack.c.b16 %v1348, %v1346
        %v1391 = vpack.c.b16 %v1351, %v1349
        %v1392 = vpack.c.b16 %v1352, %v1350
        %v1393 = vpack.c.b16 %v1355, %v1353
        %v1394 = vpack.c.b16 %v1356, %v1354
        %v1395 = vpack.c.b16 %v1359, %v1357
        %v1396 = vpack.c.b16 %v1360, %v1358
        %v1434 = vsel %vm507, %v1250, 0
        %1436 = vmatprep.subr.bf16.mxu0 %v1362
        %1437 = vmatpush1.bf16.msra.mxu0 %v1361
        %1438 = vmatprep.subr.bf16.mxu0 %v1364
        %1439 = vmatpush1.bf16.msra.mxu0 %v1363
        %1440 = vmatprep.subr.bf16.mxu0 %v1366
        %1441 = vmatpush1.bf16.msra.mxu0 %v1365
        %1442 = vmatprep.subr.bf16.mxu0 %v1368
        %1443 = vmatpush1.bf16.msra.mxu0 %v1367
        %1444 = vmatprep.subr.bf16.mxu0 %v1370
        %1445 = vmatpush1.bf16.msra.mxu0 %v1369
        %1446 = vmatprep.subr.bf16.mxu0 %v1372
        %1447 = vmatpush1.bf16.msra.mxu0 %v1371
        %1448 = vmatprep.subr.bf16.mxu0 %v1374
        %1449 = vmatpush1.bf16.msra.mxu0 %v1373
        %1450 = vmatprep.subr.bf16.mxu0 %v1376
        %1451 = vmatpush1.bf16.msra.mxu0 %v1375
        %1452 = vmatprep.subr.bf16.mxu0 %v1378
        %1453 = vmatpush1.bf16.msra.mxu0 %v1377
        %1454 = vmatprep.subr.bf16.mxu0 %v1380
        %1455 = vmatpush1.bf16.msra.mxu0 %v1379
        %1456 = vmatprep.subr.bf16.mxu0 %v1382
        %1457 = vmatpush1.bf16.msra.mxu0 %v1381
        %1458 = vmatprep.subr.bf16.mxu0 %v1384
        %1459 = vmatpush1.bf16.msra.mxu0 %v1383
        %1460 = vmatprep.subr.bf16.mxu0 %v1386
        %1461 = vmatpush1.bf16.msra.mxu0 %v1385
        %1462 = vmatprep.subr.bf16.mxu0 %v1388
        %1463 = vmatpush1.bf16.msra.mxu0 %v1387
        %1464 = vmatprep.subr.bf16.mxu0 %v1390
        %1465 = vmatpush1.bf16.msra.mxu0 %v1389
        %1466 = vmatprep.subr.bf16.mxu0 %v1392
        %1467 = vmatpush1.bf16.msra.mxu0 %v1391
        %1468 = vmatprep.mubr.bf16.mxu0 %v1244
        %1469 = vmatmul.mubr.bf16.gmra.mrb[0].mxu0 %v1237
        %v1470 = vpop.f32.mrb[0].mxu0
        %v1471 = vadd.f32 0.0, %v1470
        %v1472 = vpop.f32.mrb[0].mxu0
        %v1473 = vadd.f32 0.0, %v1472
        %v1474 = vpop.f32.mrb[0].mxu0
        %v1475 = vpop.f32.mrb[0].mxu0
        %1476 = vdwg.mxu0
        %1477 = vmatprep.subr.bf16.mxu0 %v1394
        %1478 = vmatpush1.bf16.msra.mxu0 %v1393
        %1479 = vmatprep.subr.bf16.mxu0 %v1396
        %1480 = vmatpush1.bf16.msra.mxu0 %v1395
        %1481 = vmatprep.subr.bf16.mxu0 0
        %1482 = vmatpush1.bf16.msra.mxu0 0
        %1483 = vmatprep.subr.bf16.mxu0 0
        %1484 = vmatpush1.bf16.msra.mxu0 0
        %1485 = vmatprep.subr.bf16.mxu0 0
        %1486 = vmatpush1.bf16.msra.mxu0 0
        %1487 = vmatprep.subr.bf16.mxu0 0
        %1488 = vmatpush1.bf16.msra.mxu0 0
        %1489 = vmatprep.subr.bf16.mxu0 0
        %1490 = vmatpush1.bf16.msra.mxu0 0
        %1491 = vmatprep.subr.bf16.mxu0 0
        %1492 = vmatpush1.bf16.msra.mxu0 0
        %1493 = vmatprep.subr.bf16.mxu0 0
        %1494 = vmatpush1.bf16.msra.mxu0 0
        %1495 = vmatprep.subr.bf16.mxu0 0
        %1496 = vmatpush1.bf16.msra.mxu0 0
        %1497 = vmatprep.subr.bf16.mxu0 0
        %1498 = vmatpush1.bf16.msra.mxu0 0
        %1499 = vmatprep.subr.bf16.mxu0 0
        %1500 = vmatpush1.bf16.msra.mxu0 0
        %1501 = vmatprep.subr.bf16.mxu0 0
        %1502 = vmatpush1.bf16.msra.mxu0 0
        %1503 = vmatprep.subr.bf16.mxu0 0
        %1504 = vmatpush1.bf16.msra.mxu0 0
        %1505 = vmatprep.subr.bf16.mxu0 0
        %1506 = vmatpush1.bf16.msra.mxu0 0
        %1507 = vmatprep.subr.bf16.mxu0 0
        %1508 = vmatpush1.bf16.msra.mxu0 0
        %1509 = vmatprep.mubr.bf16.mxu0 0
        %1510 = vmatmul.mubr.bf16.gmra.mrb[0].mxu0 %v1434
        %v1511 = vpop.f32.mrb[0].mxu0
        %v1512 = vadd.f32 %v1471, %v1511
        %v1513 = vpop.f32.mrb[0].mxu0
        %v1514 = vadd.f32 %v1473, %v1513
        %v1515 = vpop.f32.mrb[0].mxu0
        %v1516 = vpop.f32.mrb[0].mxu0
        %1517 = vdwg.mxu0
        %v1518 = vadd.f32 %v1192, %v1512
        %v1519 = vadd.f32 %v1193, %v1514
        %v1520 = vld [vmem:[%s232] sm:$0xee]
        %v1521 = vld [vmem:[%s232 + $0x8] sm:$0xe]
        %v1522 = vld [vmem:[%s232 + $0xc] sm:$0x11]
        %v1523 = vld [vmem:[%s232 + $0x14] sm:$0x1]
        %s1524 = scalar_lea.vmem [#allocation2], 2304
        %v1525 = vld [vmem:[%s1524] sm:$0xff]
        %v1526 = vld [vmem:[%s1524 + $0x8] sm:$0xff]
        %v1527 = vld [vmem:[%s1524 + $0x10] sm:$0xff]
        %v1528 = vld [vmem:[%s1524 + $0x18] sm:$0xff]
        %v1529 = vld [vmem:[%s1524 + $0x20] sm:$0xff]
        %v1530 = vld [vmem:[%s1524 + $0x28] sm:$0xff]
        %v1531 = vld [vmem:[%s1524 + $0x30] sm:$0xff]
        %v1532 = vld [vmem:[%s1524 + $0x38] sm:$0xff]
        %v1533 = vld [vmem:[%s1524 + $0x40] sm:$0xff]
        %v1534 = vld [vmem:[%s1524 + $0x48] sm:$0xff]
        %v1535 = vld [vmem:[%s1524 + $0x50] sm:$0xff]
        %v1536 = vld [vmem:[%s1524 + $0x58] sm:$0xff]
        %v1537 = vld [vmem:[%s1524 + $0x60] sm:$0xff]
        %v1538 = vld [vmem:[%s1524 + $0x68] sm:$0xff]
        %v1539 = vld [vmem:[%s1524 + $0x70] sm:$0xff]
        %v1540 = vld [vmem:[%s1524 + $0x78] sm:$0xff]
        %v1541 = vld [vmem:[%s1524 + $0x80] sm:$0xff]
        %v1542 = vld [vmem:[%s1524 + $0x88] sm:$0xff]
        %v1543 = vld [vmem:[%s1524 + $0x90] sm:$0xff]
        %v1544 = vld [vmem:[%s1524 + $0x98] sm:$0xff]
        %v1545 = vld [vmem:[%s1524 + $0xa0] sm:$0xff]
        %v1546 = vld [vmem:[%s1524 + $0xa8] sm:$0xff]
        %v1547 = vld [vmem:[%s1524 + $0xb0] sm:$0xff]
        %v1548 = vld [vmem:[%s1524 + $0xb8] sm:$0xff]
        %v1549 = vld [vmem:[%s1524 + $0xc0] sm:$0xff]
        %v1550 = vld [vmem:[%s1524 + $0xc8] sm:$0xff]
        %v1551 = vld [vmem:[%s1524 + $0xd0] sm:$0xff]
        %v1552 = vld [vmem:[%s1524 + $0xd8] sm:$0xff]
        %v1553 = vld [vmem:[%s1524 + $0xe0] sm:$0xff]
        %v1554 = vld [vmem:[%s1524 + $0xe8] sm:$0xff]
        %v1555 = vld [vmem:[%s1524 + $0xf0] sm:$0xff]
        %v1556 = vld [vmem:[%s1524 + $0xf8] sm:$0xff]
        %v1557 = vld [vmem:[%s1524 + $0x100] sm:$0xff]
        %v1558 = vld [vmem:[%s1524 + $0x108] sm:$0xff]
        %v1559 = vld [vmem:[%s1524 + $0x110] sm:$0xff]
        %v1560 = vld [vmem:[%s1524 + $0x118] sm:$0xff]
        %v1565 = vunpack.c.l.b16 %v1520
        %v1566 = vunpack.c.h.b16 %v1520
        %v1567 = vunpack.c.l.b16 %v1521
        %v1568 = vunpack.c.l.b16 %v1522
        %v1569 = vunpack.c.h.b16 %v1522
        %v1570 = vunpack.c.l.b16 %v1523
        %v1571 = vpack.c.b16 %v1568, %v1565
        %v1572 = vpack.c.b16 %v1569, %v1566
        %v1573 = vpack.c.b16 %v1570, %v1567
        %v1574 = vrot.slane %v1571, 1
        %v1575 = vrot.slane %v1572, 1
        %v1576 = vrot.slane %v1573, 1
        %v1615 = vunpack.c.l.b16 %v1525
        %v1616 = vunpack.c.h.b16 %v1525
        %v1617 = vunpack.c.l.b16 %v1526
        %v1618 = vunpack.c.h.b16 %v1526
        %v1619 = vunpack.c.l.b16 %v1527
        %v1620 = vunpack.c.h.b16 %v1527
        %v1621 = vunpack.c.l.b16 %v1528
        %v1622 = vunpack.c.h.b16 %v1528
        %v1623 = vunpack.c.l.b16 %v1529
        %v1624 = vunpack.c.h.b16 %v1529
        %v1625 = vunpack.c.l.b16 %v1530
        %v1626 = vunpack.c.h.b16 %v1530
        %v1627 = vunpack.c.l.b16 %v1531
        %v1628 = vunpack.c.h.b16 %v1531
        %v1629 = vunpack.c.l.b16 %v1532
        %v1630 = vunpack.c.h.b16 %v1532
        %v1631 = vunpack.c.l.b16 %v1533
        %v1632 = vunpack.c.h.b16 %v1533
        %v1633 = vunpack.c.l.b16 %v1534
        %v1634 = vunpack.c.h.b16 %v1534
        %v1635 = vunpack.c.l.b16 %v1535
        %v1636 = vunpack.c.h.b16 %v1535
        %v1637 = vunpack.c.l.b16 %v1536
        %v1638 = vunpack.c.h.b16 %v1536
        %v1639 = vunpack.c.l.b16 %v1537
        %v1640 = vunpack.c.h.b16 %v1537
        %v1641 = vunpack.c.l.b16 %v1538
        %v1642 = vunpack.c.h.b16 %v1538
        %v1643 = vunpack.c.l.b16 %v1539
        %v1644 = vunpack.c.h.b16 %v1539
        %v1645 = vunpack.c.l.b16 %v1540
        %v1646 = vunpack.c.h.b16 %v1540
        %v1647 = vunpack.c.l.b16 %v1541
        %v1648 = vunpack.c.h.b16 %v1541
        %v1649 = vunpack.c.l.b16 %v1542
        %v1650 = vunpack.c.h.b16 %v1542
        %v1651 = vunpack.c.l.b16 %v1543
        %v1652 = vunpack.c.h.b16 %v1543
        %v1653 = vunpack.c.l.b16 %v1544
        %v1654 = vunpack.c.h.b16 %v1544
        %v1655 = vunpack.c.l.b16 %v1545
        %v1656 = vunpack.c.h.b16 %v1545
        %v1657 = vunpack.c.l.b16 %v1546
        %v1658 = vunpack.c.h.b16 %v1546
        %v1659 = vunpack.c.l.b16 %v1547
        %v1660 = vunpack.c.h.b16 %v1547
        %v1661 = vunpack.c.l.b16 %v1548
        %v1662 = vunpack.c.h.b16 %v1548
        %v1663 = vunpack.c.l.b16 %v1549
        %v1664 = vunpack.c.h.b16 %v1549
        %v1665 = vunpack.c.l.b16 %v1550
        %v1666 = vunpack.c.h.b16 %v1550
        %v1667 = vunpack.c.l.b16 %v1551
        %v1668 = vunpack.c.h.b16 %v1551
        %v1669 = vunpack.c.l.b16 %v1552
        %v1670 = vunpack.c.h.b16 %v1552
        %v1671 = vunpack.c.l.b16 %v1553
        %v1672 = vunpack.c.h.b16 %v1553
        %v1673 = vunpack.c.l.b16 %v1554
        %v1674 = vunpack.c.h.b16 %v1554
        %v1675 = vunpack.c.l.b16 %v1555
        %v1676 = vunpack.c.h.b16 %v1555
        %v1677 = vunpack.c.l.b16 %v1556
        %v1678 = vunpack.c.h.b16 %v1556
        %v1679 = vunpack.c.l.b16 %v1557
        %v1680 = vunpack.c.h.b16 %v1557
        %v1681 = vunpack.c.l.b16 %v1558
        %v1682 = vunpack.c.h.b16 %v1558
        %v1683 = vunpack.c.l.b16 %v1559
        %v1684 = vunpack.c.h.b16 %v1559
        %v1685 = vunpack.c.l.b16 %v1560
        %v1686 = vunpack.c.h.b16 %v1560
        %v1687 = vpack.c.b16 %v1617, %v1615
        %v1688 = vpack.c.b16 %v1618, %v1616
        %v1689 = vpack.c.b16 %v1621, %v1619
        %v1690 = vpack.c.b16 %v1622, %v1620
        %v1691 = vpack.c.b16 %v1625, %v1623
        %v1692 = vpack.c.b16 %v1626, %v1624
        %v1693 = vpack.c.b16 %v1629, %v1627
        %v1694 = vpack.c.b16 %v1630, %v1628
        %v1695 = vpack.c.b16 %v1633, %v1631
        %v1696 = vpack.c.b16 %v1634, %v1632
        %v1697 = vpack.c.b16 %v1637, %v1635
        %v1698 = vpack.c.b16 %v1638, %v1636
        %v1699 = vpack.c.b16 %v1641, %v1639
        %v1700 = vpack.c.b16 %v1642, %v1640
        %v1701 = vpack.c.b16 %v1645, %v1643
        %v1702 = vpack.c.b16 %v1646, %v1644
        %v1703 = vpack.c.b16 %v1649, %v1647
        %v1704 = vpack.c.b16 %v1650, %v1648
        %v1705 = vpack.c.b16 %v1653, %v1651
        %v1706 = vpack.c.b16 %v1654, %v1652
        %v1707 = vpack.c.b16 %v1657, %v1655
        %v1708 = vpack.c.b16 %v1658, %v1656
        %v1709 = vpack.c.b16 %v1661, %v1659
        %v1710 = vpack.c.b16 %v1662, %v1660
        %v1711 = vpack.c.b16 %v1665, %v1663
        %v1712 = vpack.c.b16 %v1666, %v1664
        %v1713 = vpack.c.b16 %v1669, %v1667
        %v1714 = vpack.c.b16 %v1670, %v1668
        %v1715 = vpack.c.b16 %v1673, %v1671
        %v1716 = vpack.c.b16 %v1674, %v1672
        %v1717 = vpack.c.b16 %v1677, %v1675
        %v1718 = vpack.c.b16 %v1678, %v1676
        %v1719 = vpack.c.b16 %v1681, %v1679
        %v1720 = vpack.c.b16 %v1682, %v1680
        %v1721 = vpack.c.b16 %v1685, %v1683
        %v1722 = vpack.c.b16 %v1686, %v1684
        %v1760 = vsel %vm507, %v1576, 0
        %1762 = vmatprep.subr.bf16.mxu0 %v1688
        %1763 = vmatpush1.bf16.msra.mxu0 %v1687
        %1764 = vmatprep.subr.bf16.mxu0 %v1690
        %1765 = vmatpush1.bf16.msra.mxu0 %v1689
        %1766 = vmatprep.subr.bf16.mxu0 %v1692
        %1767 = vmatpush1.bf16.msra.mxu0 %v1691
        %1768 = vmatprep.subr.bf16.mxu0 %v1694
        %1769 = vmatpush1.bf16.msra.mxu0 %v1693
        %1770 = vmatprep.subr.bf16.mxu0 %v1696
        %1771 = vmatpush1.bf16.msra.mxu0 %v1695
        %1772 = vmatprep.subr.bf16.mxu0 %v1698
        %1773 = vmatpush1.bf16.msra.mxu0 %v1697
        %1774 = vmatprep.subr.bf16.mxu0 %v1700
        %1775 = vmatpush1.bf16.msra.mxu0 %v1699
        %1776 = vmatprep.subr.bf16.mxu0 %v1702
        %1777 = vmatpush1.bf16.msra.mxu0 %v1701
        %1778 = vmatprep.subr.bf16.mxu0 %v1704
        %1779 = vmatpush1.bf16.msra.mxu0 %v1703
        %1780 = vmatprep.subr.bf16.mxu0 %v1706
        %1781 = vmatpush1.bf16.msra.mxu0 %v1705
        %1782 = vmatprep.subr.bf16.mxu0 %v1708
        %1783 = vmatpush1.bf16.msra.mxu0 %v1707
        %1784 = vmatprep.subr.bf16.mxu0 %v1710
        %1785 = vmatpush1.bf16.msra.mxu0 %v1709
        %1786 = vmatprep.subr.bf16.mxu0 %v1712
        %1787 = vmatpush1.bf16.msra.mxu0 %v1711
        %1788 = vmatprep.subr.bf16.mxu0 %v1714
        %1789 = vmatpush1.bf16.msra.mxu0 %v1713
        %1790 = vmatprep.subr.bf16.mxu0 %v1716
        %1791 = vmatpush1.bf16.msra.mxu0 %v1715
        %1792 = vmatprep.subr.bf16.mxu0 %v1718
        %1793 = vmatpush1.bf16.msra.mxu0 %v1717
        %1794 = vmatprep.mubr.bf16.mxu0 %v1575
        %1795 = vmatmul.mubr.bf16.gmra.mrb[0].mxu0 %v1574
        %v1796 = vpop.f32.mrb[0].mxu0
        %v1797 = vadd.f32 0.0, %v1796
        %v1798 = vpop.f32.mrb[0].mxu0
        %v1799 = vadd.f32 0.0, %v1798
        %v1800 = vpop.f32.mrb[0].mxu0
        %v1801 = vpop.f32.mrb[0].mxu0
        %1802 = vdwg.mxu0
        %1803 = vmatprep.subr.bf16.mxu0 %v1720
        %1804 = vmatpush1.bf16.msra.mxu0 %v1719
        %1805 = vmatprep.subr.bf16.mxu0 %v1722
        %1806 = vmatpush1.bf16.msra.mxu0 %v1721
        %1807 = vmatprep.subr.bf16.mxu0 0
        %1808 = vmatpush1.bf16.msra.mxu0 0
        %1809 = vmatprep.subr.bf16.mxu0 0
        %1810 = vmatpush1.bf16.msra.mxu0 0
        %1811 = vmatprep.subr.bf16.mxu0 0
        %1812 = vmatpush1.bf16.msra.mxu0 0
        %1813 = vmatprep.subr.bf16.mxu0 0
        %1814 = vmatpush1.bf16.msra.mxu0 0
        %1815 = vmatprep.subr.bf16.mxu0 0
        %1816 = vmatpush1.bf16.msra.mxu0 0
        %1817 = vmatprep.subr.bf16.mxu0 0
        %1818 = vmatpush1.bf16.msra.mxu0 0
        %1819 = vmatprep.subr.bf16.mxu0 0
        %1820 = vmatpush1.bf16.msra.mxu0 0
        %1821 = vmatprep.subr.bf16.mxu0 0
        %1822 = vmatpush1.bf16.msra.mxu0 0
        %1823 = vmatprep.subr.bf16.mxu0 0
        %1824 = vmatpush1.bf16.msra.mxu0 0
        %1825 = vmatprep.subr.bf16.mxu0 0
        %1826 = vmatpush1.bf16.msra.mxu0 0
        %1827 = vmatprep.subr.bf16.mxu0 0
        %1828 = vmatpush1.bf16.msra.mxu0 0
        %1829 = vmatprep.subr.bf16.mxu0 0
        %1830 = vmatpush1.bf16.msra.mxu0 0
        %1831 = vmatprep.subr.bf16.mxu0 0
        %1832 = vmatpush1.bf16.msra.mxu0 0
        %1833 = vmatprep.subr.bf16.mxu0 0
        %1834 = vmatpush1.bf16.msra.mxu0 0
        %1835 = vmatprep.mubr.bf16.mxu0 0
        %1836 = vmatmul.mubr.bf16.gmra.mrb[0].mxu0 %v1760
        %v1837 = vpop.f32.mrb[0].mxu0
        %v1838 = vadd.f32 %v1797, %v1837
        %v1839 = vpop.f32.mrb[0].mxu0
        %v1840 = vadd.f32 %v1799, %v1839
        %v1841 = vpop.f32.mrb[0].mxu0
        %v1842 = vpop.f32.mrb[0].mxu0
        %1843 = vdwg.mxu0
        %v1844 = vadd.f32 %v1518, %v1838
        %v1845 = vadd.f32 %v1519, %v1840
        %v1846 = vld [vmem:[#allocation4] sm:$0x3]
        %v1848 = vlaneseq
        %v1849 = vshrl.u32 %v1848, 7
        %v1850 = vsub.s32 0, %v1849
        %v1851 = vrot.slane %v1846, %v1850
        %v1852 = vlaneseq
        %v1853 = vshrl.u32 %v1852, 7
        %v1854 = vsub.s32 1, %v1853
        %v1855 = vrot.slane %v1846, %v1854
        %v1858 = vmul.f32 %v1844, %v1851
        %v1859 = vmul.f32 %v1845, %v1855
        %v1860 = vld [vmem:[#allocation6] sm:$0x3]
        %v1862 = vlaneseq
        %v1863 = vshrl.u32 %v1862, 7
        %v1864 = vsub.s32 0, %v1863
        %v1865 = vrot.slane %v1860, %v1864
        %v1866 = vlaneseq
        %v1867 = vshrl.u32 %v1866, 7
        %v1868 = vsub.s32 1, %v1867
        %v1869 = vrot.slane %v1860, %v1868
        %v1872 = vadd.f32 %v1858, %v1865
        %v1873 = vadd.f32 %v1859, %v1869
        %v1874 = vmax.f32 %v1872, 0.0
        %v1875 = vmax.f32 %v1873, 0.0
        %s1876 = scalar_lea.vmem [#allocation2], 288
        %v1877 = vld [vmem:[%s1876] sm:$0xff]
        %v1878 = vld [vmem:[%s1876 + $0x8] sm:$0xff]
        %v1879 = vld [vmem:[%s1876 + $0x10] sm:$0xff]
        %v1880 = vld [vmem:[%s1876 + $0x18] sm:$0xff]
        %v1881 = vld [vmem:[%s1876 + $0x20] sm:$0xff]
        %v1882 = vld [vmem:[%s1876 + $0x28] sm:$0xff]
        %v1883 = vld [vmem:[%s1876 + $0x30] sm:$0xff]
        %v1884 = vld [vmem:[%s1876 + $0x38] sm:$0xff]
        %v1885 = vld [vmem:[%s1876 + $0x40] sm:$0xff]
        %v1886 = vld [vmem:[%s1876 + $0x48] sm:$0xff]
        %v1887 = vld [vmem:[%s1876 + $0x50] sm:$0xff]
        %v1888 = vld [vmem:[%s1876 + $0x58] sm:$0xff]
        %v1889 = vld [vmem:[%s1876 + $0x60] sm:$0xff]
        %v1890 = vld [vmem:[%s1876 + $0x68] sm:$0xff]
        %v1891 = vld [vmem:[%s1876 + $0x70] sm:$0xff]
        %v1892 = vld [vmem:[%s1876 + $0x78] sm:$0xff]
        %v1893 = vld [vmem:[%s1876 + $0x80] sm:$0xff]
        %v1894 = vld [vmem:[%s1876 + $0x88] sm:$0xff]
        %v1895 = vld [vmem:[%s1876 + $0x90] sm:$0xff]
        %v1896 = vld [vmem:[%s1876 + $0x98] sm:$0xff]
        %v1897 = vld [vmem:[%s1876 + $0xa0] sm:$0xff]
        %v1898 = vld [vmem:[%s1876 + $0xa8] sm:$0xff]
        %v1899 = vld [vmem:[%s1876 + $0xb0] sm:$0xff]
        %v1900 = vld [vmem:[%s1876 + $0xb8] sm:$0xff]
        %v1901 = vld [vmem:[%s1876 + $0xc0] sm:$0xff]
        %v1902 = vld [vmem:[%s1876 + $0xc8] sm:$0xff]
        %v1903 = vld [vmem:[%s1876 + $0xd0] sm:$0xff]
        %v1904 = vld [vmem:[%s1876 + $0xd8] sm:$0xff]
        %v1905 = vld [vmem:[%s1876 + $0xe0] sm:$0xff]
        %v1906 = vld [vmem:[%s1876 + $0xe8] sm:$0xff]
        %v1907 = vld [vmem:[%s1876 + $0xf0] sm:$0xff]
        %v1908 = vld [vmem:[%s1876 + $0xf8] sm:$0xff]
        %v1909 = vld [vmem:[%s1876 + $0x100] sm:$0xff]
        %v1910 = vld [vmem:[%s1876 + $0x108] sm:$0xff]
        %v1911 = vld [vmem:[%s1876 + $0x110] sm:$0xff]
        %v1912 = vld [vmem:[%s1876 + $0x118] sm:$0xff]
        %s1913 = scalar_lea.vmem [#allocation2], 864
        %v1914 = vld [vmem:[%s1913] sm:$0xff]
        %v1915 = vld [vmem:[%s1913 + $0x8] sm:$0xff]
        %v1916 = vld [vmem:[%s1913 + $0x10] sm:$0xff]
        %v1917 = vld [vmem:[%s1913 + $0x18] sm:$0xff]
        %v1918 = vld [vmem:[%s1913 + $0x20] sm:$0xff]
        %v1919 = vld [vmem:[%s1913 + $0x28] sm:$0xff]
        %v1920 = vld [vmem:[%s1913 + $0x30] sm:$0xff]
        %v1921 = vld [vmem:[%s1913 + $0x38] sm:$0xff]
        %v1922 = vld [vmem:[%s1913 + $0x40] sm:$0xff]
        %v1923 = vld [vmem:[%s1913 + $0x48] sm:$0xff]
        %v1924 = vld [vmem:[%s1913 + $0x50] sm:$0xff]
        %v1925 = vld [vmem:[%s1913 + $0x58] sm:$0xff]
        %v1926 = vld [vmem:[%s1913 + $0x60] sm:$0xff]
        %v1927 = vld [vmem:[%s1913 + $0x68] sm:$0xff]
        %v1928 = vld [vmem:[%s1913 + $0x70] sm:$0xff]
        %v1929 = vld [vmem:[%s1913 + $0x78] sm:$0xff]
        %v1930 = vld [vmem:[%s1913 + $0x80] sm:$0xff]
        %v1931 = vld [vmem:[%s1913 + $0x88] sm:$0xff]
        %v1932 = vld [vmem:[%s1913 + $0x90] sm:$0xff]
        %v1933 = vld [vmem:[%s1913 + $0x98] sm:$0xff]
        %v1934 = vld [vmem:[%s1913 + $0xa0] sm:$0xff]
        %v1935 = vld [vmem:[%s1913 + $0xa8] sm:$0xff]
        %v1936 = vld [vmem:[%s1913 + $0xb0] sm:$0xff]
        %v1937 = vld [vmem:[%s1913 + $0xb8] sm:$0xff]
        %v1938 = vld [vmem:[%s1913 + $0xc0] sm:$0xff]
        %v1939 = vld [vmem:[%s1913 + $0xc8] sm:$0xff]
        %v1940 = vld [vmem:[%s1913 + $0xd0] sm:$0xff]
        %v1941 = vld [vmem:[%s1913 + $0xd8] sm:$0xff]
        %v1942 = vld [vmem:[%s1913 + $0xe0] sm:$0xff]
        %v1943 = vld [vmem:[%s1913 + $0xe8] sm:$0xff]
        %v1944 = vld [vmem:[%s1913 + $0xf0] sm:$0xff]
        %v1945 = vld [vmem:[%s1913 + $0xf8] sm:$0xff]
        %v1946 = vld [vmem:[%s1913 + $0x100] sm:$0xff]
        %v1947 = vld [vmem:[%s1913 + $0x108] sm:$0xff]
        %v1948 = vld [vmem:[%s1913 + $0x110] sm:$0xff]
        %v1949 = vld [vmem:[%s1913 + $0x118] sm:$0xff]
        %v1986 = vunpack.c.l.b16 %v1914
        %v1987 = vunpack.c.h.b16 %v1914
        %v1988 = vunpack.c.l.b16 %v1915
        %v1989 = vunpack.c.h.b16 %v1915
        %v1990 = vunpack.c.l.b16 %v1916
        %v1991 = vunpack.c.h.b16 %v1916
        %v1992 = vunpack.c.l.b16 %v1917
        %v1993 = vunpack.c.h.b16 %v1917
        %v1994 = vunpack.c.l.b16 %v1918
        %v1995 = vunpack.c.h.b16 %v1918
        %v1996 = vunpack.c.l.b16 %v1919
        %v1997 = vunpack.c.h.b16 %v1919
        %v1998 = vunpack.c.l.b16 %v1920
        %v1999 = vunpack.c.h.b16 %v1920
        %v2000 = vunpack.c.l.b16 %v1921
        %v2001 = vunpack.c.h.b16 %v1921
        %v2002 = vunpack.c.l.b16 %v1922
        %v2003 = vunpack.c.h.b16 %v1922
        %v2004 = vunpack.c.l.b16 %v1923
        %v2005 = vunpack.c.h.b16 %v1923
        %v2006 = vunpack.c.l.b16 %v1924
        %v2007 = vunpack.c.h.b16 %v1924
        %v2008 = vunpack.c.l.b16 %v1925
        %v2009 = vunpack.c.h.b16 %v1925
        %v2010 = vunpack.c.l.b16 %v1926
        %v2011 = vunpack.c.h.b16 %v1926
        %v2012 = vunpack.c.l.b16 %v1927
        %v2013 = vunpack.c.h.b16 %v1927
        %v2014 = vunpack.c.l.b16 %v1928
        %v2015 = vunpack.c.h.b16 %v1928
        %v2016 = vunpack.c.l.b16 %v1929
        %v2017 = vunpack.c.h.b16 %v1929
        %v2018 = vunpack.c.l.b16 %v1930
        %v2019 = vunpack.c.h.b16 %v1930
        %v2020 = vunpack.c.l.b16 %v1931
        %v2021 = vunpack.c.h.b16 %v1931
        %v2022 = vunpack.c.l.b16 %v1932
        %v2023 = vunpack.c.h.b16 %v1932
        %v2024 = vunpack.c.l.b16 %v1933
        %v2025 = vunpack.c.h.b16 %v1933
        %v2026 = vunpack.c.l.b16 %v1934
        %v2027 = vunpack.c.h.b16 %v1934
        %v2028 = vunpack.c.l.b16 %v1935
        %v2029 = vunpack.c.h.b16 %v1935
        %v2030 = vunpack.c.l.b16 %v1936
        %v2031 = vunpack.c.h.b16 %v1936
        %v2032 = vunpack.c.l.b16 %v1937
        %v2033 = vunpack.c.h.b16 %v1937
        %v2034 = vunpack.c.l.b16 %v1938
        %v2035 = vunpack.c.h.b16 %v1938
        %v2036 = vunpack.c.l.b16 %v1939
        %v2037 = vunpack.c.h.b16 %v1939
        %v2038 = vunpack.c.l.b16 %v1940
        %v2039 = vunpack.c.h.b16 %v1940
        %v2040 = vunpack.c.l.b16 %v1941
        %v2041 = vunpack.c.h.b16 %v1941
        %v2042 = vunpack.c.l.b16 %v1942
        %v2043 = vunpack.c.h.b16 %v1942
        %v2044 = vunpack.c.l.b16 %v1943
        %v2045 = vunpack.c.h.b16 %v1943
        %v2046 = vunpack.c.l.b16 %v1944
        %v2047 = vunpack.c.h.b16 %v1944
        %v2048 = vunpack.c.l.b16 %v1945
        %v2049 = vunpack.c.h.b16 %v1945
        %v2050 = vunpack.c.l.b16 %v1946
        %v2051 = vunpack.c.h.b16 %v1946
        %v2052 = vunpack.c.l.b16 %v1947
        %v2053 = vunpack.c.h.b16 %v1947
        %v2054 = vunpack.c.l.b16 %v1948
        %v2055 = vunpack.c.h.b16 %v1948
        %v2056 = vunpack.c.l.b16 %v1949
        %v2057 = vunpack.c.h.b16 %v1949
        %v2058 = vpack.c.b16 %v1988, %v1986
        %v2059 = vpack.c.b16 %v1989, %v1987
        %v2060 = vpack.c.b16 %v1992, %v1990
        %v2061 = vpack.c.b16 %v1993, %v1991
        %v2062 = vpack.c.b16 %v1996, %v1994
        %v2063 = vpack.c.b16 %v1997, %v1995
        %v2064 = vpack.c.b16 %v2000, %v1998
        %v2065 = vpack.c.b16 %v2001, %v1999
        %v2066 = vpack.c.b16 %v2004, %v2002
        %v2067 = vpack.c.b16 %v2005, %v2003
        %v2068 = vpack.c.b16 %v2008, %v2006
        %v2069 = vpack.c.b16 %v2009, %v2007
        %v2070 = vpack.c.b16 %v2012, %v2010
        %v2071 = vpack.c.b16 %v2013, %v2011
        %v2072 = vpack.c.b16 %v2016, %v2014
        %v2073 = vpack.c.b16 %v2017, %v2015
        %v2074 = vpack.c.b16 %v2020, %v2018
        %v2075 = vpack.c.b16 %v2021, %v2019
        %v2076 = vpack.c.b16 %v2024, %v2022
        %v2077 = vpack.c.b16 %v2025, %v2023
        %v2078 = vpack.c.b16 %v2028, %v2026
        %v2079 = vpack.c.b16 %v2029, %v2027
        %v2080 = vpack.c.b16 %v2032, %v2030
        %v2081 = vpack.c.b16 %v2033, %v2031
        %v2082 = vpack.c.b16 %v2036, %v2034
        %v2083 = vpack.c.b16 %v2037, %v2035
        %v2084 = vpack.c.b16 %v2040, %v2038
        %v2085 = vpack.c.b16 %v2041, %v2039
        %v2086 = vpack.c.b16 %v2044, %v2042
        %v2087 = vpack.c.b16 %v2045, %v2043
        %v2088 = vpack.c.b16 %v2048, %v2046
        %v2089 = vpack.c.b16 %v2049, %v2047
        %v2090 = vpack.c.b16 %v2052, %v2050
        %v2091 = vpack.c.b16 %v2053, %v2051
        %v2092 = vpack.c.b16 %v2056, %v2054
        %v2093 = vpack.c.b16 %v2057, %v2055
        %2130 = vmatprep.subr.bf16.mxu0 %v2059
        %2131 = vmatpush1.bf16.msra.mxu0 %v2058
        %2132 = vmatprep.subr.bf16.mxu0 %v2061
        %2133 = vmatpush1.bf16.msra.mxu0 %v2060
        %2134 = vmatprep.subr.bf16.mxu0 %v2063
        %2135 = vmatpush1.bf16.msra.mxu0 %v2062
        %2136 = vmatprep.subr.bf16.mxu0 %v2065
        %2137 = vmatpush1.bf16.msra.mxu0 %v2064
        %2138 = vmatprep.subr.bf16.mxu0 %v2067
        %2139 = vmatpush1.bf16.msra.mxu0 %v2066
        %2140 = vmatprep.subr.bf16.mxu0 %v2069
        %2141 = vmatpush1.bf16.msra.mxu0 %v2068
        %2142 = vmatprep.subr.bf16.mxu0 %v2071
        %2143 = vmatpush1.bf16.msra.mxu0 %v2070
        %2144 = vmatprep.subr.bf16.mxu0 %v2073
        %2145 = vmatpush1.bf16.msra.mxu0 %v2072
        %2146 = vmatprep.subr.bf16.mxu0 %v2075
        %2147 = vmatpush1.bf16.msra.mxu0 %v2074
        %2148 = vmatprep.subr.bf16.mxu0 %v2077
        %2149 = vmatpush1.bf16.msra.mxu0 %v2076
        %2150 = vmatprep.subr.bf16.mxu0 %v2079
        %2151 = vmatpush1.bf16.msra.mxu0 %v2078
        %2152 = vmatprep.subr.bf16.mxu0 %v2081
        %2153 = vmatpush1.bf16.msra.mxu0 %v2080
        %2154 = vmatprep.subr.bf16.mxu0 %v2083
        %2155 = vmatpush1.bf16.msra.mxu0 %v2082
        %2156 = vmatprep.subr.bf16.mxu0 %v2085
        %2157 = vmatpush1.bf16.msra.mxu0 %v2084
        %2158 = vmatprep.subr.bf16.mxu0 %v2087
        %2159 = vmatpush1.bf16.msra.mxu0 %v2086
        %2160 = vmatprep.subr.bf16.mxu0 %v2089
        %2161 = vmatpush1.bf16.msra.mxu0 %v2088
        %2162 = vmatprep.mubr.bf16.mxu0 %v323
        %2163 = vmatmul.mubr.bf16.gmra.mrb[0].mxu0 %v322
        %v2164 = vpop.f32.mrb[0].mxu0
        %v2165 = vadd.f32 0.0, %v2164
        %v2166 = vpop.f32.mrb[0].mxu0
        %v2167 = vadd.f32 0.0, %v2166
        %v2168 = vpop.f32.mrb[0].mxu0
        %v2169 = vpop.f32.mrb[0].mxu0
        %2170 = vdwg.mxu0
        %2171 = vmatprep.subr.bf16.mxu0 %v2091
        %2172 = vmatpush1.bf16.msra.mxu0 %v2090
        %2173 = vmatprep.subr.bf16.mxu0 %v2093
        %2174 = vmatpush1.bf16.msra.mxu0 %v2092
        %2175 = vmatprep.subr.bf16.mxu0 0
        %2176 = vmatpush1.bf16.msra.mxu0 0
        %2177 = vmatprep.subr.bf16.mxu0 0
        %2178 = vmatpush1.bf16.msra.mxu0 0
        %2179 = vmatprep.subr.bf16.mxu0 0
        %2180 = vmatpush1.bf16.msra.mxu0 0
        %2181 = vmatprep.subr.bf16.mxu0 0
        %2182 = vmatpush1.bf16.msra.mxu0 0
        %2183 = vmatprep.subr.bf16.mxu0 0
        %2184 = vmatpush1.bf16.msra.mxu0 0
        %2185 = vmatprep.subr.bf16.mxu0 0
        %2186 = vmatpush1.bf16.msra.mxu0 0
        %2187 = vmatprep.subr.bf16.mxu0 0
        %2188 = vmatpush1.bf16.msra.mxu0 0
        %2189 = vmatprep.subr.bf16.mxu0 0
        %2190 = vmatpush1.bf16.msra.mxu0 0
        %2191 = vmatprep.subr.bf16.mxu0 0
        %2192 = vmatpush1.bf16.msra.mxu0 0
        %2193 = vmatprep.subr.bf16.mxu0 0
        %2194 = vmatpush1.bf16.msra.mxu0 0
        %2195 = vmatprep.subr.bf16.mxu0 0
        %2196 = vmatpush1.bf16.msra.mxu0 0
        %2197 = vmatprep.subr.bf16.mxu0 0
        %2198 = vmatpush1.bf16.msra.mxu0 0
        %2199 = vmatprep.subr.bf16.mxu0 0
        %2200 = vmatpush1.bf16.msra.mxu0 0
        %2201 = vmatprep.subr.bf16.mxu0 0
        %2202 = vmatpush1.bf16.msra.mxu0 0
        %2203 = vmatprep.mubr.bf16.mxu0 0
        %2204 = vmatmul.mubr.bf16.gmra.mrb[0].mxu0 %v509
        %v2205 = vpop.f32.mrb[0].mxu0
        %v2206 = vadd.f32 %v2165, %v2205
        %v2207 = vpop.f32.mrb[0].mxu0
        %v2208 = vadd.f32 %v2167, %v2207
        %v2209 = vpop.f32.mrb[0].mxu0
        %v2210 = vpop.f32.mrb[0].mxu0
        %2211 = vdwg.mxu0
        %v2248 = vunpack.c.l.b16 %v1877
        %v2249 = vunpack.c.h.b16 %v1877
        %v2250 = vunpack.c.l.b16 %v1878
        %v2251 = vunpack.c.h.b16 %v1878
        %v2252 = vunpack.c.l.b16 %v1879
        %v2253 = vunpack.c.h.b16 %v1879
        %v2254 = vunpack.c.l.b16 %v1880
        %v2255 = vunpack.c.h.b16 %v1880
        %v2256 = vunpack.c.l.b16 %v1881
        %v2257 = vunpack.c.h.b16 %v1881
        %v2258 = vunpack.c.l.b16 %v1882
        %v2259 = vunpack.c.h.b16 %v1882
        %v2260 = vunpack.c.l.b16 %v1883
        %v2261 = vunpack.c.h.b16 %v1883
        %v2262 = vunpack.c.l.b16 %v1884
        %v2263 = vunpack.c.h.b16 %v1884
        %v2264 = vunpack.c.l.b16 %v1885
        %v2265 = vunpack.c.h.b16 %v1885
        %v2266 = vunpack.c.l.b16 %v1886
        %v2267 = vunpack.c.h.b16 %v1886
        %v2268 = vunpack.c.l.b16 %v1887
        %v2269 = vunpack.c.h.b16 %v1887
        %v2270 = vunpack.c.l.b16 %v1888
        %v2271 = vunpack.c.h.b16 %v1888
        %v2272 = vunpack.c.l.b16 %v1889
        %v2273 = vunpack.c.h.b16 %v1889
        %v2274 = vunpack.c.l.b16 %v1890
        %v2275 = vunpack.c.h.b16 %v1890
        %v2276 = vunpack.c.l.b16 %v1891
        %v2277 = vunpack.c.h.b16 %v1891
        %v2278 = vunpack.c.l.b16 %v1892
        %v2279 = vunpack.c.h.b16 %v1892
        %v2280 = vunpack.c.l.b16 %v1893
        %v2281 = vunpack.c.h.b16 %v1893
        %v2282 = vunpack.c.l.b16 %v1894
        %v2283 = vunpack.c.h.b16 %v1894
        %v2284 = vunpack.c.l.b16 %v1895
        %v2285 = vunpack.c.h.b16 %v1895
        %v2286 = vunpack.c.l.b16 %v1896
        %v2287 = vunpack.c.h.b16 %v1896
        %v2288 = vunpack.c.l.b16 %v1897
        %v2289 = vunpack.c.h.b16 %v1897
        %v2290 = vunpack.c.l.b16 %v1898
        %v2291 = vunpack.c.h.b16 %v1898
        %v2292 = vunpack.c.l.b16 %v1899
        %v2293 = vunpack.c.h.b16 %v1899
        %v2294 = vunpack.c.l.b16 %v1900
        %v2295 = vunpack.c.h.b16 %v1900
        %v2296 = vunpack.c.l.b16 %v1901
        %v2297 = vunpack.c.h.b16 %v1901
        %v2298 = vunpack.c.l.b16 %v1902
        %v2299 = vunpack.c.h.b16 %v1902
        %v2300 = vunpack.c.l.b16 %v1903
        %v2301 = vunpack.c.h.b16 %v1903
        %v2302 = vunpack.c.l.b16 %v1904
        %v2303 = vunpack.c.h.b16 %v1904
        %v2304 = vunpack.c.l.b16 %v1905
        %v2305 = vunpack.c.h.b16 %v1905
        %v2306 = vunpack.c.l.b16 %v1906
        %v2307 = vunpack.c.h.b16 %v1906
        %v2308 = vunpack.c.l.b16 %v1907
        %v2309 = vunpack.c.h.b16 %v1907
        %v2310 = vunpack.c.l.b16 %v1908
        %v2311 = vunpack.c.h.b16 %v1908
        %v2312 = vunpack.c.l.b16 %v1909
        %v2313 = vunpack.c.h.b16 %v1909
        %v2314 = vunpack.c.l.b16 %v1910
        %v2315 = vunpack.c.h.b16 %v1910
        %v2316 = vunpack.c.l.b16 %v1911
        %v2317 = vunpack.c.h.b16 %v1911
        %v2318 = vunpack.c.l.b16 %v1912
        %v2319 = vunpack.c.h.b16 %v1912
        %v2320 = vpack.c.b16 %v2250, %v2248
        %v2321 = vpack.c.b16 %v2251, %v2249
        %v2322 = vpack.c.b16 %v2254, %v2252
        %v2323 = vpack.c.b16 %v2255, %v2253
        %v2324 = vpack.c.b16 %v2258, %v2256
        %v2325 = vpack.c.b16 %v2259, %v2257
        %v2326 = vpack.c.b16 %v2262, %v2260
        %v2327 = vpack.c.b16 %v2263, %v2261
        %v2328 = vpack.c.b16 %v2266, %v2264
        %v2329 = vpack.c.b16 %v2267, %v2265
        %v2330 = vpack.c.b16 %v2270, %v2268
        %v2331 = vpack.c.b16 %v2271, %v2269
        %v2332 = vpack.c.b16 %v2274, %v2272
        %v2333 = vpack.c.b16 %v2275, %v2273
        %v2334 = vpack.c.b16 %v2278, %v2276
        %v2335 = vpack.c.b16 %v2279, %v2277
        %v2336 = vpack.c.b16 %v2282, %v2280
        %v2337 = vpack.c.b16 %v2283, %v2281
        %v2338 = vpack.c.b16 %v2286, %v2284
        %v2339 = vpack.c.b16 %v2287, %v2285
        %v2340 = vpack.c.b16 %v2290, %v2288
        %v2341 = vpack.c.b16 %v2291, %v2289
        %v2342 = vpack.c.b16 %v2294, %v2292
        %v2343 = vpack.c.b16 %v2295, %v2293
        %v2344 = vpack.c.b16 %v2298, %v2296
        %v2345 = vpack.c.b16 %v2299, %v2297
        %v2346 = vpack.c.b16 %v2302, %v2300
        %v2347 = vpack.c.b16 %v2303, %v2301
        %v2348 = vpack.c.b16 %v2306, %v2304
        %v2349 = vpack.c.b16 %v2307, %v2305
        %v2350 = vpack.c.b16 %v2310, %v2308
        %v2351 = vpack.c.b16 %v2311, %v2309
        %v2352 = vpack.c.b16 %v2314, %v2312
        %v2353 = vpack.c.b16 %v2315, %v2313
        %v2354 = vpack.c.b16 %v2318, %v2316
        %v2355 = vpack.c.b16 %v2319, %v2317
        %2392 = vmatprep.subr.bf16.mxu0 %v2321
        %2393 = vmatpush1.bf16.msra.mxu0 %v2320
        %2394 = vmatprep.subr.bf16.mxu0 %v2323
        %2395 = vmatpush1.bf16.msra.mxu0 %v2322
        %2396 = vmatprep.subr.bf16.mxu0 %v2325
        %2397 = vmatpush1.bf16.msra.mxu0 %v2324
        %2398 = vmatprep.subr.bf16.mxu0 %v2327
        %2399 = vmatpush1.bf16.msra.mxu0 %v2326
        %2400 = vmatprep.subr.bf16.mxu0 %v2329
        %2401 = vmatpush1.bf16.msra.mxu0 %v2328
        %2402 = vmatprep.subr.bf16.mxu0 %v2331
        %2403 = vmatpush1.bf16.msra.mxu0 %v2330
        %2404 = vmatprep.subr.bf16.mxu0 %v2333
        %2405 = vmatpush1.bf16.msra.mxu0 %v2332
        %2406 = vmatprep.subr.bf16.mxu0 %v2335
        %2407 = vmatpush1.bf16.msra.mxu0 %v2334
        %2408 = vmatprep.subr.bf16.mxu0 %v2337
        %2409 = vmatpush1.bf16.msra.mxu0 %v2336
        %2410 = vmatprep.subr.bf16.mxu0 %v2339
        %2411 = vmatpush1.bf16.msra.mxu0 %v2338
        %2412 = vmatprep.subr.bf16.mxu0 %v2341
        %2413 = vmatpush1.bf16.msra.mxu0 %v2340
        %2414 = vmatprep.subr.bf16.mxu0 %v2343
        %2415 = vmatpush1.bf16.msra.mxu0 %v2342
        %2416 = vmatprep.subr.bf16.mxu0 %v2345
        %2417 = vmatpush1.bf16.msra.mxu0 %v2344
        %2418 = vmatprep.subr.bf16.mxu0 %v2347
        %2419 = vmatpush1.bf16.msra.mxu0 %v2346
        %2420 = vmatprep.subr.bf16.mxu0 %v2349
        %2421 = vmatpush1.bf16.msra.mxu0 %v2348
        %2422 = vmatprep.subr.bf16.mxu0 %v2351
        %2423 = vmatpush1.bf16.msra.mxu0 %v2350
        %2424 = vmatprep.mubr.bf16.mxu0 %v599
        %2425 = vmatmul.mubr.bf16.gmra.mrb[0].mxu0 %v598
        %v2426 = vpop.f32.mrb[0].mxu0
        %v2427 = vadd.f32 %v2206, %v2426
        %v2428 = vpop.f32.mrb[0].mxu0
        %v2429 = vadd.f32 %v2208, %v2428
        %v2430 = vpop.f32.mrb[0].mxu0
        %v2431 = vpop.f32.mrb[0].mxu0
        %2432 = vdwg.mxu0
        %2433 = vmatprep.subr.bf16.mxu0 %v2353
        %2434 = vmatpush1.bf16.msra.mxu0 %v2352
        %2435 = vmatprep.subr.bf16.mxu0 %v2355
        %2436 = vmatpush1.bf16.msra.mxu0 %v2354
        %2437 = vmatprep.subr.bf16.mxu0 0
        %2438 = vmatpush1.bf16.msra.mxu0 0
        %2439 = vmatprep.subr.bf16.mxu0 0
        %2440 = vmatpush1.bf16.msra.mxu0 0
        %2441 = vmatprep.subr.bf16.mxu0 0
        %2442 = vmatpush1.bf16.msra.mxu0 0
        %2443 = vmatprep.subr.bf16.mxu0 0
        %2444 = vmatpush1.bf16.msra.mxu0 0
        %2445 = vmatprep.subr.bf16.mxu0 0
        %2446 = vmatpush1.bf16.msra.mxu0 0
        %2447 = vmatprep.subr.bf16.mxu0 0
        %2448 = vmatpush1.bf16.msra.mxu0 0
        %2449 = vmatprep.subr.bf16.mxu0 0
        %2450 = vmatpush1.bf16.msra.mxu0 0
        %2451 = vmatprep.subr.bf16.mxu0 0
        %2452 = vmatpush1.bf16.msra.mxu0 0
        %2453 = vmatprep.subr.bf16.mxu0 0
        %2454 = vmatpush1.bf16.msra.mxu0 0
        %2455 = vmatprep.subr.bf16.mxu0 0
        %2456 = vmatpush1.bf16.msra.mxu0 0
        %2457 = vmatprep.subr.bf16.mxu0 0
        %2458 = vmatpush1.bf16.msra.mxu0 0
        %2459 = vmatprep.subr.bf16.mxu0 0
        %2460 = vmatpush1.bf16.msra.mxu0 0
        %2461 = vmatprep.subr.bf16.mxu0 0
        %2462 = vmatpush1.bf16.msra.mxu0 0
        %2463 = vmatprep.subr.bf16.mxu0 0
        %2464 = vmatpush1.bf16.msra.mxu0 0
        %2465 = vmatprep.mubr.bf16.mxu0 0
        %2466 = vmatmul.mubr.bf16.gmra.mrb[0].mxu0 %v784
        %v2467 = vpop.f32.mrb[0].mxu0
        %v2468 = vadd.f32 %v2427, %v2467
        %v2469 = vpop.f32.mrb[0].mxu0
        %v2470 = vadd.f32 %v2429, %v2469
        %v2471 = vpop.f32.mrb[0].mxu0
        %v2472 = vpop.f32.mrb[0].mxu0
        %2473 = vdwg.mxu0
        %s2474 = scalar_lea.vmem [#allocation2], 1440
        %v2475 = vld [vmem:[%s2474] sm:$0xff]
        %v2476 = vld [vmem:[%s2474 + $0x8] sm:$0xff]
        %v2477 = vld [vmem:[%s2474 + $0x10] sm:$0xff]
        %v2478 = vld [vmem:[%s2474 + $0x18] sm:$0xff]
        %v2479 = vld [vmem:[%s2474 + $0x20] sm:$0xff]
        %v2480 = vld [vmem:[%s2474 + $0x28] sm:$0xff]
        %v2481 = vld [vmem:[%s2474 + $0x30] sm:$0xff]
        %v2482 = vld [vmem:[%s2474 + $0x38] sm:$0xff]
        %v2483 = vld [vmem:[%s2474 + $0x40] sm:$0xff]
        %v2484 = vld [vmem:[%s2474 + $0x48] sm:$0xff]
        %v2485 = vld [vmem:[%s2474 + $0x50] sm:$0xff]
        %v2486 = vld [vmem:[%s2474 + $0x58] sm:$0xff]
        %v2487 = vld [vmem:[%s2474 + $0x60] sm:$0xff]
        %v2488 = vld [vmem:[%s2474 + $0x68] sm:$0xff]
        %v2489 = vld [vmem:[%s2474 + $0x70] sm:$0xff]
        %v2490 = vld [vmem:[%s2474 + $0x78] sm:$0xff]
        %v2491 = vld [vmem:[%s2474 + $0x80] sm:$0xff]
        %v2492 = vld [vmem:[%s2474 + $0x88] sm:$0xff]
        %v2493 = vld [vmem:[%s2474 + $0x90] sm:$0xff]
        %v2494 = vld [vmem:[%s2474 + $0x98] sm:$0xff]
        %v2495 = vld [vmem:[%s2474 + $0xa0] sm:$0xff]
        %v2496 = vld [vmem:[%s2474 + $0xa8] sm:$0xff]
        %v2497 = vld [vmem:[%s2474 + $0xb0] sm:$0xff]
        %v2498 = vld [vmem:[%s2474 + $0xb8] sm:$0xff]
        %v2499 = vld [vmem:[%s2474 + $0xc0] sm:$0xff]
        %v2500 = vld [vmem:[%s2474 + $0xc8] sm:$0xff]
        %v2501 = vld [vmem:[%s2474 + $0xd0] sm:$0xff]
        %v2502 = vld [vmem:[%s2474 + $0xd8] sm:$0xff]
        %v2503 = vld [vmem:[%s2474 + $0xe0] sm:$0xff]
        %v2504 = vld [vmem:[%s2474 + $0xe8] sm:$0xff]
        %v2505 = vld [vmem:[%s2474 + $0xf0] sm:$0xff]
        %v2506 = vld [vmem:[%s2474 + $0xf8] sm:$0xff]
        %v2507 = vld [vmem:[%s2474 + $0x100] sm:$0xff]
        %v2508 = vld [vmem:[%s2474 + $0x108] sm:$0xff]
        %v2509 = vld [vmem:[%s2474 + $0x110] sm:$0xff]
        %v2510 = vld [vmem:[%s2474 + $0x118] sm:$0xff]
        %v2547 = vunpack.c.l.b16 %v2475
        %v2548 = vunpack.c.h.b16 %v2475
        %v2549 = vunpack.c.l.b16 %v2476
        %v2550 = vunpack.c.h.b16 %v2476
        %v2551 = vunpack.c.l.b16 %v2477
        %v2552 = vunpack.c.h.b16 %v2477
        %v2553 = vunpack.c.l.b16 %v2478
        %v2554 = vunpack.c.h.b16 %v2478
        %v2555 = vunpack.c.l.b16 %v2479
        %v2556 = vunpack.c.h.b16 %v2479
        %v2557 = vunpack.c.l.b16 %v2480
        %v2558 = vunpack.c.h.b16 %v2480
        %v2559 = vunpack.c.l.b16 %v2481
        %v2560 = vunpack.c.h.b16 %v2481
        %v2561 = vunpack.c.l.b16 %v2482
        %v2562 = vunpack.c.h.b16 %v2482
        %v2563 = vunpack.c.l.b16 %v2483
        %v2564 = vunpack.c.h.b16 %v2483
        %v2565 = vunpack.c.l.b16 %v2484
        %v2566 = vunpack.c.h.b16 %v2484
        %v2567 = vunpack.c.l.b16 %v2485
        %v2568 = vunpack.c.h.b16 %v2485
        %v2569 = vunpack.c.l.b16 %v2486
        %v2570 = vunpack.c.h.b16 %v2486
        %v2571 = vunpack.c.l.b16 %v2487
        %v2572 = vunpack.c.h.b16 %v2487
        %v2573 = vunpack.c.l.b16 %v2488
        %v2574 = vunpack.c.h.b16 %v2488
        %v2575 = vunpack.c.l.b16 %v2489
        %v2576 = vunpack.c.h.b16 %v2489
        %v2577 = vunpack.c.l.b16 %v2490
        %v2578 = vunpack.c.h.b16 %v2490
        %v2579 = vunpack.c.l.b16 %v2491
        %v2580 = vunpack.c.h.b16 %v2491
        %v2581 = vunpack.c.l.b16 %v2492
        %v2582 = vunpack.c.h.b16 %v2492
        %v2583 = vunpack.c.l.b16 %v2493
        %v2584 = vunpack.c.h.b16 %v2493
        %v2585 = vunpack.c.l.b16 %v2494
        %v2586 = vunpack.c.h.b16 %v2494
        %v2587 = vunpack.c.l.b16 %v2495
        %v2588 = vunpack.c.h.b16 %v2495
        %v2589 = vunpack.c.l.b16 %v2496
        %v2590 = vunpack.c.h.b16 %v2496
        %v2591 = vunpack.c.l.b16 %v2497
        %v2592 = vunpack.c.h.b16 %v2497
        %v2593 = vunpack.c.l.b16 %v2498
        %v2594 = vunpack.c.h.b16 %v2498
        %v2595 = vunpack.c.l.b16 %v2499
        %v2596 = vunpack.c.h.b16 %v2499
        %v2597 = vunpack.c.l.b16 %v2500
        %v2598 = vunpack.c.h.b16 %v2500
        %v2599 = vunpack.c.l.b16 %v2501
        %v2600 = vunpack.c.h.b16 %v2501
        %v2601 = vunpack.c.l.b16 %v2502
        %v2602 = vunpack.c.h.b16 %v2502
        %v2603 = vunpack.c.l.b16 %v2503
        %v2604 = vunpack.c.h.b16 %v2503
        %v2605 = vunpack.c.l.b16 %v2504
        %v2606 = vunpack.c.h.b16 %v2504
        %v2607 = vunpack.c.l.b16 %v2505
        %v2608 = vunpack.c.h.b16 %v2505
        %v2609 = vunpack.c.l.b16 %v2506
        %v2610 = vunpack.c.h.b16 %v2506
        %v2611 = vunpack.c.l.b16 %v2507
        %v2612 = vunpack.c.h.b16 %v2507
        %v2613 = vunpack.c.l.b16 %v2508
        %v2614 = vunpack.c.h.b16 %v2508
        %v2615 = vunpack.c.l.b16 %v2509
        %v2616 = vunpack.c.h.b16 %v2509
        %v2617 = vunpack.c.l.b16 %v2510
        %v2618 = vunpack.c.h.b16 %v2510
        %v2619 = vpack.c.b16 %v2549, %v2547
        %v2620 = vpack.c.b16 %v2550, %v2548
        %v2621 = vpack.c.b16 %v2553, %v2551
        %v2622 = vpack.c.b16 %v2554, %v2552
        %v2623 = vpack.c.b16 %v2557, %v2555
        %v2624 = vpack.c.b16 %v2558, %v2556
        %v2625 = vpack.c.b16 %v2561, %v2559
        %v2626 = vpack.c.b16 %v2562, %v2560
        %v2627 = vpack.c.b16 %v2565, %v2563
        %v2628 = vpack.c.b16 %v2566, %v2564
        %v2629 = vpack.c.b16 %v2569, %v2567
        %v2630 = vpack.c.b16 %v2570, %v2568
        %v2631 = vpack.c.b16 %v2573, %v2571
        %v2632 = vpack.c.b16 %v2574, %v2572
        %v2633 = vpack.c.b16 %v2577, %v2575
        %v2634 = vpack.c.b16 %v2578, %v2576
        %v2635 = vpack.c.b16 %v2581, %v2579
        %v2636 = vpack.c.b16 %v2582, %v2580
        %v2637 = vpack.c.b16 %v2585, %v2583
        %v2638 = vpack.c.b16 %v2586, %v2584
        %v2639 = vpack.c.b16 %v2589, %v2587
        %v2640 = vpack.c.b16 %v2590, %v2588
        %v2641 = vpack.c.b16 %v2593, %v2591
        %v2642 = vpack.c.b16 %v2594, %v2592
        %v2643 = vpack.c.b16 %v2597, %v2595
        %v2644 = vpack.c.b16 %v2598, %v2596
        %v2645 = vpack.c.b16 %v2601, %v2599
        %v2646 = vpack.c.b16 %v2602, %v2600
        %v2647 = vpack.c.b16 %v2605, %v2603
        %v2648 = vpack.c.b16 %v2606, %v2604
        %v2649 = vpack.c.b16 %v2609, %v2607
        %v2650 = vpack.c.b16 %v2610, %v2608
        %v2651 = vpack.c.b16 %v2613, %v2611
        %v2652 = vpack.c.b16 %v2614, %v2612
        %v2653 = vpack.c.b16 %v2617, %v2615
        %v2654 = vpack.c.b16 %v2618, %v2616
        %2691 = vmatprep.subr.bf16.mxu0 %v2620
        %2692 = vmatpush1.bf16.msra.mxu0 %v2619
        %2693 = vmatprep.subr.bf16.mxu0 %v2622
        %2694 = vmatpush1.bf16.msra.mxu0 %v2621
        %2695 = vmatprep.subr.bf16.mxu0 %v2624
        %2696 = vmatpush1.bf16.msra.mxu0 %v2623
        %2697 = vmatprep.subr.bf16.mxu0 %v2626
        %2698 = vmatpush1.bf16.msra.mxu0 %v2625
        %2699 = vmatprep.subr.bf16.mxu0 %v2628
        %2700 = vmatpush1.bf16.msra.mxu0 %v2627
        %2701 = vmatprep.subr.bf16.mxu0 %v2630
        %2702 = vmatpush1.bf16.msra.mxu0 %v2629
        %2703 = vmatprep.subr.bf16.mxu0 %v2632
        %2704 = vmatpush1.bf16.msra.mxu0 %v2631
        %2705 = vmatprep.subr.bf16.mxu0 %v2634
        %2706 = vmatpush1.bf16.msra.mxu0 %v2633
        %2707 = vmatprep.subr.bf16.mxu0 %v2636
        %2708 = vmatpush1.bf16.msra.mxu0 %v2635
        %2709 = vmatprep.subr.bf16.mxu0 %v2638
        %2710 = vmatpush1.bf16.msra.mxu0 %v2637
        %2711 = vmatprep.subr.bf16.mxu0 %v2640
        %2712 = vmatpush1.bf16.msra.mxu0 %v2639
        %2713 = vmatprep.subr.bf16.mxu0 %v2642
        %2714 = vmatpush1.bf16.msra.mxu0 %v2641
        %2715 = vmatprep.subr.bf16.mxu0 %v2644
        %2716 = vmatpush1.bf16.msra.mxu0 %v2643
        %2717 = vmatprep.subr.bf16.mxu0 %v2646
        %2718 = vmatpush1.bf16.msra.mxu0 %v2645
        %2719 = vmatprep.subr.bf16.mxu0 %v2648
        %2720 = vmatpush1.bf16.msra.mxu0 %v2647
        %2721 = vmatprep.subr.bf16.mxu0 %v2650
        %2722 = vmatpush1.bf16.msra.mxu0 %v2649
        %2723 = vmatprep.mubr.bf16.mxu0 %v918
        %2724 = vmatmul.mubr.bf16.gmra.mrb[0].mxu0 %v911
        %v2725 = vpop.f32.mrb[0].mxu0
        %v2726 = vadd.f32 0.0, %v2725
        %v2727 = vpop.f32.mrb[0].mxu0
        %v2728 = vadd.f32 0.0, %v2727
        %v2729 = vpop.f32.mrb[0].mxu0
        %v2730 = vpop.f32.mrb[0].mxu0
        %2731 = vdwg.mxu0
        %2732 = vmatprep.subr.bf16.mxu0 %v2652
        %2733 = vmatpush1.bf16.msra.mxu0 %v2651
        %2734 = vmatprep.subr.bf16.mxu0 %v2654
        %2735 = vmatpush1.bf16.msra.mxu0 %v2653
        %2736 = vmatprep.subr.bf16.mxu0 0
        %2737 = vmatpush1.bf16.msra.mxu0 0
        %2738 = vmatprep.subr.bf16.mxu0 0
        %2739 = vmatpush1.bf16.msra.mxu0 0
        %2740 = vmatprep.subr.bf16.mxu0 0
        %2741 = vmatpush1.bf16.msra.mxu0 0
        %2742 = vmatprep.subr.bf16.mxu0 0
        %2743 = vmatpush1.bf16.msra.mxu0 0
        %2744 = vmatprep.subr.bf16.mxu0 0
        %2745 = vmatpush1.bf16.msra.mxu0 0
        %2746 = vmatprep.subr.bf16.mxu0 0
        %2747 = vmatpush1.bf16.msra.mxu0 0
        %2748 = vmatprep.subr.bf16.mxu0 0
        %2749 = vmatpush1.bf16.msra.mxu0 0
        %2750 = vmatprep.subr.bf16.mxu0 0
        %2751 = vmatpush1.bf16.msra.mxu0 0
        %2752 = vmatprep.subr.bf16.mxu0 0
        %2753 = vmatpush1.bf16.msra.mxu0 0
        %2754 = vmatprep.subr.bf16.mxu0 0
        %2755 = vmatpush1.bf16.msra.mxu0 0
        %2756 = vmatprep.subr.bf16.mxu0 0
        %2757 = vmatpush1.bf16.msra.mxu0 0
        %2758 = vmatprep.subr.bf16.mxu0 0
        %2759 = vmatpush1.bf16.msra.mxu0 0
        %2760 = vmatprep.subr.bf16.mxu0 0
        %2761 = vmatpush1.bf16.msra.mxu0 0
        %2762 = vmatprep.subr.bf16.mxu0 0
        %2763 = vmatpush1.bf16.msra.mxu0 0
        %2764 = vmatprep.mubr.bf16.mxu0 0
        %2765 = vmatmul.mubr.bf16.gmra.mrb[0].mxu0 %v1108
        %v2766 = vpop.f32.mrb[0].mxu0
        %v2767 = vadd.f32 %v2726, %v2766
        %v2768 = vpop.f32.mrb[0].mxu0
        %v2769 = vadd.f32 %v2728, %v2768
        %v2770 = vpop.f32.mrb[0].mxu0
        %v2771 = vpop.f32.mrb[0].mxu0
        %2772 = vdwg.mxu0
        %v2773 = vadd.f32 %v2468, %v2767
        %v2774 = vadd.f32 %v2470, %v2769
        %s2775 = scalar_lea.vmem [#allocation2], 2016
        %v2776 = vld [vmem:[%s2775] sm:$0xff]
        %v2777 = vld [vmem:[%s2775 + $0x8] sm:$0xff]
        %v2778 = vld [vmem:[%s2775 + $0x10] sm:$0xff]
        %v2779 = vld [vmem:[%s2775 + $0x18] sm:$0xff]
        %v2780 = vld [vmem:[%s2775 + $0x20] sm:$0xff]
        %v2781 = vld [vmem:[%s2775 + $0x28] sm:$0xff]
        %v2782 = vld [vmem:[%s2775 + $0x30] sm:$0xff]
        %v2783 = vld [vmem:[%s2775 + $0x38] sm:$0xff]
        %v2784 = vld [vmem:[%s2775 + $0x40] sm:$0xff]
        %v2785 = vld [vmem:[%s2775 + $0x48] sm:$0xff]
        %v2786 = vld [vmem:[%s2775 + $0x50] sm:$0xff]
        %v2787 = vld [vmem:[%s2775 + $0x58] sm:$0xff]
        %v2788 = vld [vmem:[%s2775 + $0x60] sm:$0xff]
        %v2789 = vld [vmem:[%s2775 + $0x68] sm:$0xff]
        %v2790 = vld [vmem:[%s2775 + $0x70] sm:$0xff]
        %v2791 = vld [vmem:[%s2775 + $0x78] sm:$0xff]
        %v2792 = vld [vmem:[%s2775 + $0x80] sm:$0xff]
        %v2793 = vld [vmem:[%s2775 + $0x88] sm:$0xff]
        %v2794 = vld [vmem:[%s2775 + $0x90] sm:$0xff]
        %v2795 = vld [vmem:[%s2775 + $0x98] sm:$0xff]
        %v2796 = vld [vmem:[%s2775 + $0xa0] sm:$0xff]
        %v2797 = vld [vmem:[%s2775 + $0xa8] sm:$0xff]
        %v2798 = vld [vmem:[%s2775 + $0xb0] sm:$0xff]
        %v2799 = vld [vmem:[%s2775 + $0xb8] sm:$0xff]
        %v2800 = vld [vmem:[%s2775 + $0xc0] sm:$0xff]
        %v2801 = vld [vmem:[%s2775 + $0xc8] sm:$0xff]
        %v2802 = vld [vmem:[%s2775 + $0xd0] sm:$0xff]
        %v2803 = vld [vmem:[%s2775 + $0xd8] sm:$0xff]
        %v2804 = vld [vmem:[%s2775 + $0xe0] sm:$0xff]
        %v2805 = vld [vmem:[%s2775 + $0xe8] sm:$0xff]
        %v2806 = vld [vmem:[%s2775 + $0xf0] sm:$0xff]
        %v2807 = vld [vmem:[%s2775 + $0xf8] sm:$0xff]
        %v2808 = vld [vmem:[%s2775 + $0x100] sm:$0xff]
        %v2809 = vld [vmem:[%s2775 + $0x108] sm:$0xff]
        %v2810 = vld [vmem:[%s2775 + $0x110] sm:$0xff]
        %v2811 = vld [vmem:[%s2775 + $0x118] sm:$0xff]
        %v2848 = vunpack.c.l.b16 %v2776
        %v2849 = vunpack.c.h.b16 %v2776
        %v2850 = vunpack.c.l.b16 %v2777
        %v2851 = vunpack.c.h.b16 %v2777
        %v2852 = vunpack.c.l.b16 %v2778
        %v2853 = vunpack.c.h.b16 %v2778
        %v2854 = vunpack.c.l.b16 %v2779
        %v2855 = vunpack.c.h.b16 %v2779
        %v2856 = vunpack.c.l.b16 %v2780
        %v2857 = vunpack.c.h.b16 %v2780
        %v2858 = vunpack.c.l.b16 %v2781
        %v2859 = vunpack.c.h.b16 %v2781
        %v2860 = vunpack.c.l.b16 %v2782
        %v2861 = vunpack.c.h.b16 %v2782
        %v2862 = vunpack.c.l.b16 %v2783
        %v2863 = vunpack.c.h.b16 %v2783
        %v2864 = vunpack.c.l.b16 %v2784
        %v2865 = vunpack.c.h.b16 %v2784
        %v2866 = vunpack.c.l.b16 %v2785
        %v2867 = vunpack.c.h.b16 %v2785
        %v2868 = vunpack.c.l.b16 %v2786
        %v2869 = vunpack.c.h.b16 %v2786
        %v2870 = vunpack.c.l.b16 %v2787
        %v2871 = vunpack.c.h.b16 %v2787
        %v2872 = vunpack.c.l.b16 %v2788
        %v2873 = vunpack.c.h.b16 %v2788
        %v2874 = vunpack.c.l.b16 %v2789
        %v2875 = vunpack.c.h.b16 %v2789
        %v2876 = vunpack.c.l.b16 %v2790
        %v2877 = vunpack.c.h.b16 %v2790
        %v2878 = vunpack.c.l.b16 %v2791
        %v2879 = vunpack.c.h.b16 %v2791
        %v2880 = vunpack.c.l.b16 %v2792
        %v2881 = vunpack.c.h.b16 %v2792
        %v2882 = vunpack.c.l.b16 %v2793
        %v2883 = vunpack.c.h.b16 %v2793
        %v2884 = vunpack.c.l.b16 %v2794
        %v2885 = vunpack.c.h.b16 %v2794
        %v2886 = vunpack.c.l.b16 %v2795
        %v2887 = vunpack.c.h.b16 %v2795
        %v2888 = vunpack.c.l.b16 %v2796
        %v2889 = vunpack.c.h.b16 %v2796
        %v2890 = vunpack.c.l.b16 %v2797
        %v2891 = vunpack.c.h.b16 %v2797
        %v2892 = vunpack.c.l.b16 %v2798
        %v2893 = vunpack.c.h.b16 %v2798
        %v2894 = vunpack.c.l.b16 %v2799
        %v2895 = vunpack.c.h.b16 %v2799
        %v2896 = vunpack.c.l.b16 %v2800
        %v2897 = vunpack.c.h.b16 %v2800
        %v2898 = vunpack.c.l.b16 %v2801
        %v2899 = vunpack.c.h.b16 %v2801
        %v2900 = vunpack.c.l.b16 %v2802
        %v2901 = vunpack.c.h.b16 %v2802
        %v2902 = vunpack.c.l.b16 %v2803
        %v2903 = vunpack.c.h.b16 %v2803
        %v2904 = vunpack.c.l.b16 %v2804
        %v2905 = vunpack.c.h.b16 %v2804
        %v2906 = vunpack.c.l.b16 %v2805
        %v2907 = vunpack.c.h.b16 %v2805
        %v2908 = vunpack.c.l.b16 %v2806
        %v2909 = vunpack.c.h.b16 %v2806
        %v2910 = vunpack.c.l.b16 %v2807
        %v2911 = vunpack.c.h.b16 %v2807
        %v2912 = vunpack.c.l.b16 %v2808
        %v2913 = vunpack.c.h.b16 %v2808
        %v2914 = vunpack.c.l.b16 %v2809
        %v2915 = vunpack.c.h.b16 %v2809
        %v2916 = vunpack.c.l.b16 %v2810
        %v2917 = vunpack.c.h.b16 %v2810
        %v2918 = vunpack.c.l.b16 %v2811
        %v2919 = vunpack.c.h.b16 %v2811
        %v2920 = vpack.c.b16 %v2850, %v2848
        %v2921 = vpack.c.b16 %v2851, %v2849
        %v2922 = vpack.c.b16 %v2854, %v2852
        %v2923 = vpack.c.b16 %v2855, %v2853
        %v2924 = vpack.c.b16 %v2858, %v2856
        %v2925 = vpack.c.b16 %v2859, %v2857
        %v2926 = vpack.c.b16 %v2862, %v2860
        %v2927 = vpack.c.b16 %v2863, %v2861
        %v2928 = vpack.c.b16 %v2866, %v2864
        %v2929 = vpack.c.b16 %v2867, %v2865
        %v2930 = vpack.c.b16 %v2870, %v2868
        %v2931 = vpack.c.b16 %v2871, %v2869
        %v2932 = vpack.c.b16 %v2874, %v2872
        %v2933 = vpack.c.b16 %v2875, %v2873
        %v2934 = vpack.c.b16 %v2878, %v2876
        %v2935 = vpack.c.b16 %v2879, %v2877
        %v2936 = vpack.c.b16 %v2882, %v2880
        %v2937 = vpack.c.b16 %v2883, %v2881
        %v2938 = vpack.c.b16 %v2886, %v2884
        %v2939 = vpack.c.b16 %v2887, %v2885
        %v2940 = vpack.c.b16 %v2890, %v2888
        %v2941 = vpack.c.b16 %v2891, %v2889
        %v2942 = vpack.c.b16 %v2894, %v2892
        %v2943 = vpack.c.b16 %v2895, %v2893
        %v2944 = vpack.c.b16 %v2898, %v2896
        %v2945 = vpack.c.b16 %v2899, %v2897
        %v2946 = vpack.c.b16 %v2902, %v2900
        %v2947 = vpack.c.b16 %v2903, %v2901
        %v2948 = vpack.c.b16 %v2906, %v2904
        %v2949 = vpack.c.b16 %v2907, %v2905
        %v2950 = vpack.c.b16 %v2910, %v2908
        %v2951 = vpack.c.b16 %v2911, %v2909
        %v2952 = vpack.c.b16 %v2914, %v2912
        %v2953 = vpack.c.b16 %v2915, %v2913
        %v2954 = vpack.c.b16 %v2918, %v2916
        %v2955 = vpack.c.b16 %v2919, %v2917
        %2992 = vmatprep.subr.bf16.mxu0 %v2921
        %2993 = vmatpush1.bf16.msra.mxu0 %v2920
        %2994 = vmatprep.subr.bf16.mxu0 %v2923
        %2995 = vmatpush1.bf16.msra.mxu0 %v2922
        %2996 = vmatprep.subr.bf16.mxu0 %v2925
        %2997 = vmatpush1.bf16.msra.mxu0 %v2924
        %2998 = vmatprep.subr.bf16.mxu0 %v2927
        %2999 = vmatpush1.bf16.msra.mxu0 %v2926
        %3000 = vmatprep.subr.bf16.mxu0 %v2929
        %3001 = vmatpush1.bf16.msra.mxu0 %v2928
        %3002 = vmatprep.subr.bf16.mxu0 %v2931
        %3003 = vmatpush1.bf16.msra.mxu0 %v2930
        %3004 = vmatprep.subr.bf16.mxu0 %v2933
        %3005 = vmatpush1.bf16.msra.mxu0 %v2932
        %3006 = vmatprep.subr.bf16.mxu0 %v2935
        %3007 = vmatpush1.bf16.msra.mxu0 %v2934
        %3008 = vmatprep.subr.bf16.mxu0 %v2937
        %3009 = vmatpush1.bf16.msra.mxu0 %v2936
        %3010 = vmatprep.subr.bf16.mxu0 %v2939
        %3011 = vmatpush1.bf16.msra.mxu0 %v2938
        %3012 = vmatprep.subr.bf16.mxu0 %v2941
        %3013 = vmatpush1.bf16.msra.mxu0 %v2940
        %3014 = vmatprep.subr.bf16.mxu0 %v2943
        %3015 = vmatpush1.bf16.msra.mxu0 %v2942
        %3016 = vmatprep.subr.bf16.mxu0 %v2945
        %3017 = vmatpush1.bf16.msra.mxu0 %v2944
        %3018 = vmatprep.subr.bf16.mxu0 %v2947
        %3019 = vmatpush1.bf16.msra.mxu0 %v2946
        %3020 = vmatprep.subr.bf16.mxu0 %v2949
        %3021 = vmatpush1.bf16.msra.mxu0 %v2948
        %3022 = vmatprep.subr.bf16.mxu0 %v2951
        %3023 = vmatpush1.bf16.msra.mxu0 %v2950
        %3024 = vmatprep.mubr.bf16.mxu0 %v1244
        %3025 = vmatmul.mubr.bf16.gmra.mrb[0].mxu0 %v1237
        %v3026 = vpop.f32.mrb[0].mxu0
        %v3027 = vadd.f32 0.0, %v3026
        %v3028 = vpop.f32.mrb[0].mxu0
        %v3029 = vadd.f32 0.0, %v3028
        %v3030 = vpop.f32.mrb[0].mxu0
        %v3031 = vpop.f32.mrb[0].mxu0
        %3032 = vdwg.mxu0
        %3033 = vmatprep.subr.bf16.mxu0 %v2953
        %3034 = vmatpush1.bf16.msra.mxu0 %v2952
        %3035 = vmatprep.subr.bf16.mxu0 %v2955
        %3036 = vmatpush1.bf16.msra.mxu0 %v2954
        %3037 = vmatprep.subr.bf16.mxu0 0
        %3038 = vmatpush1.bf16.msra.mxu0 0
        %3039 = vmatprep.subr.bf16.mxu0 0
        %3040 = vmatpush1.bf16.msra.mxu0 0
        %3041 = vmatprep.subr.bf16.mxu0 0
        %3042 = vmatpush1.bf16.msra.mxu0 0
        %3043 = vmatprep.subr.bf16.mxu0 0
        %3044 = vmatpush1.bf16.msra.mxu0 0
        %3045 = vmatprep.subr.bf16.mxu0 0
        %3046 = vmatpush1.bf16.msra.mxu0 0
        %3047 = vmatprep.subr.bf16.mxu0 0
        %3048 = vmatpush1.bf16.msra.mxu0 0
        %3049 = vmatprep.subr.bf16.mxu0 0
        %3050 = vmatpush1.bf16.msra.mxu0 0
        %3051 = vmatprep.subr.bf16.mxu0 0
        %3052 = vmatpush1.bf16.msra.mxu0 0
        %3053 = vmatprep.subr.bf16.mxu0 0
        %3054 = vmatpush1.bf16.msra.mxu0 0
        %3055 = vmatprep.subr.bf16.mxu0 0
        %3056 = vmatpush1.bf16.msra.mxu0 0
        %3057 = vmatprep.subr.bf16.mxu0 0
        %3058 = vmatpush1.bf16.msra.mxu0 0
        %3059 = vmatprep.subr.bf16.mxu0 0
        %3060 = vmatpush1.bf16.msra.mxu0 0
        %3061 = vmatprep.subr.bf16.mxu0 0
        %3062 = vmatpush1.bf16.msra.mxu0 0
        %3063 = vmatprep.subr.bf16.mxu0 0
        %3064 = vmatpush1.bf16.msra.mxu0 0
        %3065 = vmatprep.mubr.bf16.mxu0 0
        %3066 = vmatmul.mubr.bf16.gmra.mrb[0].mxu0 %v1434
        %v3067 = vpop.f32.mrb[0].mxu0
        %v3068 = vadd.f32 %v3027, %v3067
        %v3069 = vpop.f32.mrb[0].mxu0
        %v3070 = vadd.f32 %v3029, %v3069
        %v3071 = vpop.f32.mrb[0].mxu0
        %v3072 = vpop.f32.mrb[0].mxu0
        %3073 = vdwg.mxu0
        %v3074 = vadd.f32 %v2773, %v3068
        %v3075 = vadd.f32 %v2774, %v3070
        %s3076 = scalar_lea.vmem [#allocation2], 2592
        %v3077 = vld [vmem:[%s3076] sm:$0xff]
        %v3078 = vld [vmem:[%s3076 + $0x8] sm:$0xff]
        %v3079 = vld [vmem:[%s3076 + $0x10] sm:$0xff]
        %v3080 = vld [vmem:[%s3076 + $0x18] sm:$0xff]
        %v3081 = vld [vmem:[%s3076 + $0x20] sm:$0xff]
        %v3082 = vld [vmem:[%s3076 + $0x28] sm:$0xff]
        %v3083 = vld [vmem:[%s3076 + $0x30] sm:$0xff]
        %v3084 = vld [vmem:[%s3076 + $0x38] sm:$0xff]
        %v3085 = vld [vmem:[%s3076 + $0x40] sm:$0xff]
        %v3086 = vld [vmem:[%s3076 + $0x48] sm:$0xff]
        %v3087 = vld [vmem:[%s3076 + $0x50] sm:$0xff]
        %v3088 = vld [vmem:[%s3076 + $0x58] sm:$0xff]
        %v3089 = vld [vmem:[%s3076 + $0x60] sm:$0xff]
        %v3090 = vld [vmem:[%s3076 + $0x68] sm:$0xff]
        %v3091 = vld [vmem:[%s3076 + $0x70] sm:$0xff]
        %v3092 = vld [vmem:[%s3076 + $0x78] sm:$0xff]
        %v3093 = vld [vmem:[%s3076 + $0x80] sm:$0xff]
        %v3094 = vld [vmem:[%s3076 + $0x88] sm:$0xff]
        %v3095 = vld [vmem:[%s3076 + $0x90] sm:$0xff]
        %v3096 = vld [vmem:[%s3076 + $0x98] sm:$0xff]
        %v3097 = vld [vmem:[%s3076 + $0xa0] sm:$0xff]
        %v3098 = vld [vmem:[%s3076 + $0xa8] sm:$0xff]
        %v3099 = vld [vmem:[%s3076 + $0xb0] sm:$0xff]
        %v3100 = vld [vmem:[%s3076 + $0xb8] sm:$0xff]
        %v3101 = vld [vmem:[%s3076 + $0xc0] sm:$0xff]
        %v3102 = vld [vmem:[%s3076 + $0xc8] sm:$0xff]
        %v3103 = vld [vmem:[%s3076 + $0xd0] sm:$0xff]
        %v3104 = vld [vmem:[%s3076 + $0xd8] sm:$0xff]
        %v3105 = vld [vmem:[%s3076 + $0xe0] sm:$0xff]
        %v3106 = vld [vmem:[%s3076 + $0xe8] sm:$0xff]
        %v3107 = vld [vmem:[%s3076 + $0xf0] sm:$0xff]
        %v3108 = vld [vmem:[%s3076 + $0xf8] sm:$0xff]
        %v3109 = vld [vmem:[%s3076 + $0x100] sm:$0xff]
        %v3110 = vld [vmem:[%s3076 + $0x108] sm:$0xff]
        %v3111 = vld [vmem:[%s3076 + $0x110] sm:$0xff]
        %v3112 = vld [vmem:[%s3076 + $0x118] sm:$0xff]
        %v3149 = vunpack.c.l.b16 %v3077
        %v3150 = vunpack.c.h.b16 %v3077
        %v3151 = vunpack.c.l.b16 %v3078
        %v3152 = vunpack.c.h.b16 %v3078
        %v3153 = vunpack.c.l.b16 %v3079
        %v3154 = vunpack.c.h.b16 %v3079
        %v3155 = vunpack.c.l.b16 %v3080
        %v3156 = vunpack.c.h.b16 %v3080
        %v3157 = vunpack.c.l.b16 %v3081
        %v3158 = vunpack.c.h.b16 %v3081
        %v3159 = vunpack.c.l.b16 %v3082
        %v3160 = vunpack.c.h.b16 %v3082
        %v3161 = vunpack.c.l.b16 %v3083
        %v3162 = vunpack.c.h.b16 %v3083
        %v3163 = vunpack.c.l.b16 %v3084
        %v3164 = vunpack.c.h.b16 %v3084
        %v3165 = vunpack.c.l.b16 %v3085
        %v3166 = vunpack.c.h.b16 %v3085
        %v3167 = vunpack.c.l.b16 %v3086
        %v3168 = vunpack.c.h.b16 %v3086
        %v3169 = vunpack.c.l.b16 %v3087
        %v3170 = vunpack.c.h.b16 %v3087
        %v3171 = vunpack.c.l.b16 %v3088
        %v3172 = vunpack.c.h.b16 %v3088
        %v3173 = vunpack.c.l.b16 %v3089
        %v3174 = vunpack.c.h.b16 %v3089
        %v3175 = vunpack.c.l.b16 %v3090
        %v3176 = vunpack.c.h.b16 %v3090
        %v3177 = vunpack.c.l.b16 %v3091
        %v3178 = vunpack.c.h.b16 %v3091
        %v3179 = vunpack.c.l.b16 %v3092
        %v3180 = vunpack.c.h.b16 %v3092
        %v3181 = vunpack.c.l.b16 %v3093
        %v3182 = vunpack.c.h.b16 %v3093
        %v3183 = vunpack.c.l.b16 %v3094
        %v3184 = vunpack.c.h.b16 %v3094
        %v3185 = vunpack.c.l.b16 %v3095
        %v3186 = vunpack.c.h.b16 %v3095
        %v3187 = vunpack.c.l.b16 %v3096
        %v3188 = vunpack.c.h.b16 %v3096
        %v3189 = vunpack.c.l.b16 %v3097
        %v3190 = vunpack.c.h.b16 %v3097
        %v3191 = vunpack.c.l.b16 %v3098
        %v3192 = vunpack.c.h.b16 %v3098
        %v3193 = vunpack.c.l.b16 %v3099
        %v3194 = vunpack.c.h.b16 %v3099
        %v3195 = vunpack.c.l.b16 %v3100
        %v3196 = vunpack.c.h.b16 %v3100
        %v3197 = vunpack.c.l.b16 %v3101
        %v3198 = vunpack.c.h.b16 %v3101
        %v3199 = vunpack.c.l.b16 %v3102
        %v3200 = vunpack.c.h.b16 %v3102
        %v3201 = vunpack.c.l.b16 %v3103
        %v3202 = vunpack.c.h.b16 %v3103
        %v3203 = vunpack.c.l.b16 %v3104
        %v3204 = vunpack.c.h.b16 %v3104
        %v3205 = vunpack.c.l.b16 %v3105
        %v3206 = vunpack.c.h.b16 %v3105
        %v3207 = vunpack.c.l.b16 %v3106
        %v3208 = vunpack.c.h.b16 %v3106
        %v3209 = vunpack.c.l.b16 %v3107
        %v3210 = vunpack.c.h.b16 %v3107
        %v3211 = vunpack.c.l.b16 %v3108
        %v3212 = vunpack.c.h.b16 %v3108
        %v3213 = vunpack.c.l.b16 %v3109
        %v3214 = vunpack.c.h.b16 %v3109
        %v3215 = vunpack.c.l.b16 %v3110
        %v3216 = vunpack.c.h.b16 %v3110
        %v3217 = vunpack.c.l.b16 %v3111
        %v3218 = vunpack.c.h.b16 %v3111
        %v3219 = vunpack.c.l.b16 %v3112
        %v3220 = vunpack.c.h.b16 %v3112
        %v3221 = vpack.c.b16 %v3151, %v3149
        %v3222 = vpack.c.b16 %v3152, %v3150
        %v3223 = vpack.c.b16 %v3155, %v3153
        %v3224 = vpack.c.b16 %v3156, %v3154
        %v3225 = vpack.c.b16 %v3159, %v3157
        %v3226 = vpack.c.b16 %v3160, %v3158
        %v3227 = vpack.c.b16 %v3163, %v3161
        %v3228 = vpack.c.b16 %v3164, %v3162
        %v3229 = vpack.c.b16 %v3167, %v3165
        %v3230 = vpack.c.b16 %v3168, %v3166
        %v3231 = vpack.c.b16 %v3171, %v3169
        %v3232 = vpack.c.b16 %v3172, %v3170
        %v3233 = vpack.c.b16 %v3175, %v3173
        %v3234 = vpack.c.b16 %v3176, %v3174
        %v3235 = vpack.c.b16 %v3179, %v3177
        %v3236 = vpack.c.b16 %v3180, %v3178
        %v3237 = vpack.c.b16 %v3183, %v3181
        %v3238 = vpack.c.b16 %v3184, %v3182
        %v3239 = vpack.c.b16 %v3187, %v3185
        %v3240 = vpack.c.b16 %v3188, %v3186
        %v3241 = vpack.c.b16 %v3191, %v3189
        %v3242 = vpack.c.b16 %v3192, %v3190
        %v3243 = vpack.c.b16 %v3195, %v3193
        %v3244 = vpack.c.b16 %v3196, %v3194
        %v3245 = vpack.c.b16 %v3199, %v3197
        %v3246 = vpack.c.b16 %v3200, %v3198
        %v3247 = vpack.c.b16 %v3203, %v3201
        %v3248 = vpack.c.b16 %v3204, %v3202
        %v3249 = vpack.c.b16 %v3207, %v3205
        %v3250 = vpack.c.b16 %v3208, %v3206
        %v3251 = vpack.c.b16 %v3211, %v3209
        %v3252 = vpack.c.b16 %v3212, %v3210
        %v3253 = vpack.c.b16 %v3215, %v3213
        %v3254 = vpack.c.b16 %v3216, %v3214
        %v3255 = vpack.c.b16 %v3219, %v3217
        %v3256 = vpack.c.b16 %v3220, %v3218
        %3293 = vmatprep.subr.bf16.mxu0 %v3222
        %3294 = vmatpush1.bf16.msra.mxu0 %v3221
        %3295 = vmatprep.subr.bf16.mxu0 %v3224
        %3296 = vmatpush1.bf16.msra.mxu0 %v3223
        %3297 = vmatprep.subr.bf16.mxu0 %v3226
        %3298 = vmatpush1.bf16.msra.mxu0 %v3225
        %3299 = vmatprep.subr.bf16.mxu0 %v3228
        %3300 = vmatpush1.bf16.msra.mxu0 %v3227
        %3301 = vmatprep.subr.bf16.mxu0 %v3230
        %3302 = vmatpush1.bf16.msra.mxu0 %v3229
        %3303 = vmatprep.subr.bf16.mxu0 %v3232
        %3304 = vmatpush1.bf16.msra.mxu0 %v3231
        %3305 = vmatprep.subr.bf16.mxu0 %v3234
        %3306 = vmatpush1.bf16.msra.mxu0 %v3233
        %3307 = vmatprep.subr.bf16.mxu0 %v3236
        %3308 = vmatpush1.bf16.msra.mxu0 %v3235
        %3309 = vmatprep.subr.bf16.mxu0 %v3238
        %3310 = vmatpush1.bf16.msra.mxu0 %v3237
        %3311 = vmatprep.subr.bf16.mxu0 %v3240
        %3312 = vmatpush1.bf16.msra.mxu0 %v3239
        %3313 = vmatprep.subr.bf16.mxu0 %v3242
        %3314 = vmatpush1.bf16.msra.mxu0 %v3241
        %3315 = vmatprep.subr.bf16.mxu0 %v3244
        %3316 = vmatpush1.bf16.msra.mxu0 %v3243
        %3317 = vmatprep.subr.bf16.mxu0 %v3246
        %3318 = vmatpush1.bf16.msra.mxu0 %v3245
        %3319 = vmatprep.subr.bf16.mxu0 %v3248
        %3320 = vmatpush1.bf16.msra.mxu0 %v3247
        %3321 = vmatprep.subr.bf16.mxu0 %v3250
        %3322 = vmatpush1.bf16.msra.mxu0 %v3249
        %3323 = vmatprep.subr.bf16.mxu0 %v3252
        %3324 = vmatpush1.bf16.msra.mxu0 %v3251
        %3325 = vmatprep.mubr.bf16.mxu0 %v1575
        %3326 = vmatmul.mubr.bf16.gmra.mrb[0].mxu0 %v1574
        %v3327 = vpop.f32.mrb[0].mxu0
        %v3328 = vadd.f32 0.0, %v3327
        %v3329 = vpop.f32.mrb[0].mxu0
        %v3330 = vadd.f32 0.0, %v3329
        %v3331 = vpop.f32.mrb[0].mxu0
        %v3332 = vpop.f32.mrb[0].mxu0
        %3333 = vdwg.mxu0
        %3334 = vmatprep.subr.bf16.mxu0 %v3254
        %3335 = vmatpush1.bf16.msra.mxu0 %v3253
        %3336 = vmatprep.subr.bf16.mxu0 %v3256
        %3337 = vmatpush1.bf16.msra.mxu0 %v3255
        %3338 = vmatprep.subr.bf16.mxu0 0
        %3339 = vmatpush1.bf16.msra.mxu0 0
        %3340 = vmatprep.subr.bf16.mxu0 0
        %3341 = vmatpush1.bf16.msra.mxu0 0
        %3342 = vmatprep.subr.bf16.mxu0 0
        %3343 = vmatpush1.bf16.msra.mxu0 0
        %3344 = vmatprep.subr.bf16.mxu0 0
        %3345 = vmatpush1.bf16.msra.mxu0 0
        %3346 = vmatprep.subr.bf16.mxu0 0
        %3347 = vmatpush1.bf16.msra.mxu0 0
        %3348 = vmatprep.subr.bf16.mxu0 0
        %3349 = vmatpush1.bf16.msra.mxu0 0
        %3350 = vmatprep.subr.bf16.mxu0 0
        %3351 = vmatpush1.bf16.msra.mxu0 0
        %3352 = vmatprep.subr.bf16.mxu0 0
        %3353 = vmatpush1.bf16.msra.mxu0 0
        %3354 = vmatprep.subr.bf16.mxu0 0
        %3355 = vmatpush1.bf16.msra.mxu0 0
        %3356 = vmatprep.subr.bf16.mxu0 0
        %3357 = vmatpush1.bf16.msra.mxu0 0
        %3358 = vmatprep.subr.bf16.mxu0 0
        %3359 = vmatpush1.bf16.msra.mxu0 0
        %3360 = vmatprep.subr.bf16.mxu0 0
        %3361 = vmatpush1.bf16.msra.mxu0 0
        %3362 = vmatprep.subr.bf16.mxu0 0
        %3363 = vmatpush1.bf16.msra.mxu0 0
        %3364 = vmatprep.subr.bf16.mxu0 0
        %3365 = vmatpush1.bf16.msra.mxu0 0
        %3366 = vmatprep.mubr.bf16.mxu0 0
        %3367 = vmatmul.mubr.bf16.gmra.mrb[0].mxu0 %v1760
        %v3368 = vpop.f32.mrb[0].mxu0
        %v3369 = vadd.f32 %v3328, %v3368
        %v3370 = vpop.f32.mrb[0].mxu0
        %v3371 = vadd.f32 %v3330, %v3370
        %v3372 = vpop.f32.mrb[0].mxu0
        %v3373 = vpop.f32.mrb[0].mxu0
        %3374 = vdwg.mxu0
        %v3375 = vadd.f32 %v3074, %v3369
        %v3376 = vadd.f32 %v3075, %v3371
        %v3377 = vmul.f32 %v3375, %v1851
        %v3378 = vmul.f32 %v3376, %v1855
        %v3379 = vadd.f32 %v3377, %v1865
        %v3380 = vadd.f32 %v3378, %v1869
        %v3381 = vmax.f32 %v3379, 0.0
        %v3382 = vmax.f32 %v3380, 0.0
        %v3383 = vmax.f32 %v1874, %v3381
        %v3384 = vmax.f32 %v1875, %v3382
        %3385 = vmatprep.subr.bf16.mxu0 %v436
        %3386 = vmatpush1.bf16.msra.mxu0 %v435
        %3387 = vmatprep.subr.bf16.mxu0 %v438
        %3388 = vmatpush1.bf16.msra.mxu0 %v437
        %3389 = vmatprep.subr.bf16.mxu0 %v440
        %3390 = vmatpush1.bf16.msra.mxu0 %v439
        %3391 = vmatprep.subr.bf16.mxu0 %v442
        %3392 = vmatpush1.bf16.msra.mxu0 %v441
        %3393 = vmatprep.subr.bf16.mxu0 %v444
        %3394 = vmatpush1.bf16.msra.mxu0 %v443
        %3395 = vmatprep.subr.bf16.mxu0 %v446
        %3396 = vmatpush1.bf16.msra.mxu0 %v445
        %3397 = vmatprep.subr.bf16.mxu0 %v448
        %3398 = vmatpush1.bf16.msra.mxu0 %v447
        %3399 = vmatprep.subr.bf16.mxu0 %v450
        %3400 = vmatpush1.bf16.msra.mxu0 %v449
        %3401 = vmatprep.subr.bf16.mxu0 %v452
        %3402 = vmatpush1.bf16.msra.mxu0 %v451
        %3403 = vmatprep.subr.bf16.mxu0 %v454
        %3404 = vmatpush1.bf16.msra.mxu0 %v453
        %3405 = vmatprep.subr.bf16.mxu0 %v456
        %3406 = vmatpush1.bf16.msra.mxu0 %v455
        %3407 = vmatprep.subr.bf16.mxu0 %v458
        %3408 = vmatpush1.bf16.msra.mxu0 %v457
        %3409 = vmatprep.subr.bf16.mxu0 %v460
        %3410 = vmatpush1.bf16.msra.mxu0 %v459
        %3411 = vmatprep.subr.bf16.mxu0 %v462
        %3412 = vmatpush1.bf16.msra.mxu0 %v461
        %3413 = vmatprep.subr.bf16.mxu0 %v464
        %3414 = vmatpush1.bf16.msra.mxu0 %v463
        %3415 = vmatprep.subr.bf16.mxu0 %v466
        %3416 = vmatpush1.bf16.msra.mxu0 %v465
        %3417 = vmatprep.mubr.bf16.mxu0 %v918
        %3418 = vmatmul.mubr.bf16.gmra.mrb[0].mxu0 %v911
        %v3419 = vpop.f32.mrb[0].mxu0
        %v3420 = vadd.f32 0.0, %v3419
        %v3421 = vpop.f32.mrb[0].mxu0
        %v3422 = vadd.f32 0.0, %v3421
        %v3423 = vpop.f32.mrb[0].mxu0
        %v3424 = vpop.f32.mrb[0].mxu0
        %3425 = vdwg.mxu0
        %3426 = vmatprep.subr.bf16.mxu0 %v468
        %3427 = vmatpush1.bf16.msra.mxu0 %v467
        %3428 = vmatprep.subr.bf16.mxu0 %v470
        %3429 = vmatpush1.bf16.msra.mxu0 %v469
        %3430 = vmatprep.subr.bf16.mxu0 0
        %3431 = vmatpush1.bf16.msra.mxu0 0
        %3432 = vmatprep.subr.bf16.mxu0 0
        %3433 = vmatpush1.bf16.msra.mxu0 0
        %3434 = vmatprep.subr.bf16.mxu0 0
        %3435 = vmatpush1.bf16.msra.mxu0 0
        %3436 = vmatprep.subr.bf16.mxu0 0
        %3437 = vmatpush1.bf16.msra.mxu0 0
        %3438 = vmatprep.subr.bf16.mxu0 0
        %3439 = vmatpush1.bf16.msra.mxu0 0
        %3440 = vmatprep.subr.bf16.mxu0 0
        %3441 = vmatpush1.bf16.msra.mxu0 0
        %3442 = vmatprep.subr.bf16.mxu0 0
        %3443 = vmatpush1.bf16.msra.mxu0 0
        %3444 = vmatprep.subr.bf16.mxu0 0
        %3445 = vmatpush1.bf16.msra.mxu0 0
        %3446 = vmatprep.subr.bf16.mxu0 0
        %3447 = vmatpush1.bf16.msra.mxu0 0
        %3448 = vmatprep.subr.bf16.mxu0 0
        %3449 = vmatpush1.bf16.msra.mxu0 0
        %3450 = vmatprep.subr.bf16.mxu0 0
        %3451 = vmatpush1.bf16.msra.mxu0 0
        %3452 = vmatprep.subr.bf16.mxu0 0
        %3453 = vmatpush1.bf16.msra.mxu0 0
        %3454 = vmatprep.subr.bf16.mxu0 0
        %3455 = vmatpush1.bf16.msra.mxu0 0
        %3456 = vmatprep.subr.bf16.mxu0 0
        %3457 = vmatpush1.bf16.msra.mxu0 0
        %3458 = vmatprep.mubr.bf16.mxu0 0
        %3459 = vmatmul.mubr.bf16.gmra.mrb[0].mxu0 %v1108
        %v3460 = vpop.f32.mrb[0].mxu0
        %v3461 = vadd.f32 %v3420, %v3460
        %v3462 = vpop.f32.mrb[0].mxu0
        %v3463 = vadd.f32 %v3422, %v3462
        %v3464 = vpop.f32.mrb[0].mxu0
        %v3465 = vpop.f32.mrb[0].mxu0
        %3466 = vdwg.mxu0
        %3467 = vmatprep.subr.bf16.mxu0 %v712
        %3468 = vmatpush1.bf16.msra.mxu0 %v711
        %3469 = vmatprep.subr.bf16.mxu0 %v714
        %3470 = vmatpush1.bf16.msra.mxu0 %v713
        %3471 = vmatprep.subr.bf16.mxu0 %v716
        %3472 = vmatpush1.bf16.msra.mxu0 %v715
        %3473 = vmatprep.subr.bf16.mxu0 %v718
        %3474 = vmatpush1.bf16.msra.mxu0 %v717
        %3475 = vmatprep.subr.bf16.mxu0 %v720
        %3476 = vmatpush1.bf16.msra.mxu0 %v719
        %3477 = vmatprep.subr.bf16.mxu0 %v722
        %3478 = vmatpush1.bf16.msra.mxu0 %v721
        %3479 = vmatprep.subr.bf16.mxu0 %v724
        %3480 = vmatpush1.bf16.msra.mxu0 %v723
        %3481 = vmatprep.subr.bf16.mxu0 %v726
        %3482 = vmatpush1.bf16.msra.mxu0 %v725
        %3483 = vmatprep.subr.bf16.mxu0 %v728
        %3484 = vmatpush1.bf16.msra.mxu0 %v727
        %3485 = vmatprep.subr.bf16.mxu0 %v730
        %3486 = vmatpush1.bf16.msra.mxu0 %v729
        %3487 = vmatprep.subr.bf16.mxu0 %v732
        %3488 = vmatpush1.bf16.msra.mxu0 %v731
        %3489 = vmatprep.subr.bf16.mxu0 %v734
        %3490 = vmatpush1.bf16.msra.mxu0 %v733
        %3491 = vmatprep.subr.bf16.mxu0 %v736
        %3492 = vmatpush1.bf16.msra.mxu0 %v735
        %3493 = vmatprep.subr.bf16.mxu0 %v738
        %3494 = vmatpush1.bf16.msra.mxu0 %v737
        %3495 = vmatprep.subr.bf16.mxu0 %v740
        %3496 = vmatpush1.bf16.msra.mxu0 %v739
        %3497 = vmatprep.subr.bf16.mxu0 %v742
        %3498 = vmatpush1.bf16.msra.mxu0 %v741
        %3499 = vmatprep.mubr.bf16.mxu0 %v323
        %3500 = vmatmul.mubr.bf16.gmra.mrb[0].mxu0 %v322
        %v3501 = vpop.f32.mrb[0].mxu0
        %v3502 = vadd.f32 %v3461, %v3501
        %v3503 = vpop.f32.mrb[0].mxu0
        %v3504 = vadd.f32 %v3463, %v3503
        %v3505 = vpop.f32.mrb[0].mxu0
        %v3506 = vpop.f32.mrb[0].mxu0
        %3507 = vdwg.mxu0
        %3508 = vmatprep.subr.bf16.mxu0 %v744
        %3509 = vmatpush1.bf16.msra.mxu0 %v743
        %3510 = vmatprep.subr.bf16.mxu0 %v746
        %3511 = vmatpush1.bf16.msra.mxu0 %v745
        %3512 = vmatprep.subr.bf16.mxu0 0
        %3513 = vmatpush1.bf16.msra.mxu0 0
        %3514 = vmatprep.subr.bf16.mxu0 0
        %3515 = vmatpush1.bf16.msra.mxu0 0
        %3516 = vmatprep.subr.bf16.mxu0 0
        %3517 = vmatpush1.bf16.msra.mxu0 0
        %3518 = vmatprep.subr.bf16.mxu0 0
        %3519 = vmatpush1.bf16.msra.mxu0 0
        %3520 = vmatprep.subr.bf16.mxu0 0
        %3521 = vmatpush1.bf16.msra.mxu0 0
        %3522 = vmatprep.subr.bf16.mxu0 0
        %3523 = vmatpush1.bf16.msra.mxu0 0
        %3524 = vmatprep.subr.bf16.mxu0 0
        %3525 = vmatpush1.bf16.msra.mxu0 0
        %3526 = vmatprep.subr.bf16.mxu0 0
        %3527 = vmatpush1.bf16.msra.mxu0 0
        %3528 = vmatprep.subr.bf16.mxu0 0
        %3529 = vmatpush1.bf16.msra.mxu0 0
        %3530 = vmatprep.subr.bf16.mxu0 0
        %3531 = vmatpush1.bf16.msra.mxu0 0
        %3532 = vmatprep.subr.bf16.mxu0 0
        %3533 = vmatpush1.bf16.msra.mxu0 0
        %3534 = vmatprep.subr.bf16.mxu0 0
        %3535 = vmatpush1.bf16.msra.mxu0 0
        %3536 = vmatprep.subr.bf16.mxu0 0
        %3537 = vmatpush1.bf16.msra.mxu0 0
        %3538 = vmatprep.subr.bf16.mxu0 0
        %3539 = vmatpush1.bf16.msra.mxu0 0
        %3540 = vmatprep.mubr.bf16.mxu0 0
        %3541 = vmatmul.mubr.bf16.gmra.mrb[0].mxu0 %v509
        %v3542 = vpop.f32.mrb[0].mxu0
        %v3543 = vadd.f32 %v3502, %v3542
        %v3544 = vpop.f32.mrb[0].mxu0
        %v3545 = vadd.f32 %v3504, %v3544
        %v3546 = vpop.f32.mrb[0].mxu0
        %v3547 = vpop.f32.mrb[0].mxu0
        %3548 = vdwg.mxu0
        %3549 = vmatprep.subr.bf16.mxu0 %v1036
        %3550 = vmatpush1.bf16.msra.mxu0 %v1035
        %3551 = vmatprep.subr.bf16.mxu0 %v1038
        %3552 = vmatpush1.bf16.msra.mxu0 %v1037
        %3553 = vmatprep.subr.bf16.mxu0 %v1040
        %3554 = vmatpush1.bf16.msra.mxu0 %v1039
        %3555 = vmatprep.subr.bf16.mxu0 %v1042
        %3556 = vmatpush1.bf16.msra.mxu0 %v1041
        %3557 = vmatprep.subr.bf16.mxu0 %v1044
        %3558 = vmatpush1.bf16.msra.mxu0 %v1043
        %3559 = vmatprep.subr.bf16.mxu0 %v1046
        %3560 = vmatpush1.bf16.msra.mxu0 %v1045
        %3561 = vmatprep.subr.bf16.mxu0 %v1048
        %3562 = vmatpush1.bf16.msra.mxu0 %v1047
        %3563 = vmatprep.subr.bf16.mxu0 %v1050
        %3564 = vmatpush1.bf16.msra.mxu0 %v1049
        %3565 = vmatprep.subr.bf16.mxu0 %v1052
        %3566 = vmatpush1.bf16.msra.mxu0 %v1051
        %3567 = vmatprep.subr.bf16.mxu0 %v1054
        %3568 = vmatpush1.bf16.msra.mxu0 %v1053
        %3569 = vmatprep.subr.bf16.mxu0 %v1056
        %3570 = vmatpush1.bf16.msra.mxu0 %v1055
        %3571 = vmatprep.subr.bf16.mxu0 %v1058
        %3572 = vmatpush1.bf16.msra.mxu0 %v1057
        %3573 = vmatprep.subr.bf16.mxu0 %v1060
        %3574 = vmatpush1.bf16.msra.mxu0 %v1059
        %3575 = vmatprep.subr.bf16.mxu0 %v1062
        %3576 = vmatpush1.bf16.msra.mxu0 %v1061
        %3577 = vmatprep.subr.bf16.mxu0 %v1064
        %3578 = vmatpush1.bf16.msra.mxu0 %v1063
        %3579 = vmatprep.subr.bf16.mxu0 %v1066
        %3580 = vmatpush1.bf16.msra.mxu0 %v1065
        %3581 = vmatprep.mubr.bf16.mxu0 %v1244
        %3582 = vmatmul.mubr.bf16.gmra.mrb[0].mxu0 %v1237
        %v3583 = vpop.f32.mrb[0].mxu0
        %v3584 = vadd.f32 0.0, %v3583
        %v3585 = vpop.f32.mrb[0].mxu0
        %v3586 = vadd.f32 0.0, %v3585
        %v3587 = vpop.f32.mrb[0].mxu0
        %v3588 = vpop.f32.mrb[0].mxu0
        %3589 = vdwg.mxu0
        %3590 = vmatprep.subr.bf16.mxu0 %v1068
        %3591 = vmatpush1.bf16.msra.mxu0 %v1067
        %3592 = vmatprep.subr.bf16.mxu0 %v1070
        %3593 = vmatpush1.bf16.msra.mxu0 %v1069
        %3594 = vmatprep.subr.bf16.mxu0 0
        %3595 = vmatpush1.bf16.msra.mxu0 0
        %3596 = vmatprep.subr.bf16.mxu0 0
        %3597 = vmatpush1.bf16.msra.mxu0 0
        %3598 = vmatprep.subr.bf16.mxu0 0
        %3599 = vmatpush1.bf16.msra.mxu0 0
        %3600 = vmatprep.subr.bf16.mxu0 0
        %3601 = vmatpush1.bf16.msra.mxu0 0
        %3602 = vmatprep.subr.bf16.mxu0 0
        %3603 = vmatpush1.bf16.msra.mxu0 0
        %3604 = vmatprep.subr.bf16.mxu0 0
        %3605 = vmatpush1.bf16.msra.mxu0 0
        %3606 = vmatprep.subr.bf16.mxu0 0
        %3607 = vmatpush1.bf16.msra.mxu0 0
        %3608 = vmatprep.subr.bf16.mxu0 0
        %3609 = vmatpush1.bf16.msra.mxu0 0
        %3610 = vmatprep.subr.bf16.mxu0 0
        %3611 = vmatpush1.bf16.msra.mxu0 0
        %3612 = vmatprep.subr.bf16.mxu0 0
        %3613 = vmatpush1.bf16.msra.mxu0 0
        %3614 = vmatprep.subr.bf16.mxu0 0
        %3615 = vmatpush1.bf16.msra.mxu0 0
        %3616 = vmatprep.subr.bf16.mxu0 0
        %3617 = vmatpush1.bf16.msra.mxu0 0
        %3618 = vmatprep.subr.bf16.mxu0 0
        %3619 = vmatpush1.bf16.msra.mxu0 0
        %3620 = vmatprep.subr.bf16.mxu0 0
        %3621 = vmatpush1.bf16.msra.mxu0 0
        %3622 = vmatprep.mubr.bf16.mxu0 0
        %3623 = vmatmul.mubr.bf16.gmra.mrb[0].mxu0 %v1434
        %v3624 = vpop.f32.mrb[0].mxu0
        %v3625 = vadd.f32 %v3584, %v3624
        %v3626 = vpop.f32.mrb[0].mxu0
        %v3627 = vadd.f32 %v3586, %v3626
        %v3628 = vpop.f32.mrb[0].mxu0
        %v3629 = vpop.f32.mrb[0].mxu0
        %3630 = vdwg.mxu0
        %v3631 = vadd.f32 %v3543, %v3625
        %v3632 = vadd.f32 %v3545, %v3627
        %3633 = vmatprep.subr.bf16.mxu0 %v1362
        %3634 = vmatpush1.bf16.msra.mxu0 %v1361
        %3635 = vmatprep.subr.bf16.mxu0 %v1364
        %3636 = vmatpush1.bf16.msra.mxu0 %v1363
        %3637 = vmatprep.subr.bf16.mxu0 %v1366
        %3638 = vmatpush1.bf16.msra.mxu0 %v1365
        %3639 = vmatprep.subr.bf16.mxu0 %v1368
        %3640 = vmatpush1.bf16.msra.mxu0 %v1367
        %3641 = vmatprep.subr.bf16.mxu0 %v1370
        %3642 = vmatpush1.bf16.msra.mxu0 %v1369
        %3643 = vmatprep.subr.bf16.mxu0 %v1372
        %3644 = vmatpush1.bf16.msra.mxu0 %v1371
        %3645 = vmatprep.subr.bf16.mxu0 %v1374
        %3646 = vmatpush1.bf16.msra.mxu0 %v1373
        %3647 = vmatprep.subr.bf16.mxu0 %v1376
        %3648 = vmatpush1.bf16.msra.mxu0 %v1375
        %3649 = vmatprep.subr.bf16.mxu0 %v1378
        %3650 = vmatpush1.bf16.msra.mxu0 %v1377
        %3651 = vmatprep.subr.bf16.mxu0 %v1380
        %3652 = vmatpush1.bf16.msra.mxu0 %v1379
        %3653 = vmatprep.subr.bf16.mxu0 %v1382
        %3654 = vmatpush1.bf16.msra.mxu0 %v1381
        %3655 = vmatprep.subr.bf16.mxu0 %v1384
        %3656 = vmatpush1.bf16.msra.mxu0 %v1383
        %3657 = vmatprep.subr.bf16.mxu0 %v1386
        %3658 = vmatpush1.bf16.msra.mxu0 %v1385
        %3659 = vmatprep.subr.bf16.mxu0 %v1388
        %3660 = vmatpush1.bf16.msra.mxu0 %v1387
        %3661 = vmatprep.subr.bf16.mxu0 %v1390
        %3662 = vmatpush1.bf16.msra.mxu0 %v1389
        %3663 = vmatprep.subr.bf16.mxu0 %v1392
        %3664 = vmatpush1.bf16.msra.mxu0 %v1391
        %3665 = vmatprep.mubr.bf16.mxu0 %v1575
        %3666 = vmatmul.mubr.bf16.gmra.mrb[0].mxu0 %v1574
        %v3667 = vpop.f32.mrb[0].mxu0
        %v3668 = vadd.f32 0.0, %v3667
        %v3669 = vpop.f32.mrb[0].mxu0
        %v3670 = vadd.f32 0.0, %v3669
        %v3671 = vpop.f32.mrb[0].mxu0
        %v3672 = vpop.f32.mrb[0].mxu0
        %3673 = vdwg.mxu0
        %3674 = vmatprep.subr.bf16.mxu0 %v1394
        %3675 = vmatpush1.bf16.msra.mxu0 %v1393
        %3676 = vmatprep.subr.bf16.mxu0 %v1396
        %3677 = vmatpush1.bf16.msra.mxu0 %v1395
        %3678 = vmatprep.subr.bf16.mxu0 0
        %3679 = vmatpush1.bf16.msra.mxu0 0
        %3680 = vmatprep.subr.bf16.mxu0 0
        %3681 = vmatpush1.bf16.msra.mxu0 0
        %3682 = vmatprep.subr.bf16.mxu0 0
        %3683 = vmatpush1.bf16.msra.mxu0 0
        %3684 = vmatprep.subr.bf16.mxu0 0
        %3685 = vmatpush1.bf16.msra.mxu0 0
        %3686 = vmatprep.subr.bf16.mxu0 0
        %3687 = vmatpush1.bf16.msra.mxu0 0
        %3688 = vmatprep.subr.bf16.mxu0 0
        %3689 = vmatpush1.bf16.msra.mxu0 0
        %3690 = vmatprep.subr.bf16.mxu0 0
        %3691 = vmatpush1.bf16.msra.mxu0 0
        %3692 = vmatprep.subr.bf16.mxu0 0
        %3693 = vmatpush1.bf16.msra.mxu0 0
        %3694 = vmatprep.subr.bf16.mxu0 0
        %3695 = vmatpush1.bf16.msra.mxu0 0
        %3696 = vmatprep.subr.bf16.mxu0 0
        %3697 = vmatpush1.bf16.msra.mxu0 0
        %3698 = vmatprep.subr.bf16.mxu0 0
        %3699 = vmatpush1.bf16.msra.mxu0 0
        %3700 = vmatprep.subr.bf16.mxu0 0
        %3701 = vmatpush1.bf16.msra.mxu0 0
        %3702 = vmatprep.subr.bf16.mxu0 0
        %3703 = vmatpush1.bf16.msra.mxu0 0
        %3704 = vmatprep.subr.bf16.mxu0 0
        %3705 = vmatpush1.bf16.msra.mxu0 0
        %3706 = vmatprep.mubr.bf16.mxu0 0
        %3707 = vmatmul.mubr.bf16.gmra.mrb[0].mxu0 %v1760
        %v3708 = vpop.f32.mrb[0].mxu0
        %v3709 = vadd.f32 %v3668, %v3708
        %v3710 = vpop.f32.mrb[0].mxu0
        %v3711 = vadd.f32 %v3670, %v3710
        %v3712 = vpop.f32.mrb[0].mxu0
        %v3713 = vpop.f32.mrb[0].mxu0
        %3714 = vdwg.mxu0
        %v3715 = vadd.f32 %v3631, %v3709
        %v3716 = vadd.f32 %v3632, %v3711
        %v3717 = vld [vmem:[%s277] sm:$0xee]
        %v3718 = vld [vmem:[%s277 + $0x8] sm:$0xe]
        %v3719 = vld [vmem:[%s277 + $0xc] sm:$0x11]
        %v3720 = vld [vmem:[%s277 + $0x14] sm:$0x1]
        %v3725 = vunpack.c.l.b16 %v3717
        %v3726 = vunpack.c.h.b16 %v3717
        %v3727 = vunpack.c.l.b16 %v3718
        %v3728 = vunpack.c.l.b16 %v3719
        %v3729 = vunpack.c.h.b16 %v3719
        %v3730 = vunpack.c.l.b16 %v3720
        %v3731 = vpack.c.b16 %v3728, %v3725
        %v3732 = vpack.c.b16 %v3729, %v3726
        %v3733 = vpack.c.b16 %v3730, %v3727
        %v3734 = vrot.slane %v3731, 1
        %v3735 = vrot.slane %v3732, 1
        %v3736 = vrot.slane %v3733, 1
        %v3740 = vsel %vm507, %v3736, 0
        %3742 = vmatprep.subr.bf16.mxu0 %v1688
        %3743 = vmatpush1.bf16.msra.mxu0 %v1687
        %3744 = vmatprep.subr.bf16.mxu0 %v1690
        %3745 = vmatpush1.bf16.msra.mxu0 %v1689
        %3746 = vmatprep.subr.bf16.mxu0 %v1692
        %3747 = vmatpush1.bf16.msra.mxu0 %v1691
        %3748 = vmatprep.subr.bf16.mxu0 %v1694
        %3749 = vmatpush1.bf16.msra.mxu0 %v1693
        %3750 = vmatprep.subr.bf16.mxu0 %v1696
        %3751 = vmatpush1.bf16.msra.mxu0 %v1695
        %3752 = vmatprep.subr.bf16.mxu0 %v1698
        %3753 = vmatpush1.bf16.msra.mxu0 %v1697
        %3754 = vmatprep.subr.bf16.mxu0 %v1700
        %3755 = vmatpush1.bf16.msra.mxu0 %v1699
        %3756 = vmatprep.subr.bf16.mxu0 %v1702
        %3757 = vmatpush1.bf16.msra.mxu0 %v1701
        %3758 = vmatprep.subr.bf16.mxu0 %v1704
        %3759 = vmatpush1.bf16.msra.mxu0 %v1703
        %3760 = vmatprep.subr.bf16.mxu0 %v1706
        %3761 = vmatpush1.bf16.msra.mxu0 %v1705
        %3762 = vmatprep.subr.bf16.mxu0 %v1708
        %3763 = vmatpush1.bf16.msra.mxu0 %v1707
        %3764 = vmatprep.subr.bf16.mxu0 %v1710
        %3765 = vmatpush1.bf16.msra.mxu0 %v1709
        %3766 = vmatprep.subr.bf16.mxu0 %v1712
        %3767 = vmatpush1.bf16.msra.mxu0 %v1711
        %3768 = vmatprep.subr.bf16.mxu0 %v1714
        %3769 = vmatpush1.bf16.msra.mxu0 %v1713
        %3770 = vmatprep.subr.bf16.mxu0 %v1716
        %3771 = vmatpush1.bf16.msra.mxu0 %v1715
        %3772 = vmatprep.subr.bf16.mxu0 %v1718
        %3773 = vmatpush1.bf16.msra.mxu0 %v1717
        %3774 = vmatprep.mubr.bf16.mxu0 %v3735
        %3775 = vmatmul.mubr.bf16.gmra.mrb[0].mxu0 %v3734
        %v3776 = vpop.f32.mrb[0].mxu0
        %v3777 = vadd.f32 0.0, %v3776
        %v3778 = vpop.f32.mrb[0].mxu0
        %v3779 = vadd.f32 0.0, %v3778
        %v3780 = vpop.f32.mrb[0].mxu0
        %v3781 = vpop.f32.mrb[0].mxu0
        %3782 = vdwg.mxu0
        %3783 = vmatprep.subr.bf16.mxu0 %v1720
        %3784 = vmatpush1.bf16.msra.mxu0 %v1719
        %3785 = vmatprep.subr.bf16.mxu0 %v1722
        %3786 = vmatpush1.bf16.msra.mxu0 %v1721
        %3787 = vmatprep.subr.bf16.mxu0 0
        %3788 = vmatpush1.bf16.msra.mxu0 0
        %3789 = vmatprep.subr.bf16.mxu0 0
        %3790 = vmatpush1.bf16.msra.mxu0 0
        %3791 = vmatprep.subr.bf16.mxu0 0
        %3792 = vmatpush1.bf16.msra.mxu0 0
        %3793 = vmatprep.subr.bf16.mxu0 0
        %3794 = vmatpush1.bf16.msra.mxu0 0
        %3795 = vmatprep.subr.bf16.mxu0 0
        %3796 = vmatpush1.bf16.msra.mxu0 0
        %3797 = vmatprep.subr.bf16.mxu0 0
        %3798 = vmatpush1.bf16.msra.mxu0 0
        %3799 = vmatprep.subr.bf16.mxu0 0
        %3800 = vmatpush1.bf16.msra.mxu0 0
        %3801 = vmatprep.subr.bf16.mxu0 0
        %3802 = vmatpush1.bf16.msra.mxu0 0
        %3803 = vmatprep.subr.bf16.mxu0 0
        %3804 = vmatpush1.bf16.msra.mxu0 0
        %3805 = vmatprep.subr.bf16.mxu0 0
        %3806 = vmatpush1.bf16.msra.mxu0 0
        %3807 = vmatprep.subr.bf16.mxu0 0
        %3808 = vmatpush1.bf16.msra.mxu0 0
        %3809 = vmatprep.subr.bf16.mxu0 0
        %3810 = vmatpush1.bf16.msra.mxu0 0
        %3811 = vmatprep.subr.bf16.mxu0 0
        %3812 = vmatpush1.bf16.msra.mxu0 0
        %3813 = vmatprep.subr.bf16.mxu0 0
        %3814 = vmatpush1.bf16.msra.mxu0 0
        %3815 = vmatprep.mubr.bf16.mxu0 0
        %3816 = vmatmul.mubr.bf16.gmra.mrb[0].mxu0 %v3740
        %v3817 = vpop.f32.mrb[0].mxu0
        %v3818 = vadd.f32 %v3777, %v3817
        %v3819 = vpop.f32.mrb[0].mxu0
        %v3820 = vadd.f32 %v3779, %v3819
        %v3821 = vpop.f32.mrb[0].mxu0
        %v3822 = vpop.f32.mrb[0].mxu0
        %3823 = vdwg.mxu0
        %v3824 = vadd.f32 %v3715, %v3818
        %v3825 = vadd.f32 %v3716, %v3820
        %v3826 = vmul.f32 %v3824, %v1851
        %v3827 = vmul.f32 %v3825, %v1855
        %v3828 = vadd.f32 %v3826, %v1865
        %v3829 = vadd.f32 %v3827, %v1869
        %v3830 = vmax.f32 %v3828, 0.0
        %v3831 = vmax.f32 %v3829, 0.0
        %v3832 = vmax.f32 %v3383, %v3830
        %v3833 = vmax.f32 %v3384, %v3831
        %3834 = vmatprep.subr.bf16.mxu0 %v2059
        %3835 = vmatpush1.bf16.msra.mxu0 %v2058
        %3836 = vmatprep.subr.bf16.mxu0 %v2061
        %3837 = vmatpush1.bf16.msra.mxu0 %v2060
        %3838 = vmatprep.subr.bf16.mxu0 %v2063
        %3839 = vmatpush1.bf16.msra.mxu0 %v2062
        %3840 = vmatprep.subr.bf16.mxu0 %v2065
        %3841 = vmatpush1.bf16.msra.mxu0 %v2064
        %3842 = vmatprep.subr.bf16.mxu0 %v2067
        %3843 = vmatpush1.bf16.msra.mxu0 %v2066
        %3844 = vmatprep.subr.bf16.mxu0 %v2069
        %3845 = vmatpush1.bf16.msra.mxu0 %v2068
        %3846 = vmatprep.subr.bf16.mxu0 %v2071
        %3847 = vmatpush1.bf16.msra.mxu0 %v2070
        %3848 = vmatprep.subr.bf16.mxu0 %v2073
        %3849 = vmatpush1.bf16.msra.mxu0 %v2072
        %3850 = vmatprep.subr.bf16.mxu0 %v2075
        %3851 = vmatpush1.bf16.msra.mxu0 %v2074
        %3852 = vmatprep.subr.bf16.mxu0 %v2077
        %3853 = vmatpush1.bf16.msra.mxu0 %v2076
        %3854 = vmatprep.subr.bf16.mxu0 %v2079
        %3855 = vmatpush1.bf16.msra.mxu0 %v2078
        %3856 = vmatprep.subr.bf16.mxu0 %v2081
        %3857 = vmatpush1.bf16.msra.mxu0 %v2080
        %3858 = vmatprep.subr.bf16.mxu0 %v2083
        %3859 = vmatpush1.bf16.msra.mxu0 %v2082
        %3860 = vmatprep.subr.bf16.mxu0 %v2085
        %3861 = vmatpush1.bf16.msra.mxu0 %v2084
        %3862 = vmatprep.subr.bf16.mxu0 %v2087
        %3863 = vmatpush1.bf16.msra.mxu0 %v2086
        %3864 = vmatprep.subr.bf16.mxu0 %v2089
        %3865 = vmatpush1.bf16.msra.mxu0 %v2088
        %3866 = vmatprep.mubr.bf16.mxu0 %v918
        %3867 = vmatmul.mubr.bf16.gmra.mrb[0].mxu0 %v911
        %v3868 = vpop.f32.mrb[0].mxu0
        %v3869 = vadd.f32 0.0, %v3868
        %v3870 = vpop.f32.mrb[0].mxu0
        %v3871 = vadd.f32 0.0, %v3870
        %v3872 = vpop.f32.mrb[0].mxu0
        %v3873 = vpop.f32.mrb[0].mxu0
        %3874 = vdwg.mxu0
        %3875 = vmatprep.subr.bf16.mxu0 %v2091
        %3876 = vmatpush1.bf16.msra.mxu0 %v2090
        %3877 = vmatprep.subr.bf16.mxu0 %v2093
        %3878 = vmatpush1.bf16.msra.mxu0 %v2092
        %3879 = vmatprep.subr.bf16.mxu0 0
        %3880 = vmatpush1.bf16.msra.mxu0 0
        %3881 = vmatprep.subr.bf16.mxu0 0
        %3882 = vmatpush1.bf16.msra.mxu0 0
        %3883 = vmatprep.subr.bf16.mxu0 0
        %3884 = vmatpush1.bf16.msra.mxu0 0
        %3885 = vmatprep.subr.bf16.mxu0 0
        %3886 = vmatpush1.bf16.msra.mxu0 0
        %3887 = vmatprep.subr.bf16.mxu0 0
        %3888 = vmatpush1.bf16.msra.mxu0 0
        %3889 = vmatprep.subr.bf16.mxu0 0
        %3890 = vmatpush1.bf16.msra.mxu0 0
        %3891 = vmatprep.subr.bf16.mxu0 0
        %3892 = vmatpush1.bf16.msra.mxu0 0
        %3893 = vmatprep.subr.bf16.mxu0 0
        %3894 = vmatpush1.bf16.msra.mxu0 0
        %3895 = vmatprep.subr.bf16.mxu0 0
        %3896 = vmatpush1.bf16.msra.mxu0 0
        %3897 = vmatprep.subr.bf16.mxu0 0
        %3898 = vmatpush1.bf16.msra.mxu0 0
        %3899 = vmatprep.subr.bf16.mxu0 0
        %3900 = vmatpush1.bf16.msra.mxu0 0
        %3901 = vmatprep.subr.bf16.mxu0 0
        %3902 = vmatpush1.bf16.msra.mxu0 0
        %3903 = vmatprep.subr.bf16.mxu0 0
        %3904 = vmatpush1.bf16.msra.mxu0 0
        %3905 = vmatprep.subr.bf16.mxu0 0
        %3906 = vmatpush1.bf16.msra.mxu0 0
        %3907 = vmatprep.mubr.bf16.mxu0 0
        %3908 = vmatmul.mubr.bf16.gmra.mrb[0].mxu0 %v1108
        %v3909 = vpop.f32.mrb[0].mxu0
        %v3910 = vadd.f32 %v3869, %v3909
        %v3911 = vpop.f32.mrb[0].mxu0
        %v3912 = vadd.f32 %v3871, %v3911
        %v3913 = vpop.f32.mrb[0].mxu0
        %v3914 = vpop.f32.mrb[0].mxu0
        %3915 = vdwg.mxu0
        %3916 = vmatprep.subr.bf16.mxu0 %v2321
        %3917 = vmatpush1.bf16.msra.mxu0 %v2320
        %3918 = vmatprep.subr.bf16.mxu0 %v2323
        %3919 = vmatpush1.bf16.msra.mxu0 %v2322
        %3920 = vmatprep.subr.bf16.mxu0 %v2325
        %3921 = vmatpush1.bf16.msra.mxu0 %v2324
        %3922 = vmatprep.subr.bf16.mxu0 %v2327
        %3923 = vmatpush1.bf16.msra.mxu0 %v2326
        %3924 = vmatprep.subr.bf16.mxu0 %v2329
        %3925 = vmatpush1.bf16.msra.mxu0 %v2328
        %3926 = vmatprep.subr.bf16.mxu0 %v2331
        %3927 = vmatpush1.bf16.msra.mxu0 %v2330
        %3928 = vmatprep.subr.bf16.mxu0 %v2333
        %3929 = vmatpush1.bf16.msra.mxu0 %v2332
        %3930 = vmatprep.subr.bf16.mxu0 %v2335
        %3931 = vmatpush1.bf16.msra.mxu0 %v2334
        %3932 = vmatprep.subr.bf16.mxu0 %v2337
        %3933 = vmatpush1.bf16.msra.mxu0 %v2336
        %3934 = vmatprep.subr.bf16.mxu0 %v2339
        %3935 = vmatpush1.bf16.msra.mxu0 %v2338
        %3936 = vmatprep.subr.bf16.mxu0 %v2341
        %3937 = vmatpush1.bf16.msra.mxu0 %v2340
        %3938 = vmatprep.subr.bf16.mxu0 %v2343
        %3939 = vmatpush1.bf16.msra.mxu0 %v2342
        %3940 = vmatprep.subr.bf16.mxu0 %v2345
        %3941 = vmatpush1.bf16.msra.mxu0 %v2344
        %3942 = vmatprep.subr.bf16.mxu0 %v2347
        %3943 = vmatpush1.bf16.msra.mxu0 %v2346
        %3944 = vmatprep.subr.bf16.mxu0 %v2349
        %3945 = vmatpush1.bf16.msra.mxu0 %v2348
        %3946 = vmatprep.subr.bf16.mxu0 %v2351
        %3947 = vmatpush1.bf16.msra.mxu0 %v2350
        %3948 = vmatprep.mubr.bf16.mxu0 %v323
        %3949 = vmatmul.mubr.bf16.gmra.mrb[0].mxu0 %v322
        %v3950 = vpop.f32.mrb[0].mxu0
        %v3951 = vadd.f32 %v3910, %v3950
        %v3952 = vpop.f32.mrb[0].mxu0
        %v3953 = vadd.f32 %v3912, %v3952
        %v3954 = vpop.f32.mrb[0].mxu0
        %v3955 = vpop.f32.mrb[0].mxu0
        %3956 = vdwg.mxu0
        %3957 = vmatprep.subr.bf16.mxu0 %v2353
        %3958 = vmatpush1.bf16.msra.mxu0 %v2352
        %3959 = vmatprep.subr.bf16.mxu0 %v2355
        %3960 = vmatpush1.bf16.msra.mxu0 %v2354
        %3961 = vmatprep.subr.bf16.mxu0 0
        %3962 = vmatpush1.bf16.msra.mxu0 0
        %3963 = vmatprep.subr.bf16.mxu0 0
        %3964 = vmatpush1.bf16.msra.mxu0 0
        %3965 = vmatprep.subr.bf16.mxu0 0
        %3966 = vmatpush1.bf16.msra.mxu0 0
        %3967 = vmatprep.subr.bf16.mxu0 0
        %3968 = vmatpush1.bf16.msra.mxu0 0
        %3969 = vmatprep.subr.bf16.mxu0 0
        %3970 = vmatpush1.bf16.msra.mxu0 0
        %3971 = vmatprep.subr.bf16.mxu0 0
        %3972 = vmatpush1.bf16.msra.mxu0 0
        %3973 = vmatprep.subr.bf16.mxu0 0
        %3974 = vmatpush1.bf16.msra.mxu0 0
        %3975 = vmatprep.subr.bf16.mxu0 0
        %3976 = vmatpush1.bf16.msra.mxu0 0
        %3977 = vmatprep.subr.bf16.mxu0 0
        %3978 = vmatpush1.bf16.msra.mxu0 0
        %3979 = vmatprep.subr.bf16.mxu0 0
        %3980 = vmatpush1.bf16.msra.mxu0 0
        %3981 = vmatprep.subr.bf16.mxu0 0
        %3982 = vmatpush1.bf16.msra.mxu0 0
        %3983 = vmatprep.subr.bf16.mxu0 0
        %3984 = vmatpush1.bf16.msra.mxu0 0
        %3985 = vmatprep.subr.bf16.mxu0 0
        %3986 = vmatpush1.bf16.msra.mxu0 0
        %3987 = vmatprep.subr.bf16.mxu0 0
        %3988 = vmatpush1.bf16.msra.mxu0 0
        %3989 = vmatprep.mubr.bf16.mxu0 0
        %3990 = vmatmul.mubr.bf16.gmra.mrb[0].mxu0 %v509
        %v3991 = vpop.f32.mrb[0].mxu0
        %v3992 = vadd.f32 %v3951, %v3991
        %v3993 = vpop.f32.mrb[0].mxu0
        %v3994 = vadd.f32 %v3953, %v3993
        %v3995 = vpop.f32.mrb[0].mxu0
        %v3996 = vpop.f32.mrb[0].mxu0
        %3997 = vdwg.mxu0
        %3998 = vmatprep.subr.bf16.mxu0 %v2620
        %3999 = vmatpush1.bf16.msra.mxu0 %v2619
        %4000 = vmatprep.subr.bf16.mxu0 %v2622
        %4001 = vmatpush1.bf16.msra.mxu0 %v2621
        %4002 = vmatprep.subr.bf16.mxu0 %v2624
        %4003 = vmatpush1.bf16.msra.mxu0 %v2623
        %4004 = vmatprep.subr.bf16.mxu0 %v2626
        %4005 = vmatpush1.bf16.msra.mxu0 %v2625
        %4006 = vmatprep.subr.bf16.mxu0 %v2628
        %4007 = vmatpush1.bf16.msra.mxu0 %v2627
        %4008 = vmatprep.subr.bf16.mxu0 %v2630
        %4009 = vmatpush1.bf16.msra.mxu0 %v2629
        %4010 = vmatprep.subr.bf16.mxu0 %v2632
        %4011 = vmatpush1.bf16.msra.mxu0 %v2631
        %4012 = vmatprep.subr.bf16.mxu0 %v2634
        %4013 = vmatpush1.bf16.msra.mxu0 %v2633
        %4014 = vmatprep.subr.bf16.mxu0 %v2636
        %4015 = vmatpush1.bf16.msra.mxu0 %v2635
        %4016 = vmatprep.subr.bf16.mxu0 %v2638
        %4017 = vmatpush1.bf16.msra.mxu0 %v2637
        %4018 = vmatprep.subr.bf16.mxu0 %v2640
        %4019 = vmatpush1.bf16.msra.mxu0 %v2639
        %4020 = vmatprep.subr.bf16.mxu0 %v2642
        %4021 = vmatpush1.bf16.msra.mxu0 %v2641
        %4022 = vmatprep.subr.bf16.mxu0 %v2644
        %4023 = vmatpush1.bf16.msra.mxu0 %v2643
        %4024 = vmatprep.subr.bf16.mxu0 %v2646
        %4025 = vmatpush1.bf16.msra.mxu0 %v2645
        %4026 = vmatprep.subr.bf16.mxu0 %v2648
        %4027 = vmatpush1.bf16.msra.mxu0 %v2647
        %4028 = vmatprep.subr.bf16.mxu0 %v2650
        %4029 = vmatpush1.bf16.msra.mxu0 %v2649
        %4030 = vmatprep.mubr.bf16.mxu0 %v1244
        %4031 = vmatmul.mubr.bf16.gmra.mrb[0].mxu0 %v1237
        %v4032 = vpop.f32.mrb[0].mxu0
        %v4033 = vadd.f32 0.0, %v4032
        %v4034 = vpop.f32.mrb[0].mxu0
        %v4035 = vadd.f32 0.0, %v4034
        %v4036 = vpop.f32.mrb[0].mxu0
        %v4037 = vpop.f32.mrb[0].mxu0
        %4038 = vdwg.mxu0
        %4039 = vmatprep.subr.bf16.mxu0 %v2652
        %4040 = vmatpush1.bf16.msra.mxu0 %v2651
        %4041 = vmatprep.subr.bf16.mxu0 %v2654
        %4042 = vmatpush1.bf16.msra.mxu0 %v2653
        %4043 = vmatprep.subr.bf16.mxu0 0
        %4044 = vmatpush1.bf16.msra.mxu0 0
        %4045 = vmatprep.subr.bf16.mxu0 0
        %4046 = vmatpush1.bf16.msra.mxu0 0
        %4047 = vmatprep.subr.bf16.mxu0 0
        %4048 = vmatpush1.bf16.msra.mxu0 0
        %4049 = vmatprep.subr.bf16.mxu0 0
        %4050 = vmatpush1.bf16.msra.mxu0 0
        %4051 = vmatprep.subr.bf16.mxu0 0
        %4052 = vmatpush1.bf16.msra.mxu0 0
        %4053 = vmatprep.subr.bf16.mxu0 0
        %4054 = vmatpush1.bf16.msra.mxu0 0
        %4055 = vmatprep.subr.bf16.mxu0 0
        %4056 = vmatpush1.bf16.msra.mxu0 0
        %4057 = vmatprep.subr.bf16.mxu0 0
        %4058 = vmatpush1.bf16.msra.mxu0 0
        %4059 = vmatprep.subr.bf16.mxu0 0
        %4060 = vmatpush1.bf16.msra.mxu0 0
        %4061 = vmatprep.subr.bf16.mxu0 0
        %4062 = vmatpush1.bf16.msra.mxu0 0
        %4063 = vmatprep.subr.bf16.mxu0 0
        %4064 = vmatpush1.bf16.msra.mxu0 0
        %4065 = vmatprep.subr.bf16.mxu0 0
        %4066 = vmatpush1.bf16.msra.mxu0 0
        %4067 = vmatprep.subr.bf16.mxu0 0
        %4068 = vmatpush1.bf16.msra.mxu0 0
        %4069 = vmatprep.subr.bf16.mxu0 0
        %4070 = vmatpush1.bf16.msra.mxu0 0
        %4071 = vmatprep.mubr.bf16.mxu0 0
        %4072 = vmatmul.mubr.bf16.gmra.mrb[0].mxu0 %v1434
        %v4073 = vpop.f32.mrb[0].mxu0
        %v4074 = vadd.f32 %v4033, %v4073
        %v4075 = vpop.f32.mrb[0].mxu0
        %v4076 = vadd.f32 %v4035, %v4075
        %v4077 = vpop.f32.mrb[0].mxu0
        %v4078 = vpop.f32.mrb[0].mxu0
        %4079 = vdwg.mxu0
        %v4080 = vadd.f32 %v3992, %v4074
        %v4081 = vadd.f32 %v3994, %v4076
        %4082 = vmatprep.subr.bf16.mxu0 %v2921
        %4083 = vmatpush1.bf16.msra.mxu0 %v2920
        %4084 = vmatprep.subr.bf16.mxu0 %v2923
        %4085 = vmatpush1.bf16.msra.mxu0 %v2922
        %4086 = vmatprep.subr.bf16.mxu0 %v2925
        %4087 = vmatpush1.bf16.msra.mxu0 %v2924
        %4088 = vmatprep.subr.bf16.mxu0 %v2927
        %4089 = vmatpush1.bf16.msra.mxu0 %v2926
        %4090 = vmatprep.subr.bf16.mxu0 %v2929
        %4091 = vmatpush1.bf16.msra.mxu0 %v2928
        %4092 = vmatprep.subr.bf16.mxu0 %v2931
        %4093 = vmatpush1.bf16.msra.mxu0 %v2930
        %4094 = vmatprep.subr.bf16.mxu0 %v2933
        %4095 = vmatpush1.bf16.msra.mxu0 %v2932
        %4096 = vmatprep.subr.bf16.mxu0 %v2935
        %4097 = vmatpush1.bf16.msra.mxu0 %v2934
        %4098 = vmatprep.subr.bf16.mxu0 %v2937
        %4099 = vmatpush1.bf16.msra.mxu0 %v2936
        %4100 = vmatprep.subr.bf16.mxu0 %v2939
        %4101 = vmatpush1.bf16.msra.mxu0 %v2938
        %4102 = vmatprep.subr.bf16.mxu0 %v2941
        %4103 = vmatpush1.bf16.msra.mxu0 %v2940
        %4104 = vmatprep.subr.bf16.mxu0 %v2943
        %4105 = vmatpush1.bf16.msra.mxu0 %v2942
        %4106 = vmatprep.subr.bf16.mxu0 %v2945
        %4107 = vmatpush1.bf16.msra.mxu0 %v2944
        %4108 = vmatprep.subr.bf16.mxu0 %v2947
        %4109 = vmatpush1.bf16.msra.mxu0 %v2946
        %4110 = vmatprep.subr.bf16.mxu0 %v2949
        %4111 = vmatpush1.bf16.msra.mxu0 %v2948
        %4112 = vmatprep.subr.bf16.mxu0 %v2951
        %4113 = vmatpush1.bf16.msra.mxu0 %v2950
        %4114 = vmatprep.mubr.bf16.mxu0 %v1575
        %4115 = vmatmul.mubr.bf16.gmra.mrb[0].mxu0 %v1574
        %v4116 = vpop.f32.mrb[0].mxu0
        %v4117 = vadd.f32 0.0, %v4116
        %v4118 = vpop.f32.mrb[0].mxu0
        %v4119 = vadd.f32 0.0, %v4118
        %v4120 = vpop.f32.mrb[0].mxu0
        %v4121 = vpop.f32.mrb[0].mxu0
        %4122 = vdwg.mxu0
        %4123 = vmatprep.subr.bf16.mxu0 %v2953
        %4124 = vmatpush1.bf16.msra.mxu0 %v2952
        %4125 = vmatprep.subr.bf16.mxu0 %v2955
        %4126 = vmatpush1.bf16.msra.mxu0 %v2954
        %4127 = vmatprep.subr.bf16.mxu0 0
        %4128 = vmatpush1.bf16.msra.mxu0 0
        %4129 = vmatprep.subr.bf16.mxu0 0
        %4130 = vmatpush1.bf16.msra.mxu0 0
        %4131 = vmatprep.subr.bf16.mxu0 0
        %4132 = vmatpush1.bf16.msra.mxu0 0
        %4133 = vmatprep.subr.bf16.mxu0 0
        %4134 = vmatpush1.bf16.msra.mxu0 0
        %4135 = vmatprep.subr.bf16.mxu0 0
        %4136 = vmatpush1.bf16.msra.mxu0 0
        %4137 = vmatprep.subr.bf16.mxu0 0
        %4138 = vmatpush1.bf16.msra.mxu0 0
        %4139 = vmatprep.subr.bf16.mxu0 0
        %4140 = vmatpush1.bf16.msra.mxu0 0
        %4141 = vmatprep.subr.bf16.mxu0 0
        %4142 = vmatpush1.bf16.msra.mxu0 0
        %4143 = vmatprep.subr.bf16.mxu0 0
        %4144 = vmatpush1.bf16.msra.mxu0 0
        %4145 = vmatprep.subr.bf16.mxu0 0
        %4146 = vmatpush1.bf16.msra.mxu0 0
        %4147 = vmatprep.subr.bf16.mxu0 0
        %4148 = vmatpush1.bf16.msra.mxu0 0
        %4149 = vmatprep.subr.bf16.mxu0 0
        %4150 = vmatpush1.bf16.msra.mxu0 0
        %4151 = vmatprep.subr.bf16.mxu0 0
        %4152 = vmatpush1.bf16.msra.mxu0 0
        %4153 = vmatprep.subr.bf16.mxu0 0
        %4154 = vmatpush1.bf16.msra.mxu0 0
        %4155 = vmatprep.mubr.bf16.mxu0 0
        %4156 = vmatmul.mubr.bf16.gmra.mrb[0].mxu0 %v1760
        %v4157 = vpop.f32.mrb[0].mxu0
        %v4158 = vadd.f32 %v4117, %v4157
        %v4159 = vpop.f32.mrb[0].mxu0
        %v4160 = vadd.f32 %v4119, %v4159
        %v4161 = vpop.f32.mrb[0].mxu0
        %v4162 = vpop.f32.mrb[0].mxu0
        %4163 = vdwg.mxu0
        %v4164 = vadd.f32 %v4080, %v4158
        %v4165 = vadd.f32 %v4081, %v4160
        %4166 = vmatprep.subr.bf16.mxu0 %v3222
        %4167 = vmatpush1.bf16.msra.mxu0 %v3221
        %4168 = vmatprep.subr.bf16.mxu0 %v3224
        %4169 = vmatpush1.bf16.msra.mxu0 %v3223
        %4170 = vmatprep.subr.bf16.mxu0 %v3226
        %4171 = vmatpush1.bf16.msra.mxu0 %v3225
        %4172 = vmatprep.subr.bf16.mxu0 %v3228
        %4173 = vmatpush1.bf16.msra.mxu0 %v3227
        %4174 = vmatprep.subr.bf16.mxu0 %v3230
        %4175 = vmatpush1.bf16.msra.mxu0 %v3229
        %4176 = vmatprep.subr.bf16.mxu0 %v3232
        %4177 = vmatpush1.bf16.msra.mxu0 %v3231
        %4178 = vmatprep.subr.bf16.mxu0 %v3234
        %4179 = vmatpush1.bf16.msra.mxu0 %v3233
        %4180 = vmatprep.subr.bf16.mxu0 %v3236
        %4181 = vmatpush1.bf16.msra.mxu0 %v3235
        %4182 = vmatprep.subr.bf16.mxu0 %v3238
        %4183 = vmatpush1.bf16.msra.mxu0 %v3237
        %4184 = vmatprep.subr.bf16.mxu0 %v3240
        %4185 = vmatpush1.bf16.msra.mxu0 %v3239
        %4186 = vmatprep.subr.bf16.mxu0 %v3242
        %4187 = vmatpush1.bf16.msra.mxu0 %v3241
        %4188 = vmatprep.subr.bf16.mxu0 %v3244
        %4189 = vmatpush1.bf16.msra.mxu0 %v3243
        %4190 = vmatprep.subr.bf16.mxu0 %v3246
        %4191 = vmatpush1.bf16.msra.mxu0 %v3245
        %4192 = vmatprep.subr.bf16.mxu0 %v3248
        %4193 = vmatpush1.bf16.msra.mxu0 %v3247
        %4194 = vmatprep.subr.bf16.mxu0 %v3250
        %4195 = vmatpush1.bf16.msra.mxu0 %v3249
        %4196 = vmatprep.subr.bf16.mxu0 %v3252
        %4197 = vmatpush1.bf16.msra.mxu0 %v3251
        %4198 = vmatprep.mubr.bf16.mxu0 %v3735
        %4199 = vmatmul.mubr.bf16.gmra.mrb[0].mxu0 %v3734
        %v4200 = vpop.f32.mrb[0].mxu0
        %v4201 = vadd.f32 0.0, %v4200
        %v4202 = vpop.f32.mrb[0].mxu0
        %v4203 = vadd.f32 0.0, %v4202
        %v4204 = vpop.f32.mrb[0].mxu0
        %v4205 = vpop.f32.mrb[0].mxu0
        %4206 = vdwg.mxu0
        %4207 = vmatprep.subr.bf16.mxu0 %v3254
        %4208 = vmatpush1.bf16.msra.mxu0 %v3253
        %4209 = vmatprep.subr.bf16.mxu0 %v3256
        %4210 = vmatpush1.bf16.msra.mxu0 %v3255
        %4211 = vmatprep.subr.bf16.mxu0 0
        %4212 = vmatpush1.bf16.msra.mxu0 0
        %4213 = vmatprep.subr.bf16.mxu0 0
        %4214 = vmatpush1.bf16.msra.mxu0 0
        %4215 = vmatprep.subr.bf16.mxu0 0
        %4216 = vmatpush1.bf16.msra.mxu0 0
        %4217 = vmatprep.subr.bf16.mxu0 0
        %4218 = vmatpush1.bf16.msra.mxu0 0
        %4219 = vmatprep.subr.bf16.mxu0 0
        %4220 = vmatpush1.bf16.msra.mxu0 0
        %4221 = vmatprep.subr.bf16.mxu0 0
        %4222 = vmatpush1.bf16.msra.mxu0 0
        %4223 = vmatprep.subr.bf16.mxu0 0
        %4224 = vmatpush1.bf16.msra.mxu0 0
        %4225 = vmatprep.subr.bf16.mxu0 0
        %4226 = vmatpush1.bf16.msra.mxu0 0
        %4227 = vmatprep.subr.bf16.mxu0 0
        %4228 = vmatpush1.bf16.msra.mxu0 0
        %4229 = vmatprep.subr.bf16.mxu0 0
        %4230 = vmatpush1.bf16.msra.mxu0 0
        %4231 = vmatprep.subr.bf16.mxu0 0
        %4232 = vmatpush1.bf16.msra.mxu0 0
        %4233 = vmatprep.subr.bf16.mxu0 0
        %4234 = vmatpush1.bf16.msra.mxu0 0
        %4235 = vmatprep.subr.bf16.mxu0 0
        %4236 = vmatpush1.bf16.msra.mxu0 0
        %4237 = vmatprep.subr.bf16.mxu0 0
        %4238 = vmatpush1.bf16.msra.mxu0 0
        %4239 = vmatprep.mubr.bf16.mxu0 0
        %4240 = vmatmul.mubr.bf16.gmra.mrb[0].mxu0 %v3740
        %v4241 = vpop.f32.mrb[0].mxu0
        %v4242 = vadd.f32 %v4201, %v4241
        %v4243 = vpop.f32.mrb[0].mxu0
        %v4244 = vadd.f32 %v4203, %v4243
        %v4245 = vpop.f32.mrb[0].mxu0
        %v4246 = vpop.f32.mrb[0].mxu0
        %4247 = vdwg.mxu0
        %v4248 = vadd.f32 %v4164, %v4242
        %v4249 = vadd.f32 %v4165, %v4244
        %v4250 = vmul.f32 %v4248, %v1851
        %v4251 = vmul.f32 %v4249, %v1855
        %v4252 = vadd.f32 %v4250, %v1865
        %v4253 = vadd.f32 %v4251, %v1869
        %v4254 = vmax.f32 %v4252, 0.0
        %v4255 = vmax.f32 %v4253, 0.0
        %v4256 = vmax.f32 %v3832, %v4254
        %v4257 = vmax.f32 %v3833, %v4255
        %4258 = vst [vmem:[%s237] sm:$0x7f] %v4256
        %vm4259 = vcmask 784384
        %4260 = vst.msk [vmem:[%s237 + $0x8] sm:$0x7f] %vm4259, %v4257
        %p4261 = scmp.lt.s32.totalorder %s17, 1
        %s4262 = scalar_select %p4261, %s17, 1
        %s4263 = smul.addr %s4262, 2
        %s4264 = smul.addr %s4263, 8
        %s4265 = scalar_lea.vmem %s4, %s4264
        // Predicated region
        $region49: #{net_fashionmnist_forward.4} parent=35 // pred_check
          %p4266 = pneg %p124
        $region50: #{net_fashionmnist_forward.4} parent=35 // pred_check_branch
          %4268 = sbr.rel (%p4266) target = $region52
        $region51: #{net_fashionmnist_forward.4} parent=35 // pred_region
          _
        $region52: #{net_fashionmnist_forward.4} parent=35 // pred_fallthru
          _
      $region36: #{net_fashionmnist_forward.4} parent=5 // pred_fallthru
        _
      %p4269 = scmp.le.s32.totalorder 2, %s12
      // Predicated region
      $region53: #{net_fashionmnist_forward.4} parent=5 // pred_check
        %p4270 = pneg %p4269
      $region54: #{net_fashionmnist_forward.4} parent=5 // pred_check_branch
        %4272 = sbr.rel (%p4270) target = $region56
      $region55: #{net_fashionmnist_forward.4} parent=5 // pred_region
        %s4273 = ssub.s32 %s12, 2
        // Predicated region
        $region57: #{net_fashionmnist_forward.4} parent=55 // pred_check
          %p4274 = pneg %p130
        $region58: #{net_fashionmnist_forward.4} parent=55 // pred_check_branch
          %4276 = sbr.rel (%p4274) target = $region60
        $region59: #{net_fashionmnist_forward.4} parent=55 // pred_region
          %p4277 = scmp.lt.s32.totalorder %s18, 1
          %s4278 = scalar_select %p4277, %s18, 1
          %s4279 = smul.addr %s4278, 2
          %s4280 = smul.addr %s4279, 8
          %s4281 = scalar_lea.vmem %s4, %s4280
        $region60: #{net_fashionmnist_forward.4} parent=55 // pred_fallthru
          _
      $region56: #{net_fashionmnist_forward.4} parent=5 // pred_fallthru
        _
    $region6: #{net_fashionmnist_forward.4} parent=1 // loop_footer
      %s16 = sadd.s32 1, %s12
    $region7: #{net_fashionmnist_forward.4} parent=1 // loop_footer_branch
      %11 = sbr.rel target = $region3
    $region8: #{net_fashionmnist_forward.4} parent=1 // loop_exit
      _
    %4282 = vsyncpa [#allocation3], 1
    %s4283 = scalar_lea.sflag [#allocation3], 1
    %4284 = vsyncpa %s4283, 1
    %4285 = vsyncpa [#allocation5], 1

</llo_original>
